<compile_context>
chip_gen: v5e
topology: v5e:2x2
jax: 0.10.0
libtpu: 0.0.40
codegen_flags: <defaults>
</compile_context>

<pallas_src>
from functools import partial

import jax
import jax.numpy as jnp
from jax.experimental import pallas as pl
from jax.experimental.pallas import tpu as pltpu

# ---- scaled-down roberta-large config (hidden 1024->128, 24 layers->2, 16 heads->4) ----
VOCAB = 100
PAD_ID = 1
MAX_POS = 40
D = 128            # hidden size
H = 4              # attention heads
DH = D // H        # head dim
INTER = 256        # FFN intermediate size
LAYERS = 2
NUM_CLASSES = 6
CLS_PAD = 128      # logits padded to a full lane width; sliced to NUM_CLASSES outside
LN_EPS = 1e-5


# ----------------------------- in-kernel helpers -----------------------------

def _mm(x, w_ref):
    """bf16 MXU matmul with f32 accumulation (weights stored bf16)."""
    return jnp.dot(x.astype(jnp.bfloat16), w_ref[...],
                   preferred_element_type=jnp.float32)


def _ln(x, g, b):
    mu = jnp.mean(x, axis=-1, keepdims=True)
    var = jnp.mean(jnp.square(x - mu), axis=-1, keepdims=True)
    return (x - mu) * jax.lax.rsqrt(var + LN_EPS) * g + b


def _gelu(x):
    # TODO(synk): HF roberta uses exact erf GELU; tanh approximation is TPU-safe.
    c = 0.7978845608028654
    return 0.5 * x * (1.0 + jnp.tanh(c * (x + 0.044715 * x * x * x)))


# ----------------------------- fused model kernel -----------------------------

def _model_kernel(B, S,
                  emb_ref, abias_ref, eg_ref, ebeta_ref,
                  wqkv_ref, bqkv_ref, wo_ref, bo_ref, ln1g_ref, ln1b_ref,
                  w1_ref, b1_ref, w2_ref, b2_ref, ln2g_ref, ln2b_ref,
                  wpool_ref, bpool_ref, wcls_ref, bcls_ref,
                  logits_ref, x_sc):
    """One grid step == one encoder layer.  Activations stay resident in VMEM (x_sc);
    the last grid step also runs the pooler + classifier."""
    layer = pl.program_id(0)
    BS = B * S

    # layer 0: embeddings -> LayerNorm (no residual)
    @pl.when(layer == 0)
    def _():
        x_sc[...] = _ln(emb_ref[...], eg_ref[...], ebeta_ref[...])

    x = x_sc[...]                                    # (B*S, D) f32, hidden = lane dim

    # ---- self-attention: fused QKV matmul, then packed block-diagonal heads ----
    qkv = _mm(x, wqkv_ref) + bqkv_ref[...]           # (B*S, 3D) f32
    qkv16 = qkv.astype(jnp.bfloat16)                 # single bf16 cast of activations

    def stack_heads(base):
        # move heads lane -> sublane once; packed rows ordered (h, b, s)
        return jnp.concatenate(
            [qkv16[:, base + h * DH: base + (h + 1) * DH] for h in range(H)], axis=0)

    q_st = stack_heads(0)                            # (H*B*S, DH) bf16
    k_st = stack_heads(D)                            # (H*B*S, DH) bf16
    v_st = stack_heads(2 * D)                        # (H*B*S, DH) bf16

    # one QK^T for all (b, h): (H*B*S, DH) x (DH, H*B*S)
    s = jax.lax.dot_general(q_st, k_st, (((1,), (1,)), ((), ())),
                            preferred_element_type=jnp.float32) * (1.0 / (DH ** 0.5))
    s = s + abias_ref[...]                           # block-diag mask + key-padding bias
    m = jnp.max(s, axis=-1, keepdims=True)
    p = jnp.exp(s - m)
    denom = jnp.sum(p, axis=-1, keepdims=True)
    p = p * pl.reciprocal(denom, approx=True)        # EUP slot, frees the VPU

    # one PV matmul for all (b, h)
    ctx_st = jnp.dot(p.astype(jnp.bfloat16), v_st,
                     preferred_element_type=jnp.float32)   # (H*B*S, DH) f32

    # unpack heads back to lanes: (B*S, D)
    ctx = jnp.concatenate(
        [ctx_st[h * BS:(h + 1) * BS, :] for h in range(H)], axis=-1)

    attn_out = _mm(ctx, wo_ref) + bo_ref[...]
    x = _ln(attn_out + x, ln1g_ref[...], ln1b_ref[...])

    # ---- feed-forward ----
    hid = _gelu(_mm(x, w1_ref) + b1_ref[...])
    ffn = _mm(hid, w2_ref) + b2_ref[...]
    x = _ln(ffn + x, ln2g_ref[...], ln2b_ref[...])
    x_sc[...] = x

    # last layer: pooler (tanh on [CLS]) + classifier, lane-padded to 128 logits
    @pl.when(layer == pl.num_programs(0) - 1)
    def _():
        cls_tok = x_sc[pl.ds(0, B, stride=S), :]     # strided gather of the B [CLS] rows
        pooled = jnp.tanh(_mm(cls_tok, wpool_ref) + bpool_ref[...])
        # TODO(synk): nn.Dropout(0.3) is the identity at inference (eval mode); omitted.
        logits_ref[...] = _mm(pooled, wcls_ref) + bcls_ref[...]


# ----------------------------- parameters -----------------------------

def _dense(key, fan_in, fan_out):
    return {"w": 0.02 * jax.random.normal(key, (fan_in, fan_out), jnp.float32),
            "b": jnp.zeros((fan_out,), jnp.float32)}


def init_params(key):
    keys = iter(jax.random.split(key, 64))
    params = {
        "word_emb": 0.02 * jax.random.normal(next(keys), (VOCAB, D), jnp.float32),
        "pos_emb": 0.02 * jax.random.normal(next(keys), (MAX_POS, D), jnp.float32),
        "type_emb": 0.02 * jax.random.normal(next(keys), (1, D), jnp.float32),
        "emb_ln_g": jnp.ones((D,), jnp.float32),
        "emb_ln_b": jnp.zeros((D,), jnp.float32),
        "layers": [],
        "pooler": _dense(next(keys), D, D),
        "cls": _dense(next(keys), D, NUM_CLASSES),
    }
    for _ in range(LAYERS):
        params["layers"].append({
            "q": _dense(next(keys), D, D),
            "k": _dense(next(keys), D, D),
            "v": _dense(next(keys), D, D),
            "o": _dense(next(keys), D, D),
            "ln1_g": jnp.ones((D,), jnp.float32),
            "ln1_b": jnp.zeros((D,), jnp.float32),
            "fc1": _dense(next(keys), D, INTER),
            "fc2": _dense(next(keys), INTER, D),
            "ln2_g": jnp.ones((D,), jnp.float32),
            "ln2_b": jnp.zeros((D,), jnp.float32),
        })
    return params


def prepare_params(p):
    """Stack per-layer weights on a leading LAYERS axis (one BlockSpec DMA per grid
    step) and pre-cast matmul weights to bf16.  Runs ONCE at init, outside the jitted
    forward, so the stacks/casts are not paid on every call."""
    def stack(fn):
        return jnp.stack([fn(ly) for ly in p["layers"]], axis=0)

    wcls = jnp.zeros((D, CLS_PAD), jnp.float32).at[:, :NUM_CLASSES].set(p["cls"]["w"])
    bcls = jnp.zeros((1, CLS_PAD), jnp.float32).at[0, :NUM_CLASSES].set(p["cls"]["b"])
    return {
        "word_emb": p["word_emb"],
        "pos_emb": p["pos_emb"],
        "type_emb": p["type_emb"],
        "emb_ln_g": p["emb_ln_g"][None, :],
        "emb_ln_b": p["emb_ln_b"][None, :],
        "wqkv": stack(lambda ly: jnp.concatenate(
            [ly["q"]["w"], ly["k"]["w"], ly["v"]["w"]], axis=1)).astype(jnp.bfloat16),
        "bqkv": stack(lambda ly: jnp.concatenate(
            [ly["q"]["b"], ly["k"]["b"], ly["v"]["b"]])[None, :]),
        "wo": stack(lambda ly: ly["o"]["w"]).astype(jnp.bfloat16),
        "bo": stack(lambda ly: ly["o"]["b"][None, :]),
        "ln1g": stack(lambda ly: ly["ln1_g"][None, :]),
        "ln1b": stack(lambda ly: ly["ln1_b"][None, :]),
        "w1": stack(lambda ly: ly["fc1"]["w"]).astype(jnp.bfloat16),
        "b1": stack(lambda ly: ly["fc1"]["b"][None, :]),
        "w2": stack(lambda ly: ly["fc2"]["w"]).astype(jnp.bfloat16),
        "b2": stack(lambda ly: ly["fc2"]["b"][None, :]),
        "ln2g": stack(lambda ly: ly["ln2_g"][None, :]),
        "ln2b": stack(lambda ly: ly["ln2_b"][None, :]),
        "wpool": p["pooler"]["w"].astype(jnp.bfloat16),
        "bpool": p["pooler"]["b"][None, :],
        "wcls": wcls.astype(jnp.bfloat16),
        "bcls": bcls,
    }


# ----------------------------- forward pass -----------------------------

def forward(pk, ids, mask):
    B, S = ids.shape
    HBS = H * B * S

    # ---- plain-JAX glue: embedding gathers + RoBERTa position ids ----
    not_pad = (ids != PAD_ID).astype(jnp.int32)
    position_ids = jnp.cumsum(not_pad, axis=1) * not_pad + PAD_ID
    emb = (pk["word_emb"][ids]
           + pk["pos_emb"][position_ids]
           + pk["type_emb"][0])
    emb = emb.reshape(B * S, D).astype(jnp.float32)

    # block-diagonal attention bias for the packed (h, b, s) score layout:
    # off-block entries get -1e9; valid columns additionally get the key-padding bias.
    key_bias = (1.0 - mask.astype(jnp.float32)) * -1e9          # (B, S)
    col_bias = jnp.tile(key_bias.reshape(-1), H)                 # (H*B*S,)
    hb = jnp.arange(HBS, dtype=jnp.int32) // S                   # (h*B + b) group id
    abias = (jnp.where(hb[:, None] == hb[None, :], 0.0, -1e9)
             + col_bias[None, :]).astype(jnp.float32)            # (H*B*S, H*B*S)

    def lyr3(d1, d2):     # per-layer stacked weight: layer axis squeezed, indexed by l
        return pl.BlockSpec((None, d1, d2), lambda l: (l, 0, 0))

    def rep2(d1, d2):     # layer-invariant array, resident across the grid
        return pl.BlockSpec((d1, d2), lambda l: (0, 0))

    logits_pad = pl.pallas_call(
        partial(_model_kernel, B, S),
        out_shape=jax.ShapeDtypeStruct((B, CLS_PAD), jnp.float32),
        grid_spec=pltpu.PrefetchScalarGridSpec(
            num_scalar_prefetch=0,
            grid=(LAYERS,),
            in_specs=[
                rep2(B * S, D),                      # embeddings
                rep2(HBS, HBS),                      # packed block-diag attention bias
                rep2(1, D), rep2(1, D),              # embedding LN gamma/beta
                lyr3(D, 3 * D), lyr3(1, 3 * D),      # fused QKV weight/bias
                lyr3(D, D), lyr3(1, D),              # attention output proj
                lyr3(1, D), lyr3(1, D),              # LN1
                lyr3(D, INTER), lyr3(1, INTER),      # FFN fc1
                lyr3(INTER, D), lyr3(1, D),          # FFN fc2
                lyr3(1, D), lyr3(1, D),              # LN2
                rep2(D, D), rep2(1, D),              # pooler
                rep2(D, CLS_PAD), rep2(1, CLS_PAD),  # classifier (lane-padded)
            ],
            out_specs=pl.BlockSpec((B, CLS_PAD), lambda l: (0, 0)),
            scratch_shapes=[pltpu.VMEM((B * S, D), jnp.float32)],
        ),
        compiler_params=pltpu.CompilerParams(
            dimension_semantics=("arbitrary",)),
    )(emb, abias, pk["emb_ln_g"], pk["emb_ln_b"],
      pk["wqkv"], pk["bqkv"], pk["wo"], pk["bo"], pk["ln1g"], pk["ln1b"],
      pk["w1"], pk["b1"], pk["w2"], pk["b2"], pk["ln2g"], pk["ln2b"],
      pk["wpool"], pk["bpool"], pk["wcls"], pk["bcls"])

    return logits_pad[:, :NUM_CLASSES]


# ----------------------------- main -----------------------------

if __name__ == "__main__":
    B, S = 4, 32          # B*S = 128 rows -> full MXU row utilization for dense matmuls
    key = jax.random.PRNGKey(0)
    k_ids, k_params = jax.random.split(key)

    ids = jax.random.randint(k_ids, (B, S), 3, VOCAB, dtype=jnp.int32)
    # pad the tails of two sequences
    mask = jnp.ones((B, S), jnp.int32).at[1, S - 5:].set(0).at[3, S - 9:].set(0)
    ids = jnp.where(mask == 1, ids, PAD_ID)

    params = init_params(k_params)
    pk = prepare_params(params)          # weight stacking + bf16 casts run once, outside jit

    logits = jax.jit(forward)(pk, ids, mask)
    jax.block_until_ready(logits)
    assert logits.shape == (B, NUM_CLASSES) and logits.dtype == jnp.float32
    print("KERNEL_OK")
</pallas_src>

<mosaic_0001>
module attributes {stable_mosaic.version = 11 : i64} {
  func.func @_model_kernel(%arg0: i32, %arg1: memref<128x128xf32, #tpu.memory_space<vmem>>, %arg2: memref<512x512xf32, #tpu.memory_space<vmem>>, %arg3: memref<1x128xf32, #tpu.memory_space<vmem>>, %arg4: memref<1x128xf32, #tpu.memory_space<vmem>>, %arg5: memref<1x128x384xbf16, #tpu.memory_space<vmem>>, %arg6: memref<1x1x384xf32, #tpu.memory_space<vmem>>, %arg7: memref<1x128x128xbf16, #tpu.memory_space<vmem>>, %arg8: memref<1x1x128xf32, #tpu.memory_space<vmem>>, %arg9: memref<1x1x128xf32, #tpu.memory_space<vmem>>, %arg10: memref<1x1x128xf32, #tpu.memory_space<vmem>>, %arg11: memref<1x128x256xbf16, #tpu.memory_space<vmem>>, %arg12: memref<1x1x256xf32, #tpu.memory_space<vmem>>, %arg13: memref<1x256x128xbf16, #tpu.memory_space<vmem>>, %arg14: memref<1x1x128xf32, #tpu.memory_space<vmem>>, %arg15: memref<1x1x128xf32, #tpu.memory_space<vmem>>, %arg16: memref<1x1x128xf32, #tpu.memory_space<vmem>>, %arg17: memref<128x128xbf16, #tpu.memory_space<vmem>>, %arg18: memref<1x128xf32, #tpu.memory_space<vmem>>, %arg19: memref<128x128xbf16, #tpu.memory_space<vmem>>, %arg20: memref<1x128xf32, #tpu.memory_space<vmem>>, %arg21: memref<4x128xf32, #tpu.memory_space<vmem>>, %arg22: memref<128x128xf32, #tpu.memory_space<vmem>>) attributes {dimension_semantics = [#tpu.dimension_semantics<arbitrary>], iteration_bounds = array<i64: 2>, scalar_prefetch = 0 : i64, scratch_operands = 1 : i64, tpu.core_type = #tpu.core_type<tc>, window_params = [{pipeline_mode = #tpu.pipeline_mode<synchronous>, transform_indices = @transform_0, window_bounds = array<i64: 128, 128>}, {pipeline_mode = #tpu.pipeline_mode<synchronous>, transform_indices = @transform_1, window_bounds = array<i64: 512, 512>}, {pipeline_mode = #tpu.pipeline_mode<synchronous>, transform_indices = @transform_2, window_bounds = array<i64: 1, 128>}, {pipeline_mode = #tpu.pipeline_mode<synchronous>, transform_indices = @transform_3, window_bounds = array<i64: 1, 128>}, {transform_indices = @transform_4, window_bounds = array<i64: 1, 128, 384>}, {transform_indices = @transform_5, window_bounds = array<i64: 1, 1, 384>}, {transform_indices = @transform_6, window_bounds = array<i64: 1, 128, 128>}, {transform_indices = @transform_7, window_bounds = array<i64: 1, 1, 128>}, {transform_indices = @transform_8, window_bounds = array<i64: 1, 1, 128>}, {transform_indices = @transform_9, window_bounds = array<i64: 1, 1, 128>}, {transform_indices = @transform_10, window_bounds = array<i64: 1, 128, 256>}, {transform_indices = @transform_11, window_bounds = array<i64: 1, 1, 256>}, {transform_indices = @transform_12, window_bounds = array<i64: 1, 256, 128>}, {transform_indices = @transform_13, window_bounds = array<i64: 1, 1, 128>}, {transform_indices = @transform_14, window_bounds = array<i64: 1, 1, 128>}, {transform_indices = @transform_15, window_bounds = array<i64: 1, 1, 128>}, {pipeline_mode = #tpu.pipeline_mode<synchronous>, transform_indices = @transform_16, window_bounds = array<i64: 128, 128>}, {pipeline_mode = #tpu.pipeline_mode<synchronous>, transform_indices = @transform_17, window_bounds = array<i64: 1, 128>}, {pipeline_mode = #tpu.pipeline_mode<synchronous>, transform_indices = @transform_18, window_bounds = array<i64: 128, 128>}, {pipeline_mode = #tpu.pipeline_mode<synchronous>, transform_indices = @transform_19, window_bounds = array<i64: 1, 128>}, {pipeline_mode = #tpu.pipeline_mode<synchronous>, transform_indices = @transform_20, window_bounds = array<i64: 4, 128>}]} {
    %c0_i32 = arith.constant 0 : i32
    %0 = arith.cmpi eq, %arg0, %c0_i32 : i32
    %1 = arith.extui %0 : i1 to i32
    %c0_i32_0 = arith.constant 0 : i32
    %2 = arith.cmpi ne, %1, %c0_i32_0 : i32
    scf.if %2 {
      %c0_65 = arith.constant 0 : index
      %c0_66 = arith.constant 0 : index
      %145 = vector.load %arg1[%c0_65, %c0_66] : memref<128x128xf32, #tpu.memory_space<vmem>>, vector<128x128xf32>
      %c0_67 = arith.constant 0 : index
      %c0_68 = arith.constant 0 : index
      %146 = vector.load %arg3[%c0_67, %c0_68] : memref<1x128xf32, #tpu.memory_space<vmem>>, vector<1x128xf32>
      %c0_69 = arith.constant 0 : index
      %c0_70 = arith.constant 0 : index
      %147 = vector.load %arg4[%c0_69, %c0_70] : memref<1x128xf32, #tpu.memory_space<vmem>>, vector<1x128xf32>
      %cst_71 = arith.constant dense<0.000000e+00> : vector<128xf32>
      %148 = vector.multi_reduction <add>, %145, %cst_71 [1] : vector<128x128xf32> to vector<128xf32>
      %149 = vector.shape_cast %148 : vector<128xf32> to vector<128x1xf32>
      %cst_72 = arith.constant 1.280000e+02 : f32
      %150 = vector.broadcast %cst_72 : f32 to vector<128x1xf32>
      %151 = arith.divf %149, %150 : vector<128x1xf32>
      %152 = vector.broadcast %151 : vector<128x1xf32> to vector<128x128xf32>
      %153 = arith.subf %145, %152 : vector<128x128xf32>
      %154 = arith.mulf %153, %153 : vector<128x128xf32>
      %cst_73 = arith.constant dense<0.000000e+00> : vector<128xf32>
      %155 = vector.multi_reduction <add>, %154, %cst_73 [1] : vector<128x128xf32> to vector<128xf32>
      %156 = vector.shape_cast %155 : vector<128xf32> to vector<128x1xf32>
      %cst_74 = arith.constant 1.280000e+02 : f32
      %157 = vector.broadcast %cst_74 : f32 to vector<128x1xf32>
      %158 = arith.divf %156, %157 : vector<128x1xf32>
      %159 = vector.broadcast %151 : vector<128x1xf32> to vector<128x128xf32>
      %160 = arith.subf %145, %159 : vector<128x128xf32>
      %cst_75 = arith.constant 9.99999974E-6 : f32
      %161 = vector.broadcast %cst_75 : f32 to vector<128x1xf32>
      %162 = arith.addf %158, %161 : vector<128x1xf32>
      %163 = math.rsqrt %162 : vector<128x1xf32>
      %164 = vector.broadcast %163 : vector<128x1xf32> to vector<128x128xf32>
      %165 = arith.mulf %160, %164 : vector<128x128xf32>
      %166 = vector.broadcast %146 : vector<1x128xf32> to vector<128x128xf32>
      %167 = arith.mulf %165, %166 : vector<128x128xf32>
      %168 = vector.broadcast %147 : vector<1x128xf32> to vector<128x128xf32>
      %169 = arith.addf %167, %168 : vector<128x128xf32>
      %c0_76 = arith.constant 0 : index
      %c0_77 = arith.constant 0 : index
      %170 = vector.load %arg22[%c0_76, %c0_77] : memref<128x128xf32, #tpu.memory_space<vmem>>, vector<128x128xf32>
      tpu.vector_store %arg22[%c0_76, %c0_77], %169 {strides = array<i32>} : memref<128x128xf32, #tpu.memory_space<vmem>>, vector<128x128xf32>,
    } else {
    }
    %c0 = arith.constant 0 : index
    %c0_1 = arith.constant 0 : index
    %3 = vector.load %arg22[%c0, %c0_1] : memref<128x128xf32, #tpu.memory_space<vmem>>, vector<128x128xf32>
    %4 = arith.truncf %3 : vector<128x128xf32> to vector<128x128xbf16>
    %c0_2 = arith.constant 0 : index
    %c0_3 = arith.constant 0 : index
    %c0_4 = arith.constant 0 : index
    %5 = vector.load %arg5[%c0_2, %c0_3, %c0_4] : memref<1x128x384xbf16, #tpu.memory_space<vmem>>, vector<1x128x384xbf16>
    %6 = vector.shape_cast %5 : vector<1x128x384xbf16> to vector<128x384xbf16>
    %cst = arith.constant dense<0.000000e+00> : vector<128x384xf32>
    %7 = tpu.matmul %4, %6, %cst {dimension_numbers = #tpu.dot_dimension_numbers<[1], [0], [0], [1], [0, 0, 1, 1], [], []>} : vector<128x128xbf16>, vector<128x384xbf16>, vector<128x384xf32> -> vector<128x384xf32>
    %c0_5 = arith.constant 0 : index
    %c0_6 = arith.constant 0 : index
    %c0_7 = arith.constant 0 : index
    %8 = vector.load %arg6[%c0_5, %c0_6, %c0_7] : memref<1x1x384xf32, #tpu.memory_space<vmem>>, vector<1x1x384xf32>
    %9 = vector.shape_cast %8 : vector<1x1x384xf32> to vector<1x384xf32>
    %10 = vector.broadcast %9 : vector<1x384xf32> to vector<128x384xf32>
    %11 = arith.addf %7, %10 : vector<128x384xf32>
    %12 = arith.truncf %11 : vector<128x384xf32> to vector<128x384xbf16>
    %13 = vector.extract_strided_slice %12 {offsets = [0, 0], sizes = [128, 32], strides = [1, 1]} : vector<128x384xbf16> to vector<128x32xbf16>
    %14 = vector.extract_strided_slice %12 {offsets = [0, 32], sizes = [128, 32], strides = [1, 1]} : vector<128x384xbf16> to vector<128x32xbf16>
    %15 = vector.extract_strided_slice %12 {offsets = [0, 64], sizes = [128, 32], strides = [1, 1]} : vector<128x384xbf16> to vector<128x32xbf16>
    %16 = vector.extract_strided_slice %12 {offsets = [0, 96], sizes = [128, 32], strides = [1, 1]} : vector<128x384xbf16> to vector<128x32xbf16>
    %17 = tpu.concatenate %13, %14, %15, %16 in 0 : vector<128x32xbf16>, vector<128x32xbf16>, vector<128x32xbf16>, vector<128x32xbf16> -> vector<512x32xbf16>
    %18 = vector.extract_strided_slice %12 {offsets = [0, 128], sizes = [128, 32], strides = [1, 1]} : vector<128x384xbf16> to vector<128x32xbf16>
    %19 = vector.extract_strided_slice %12 {offsets = [0, 160], sizes = [128, 32], strides = [1, 1]} : vector<128x384xbf16> to vector<128x32xbf16>
    %20 = vector.extract_strided_slice %12 {offsets = [0, 192], sizes = [128, 32], strides = [1, 1]} : vector<128x384xbf16> to vector<128x32xbf16>
    %21 = vector.extract_strided_slice %12 {offsets = [0, 224], sizes = [128, 32], strides = [1, 1]} : vector<128x384xbf16> to vector<128x32xbf16>
    %22 = tpu.concatenate %18, %19, %20, %21 in 0 : vector<128x32xbf16>, vector<128x32xbf16>, vector<128x32xbf16>, vector<128x32xbf16> -> vector<512x32xbf16>
    %23 = vector.extract_strided_slice %12 {offsets = [0, 256], sizes = [128, 32], strides = [1, 1]} : vector<128x384xbf16> to vector<128x32xbf16>
    %24 = vector.extract_strided_slice %12 {offsets = [0, 288], sizes = [128, 32], strides = [1, 1]} : vector<128x384xbf16> to vector<128x32xbf16>
    %25 = vector.extract_strided_slice %12 {offsets = [0, 320], sizes = [128, 32], strides = [1, 1]} : vector<128x384xbf16> to vector<128x32xbf16>
    %26 = vector.extract_strided_slice %12 {offsets = [0, 352], sizes = [128, 32], strides = [1, 1]} : vector<128x384xbf16> to vector<128x32xbf16>
    %27 = tpu.concatenate %23, %24, %25, %26 in 0 : vector<128x32xbf16>, vector<128x32xbf16>, vector<128x32xbf16>, vector<128x32xbf16> -> vector<512x32xbf16>
    %cst_8 = arith.constant dense<0.000000e+00> : vector<512x512xf32>
    %28 = tpu.matmul %17, %22, %cst_8 {dimension_numbers = #tpu.dot_dimension_numbers<[1], [1], [0], [0], [0, 0, 1, 0], [], []>} : vector<512x32xbf16>, vector<512x32xbf16>, vector<512x512xf32> -> vector<512x512xf32>
    %cst_9 = arith.constant 0.176776692 : f32
    %29 = vector.broadcast %cst_9 : f32 to vector<512x512xf32>
    %30 = arith.mulf %28, %29 : vector<512x512xf32>
    %c0_10 = arith.constant 0 : index
    %c0_11 = arith.constant 0 : index
    %31 = vector.load %arg2[%c0_10, %c0_11] : memref<512x512xf32, #tpu.memory_space<vmem>>, vector<512x512xf32>
    %32 = arith.addf %30, %31 : vector<512x512xf32>
    %cst_12 = arith.constant dense<0xFF800000> : vector<512xf32>
    %33 = vector.multi_reduction <maximumf>, %32, %cst_12 [1] : vector<512x512xf32> to vector<512xf32>
    %34 = vector.shape_cast %33 : vector<512xf32> to vector<512x1xf32>
    %35 = vector.broadcast %34 : vector<512x1xf32> to vector<512x512xf32>
    %36 = arith.subf %32, %35 : vector<512x512xf32>
    %37 = math.exp %36 : vector<512x512xf32>
    %cst_13 = arith.constant dense<0.000000e+00> : vector<512xf32>
    %38 = vector.multi_reduction <add>, %37, %cst_13 [1] : vector<512x512xf32> to vector<512xf32>
    %39 = vector.shape_cast %38 : vector<512xf32> to vector<512x1xf32>
    %40 = tpu.reciprocal %39 {approx = true} : vector<512x1xf32> -> vector<512x1xf32>
    %41 = vector.broadcast %40 : vector<512x1xf32> to vector<512x512xf32>
    %42 = arith.mulf %37, %41 : vector<512x512xf32>
    %43 = arith.truncf %42 : vector<512x512xf32> to vector<512x512xbf16>
    %cst_14 = arith.constant dense<0.000000e+00> : vector<512x32xf32>
    %44 = tpu.matmul %43, %27, %cst_14 {dimension_numbers = #tpu.dot_dimension_numbers<[1], [0], [0], [1], [0, 0, 1, 1], [], []>} : vector<512x512xbf16>, vector<512x32xbf16>, vector<512x32xf32> -> vector<512x32xf32>
    %45 = vector.extract_strided_slice %44 {offsets = [0, 0], sizes = [128, 32], strides = [1, 1]} : vector<512x32xf32> to vector<128x32xf32>
    %46 = vector.extract_strided_slice %44 {offsets = [128, 0], sizes = [128, 32], strides = [1, 1]} : vector<512x32xf32> to vector<128x32xf32>
    %47 = vector.extract_strided_slice %44 {offsets = [256, 0], sizes = [128, 32], strides = [1, 1]} : vector<512x32xf32> to vector<128x32xf32>
    %48 = vector.extract_strided_slice %44 {offsets = [384, 0], sizes = [128, 32], strides = [1, 1]} : vector<512x32xf32> to vector<128x32xf32>
    %49 = tpu.concatenate %45, %46, %47, %48 in 1 : vector<128x32xf32>, vector<128x32xf32>, vector<128x32xf32>, vector<128x32xf32> -> vector<128x128xf32>
    %50 = arith.truncf %49 : vector<128x128xf32> to vector<128x128xbf16>
    %c0_15 = arith.constant 0 : index
    %c0_16 = arith.constant 0 : index
    %c0_17 = arith.constant 0 : index
    %51 = vector.load %arg7[%c0_15, %c0_16, %c0_17] : memref<1x128x128xbf16, #tpu.memory_space<vmem>>, vector<1x128x128xbf16>
    %52 = vector.shape_cast %51 : vector<1x128x128xbf16> to vector<128x128xbf16>
    %cst_18 = arith.constant dense<0.000000e+00> : vector<128x128xf32>
    %53 = tpu.matmul %50, %52, %cst_18 {dimension_numbers = #tpu.dot_dimension_numbers<[1], [0], [0], [1], [0, 0, 1, 1], [], []>} : vector<128x128xbf16>, vector<128x128xbf16>, vector<128x128xf32> -> vector<128x128xf32>
    %c0_19 = arith.constant 0 : index
    %c0_20 = arith.constant 0 : index
    %c0_21 = arith.constant 0 : index
    %54 = vector.load %arg8[%c0_19, %c0_20, %c0_21] : memref<1x1x128xf32, #tpu.memory_space<vmem>>, vector<1x1x128xf32>
    %55 = vector.shape_cast %54 : vector<1x1x128xf32> to vector<1x128xf32>
    %56 = vector.broadcast %55 : vector<1x128xf32> to vector<128x128xf32>
    %57 = arith.addf %53, %56 : vector<128x128xf32>
    %58 = arith.addf %57, %3 : vector<128x128xf32>
    %c0_22 = arith.constant 0 : index
    %c0_23 = arith.constant 0 : index
    %c0_24 = arith.constant 0 : index
    %59 = vector.load %arg9[%c0_22, %c0_23, %c0_24] : memref<1x1x128xf32, #tpu.memory_space<vmem>>, vector<1x1x128xf32>
    %60 = vector.shape_cast %59 : vector<1x1x128xf32> to vector<1x128xf32>
    %c0_25 = arith.constant 0 : index
    %c0_26 = arith.constant 0 : index
    %c0_27 = arith.constant 0 : index
    %61 = vector.load %arg10[%c0_25, %c0_26, %c0_27] : memref<1x1x128xf32, #tpu.memory_space<vmem>>, vector<1x1x128xf32>
    %62 = vector.shape_cast %61 : vector<1x1x128xf32> to vector<1x128xf32>
    %cst_28 = arith.constant dense<0.000000e+00> : vector<128xf32>
    %63 = vector.multi_reduction <add>, %58, %cst_28 [1] : vector<128x128xf32> to vector<128xf32>
    %64 = vector.shape_cast %63 : vector<128xf32> to vector<128x1xf32>
    %cst_29 = arith.constant 1.280000e+02 : f32
    %65 = vector.broadcast %cst_29 : f32 to vector<128x1xf32>
    %66 = arith.divf %64, %65 : vector<128x1xf32>
    %67 = vector.broadcast %66 : vector<128x1xf32> to vector<128x128xf32>
    %68 = arith.subf %58, %67 : vector<128x128xf32>
    %69 = arith.mulf %68, %68 : vector<128x128xf32>
    %cst_30 = arith.constant dense<0.000000e+00> : vector<128xf32>
    %70 = vector.multi_reduction <add>, %69, %cst_30 [1] : vector<128x128xf32> to vector<128xf32>
    %71 = vector.shape_cast %70 : vector<128xf32> to vector<128x1xf32>
    %cst_31 = arith.constant 1.280000e+02 : f32
    %72 = vector.broadcast %cst_31 : f32 to vector<128x1xf32>
    %73 = arith.divf %71, %72 : vector<128x1xf32>
    %74 = vector.broadcast %66 : vector<128x1xf32> to vector<128x128xf32>
    %75 = arith.subf %58, %74 : vector<128x128xf32>
    %cst_32 = arith.constant 9.99999974E-6 : f32
    %76 = vector.broadcast %cst_32 : f32 to vector<128x1xf32>
    %77 = arith.addf %73, %76 : vector<128x1xf32>
    %78 = math.rsqrt %77 : vector<128x1xf32>
    %79 = vector.broadcast %78 : vector<128x1xf32> to vector<128x128xf32>
    %80 = arith.mulf %75, %79 : vector<128x128xf32>
    %81 = vector.broadcast %60 : vector<1x128xf32> to vector<128x128xf32>
    %82 = arith.mulf %80, %81 : vector<128x128xf32>
    %83 = vector.broadcast %62 : vector<1x128xf32> to vector<128x128xf32>
    %84 = arith.addf %82, %83 : vector<128x128xf32>
    %85 = arith.truncf %84 : vector<128x128xf32> to vector<128x128xbf16>
    %c0_33 = arith.constant 0 : index
    %c0_34 = arith.constant 0 : index
    %c0_35 = arith.constant 0 : index
    %86 = vector.load %arg11[%c0_33, %c0_34, %c0_35] : memref<1x128x256xbf16, #tpu.memory_space<vmem>>, vector<1x128x256xbf16>
    %87 = vector.shape_cast %86 : vector<1x128x256xbf16> to vector<128x256xbf16>
    %cst_36 = arith.constant dense<0.000000e+00> : vector<128x256xf32>
    %88 = tpu.matmul %85, %87, %cst_36 {dimension_numbers = #tpu.dot_dimension_numbers<[1], [0], [0], [1], [0, 0, 1, 1], [], []>} : vector<128x128xbf16>, vector<128x256xbf16>, vector<128x256xf32> -> vector<128x256xf32>
    %c0_37 = arith.constant 0 : index
    %c0_38 = arith.constant 0 : index
    %c0_39 = arith.constant 0 : index
    %89 = vector.load %arg12[%c0_37, %c0_38, %c0_39] : memref<1x1x256xf32, #tpu.memory_space<vmem>>, vector<1x1x256xf32>
    %90 = vector.shape_cast %89 : vector<1x1x256xf32> to vector<1x256xf32>
    %91 = vector.broadcast %90 : vector<1x256xf32> to vector<128x256xf32>
    %92 = arith.addf %88, %91 : vector<128x256xf32>
    %cst_40 = arith.constant 5.000000e-01 : f32
    %93 = vector.broadcast %cst_40 : f32 to vector<128x256xf32>
    %94 = arith.mulf %93, %92 : vector<128x256xf32>
    %cst_41 = arith.constant 4.471500e-02 : f32
    %95 = vector.broadcast %cst_41 : f32 to vector<128x256xf32>
    %96 = arith.mulf %95, %92 : vector<128x256xf32>
    %97 = arith.mulf %96, %92 : vector<128x256xf32>
    %98 = arith.mulf %97, %92 : vector<128x256xf32>
    %99 = arith.addf %92, %98 : vector<128x256xf32>
    %cst_42 = arith.constant 0.797884583 : f32
    %100 = vector.broadcast %cst_42 : f32 to vector<128x256xf32>
    %101 = arith.mulf %100, %99 : vector<128x256xf32>
    %102 = math.tanh %101 : vector<128x256xf32>
    %cst_43 = arith.constant 1.000000e+00 : f32
    %103 = vector.broadcast %cst_43 : f32 to vector<128x256xf32>
    %104 = arith.addf %103, %102 : vector<128x256xf32>
    %105 = arith.mulf %94, %104 : vector<128x256xf32>
    %106 = arith.truncf %105 : vector<128x256xf32> to vector<128x256xbf16>
    %c0_44 = arith.constant 0 : index
    %c0_45 = arith.constant 0 : index
    %c0_46 = arith.constant 0 : index
    %107 = vector.load %arg13[%c0_44, %c0_45, %c0_46] : memref<1x256x128xbf16, #tpu.memory_space<vmem>>, vector<1x256x128xbf16>
    %108 = vector.shape_cast %107 : vector<1x256x128xbf16> to vector<256x128xbf16>
    %cst_47 = arith.constant dense<0.000000e+00> : vector<128x128xf32>
    %109 = tpu.matmul %106, %108, %cst_47 {dimension_numbers = #tpu.dot_dimension_numbers<[1], [0], [0], [1], [0, 0, 1, 1], [], []>} : vector<128x256xbf16>, vector<256x128xbf16>, vector<128x128xf32> -> vector<128x128xf32>
    %c0_48 = arith.constant 0 : index
    %c0_49 = arith.constant 0 : index
    %c0_50 = arith.constant 0 : index
    %110 = vector.load %arg14[%c0_48, %c0_49, %c0_50] : memref<1x1x128xf32, #tpu.memory_space<vmem>>, vector<1x1x128xf32>
    %111 = vector.shape_cast %110 : vector<1x1x128xf32> to vector<1x128xf32>
    %112 = vector.broadcast %111 : vector<1x128xf32> to vector<128x128xf32>
    %113 = arith.addf %109, %112 : vector<128x128xf32>
    %114 = arith.addf %113, %84 : vector<128x128xf32>
    %c0_51 = arith.constant 0 : index
    %c0_52 = arith.constant 0 : index
    %c0_53 = arith.constant 0 : index
    %115 = vector.load %arg15[%c0_51, %c0_52, %c0_53] : memref<1x1x128xf32, #tpu.memory_space<vmem>>, vector<1x1x128xf32>
    %116 = vector.shape_cast %115 : vector<1x1x128xf32> to vector<1x128xf32>
    %c0_54 = arith.constant 0 : index
    %c0_55 = arith.constant 0 : index
    %c0_56 = arith.constant 0 : index
    %117 = vector.load %arg16[%c0_54, %c0_55, %c0_56] : memref<1x1x128xf32, #tpu.memory_space<vmem>>, vector<1x1x128xf32>
    %118 = vector.shape_cast %117 : vector<1x1x128xf32> to vector<1x128xf32>
    %cst_57 = arith.constant dense<0.000000e+00> : vector<128xf32>
    %119 = vector.multi_reduction <add>, %114, %cst_57 [1] : vector<128x128xf32> to vector<128xf32>
    %120 = vector.shape_cast %119 : vector<128xf32> to vector<128x1xf32>
    %cst_58 = arith.constant 1.280000e+02 : f32
    %121 = vector.broadcast %cst_58 : f32 to vector<128x1xf32>
    %122 = arith.divf %120, %121 : vector<128x1xf32>
    %123 = vector.broadcast %122 : vector<128x1xf32> to vector<128x128xf32>
    %124 = arith.subf %114, %123 : vector<128x128xf32>
    %125 = arith.mulf %124, %124 : vector<128x128xf32>
    %cst_59 = arith.constant dense<0.000000e+00> : vector<128xf32>
    %126 = vector.multi_reduction <add>, %125, %cst_59 [1] : vector<128x128xf32> to vector<128xf32>
    %127 = vector.shape_cast %126 : vector<128xf32> to vector<128x1xf32>
    %cst_60 = arith.constant 1.280000e+02 : f32
    %128 = vector.broadcast %cst_60 : f32 to vector<128x1xf32>
    %129 = arith.divf %127, %128 : vector<128x1xf32>
    %130 = vector.broadcast %122 : vector<128x1xf32> to vector<128x128xf32>
    %131 = arith.subf %114, %130 : vector<128x128xf32>
    %cst_61 = arith.constant 9.99999974E-6 : f32
    %132 = vector.broadcast %cst_61 : f32 to vector<128x1xf32>
    %133 = arith.addf %129, %132 : vector<128x1xf32>
    %134 = math.rsqrt %133 : vector<128x1xf32>
    %135 = vector.broadcast %134 : vector<128x1xf32> to vector<128x128xf32>
    %136 = arith.mulf %131, %135 : vector<128x128xf32>
    %137 = vector.broadcast %116 : vector<1x128xf32> to vector<128x128xf32>
    %138 = arith.mulf %136, %137 : vector<128x128xf32>
    %139 = vector.broadcast %118 : vector<1x128xf32> to vector<128x128xf32>
    %140 = arith.addf %138, %139 : vector<128x128xf32>
    %c0_62 = arith.constant 0 : index
    %c0_63 = arith.constant 0 : index
    %141 = vector.load %arg22[%c0_62, %c0_63] : memref<128x128xf32, #tpu.memory_space<vmem>>, vector<128x128xf32>
    tpu.vector_store %arg22[%c0_62, %c0_63], %140 {strides = array<i32>} : memref<128x128xf32, #tpu.memory_space<vmem>>, vector<128x128xf32>,
    %c1_i32 = arith.constant 1 : i32
    %142 = arith.cmpi eq, %arg0, %c1_i32 : i32
    %143 = arith.extui %142 : i1 to i32
    %c0_i32_64 = arith.constant 0 : i32
    %144 = arith.cmpi ne, %143, %c0_i32_64 : i32
    scf.if %144 {
      %c0_65 = arith.constant 0 : index
      %c0_66 = arith.constant 0 : index
      %145 = tpu.strided_load %arg22[%c0_65, %c0_66] {strides = array<i32: 32, 1>} : memref<128x128xf32, #tpu.memory_space<vmem>>, vector<4x128xf32>
      %146 = arith.truncf %145 : vector<4x128xf32> to vector<4x128xbf16>
      %c0_67 = arith.constant 0 : index
      %c0_68 = arith.constant 0 : index
      %147 = vector.load %arg17[%c0_67, %c0_68] : memref<128x128xbf16, #tpu.memory_space<vmem>>, vector<128x128xbf16>
      %cst_69 = arith.constant dense<0.000000e+00> : vector<4x128xf32>
      %148 = tpu.matmul %146, %147, %cst_69 {dimension_numbers = #tpu.dot_dimension_numbers<[1], [0], [0], [1], [0, 0, 1, 1], [], []>} : vector<4x128xbf16>, vector<128x128xbf16>, vector<4x128xf32> -> vector<4x128xf32>
      %c0_70 = arith.constant 0 : index
      %c0_71 = arith.constant 0 : index
      %149 = vector.load %arg18[%c0_70, %c0_71] : memref<1x128xf32, #tpu.memory_space<vmem>>, vector<1x128xf32>
      %150 = vector.broadcast %149 : vector<1x128xf32> to vector<4x128xf32>
      %151 = arith.addf %148, %150 : vector<4x128xf32>
      %152 = math.tanh %151 : vector<4x128xf32>
      %153 = arith.truncf %152 : vector<4x128xf32> to vector<4x128xbf16>
      %c0_72 = arith.constant 0 : index
      %c0_73 = arith.constant 0 : index
      %154 = vector.load %arg19[%c0_72, %c0_73] : memref<128x128xbf16, #tpu.memory_space<vmem>>, vector<128x128xbf16>
      %cst_74 = arith.constant dense<0.000000e+00> : vector<4x128xf32>
      %155 = tpu.matmul %153, %154, %cst_74 {dimension_numbers = #tpu.dot_dimension_numbers<[1], [0], [0], [1], [0, 0, 1, 1], [], []>} : vector<4x128xbf16>, vector<128x128xbf16>, vector<4x128xf32> -> vector<4x128xf32>
      %c0_75 = arith.constant 0 : index
      %c0_76 = arith.constant 0 : index
      %156 = vector.load %arg20[%c0_75, %c0_76] : memref<1x128xf32, #tpu.memory_space<vmem>>, vector<1x128xf32>
      %157 = vector.broadcast %156 : vector<1x128xf32> to vector<4x128xf32>
      %158 = arith.addf %155, %157 : vector<4x128xf32>
      %c0_77 = arith.constant 0 : index
      %c0_78 = arith.constant 0 : index
      %159 = vector.load %arg21[%c0_77, %c0_78] : memref<4x128xf32, #tpu.memory_space<vmem>>, vector<4x128xf32>
      tpu.vector_store %arg21[%c0_77, %c0_78], %158 {strides = array<i32>} : memref<4x128xf32, #tpu.memory_space<vmem>>, vector<4x128xf32>,
    } else {
    }
    return
  }
  func.func @transform_0(%arg0: i32) -> (i32, i32) {
    %c0_i32 = arith.constant 0 : i32
    %c0_i32_0 = arith.constant 0 : i32
    %c0_i32_1 = arith.constant 0 : i32
    return %c0_i32, %c0_i32_0 : i32, i32
  }
  func.func @transform_1(%arg0: i32) -> (i32, i32) {
    %c0_i32 = arith.constant 0 : i32
    %c0_i32_0 = arith.constant 0 : i32
    %c0_i32_1 = arith.constant 0 : i32
    return %c0_i32, %c0_i32_0 : i32, i32
  }
  func.func @transform_2(%arg0: i32) -> (i32, i32) {
    %c0_i32 = arith.constant 0 : i32
    %c0_i32_0 = arith.constant 0 : i32
    %c0_i32_1 = arith.constant 0 : i32
    return %c0_i32, %c0_i32_0 : i32, i32
  }
  func.func @transform_3(%arg0: i32) -> (i32, i32) {
    %c0_i32 = arith.constant 0 : i32
    %c0_i32_0 = arith.constant 0 : i32
    %c0_i32_1 = arith.constant 0 : i32
    return %c0_i32, %c0_i32_0 : i32, i32
  }
  func.func @transform_4(%arg0: i32) -> (i32, i32, i32) {
    %c0_i32 = arith.constant 0 : i32
    %c0_i32_0 = arith.constant 0 : i32
    %c0_i32_1 = arith.constant 0 : i32
    return %arg0, %c0_i32, %c0_i32_0 : i32, i32, i32
  }
  func.func @transform_5(%arg0: i32) -> (i32, i32, i32) {
    %c0_i32 = arith.constant 0 : i32
    %c0_i32_0 = arith.constant 0 : i32
    %c0_i32_1 = arith.constant 0 : i32
    return %arg0, %c0_i32, %c0_i32_0 : i32, i32, i32
  }
  func.func @transform_6(%arg0: i32) -> (i32, i32, i32) {
    %c0_i32 = arith.constant 0 : i32
    %c0_i32_0 = arith.constant 0 : i32
    %c0_i32_1 = arith.constant 0 : i32
    return %arg0, %c0_i32, %c0_i32_0 : i32, i32, i32
  }
  func.func @transform_7(%arg0: i32) -> (i32, i32, i32) {
    %c0_i32 = arith.constant 0 : i32
    %c0_i32_0 = arith.constant 0 : i32
    %c0_i32_1 = arith.constant 0 : i32
    return %arg0, %c0_i32, %c0_i32_0 : i32, i32, i32
  }
  func.func @transform_8(%arg0: i32) -> (i32, i32, i32) {
    %c0_i32 = arith.constant 0 : i32
    %c0_i32_0 = arith.constant 0 : i32
    %c0_i32_1 = arith.constant 0 : i32
    return %arg0, %c0_i32, %c0_i32_0 : i32, i32, i32
  }
  func.func @transform_9(%arg0: i32) -> (i32, i32, i32) {
    %c0_i32 = arith.constant 0 : i32
    %c0_i32_0 = arith.constant 0 : i32
    %c0_i32_1 = arith.constant 0 : i32
    return %arg0, %c0_i32, %c0_i32_0 : i32, i32, i32
  }
  func.func @transform_10(%arg0: i32) -> (i32, i32, i32) {
    %c0_i32 = arith.constant 0 : i32
    %c0_i32_0 = arith.constant 0 : i32
    %c0_i32_1 = arith.constant 0 : i32
    return %arg0, %c0_i32, %c0_i32_0 : i32, i32, i32
  }
  func.func @transform_11(%arg0: i32) -> (i32, i32, i32) {
    %c0_i32 = arith.constant 0 : i32
    %c0_i32_0 = arith.constant 0 : i32
    %c0_i32_1 = arith.constant 0 : i32
    return %arg0, %c0_i32, %c0_i32_0 : i32, i32, i32
  }
  func.func @transform_12(%arg0: i32) -> (i32, i32, i32) {
    %c0_i32 = arith.constant 0 : i32
    %c0_i32_0 = arith.constant 0 : i32
    %c0_i32_1 = arith.constant 0 : i32
    return %arg0, %c0_i32, %c0_i32_0 : i32, i32, i32
  }
  func.func @transform_13(%arg0: i32) -> (i32, i32, i32) {
    %c0_i32 = arith.constant 0 : i32
    %c0_i32_0 = arith.constant 0 : i32
    %c0_i32_1 = arith.constant 0 : i32
    return %arg0, %c0_i32, %c0_i32_0 : i32, i32, i32
  }
  func.func @transform_14(%arg0: i32) -> (i32, i32, i32) {
    %c0_i32 = arith.constant 0 : i32
    %c0_i32_0 = arith.constant 0 : i32
    %c0_i32_1 = arith.constant 0 : i32
    return %arg0, %c0_i32, %c0_i32_0 : i32, i32, i32
  }
  func.func @transform_15(%arg0: i32) -> (i32, i32, i32) {
    %c0_i32 = arith.constant 0 : i32
    %c0_i32_0 = arith.constant 0 : i32
    %c0_i32_1 = arith.constant 0 : i32
    return %arg0, %c0_i32, %c0_i32_0 : i32, i32, i32
  }
  func.func @transform_16(%arg0: i32) -> (i32, i32) {
    %c0_i32 = arith.constant 0 : i32
    %c0_i32_0 = arith.constant 0 : i32
    %c0_i32_1 = arith.constant 0 : i32
    return %c0_i32, %c0_i32_0 : i32, i32
  }
  func.func @transform_17(%arg0: i32) -> (i32, i32) {
    %c0_i32 = arith.constant 0 : i32
    %c0_i32_0 = arith.constant 0 : i32
    %c0_i32_1 = arith.constant 0 : i32
    return %c0_i32, %c0_i32_0 : i32, i32
  }
  func.func @transform_18(%arg0: i32) -> (i32, i32) {
    %c0_i32 = arith.constant 0 : i32
    %c0_i32_0 = arith.constant 0 : i32
    %c0_i32_1 = arith.constant 0 : i32
    return %c0_i32, %c0_i32_0 : i32, i32
  }
  func.func @transform_19(%arg0: i32) -> (i32, i32) {
    %c0_i32 = arith.constant 0 : i32
    %c0_i32_0 = arith.constant 0 : i32
    %c0_i32_1 = arith.constant 0 : i32
    return %c0_i32, %c0_i32_0 : i32, i32
  }
  func.func @transform_20(%arg0: i32) -> (i32, i32) {
    %c0_i32 = arith.constant 0 : i32
    %c0_i32_0 = arith.constant 0 : i32
    %c0_i32_1 = arith.constant 0 : i32
    return %c0_i32, %c0_i32_0 : i32, i32
  }
}

</mosaic_0001>

<llo_original>
// kernel: tile.5
$region0: #{tile.5}
  %s0 = inlined_call_operand.vmem [shape: f32[4,32], index: 0, kind: input, shape index: {}]
  %s1 = inlined_call_operand.vmem [shape: f32[128], index: 1, kind: output, shape index: {}]
  $region1: #{tile.5} parent=0
    #allocation0 [shape = 'u8[4096]{0}', space=vmem, size = 0x1000, scoped, tag = 'scoped mem for output reshape']
    #allocation1 [shape = 'u8[4096]{0}', space=vmem, size = 0x1000, scoped, tag = 'scoped mem for input reshape']
    %s3 = ssub.s32 16, 1
    %v4 = vld [vmem:[%s0] sm:%s3]
    %5 = vst [vmem:[#allocation1] sm:%s3] %v4
    %v6 = vld [vmem:[#allocation1] sm:$0x1]
    %vm7 = vcmask 261120
    %8 = vst.msk [vmem:[#allocation0] sm:$0x1] %vm7, %v6
    %s9 = scalar_lea.vmem [#allocation1], 3
    %v10 = vld [vmem:[%s9] sm:$0x1]
    %11 = vrot.lane.b32.xlu0 %v10, 96
    %v12 = vpop.permute.xlu0 %11
    %vm13 = vcmask 1048320
    %14 = vst.msk [vmem:[#allocation0] sm:$0x1] %vm13, %v12
    %s15 = scalar_lea.vmem [#allocation1], 2
    %v16 = vld [vmem:[%s15] sm:$0x1]
    %17 = vrot.lane.b32.xlu0 %v16, 64
    %v18 = vpop.permute.xlu0 %17
    %vm19 = vcmask 785920
    %20 = vst.msk [vmem:[#allocation0] sm:$0x1] %vm19, %v18
    %s21 = scalar_lea.vmem [#allocation1], 1
    %v22 = vld [vmem:[%s21] sm:$0x1]
    %23 = vrot.lane.b32.xlu0 %v22, 32
    %v24 = vpop.permute.xlu0 %23
    %vm25 = vcmask 523520
    %26 = vst.msk [vmem:[#allocation0] sm:$0x1] %vm25, %v24
    %s28 = ssub.s32 2, 1
    %v29 = vld [vmem:[#allocation0] sm:%s28]
    %s31 = ssub.s32 2, 1
    %32 = vst [vmem:[%s1] sm:%s31] %v29

// kernel: forward.1
$region0: #{forward.1}
  #allocation0 [shape = 'u32[]', space=smem, size = 0x4, offset = 0x4, fixed_abs, tag = 'smem constant byte address 0x4 - core index']
  #allocation1 [shape = 'u32[72,128]{1,0:T(1,128)}', space=vmem, size = 0x9000, scoped, tag = 'internal scratch']
  #allocation2 [shape = 'f32[128,128]{1,0:T(8,128)}', space=vmem, size = 0x10000, scoped, tag = 'scratch operand']
  %s0 = inlined_call_operand.vmem [shape: f32[128,128], index: 0, kind: input, shape index: {}]
  %s1 = inlined_call_operand.vmem [shape: f32[512,512], index: 1, kind: input, shape index: {}]
  %s2 = inlined_call_operand.vmem [shape: f32[1,128], index: 2, kind: input, shape index: {}]
  %s3 = inlined_call_operand.vmem [shape: f32[1,128], index: 3, kind: input, shape index: {}]
  %s4 = inlined_call_operand.vmem [shape: bf16[2,128,384], index: 4, kind: input, shape index: {}]
  %s5 = inlined_call_operand.vmem [shape: f32[2,1,384], index: 5, kind: input, shape index: {}]
  %s6 = inlined_call_operand.vmem [shape: bf16[2,128,128], index: 6, kind: input, shape index: {}]
  %s7 = inlined_call_operand.vmem [shape: f32[2,1,128], index: 7, kind: input, shape index: {}]
  %s8 = inlined_call_operand.vmem [shape: f32[2,1,128], index: 8, kind: input, shape index: {}]
  %s9 = inlined_call_operand.vmem [shape: f32[2,1,128], index: 9, kind: input, shape index: {}]
  %s10 = inlined_call_operand.vmem [shape: bf16[2,128,256], index: 10, kind: input, shape index: {}]
  %s11 = inlined_call_operand.vmem [shape: f32[2,1,256], index: 11, kind: input, shape index: {}]
  %s12 = inlined_call_operand.vmem [shape: bf16[2,256,128], index: 12, kind: input, shape index: {}]
  %s13 = inlined_call_operand.vmem [shape: f32[2,1,128], index: 13, kind: input, shape index: {}]
  %s14 = inlined_call_operand.vmem [shape: f32[2,1,128], index: 14, kind: input, shape index: {}]
  %s15 = inlined_call_operand.vmem [shape: f32[2,1,128], index: 15, kind: input, shape index: {}]
  %s16 = inlined_call_operand.vmem [shape: bf16[128,128], index: 16, kind: input, shape index: {}]
  %s17 = inlined_call_operand.vmem [shape: f32[1,128], index: 17, kind: input, shape index: {}]
  %s18 = inlined_call_operand.vmem [shape: bf16[128,128], index: 18, kind: input, shape index: {}]
  %s19 = inlined_call_operand.vmem [shape: f32[1,128], index: 19, kind: input, shape index: {}]
  %s20 = inlined_call_operand.hbm [shape: f32[4,128], index: 20, kind: output, shape index: {}]
  %s21 = sld [smem:[#allocation0]]
  $region121: #{forward.1} parent=0
    _
  %s23 = ssub.s32 1, %s21
  %s24 = scalar_select 0, %s23, %s21
  $region1: #{forward.1} parent=0
    #allocation3 [shape = 'u8[2048]{0}', space=vmem, size = 0x800, scoped, tag = 'output window, operand 0, single buffered']
    #allocation4 [shape = 's32[2]{0}', space=sflag, size = 0x8, scoped, tag = 'scoped memory for forward.1']
    %25 = vsyncpa [#allocation4], 0
    loop: start=0, step=1, limit=4
    $region2: #{forward.1} parent=1 // loop_pre_header
      _
    $region3: #{forward.1} parent=1 // loop_header
      %s27 = sphi 0, %s31
      %p28 = scmp.ge.s32.totalorder %s27, 4
      %s35 = sphi 0, %s35
      %s37 = sphi 0, %s35
      %s38 = sphi 0, %s37
      %s52 = sphi 0, %s38
      %s56 = sphi 0, %s56
      %s58 = sphi 0, %s56
      %s59 = sphi 0, %s58
      %s73 = sphi 0, %s59
      %s77 = sphi 0, %s77
      %s79 = sphi 0, %s77
      %s80 = sphi 0, %s79
      %s94 = sphi 0, %s80
      %s98 = sphi 0, %s98
      %s100 = sphi 0, %s98
      %s101 = sphi 0, %s100
      %s115 = sphi 0, %s101
      %s121 = sphi 0, %s123
      %s124 = sphi 0, %s121
      %s125 = sphi 0, %s124
      %s141 = sphi 0, %s125
      %s147 = sphi 0, %s149
      %s150 = sphi 0, %s147
      %s151 = sphi 0, %s150
      %s167 = sphi 0, %s151
      %s173 = sphi 0, %s175
      %s176 = sphi 0, %s173
      %s177 = sphi 0, %s176
      %s193 = sphi 0, %s177
      %s199 = sphi 0, %s201
      %s202 = sphi 0, %s199
      %s203 = sphi 0, %s202
      %s219 = sphi 0, %s203
      %s225 = sphi 0, %s227
      %s228 = sphi 0, %s225
      %s229 = sphi 0, %s228
      %s245 = sphi 0, %s229
      %s251 = sphi 0, %s253
      %s254 = sphi 0, %s251
      %s255 = sphi 0, %s254
      %s271 = sphi 0, %s255
      %s277 = sphi 0, %s279
      %s280 = sphi 0, %s277
      %s281 = sphi 0, %s280
      %s297 = sphi 0, %s281
      %s303 = sphi 0, %s305
      %s306 = sphi 0, %s303
      %s307 = sphi 0, %s306
      %s323 = sphi 0, %s307
      %s329 = sphi 0, %s331
      %s332 = sphi 0, %s329
      %s333 = sphi 0, %s332
      %s349 = sphi 0, %s333
      %s355 = sphi 0, %s357
      %s358 = sphi 0, %s355
      %s359 = sphi 0, %s358
      %s375 = sphi 0, %s359
      %s381 = sphi 0, %s383
      %s384 = sphi 0, %s381
      %s385 = sphi 0, %s384
      %s401 = sphi 0, %s385
      %s407 = sphi 0, %s409
      %s410 = sphi 0, %s407
      %s411 = sphi 0, %s410
      %s427 = sphi 0, %s411
      %s431 = sphi 0, %s431
      %s433 = sphi 0, %s431
      %s434 = sphi 0, %s433
      %s448 = sphi 0, %s434
      %s452 = sphi 0, %s452
      %s454 = sphi 0, %s452
      %s455 = sphi 0, %s454
      %s469 = sphi 0, %s455
      %s473 = sphi 0, %s473
      %s475 = sphi 0, %s473
      %s476 = sphi 0, %s475
      %s490 = sphi 0, %s476
      %s494 = sphi 0, %s494
      %s496 = sphi 0, %s494
      %s497 = sphi 0, %s496
      %s511 = sphi 0, %s497
      %s515 = sphi 0, %s515
      %s517 = sphi 0, %s515
      %s518 = sphi 0, %s517
      %s532 = sphi 0, %s518
    $region4: #{forward.1} parent=1 // loop_header_branch
      %30 = sbr.rel (%p28) target = $region8
    $region5: #{forward.1} parent=1 // loop_body
      %s32 = ssub.s32 %s27, 1
      %s33 = ssub.s32 %s27, 2
      %s34 = sadd.s32 %s27, 1
      %s36 = sadd.s32 %s35, 1
      %p39 = scmp.eq.s32.totalorder %s27, 1
      %p40 = scmp.ne.s32.totalorder %s35, %s37
      %p41 = scmp.eq.s32.totalorder %s27, 0
      %p42 = por %p40, %p41
      %p43 = scmp.ne.s32.totalorder %s35, %s37
      %p44 = scmp.eq.s32.totalorder %s32, 1
      %p45 = por %p43, %p44
      %p46 = scmp.ne.s32.totalorder %s37, %s38
      %p47 = scmp.eq.s32.totalorder %s32, 0
      %p48 = por %p46, %p47
      %p49 = scmp.ne.s32.totalorder %s37, %s38
      %p50 = scmp.eq.s32.totalorder %s33, 1
      %p51 = por %p49, %p50
      %p53 = scmp.ne.s32.totalorder %s38, %s52
      %p54 = scmp.eq.s32.totalorder %s33, 0
      %p55 = por %p53, %p54
      %s57 = sadd.s32 %s56, 1
      %p60 = scmp.eq.s32.totalorder %s27, 1
      %p61 = scmp.ne.s32.totalorder %s56, %s58
      %p62 = scmp.eq.s32.totalorder %s27, 0
      %p63 = por %p61, %p62
      %p64 = scmp.ne.s32.totalorder %s56, %s58
      %p65 = scmp.eq.s32.totalorder %s32, 1
      %p66 = por %p64, %p65
      %p67 = scmp.ne.s32.totalorder %s58, %s59
      %p68 = scmp.eq.s32.totalorder %s32, 0
      %p69 = por %p67, %p68
      %p70 = scmp.ne.s32.totalorder %s58, %s59
      %p71 = scmp.eq.s32.totalorder %s33, 1
      %p72 = por %p70, %p71
      %p74 = scmp.ne.s32.totalorder %s59, %s73
      %p75 = scmp.eq.s32.totalorder %s33, 0
      %p76 = por %p74, %p75
      %s78 = sadd.s32 %s77, 1
      %p81 = scmp.eq.s32.totalorder %s27, 1
      %p82 = scmp.ne.s32.totalorder %s77, %s79
      %p83 = scmp.eq.s32.totalorder %s27, 0
      %p84 = por %p82, %p83
      %p85 = scmp.ne.s32.totalorder %s77, %s79
      %p86 = scmp.eq.s32.totalorder %s32, 1
      %p87 = por %p85, %p86
      %p88 = scmp.ne.s32.totalorder %s79, %s80
      %p89 = scmp.eq.s32.totalorder %s32, 0
      %p90 = por %p88, %p89
      %p91 = scmp.ne.s32.totalorder %s79, %s80
      %p92 = scmp.eq.s32.totalorder %s33, 1
      %p93 = por %p91, %p92
      %p95 = scmp.ne.s32.totalorder %s80, %s94
      %p96 = scmp.eq.s32.totalorder %s33, 0
      %p97 = por %p95, %p96
      %s99 = sadd.s32 %s98, 1
      %p102 = scmp.eq.s32.totalorder %s27, 1
      %p103 = scmp.ne.s32.totalorder %s98, %s100
      %p104 = scmp.eq.s32.totalorder %s27, 0
      %p105 = por %p103, %p104
      %p106 = scmp.ne.s32.totalorder %s98, %s100
      %p107 = scmp.eq.s32.totalorder %s32, 1
      %p108 = por %p106, %p107
      %p109 = scmp.ne.s32.totalorder %s100, %s101
      %p110 = scmp.eq.s32.totalorder %s32, 0
      %p111 = por %p109, %p110
      %p112 = scmp.ne.s32.totalorder %s100, %s101
      %p113 = scmp.eq.s32.totalorder %s33, 1
      %p114 = por %p112, %p113
      %p116 = scmp.ne.s32.totalorder %s101, %s115
      %p117 = scmp.eq.s32.totalorder %s33, 0
      %p118 = por %p116, %p117
      %s119 = ssub.s32 %s27, %s34
      %p120 = scmp.eq.s32.totalorder %s119, 0
      %s122 = sadd.s32 %s121, 1
      %s123 = scalar_select %p120, %s121, %s122
      %p126 = pneg %p120
      %p127 = scmp.eq.s32.totalorder %s27, 1
      %p128 = por %p126, %p127
      %p129 = scmp.ne.s32.totalorder %s121, %s124
      %p130 = scmp.eq.s32.totalorder %s27, 0
      %p131 = por %p129, %p130
      %p132 = scmp.ne.s32.totalorder %s121, %s124
      %p133 = scmp.eq.s32.totalorder %s32, 1
      %p134 = por %p132, %p133
      %p135 = scmp.ne.s32.totalorder %s124, %s125
      %p136 = scmp.eq.s32.totalorder %s32, 0
      %p137 = por %p135, %p136
      %p138 = scmp.ne.s32.totalorder %s124, %s125
      %p139 = scmp.eq.s32.totalorder %s33, 1
      %p140 = por %p138, %p139
      %p142 = scmp.ne.s32.totalorder %s125, %s141
      %p143 = scmp.eq.s32.totalorder %s33, 0
      %p144 = por %p142, %p143
      %s145 = ssub.s32 %s27, %s34
      %p146 = scmp.eq.s32.totalorder %s145, 0
      %s148 = sadd.s32 %s147, 1
      %s149 = scalar_select %p146, %s147, %s148
      %p152 = pneg %p146
      %p153 = scmp.eq.s32.totalorder %s27, 1
      %p154 = por %p152, %p153
      %p155 = scmp.ne.s32.totalorder %s147, %s150
      %p156 = scmp.eq.s32.totalorder %s27, 0
      %p157 = por %p155, %p156
      %p158 = scmp.ne.s32.totalorder %s147, %s150
      %p159 = scmp.eq.s32.totalorder %s32, 1
      %p160 = por %p158, %p159
      %p161 = scmp.ne.s32.totalorder %s150, %s151
      %p162 = scmp.eq.s32.totalorder %s32, 0
      %p163 = por %p161, %p162
      %p164 = scmp.ne.s32.totalorder %s150, %s151
      %p165 = scmp.eq.s32.totalorder %s33, 1
      %p166 = por %p164, %p165
      %p168 = scmp.ne.s32.totalorder %s151, %s167
      %p169 = scmp.eq.s32.totalorder %s33, 0
      %p170 = por %p168, %p169
      %s171 = ssub.s32 %s27, %s34
      %p172 = scmp.eq.s32.totalorder %s171, 0
      %s174 = sadd.s32 %s173, 1
      %s175 = scalar_select %p172, %s173, %s174
      %p178 = pneg %p172
      %p179 = scmp.eq.s32.totalorder %s27, 1
      %p180 = por %p178, %p179
      %p181 = scmp.ne.s32.totalorder %s173, %s176
      %p182 = scmp.eq.s32.totalorder %s27, 0
      %p183 = por %p181, %p182
      %p184 = scmp.ne.s32.totalorder %s173, %s176
      %p185 = scmp.eq.s32.totalorder %s32, 1
      %p186 = por %p184, %p185
      %p187 = scmp.ne.s32.totalorder %s176, %s177
      %p188 = scmp.eq.s32.totalorder %s32, 0
      %p189 = por %p187, %p188
      %p190 = scmp.ne.s32.totalorder %s176, %s177
      %p191 = scmp.eq.s32.totalorder %s33, 1
      %p192 = por %p190, %p191
      %p194 = scmp.ne.s32.totalorder %s177, %s193
      %p195 = scmp.eq.s32.totalorder %s33, 0
      %p196 = por %p194, %p195
      %s197 = ssub.s32 %s27, %s34
      %p198 = scmp.eq.s32.totalorder %s197, 0
      %s200 = sadd.s32 %s199, 1
      %s201 = scalar_select %p198, %s199, %s200
      %p204 = pneg %p198
      %p205 = scmp.eq.s32.totalorder %s27, 1
      %p206 = por %p204, %p205
      %p207 = scmp.ne.s32.totalorder %s199, %s202
      %p208 = scmp.eq.s32.totalorder %s27, 0
      %p209 = por %p207, %p208
      %p210 = scmp.ne.s32.totalorder %s199, %s202
      %p211 = scmp.eq.s32.totalorder %s32, 1
      %p212 = por %p210, %p211
      %p213 = scmp.ne.s32.totalorder %s202, %s203
      %p214 = scmp.eq.s32.totalorder %s32, 0
      %p215 = por %p213, %p214
      %p216 = scmp.ne.s32.totalorder %s202, %s203
      %p217 = scmp.eq.s32.totalorder %s33, 1
      %p218 = por %p216, %p217
      %p220 = scmp.ne.s32.totalorder %s203, %s219
      %p221 = scmp.eq.s32.totalorder %s33, 0
      %p222 = por %p220, %p221
      %s223 = ssub.s32 %s27, %s34
      %p224 = scmp.eq.s32.totalorder %s223, 0
      %s226 = sadd.s32 %s225, 1
      %s227 = scalar_select %p224, %s225, %s226
      %p230 = pneg %p224
      %p231 = scmp.eq.s32.totalorder %s27, 1
      %p232 = por %p230, %p231
      %p233 = scmp.ne.s32.totalorder %s225, %s228
      %p234 = scmp.eq.s32.totalorder %s27, 0
      %p235 = por %p233, %p234
      %p236 = scmp.ne.s32.totalorder %s225, %s228
      %p237 = scmp.eq.s32.totalorder %s32, 1
      %p238 = por %p236, %p237
      %p239 = scmp.ne.s32.totalorder %s228, %s229
      %p240 = scmp.eq.s32.totalorder %s32, 0
      %p241 = por %p239, %p240
      %p242 = scmp.ne.s32.totalorder %s228, %s229
      %p243 = scmp.eq.s32.totalorder %s33, 1
      %p244 = por %p242, %p243
      %p246 = scmp.ne.s32.totalorder %s229, %s245
      %p247 = scmp.eq.s32.totalorder %s33, 0
      %p248 = por %p246, %p247
      %s249 = ssub.s32 %s27, %s34
      %p250 = scmp.eq.s32.totalorder %s249, 0
      %s252 = sadd.s32 %s251, 1
      %s253 = scalar_select %p250, %s251, %s252
      %p256 = pneg %p250
      %p257 = scmp.eq.s32.totalorder %s27, 1
      %p258 = por %p256, %p257
      %p259 = scmp.ne.s32.totalorder %s251, %s254
      %p260 = scmp.eq.s32.totalorder %s27, 0
      %p261 = por %p259, %p260
      %p262 = scmp.ne.s32.totalorder %s251, %s254
      %p263 = scmp.eq.s32.totalorder %s32, 1
      %p264 = por %p262, %p263
      %p265 = scmp.ne.s32.totalorder %s254, %s255
      %p266 = scmp.eq.s32.totalorder %s32, 0
      %p267 = por %p265, %p266
      %p268 = scmp.ne.s32.totalorder %s254, %s255
      %p269 = scmp.eq.s32.totalorder %s33, 1
      %p270 = por %p268, %p269
      %p272 = scmp.ne.s32.totalorder %s255, %s271
      %p273 = scmp.eq.s32.totalorder %s33, 0
      %p274 = por %p272, %p273
      %s275 = ssub.s32 %s27, %s34
      %p276 = scmp.eq.s32.totalorder %s275, 0
      %s278 = sadd.s32 %s277, 1
      %s279 = scalar_select %p276, %s277, %s278
      %p282 = pneg %p276
      %p283 = scmp.eq.s32.totalorder %s27, 1
      %p284 = por %p282, %p283
      %p285 = scmp.ne.s32.totalorder %s277, %s280
      %p286 = scmp.eq.s32.totalorder %s27, 0
      %p287 = por %p285, %p286
      %p288 = scmp.ne.s32.totalorder %s277, %s280
      %p289 = scmp.eq.s32.totalorder %s32, 1
      %p290 = por %p288, %p289
      %p291 = scmp.ne.s32.totalorder %s280, %s281
      %p292 = scmp.eq.s32.totalorder %s32, 0
      %p293 = por %p291, %p292
      %p294 = scmp.ne.s32.totalorder %s280, %s281
      %p295 = scmp.eq.s32.totalorder %s33, 1
      %p296 = por %p294, %p295
      %p298 = scmp.ne.s32.totalorder %s281, %s297
      %p299 = scmp.eq.s32.totalorder %s33, 0
      %p300 = por %p298, %p299
      %s301 = ssub.s32 %s27, %s34
      %p302 = scmp.eq.s32.totalorder %s301, 0
      %s304 = sadd.s32 %s303, 1
      %s305 = scalar_select %p302, %s303, %s304
      %p308 = pneg %p302
      %p309 = scmp.eq.s32.totalorder %s27, 1
      %p310 = por %p308, %p309
      %p311 = scmp.ne.s32.totalorder %s303, %s306
      %p312 = scmp.eq.s32.totalorder %s27, 0
      %p313 = por %p311, %p312
      %p314 = scmp.ne.s32.totalorder %s303, %s306
      %p315 = scmp.eq.s32.totalorder %s32, 1
      %p316 = por %p314, %p315
      %p317 = scmp.ne.s32.totalorder %s306, %s307
      %p318 = scmp.eq.s32.totalorder %s32, 0
      %p319 = por %p317, %p318
      %p320 = scmp.ne.s32.totalorder %s306, %s307
      %p321 = scmp.eq.s32.totalorder %s33, 1
      %p322 = por %p320, %p321
      %p324 = scmp.ne.s32.totalorder %s307, %s323
      %p325 = scmp.eq.s32.totalorder %s33, 0
      %p326 = por %p324, %p325
      %s327 = ssub.s32 %s27, %s34
      %p328 = scmp.eq.s32.totalorder %s327, 0
      %s330 = sadd.s32 %s329, 1
      %s331 = scalar_select %p328, %s329, %s330
      %p334 = pneg %p328
      %p335 = scmp.eq.s32.totalorder %s27, 1
      %p336 = por %p334, %p335
      %p337 = scmp.ne.s32.totalorder %s329, %s332
      %p338 = scmp.eq.s32.totalorder %s27, 0
      %p339 = por %p337, %p338
      %p340 = scmp.ne.s32.totalorder %s329, %s332
      %p341 = scmp.eq.s32.totalorder %s32, 1
      %p342 = por %p340, %p341
      %p343 = scmp.ne.s32.totalorder %s332, %s333
      %p344 = scmp.eq.s32.totalorder %s32, 0
      %p345 = por %p343, %p344
      %p346 = scmp.ne.s32.totalorder %s332, %s333
      %p347 = scmp.eq.s32.totalorder %s33, 1
      %p348 = por %p346, %p347
      %p350 = scmp.ne.s32.totalorder %s333, %s349
      %p351 = scmp.eq.s32.totalorder %s33, 0
      %p352 = por %p350, %p351
      %s353 = ssub.s32 %s27, %s34
      %p354 = scmp.eq.s32.totalorder %s353, 0
      %s356 = sadd.s32 %s355, 1
      %s357 = scalar_select %p354, %s355, %s356
      %p360 = pneg %p354
      %p361 = scmp.eq.s32.totalorder %s27, 1
      %p362 = por %p360, %p361
      %p363 = scmp.ne.s32.totalorder %s355, %s358
      %p364 = scmp.eq.s32.totalorder %s27, 0
      %p365 = por %p363, %p364
      %p366 = scmp.ne.s32.totalorder %s355, %s358
      %p367 = scmp.eq.s32.totalorder %s32, 1
      %p368 = por %p366, %p367
      %p369 = scmp.ne.s32.totalorder %s358, %s359
      %p370 = scmp.eq.s32.totalorder %s32, 0
      %p371 = por %p369, %p370
      %p372 = scmp.ne.s32.totalorder %s358, %s359
      %p373 = scmp.eq.s32.totalorder %s33, 1
      %p374 = por %p372, %p373
      %p376 = scmp.ne.s32.totalorder %s359, %s375
      %p377 = scmp.eq.s32.totalorder %s33, 0
      %p378 = por %p376, %p377
      %s379 = ssub.s32 %s27, %s34
      %p380 = scmp.eq.s32.totalorder %s379, 0
      %s382 = sadd.s32 %s381, 1
      %s383 = scalar_select %p380, %s381, %s382
      %p386 = pneg %p380
      %p387 = scmp.eq.s32.totalorder %s27, 1
      %p388 = por %p386, %p387
      %p389 = scmp.ne.s32.totalorder %s381, %s384
      %p390 = scmp.eq.s32.totalorder %s27, 0
      %p391 = por %p389, %p390
      %p392 = scmp.ne.s32.totalorder %s381, %s384
      %p393 = scmp.eq.s32.totalorder %s32, 1
      %p394 = por %p392, %p393
      %p395 = scmp.ne.s32.totalorder %s384, %s385
      %p396 = scmp.eq.s32.totalorder %s32, 0
      %p397 = por %p395, %p396
      %p398 = scmp.ne.s32.totalorder %s384, %s385
      %p399 = scmp.eq.s32.totalorder %s33, 1
      %p400 = por %p398, %p399
      %p402 = scmp.ne.s32.totalorder %s385, %s401
      %p403 = scmp.eq.s32.totalorder %s33, 0
      %p404 = por %p402, %p403
      %s405 = ssub.s32 %s27, %s34
      %p406 = scmp.eq.s32.totalorder %s405, 0
      %s408 = sadd.s32 %s407, 1
      %s409 = scalar_select %p406, %s407, %s408
      %p412 = pneg %p406
      %p413 = scmp.eq.s32.totalorder %s27, 1
      %p414 = por %p412, %p413
      %p415 = scmp.ne.s32.totalorder %s407, %s410
      %p416 = scmp.eq.s32.totalorder %s27, 0
      %p417 = por %p415, %p416
      %p418 = scmp.ne.s32.totalorder %s407, %s410
      %p419 = scmp.eq.s32.totalorder %s32, 1
      %p420 = por %p418, %p419
      %p421 = scmp.ne.s32.totalorder %s410, %s411
      %p422 = scmp.eq.s32.totalorder %s32, 0
      %p423 = por %p421, %p422
      %p424 = scmp.ne.s32.totalorder %s410, %s411
      %p425 = scmp.eq.s32.totalorder %s33, 1
      %p426 = por %p424, %p425
      %p428 = scmp.ne.s32.totalorder %s411, %s427
      %p429 = scmp.eq.s32.totalorder %s33, 0
      %p430 = por %p428, %p429
      %s432 = sadd.s32 %s431, 1
      %p435 = scmp.eq.s32.totalorder %s27, 1
      %p436 = scmp.ne.s32.totalorder %s431, %s433
      %p437 = scmp.eq.s32.totalorder %s27, 0
      %p438 = por %p436, %p437
      %p439 = scmp.ne.s32.totalorder %s431, %s433
      %p440 = scmp.eq.s32.totalorder %s32, 1
      %p441 = por %p439, %p440
      %p442 = scmp.ne.s32.totalorder %s433, %s434
      %p443 = scmp.eq.s32.totalorder %s32, 0
      %p444 = por %p442, %p443
      %p445 = scmp.ne.s32.totalorder %s433, %s434
      %p446 = scmp.eq.s32.totalorder %s33, 1
      %p447 = por %p445, %p446
      %p449 = scmp.ne.s32.totalorder %s434, %s448
      %p450 = scmp.eq.s32.totalorder %s33, 0
      %p451 = por %p449, %p450
      %s453 = sadd.s32 %s452, 1
      %p456 = scmp.eq.s32.totalorder %s27, 1
      %p457 = scmp.ne.s32.totalorder %s452, %s454
      %p458 = scmp.eq.s32.totalorder %s27, 0
      %p459 = por %p457, %p458
      %p460 = scmp.ne.s32.totalorder %s452, %s454
      %p461 = scmp.eq.s32.totalorder %s32, 1
      %p462 = por %p460, %p461
      %p463 = scmp.ne.s32.totalorder %s454, %s455
      %p464 = scmp.eq.s32.totalorder %s32, 0
      %p465 = por %p463, %p464
      %p466 = scmp.ne.s32.totalorder %s454, %s455
      %p467 = scmp.eq.s32.totalorder %s33, 1
      %p468 = por %p466, %p467
      %p470 = scmp.ne.s32.totalorder %s455, %s469
      %p471 = scmp.eq.s32.totalorder %s33, 0
      %p472 = por %p470, %p471
      %s474 = sadd.s32 %s473, 1
      %p477 = scmp.eq.s32.totalorder %s27, 1
      %p478 = scmp.ne.s32.totalorder %s473, %s475
      %p479 = scmp.eq.s32.totalorder %s27, 0
      %p480 = por %p478, %p479
      %p481 = scmp.ne.s32.totalorder %s473, %s475
      %p482 = scmp.eq.s32.totalorder %s32, 1
      %p483 = por %p481, %p482
      %p484 = scmp.ne.s32.totalorder %s475, %s476
      %p485 = scmp.eq.s32.totalorder %s32, 0
      %p486 = por %p484, %p485
      %p487 = scmp.ne.s32.totalorder %s475, %s476
      %p488 = scmp.eq.s32.totalorder %s33, 1
      %p489 = por %p487, %p488
      %p491 = scmp.ne.s32.totalorder %s476, %s490
      %p492 = scmp.eq.s32.totalorder %s33, 0
      %p493 = por %p491, %p492
      %s495 = sadd.s32 %s494, 1
      %p498 = scmp.eq.s32.totalorder %s27, 1
      %p499 = scmp.ne.s32.totalorder %s494, %s496
      %p500 = scmp.eq.s32.totalorder %s27, 0
      %p501 = por %p499, %p500
      %p502 = scmp.ne.s32.totalorder %s494, %s496
      %p503 = scmp.eq.s32.totalorder %s32, 1
      %p504 = por %p502, %p503
      %p505 = scmp.ne.s32.totalorder %s496, %s497
      %p506 = scmp.eq.s32.totalorder %s32, 0
      %p507 = por %p505, %p506
      %p508 = scmp.ne.s32.totalorder %s496, %s497
      %p509 = scmp.eq.s32.totalorder %s33, 1
      %p510 = por %p508, %p509
      %p512 = scmp.ne.s32.totalorder %s497, %s511
      %p513 = scmp.eq.s32.totalorder %s33, 0
      %p514 = por %p512, %p513
      %s516 = sadd.s32 %s515, 1
      %p519 = scmp.eq.s32.totalorder %s27, 1
      %p520 = scmp.ne.s32.totalorder %s515, %s517
      %p521 = scmp.eq.s32.totalorder %s27, 0
      %p522 = por %p520, %p521
      %p523 = scmp.ne.s32.totalorder %s515, %s517
      %p524 = scmp.eq.s32.totalorder %s32, 1
      %p525 = por %p523, %p524
      %p526 = scmp.ne.s32.totalorder %s517, %s518
      %p527 = scmp.eq.s32.totalorder %s32, 0
      %p528 = por %p526, %p527
      %p529 = scmp.ne.s32.totalorder %s517, %s518
      %p530 = scmp.eq.s32.totalorder %s33, 1
      %p531 = por %p529, %p530
      %p533 = scmp.ne.s32.totalorder %s518, %s532
      %p534 = scmp.eq.s32.totalorder %s33, 0
      %p535 = por %p533, %p534
      %p536 = scmp.le.s32.totalorder 1, %s27
      %p537 = scmp.lt.s32.totalorder %s27, 3
      %p538 = pnand %p536, %p537
      %p539 = pneg %p538
      // Predicated region
      $region9: #{forward.1} parent=5 // pred_check
        _
      $region10: #{forward.1} parent=5 // pred_check_branch
        %541 = sbr.rel (%p538) target = $region12
      $region11: #{forward.1} parent=5 // pred_region
        %s542 = ssub.s32 %s27, 1
        // Predicated region
        $region13: #{forward.1} parent=11 // pred_check
          %p543 = pneg %p48
        $region14: #{forward.1} parent=11 // pred_check_branch
          %545 = sbr.rel (%p543) target = $region16
        $region15: #{forward.1} parent=11 // pred_region
          _
        $region16: #{forward.1} parent=11 // pred_fallthru
          _
        // Predicated region
        $region17: #{forward.1} parent=11 // pred_check
          %p546 = pneg %p69
        $region18: #{forward.1} parent=11 // pred_check_branch
          %548 = sbr.rel (%p546) target = $region20
        $region19: #{forward.1} parent=11 // pred_region
          _
        $region20: #{forward.1} parent=11 // pred_fallthru
          _
        // Predicated region
        $region21: #{forward.1} parent=11 // pred_check
          %p549 = pneg %p90
        $region22: #{forward.1} parent=11 // pred_check_branch
          %551 = sbr.rel (%p549) target = $region24
        $region23: #{forward.1} parent=11 // pred_region
          _
        $region24: #{forward.1} parent=11 // pred_fallthru
          _
        // Predicated region
        $region25: #{forward.1} parent=11 // pred_check
          %p552 = pneg %p111
        $region26: #{forward.1} parent=11 // pred_check_branch
          %554 = sbr.rel (%p552) target = $region28
        $region27: #{forward.1} parent=11 // pred_region
          _
        $region28: #{forward.1} parent=11 // pred_fallthru
          _
        // Predicated region
        $region29: #{forward.1} parent=11 // pred_check
          %p555 = pneg %p444
        $region30: #{forward.1} parent=11 // pred_check_branch
          %557 = sbr.rel (%p555) target = $region32
        $region31: #{forward.1} parent=11 // pred_region
          _
        $region32: #{forward.1} parent=11 // pred_fallthru
          _
        // Predicated region
        $region33: #{forward.1} parent=11 // pred_check
          %p558 = pneg %p465
        $region34: #{forward.1} parent=11 // pred_check_branch
          %560 = sbr.rel (%p558) target = $region36
        $region35: #{forward.1} parent=11 // pred_region
          _
        $region36: #{forward.1} parent=11 // pred_fallthru
          _
        // Predicated region
        $region37: #{forward.1} parent=11 // pred_check
          %p561 = pneg %p486
        $region38: #{forward.1} parent=11 // pred_check_branch
          %563 = sbr.rel (%p561) target = $region40
        $region39: #{forward.1} parent=11 // pred_region
          _
        $region40: #{forward.1} parent=11 // pred_fallthru
          _
        // Predicated region
        $region41: #{forward.1} parent=11 // pred_check
          %p564 = pneg %p507
        $region42: #{forward.1} parent=11 // pred_check_branch
          %566 = sbr.rel (%p564) target = $region44
        $region43: #{forward.1} parent=11 // pred_region
          _
        $region44: #{forward.1} parent=11 // pred_fallthru
          _
      $region12: #{forward.1} parent=5 // pred_fallthru
        _
      %p567 = scmp.lt.s32.totalorder %s27, 2
      // Predicated region
      $region45: #{forward.1} parent=5 // pred_check
        %p568 = pneg %p567
      $region46: #{forward.1} parent=5 // pred_check_branch
        %570 = sbr.rel (%p568) target = $region48
      $region47: #{forward.1} parent=5 // pred_region
        // Predicated region
        $region49: #{forward.1} parent=47 // pred_check
          %p571 = pneg %p131
        $region50: #{forward.1} parent=47 // pred_check_branch
          %573 = sbr.rel (%p571) target = $region52
        $region51: #{forward.1} parent=47 // pred_region
          %p574 = scmp.lt.s32.totalorder %s27, 1
          %s575 = scalar_select %p574, %s27, 1
          %s576 = smul.addr %s575, 48
          %s577 = smul.addr %s576, 4
          %s578 = scalar_lea.vmem %s4, %s577
        $region52: #{forward.1} parent=47 // pred_fallthru
          _
        // Predicated region
        $region53: #{forward.1} parent=47 // pred_check
          %p579 = pneg %p157
        $region54: #{forward.1} parent=47 // pred_check_branch
          %581 = sbr.rel (%p579) target = $region56
        $region55: #{forward.1} parent=47 // pred_region
          %p582 = scmp.lt.s32.totalorder %s27, 1
          %s583 = scalar_select %p582, %s27, 1
          %s584 = smul.addr %s583, 3
          %s585 = scalar_lea.vmem %s5, %s584
        $region56: #{forward.1} parent=47 // pred_fallthru
          _
        // Predicated region
        $region57: #{forward.1} parent=47 // pred_check
          %p586 = pneg %p183
        $region58: #{forward.1} parent=47 // pred_check_branch
          %588 = sbr.rel (%p586) target = $region60
        $region59: #{forward.1} parent=47 // pred_region
          %p589 = scmp.lt.s32.totalorder %s27, 1
          %s590 = scalar_select %p589, %s27, 1
          %s591 = smul.addr %s590, 16
          %s592 = smul.addr %s591, 4
          %s593 = scalar_lea.vmem %s6, %s592
        $region60: #{forward.1} parent=47 // pred_fallthru
          _
        // Predicated region
        $region61: #{forward.1} parent=47 // pred_check
          %p594 = pneg %p209
        $region62: #{forward.1} parent=47 // pred_check_branch
          %596 = sbr.rel (%p594) target = $region64
        $region63: #{forward.1} parent=47 // pred_region
          %p597 = scmp.lt.s32.totalorder %s27, 1
          %s598 = scalar_select %p597, %s27, 1
          %s599 = scalar_lea.vmem %s7, %s598
        $region64: #{forward.1} parent=47 // pred_fallthru
          _
        // Predicated region
        $region65: #{forward.1} parent=47 // pred_check
          %p600 = pneg %p235
        $region66: #{forward.1} parent=47 // pred_check_branch
          %602 = sbr.rel (%p600) target = $region68
        $region67: #{forward.1} parent=47 // pred_region
          %p603 = scmp.lt.s32.totalorder %s27, 1
          %s604 = scalar_select %p603, %s27, 1
          %s605 = scalar_lea.vmem %s8, %s604
        $region68: #{forward.1} parent=47 // pred_fallthru
          _
        // Predicated region
        $region69: #{forward.1} parent=47 // pred_check
          %p606 = pneg %p261
        $region70: #{forward.1} parent=47 // pred_check_branch
          %608 = sbr.rel (%p606) target = $region72
        $region71: #{forward.1} parent=47 // pred_region
          %p609 = scmp.lt.s32.totalorder %s27, 1
          %s610 = scalar_select %p609, %s27, 1
          %s611 = scalar_lea.vmem %s9, %s610
        $region72: #{forward.1} parent=47 // pred_fallthru
          _
        // Predicated region
        $region73: #{forward.1} parent=47 // pred_check
          %p612 = pneg %p287
        $region74: #{forward.1} parent=47 // pred_check_branch
          %614 = sbr.rel (%p612) target = $region76
        $region75: #{forward.1} parent=47 // pred_region
          %p615 = scmp.lt.s32.totalorder %s27, 1
          %s616 = scalar_select %p615, %s27, 1
          %s617 = smul.addr %s616, 32
          %s618 = smul.addr %s617, 4
          %s619 = scalar_lea.vmem %s10, %s618
        $region76: #{forward.1} parent=47 // pred_fallthru
          _
        // Predicated region
        $region77: #{forward.1} parent=47 // pred_check
          %p620 = pneg %p313
        $region78: #{forward.1} parent=47 // pred_check_branch
          %622 = sbr.rel (%p620) target = $region80
        $region79: #{forward.1} parent=47 // pred_region
          %p623 = scmp.lt.s32.totalorder %s27, 1
          %s624 = scalar_select %p623, %s27, 1
          %s625 = smul.addr %s624, 2
          %s626 = scalar_lea.vmem %s11, %s625
        $region80: #{forward.1} parent=47 // pred_fallthru
          _
        // Predicated region
        $region81: #{forward.1} parent=47 // pred_check
          %p627 = pneg %p339
        $region82: #{forward.1} parent=47 // pred_check_branch
          %629 = sbr.rel (%p627) target = $region84
        $region83: #{forward.1} parent=47 // pred_region
          %p630 = scmp.lt.s32.totalorder %s27, 1
          %s631 = scalar_select %p630, %s27, 1
          %s632 = smul.addr %s631, 32
          %s633 = smul.addr %s632, 4
          %s634 = scalar_lea.vmem %s12, %s633
        $region84: #{forward.1} parent=47 // pred_fallthru
          _
        // Predicated region
        $region85: #{forward.1} parent=47 // pred_check
          %p635 = pneg %p365
        $region86: #{forward.1} parent=47 // pred_check_branch
          %637 = sbr.rel (%p635) target = $region88
        $region87: #{forward.1} parent=47 // pred_region
          %p638 = scmp.lt.s32.totalorder %s27, 1
          %s639 = scalar_select %p638, %s27, 1
          %s640 = scalar_lea.vmem %s13, %s639
        $region88: #{forward.1} parent=47 // pred_fallthru
          _
        // Predicated region
        $region89: #{forward.1} parent=47 // pred_check
          %p641 = pneg %p391
        $region90: #{forward.1} parent=47 // pred_check_branch
          %643 = sbr.rel (%p641) target = $region92
        $region91: #{forward.1} parent=47 // pred_region
          %p644 = scmp.lt.s32.totalorder %s27, 1
          %s645 = scalar_select %p644, %s27, 1
          %s646 = scalar_lea.vmem %s14, %s645
        $region92: #{forward.1} parent=47 // pred_fallthru
          _
        // Predicated region
        $region93: #{forward.1} parent=47 // pred_check
          %p647 = pneg %p417
        $region94: #{forward.1} parent=47 // pred_check_branch
          %649 = sbr.rel (%p647) target = $region96
        $region95: #{forward.1} parent=47 // pred_region
          %p650 = scmp.lt.s32.totalorder %s27, 1
          %s651 = scalar_select %p650, %s27, 1
          %s652 = scalar_lea.vmem %s15, %s651
        $region96: #{forward.1} parent=47 // pred_fallthru
          _
      $region48: #{forward.1} parent=5 // pred_fallthru
        _
      %p653 = scmp.le.s32.totalorder 1, %s27
      %p654 = scmp.lt.s32.totalorder %s27, 3
      %p655 = pnand %p653, %p654
      %p656 = pneg %p655
      // Predicated region
      $region97: #{forward.1} parent=5 // pred_check
        _
      $region98: #{forward.1} parent=5 // pred_check_branch
        %658 = sbr.rel (%p655) target = $region100
      $region99: #{forward.1} parent=5 // pred_region
        %s659 = ssub.s32 %s27, 1
        %p660 = pneg %p48
        %p661 = pneg %p45
        %p662 = pneg %p69
        %p663 = pneg %p66
        %p664 = pneg %p90
        %p665 = pneg %p87
        %p666 = pneg %p111
        %p667 = pneg %p108
        %p668 = scmp.lt.s32.totalorder %s32, 1
        %s669 = scalar_select %p668, %s32, 1
        %s670 = smul.addr %s669, 48
        %s671 = smul.addr %s670, 4
        %s672 = scalar_lea.vmem %s4, %s671
        %p673 = pneg %p137
        %p674 = pneg %p134
        %p675 = scmp.lt.s32.totalorder %s32, 1
        %s676 = scalar_select %p675, %s32, 1
        %s677 = smul.addr %s676, 3
        %s678 = scalar_lea.vmem %s5, %s677
        %p679 = pneg %p163
        %p680 = pneg %p160
        %p681 = scmp.lt.s32.totalorder %s32, 1
        %s682 = scalar_select %p681, %s32, 1
        %s683 = smul.addr %s682, 16
        %s684 = smul.addr %s683, 4
        %s685 = scalar_lea.vmem %s6, %s684
        %p686 = pneg %p189
        %p687 = pneg %p186
        %p688 = scmp.lt.s32.totalorder %s32, 1
        %s689 = scalar_select %p688, %s32, 1
        %s690 = scalar_lea.vmem %s7, %s689
        %p691 = pneg %p215
        %p692 = pneg %p212
        %p693 = scmp.lt.s32.totalorder %s32, 1
        %s694 = scalar_select %p693, %s32, 1
        %s695 = scalar_lea.vmem %s8, %s694
        %p696 = pneg %p241
        %p697 = pneg %p238
        %p698 = scmp.lt.s32.totalorder %s32, 1
        %s699 = scalar_select %p698, %s32, 1
        %s700 = scalar_lea.vmem %s9, %s699
        %p701 = pneg %p267
        %p702 = pneg %p264
        %p703 = scmp.lt.s32.totalorder %s32, 1
        %s704 = scalar_select %p703, %s32, 1
        %s705 = smul.addr %s704, 32
        %s706 = smul.addr %s705, 4
        %s707 = scalar_lea.vmem %s10, %s706
        %p708 = pneg %p293
        %p709 = pneg %p290
        %p710 = scmp.lt.s32.totalorder %s32, 1
        %s711 = scalar_select %p710, %s32, 1
        %s712 = smul.addr %s711, 2
        %s713 = scalar_lea.vmem %s11, %s712
        %p714 = pneg %p319
        %p715 = pneg %p316
        %p716 = scmp.lt.s32.totalorder %s32, 1
        %s717 = scalar_select %p716, %s32, 1
        %s718 = smul.addr %s717, 32
        %s719 = smul.addr %s718, 4
        %s720 = scalar_lea.vmem %s12, %s719
        %p721 = pneg %p345
        %p722 = pneg %p342
        %p723 = scmp.lt.s32.totalorder %s32, 1
        %s724 = scalar_select %p723, %s32, 1
        %s725 = scalar_lea.vmem %s13, %s724
        %p726 = pneg %p371
        %p727 = pneg %p368
        %p728 = scmp.lt.s32.totalorder %s32, 1
        %s729 = scalar_select %p728, %s32, 1
        %s730 = scalar_lea.vmem %s14, %s729
        %p731 = pneg %p397
        %p732 = pneg %p394
        %p733 = scmp.lt.s32.totalorder %s32, 1
        %s734 = scalar_select %p733, %s32, 1
        %s735 = scalar_lea.vmem %s15, %s734
        %p736 = pneg %p423
        %p737 = pneg %p420
        %p738 = pneg %p444
        %p739 = pneg %p441
        %p740 = pneg %p465
        %p741 = pneg %p462
        %p742 = pneg %p486
        %p743 = pneg %p483
        %p744 = pneg %p507
        %p745 = pneg %p504
        %p746 = pneg %p528
        %p747 = pneg %p525
        %p748 = scmp.lt.s32.totalorder %s32, 1
        %s749 = scalar_select %p748, %s32, 1
        %s750 = smul.addr %s749, 48
        %s751 = smul.addr %s750, 4
        %s752 = scalar_lea.vmem %s4, %s751
        %p753 = scmp.lt.s32.totalorder %s32, 1
        %s754 = scalar_select %p753, %s32, 1
        %s755 = smul.addr %s754, 3
        %s756 = scalar_lea.vmem %s5, %s755
        %p757 = scmp.lt.s32.totalorder %s32, 1
        %s758 = scalar_select %p757, %s32, 1
        %s759 = smul.addr %s758, 16
        %s760 = smul.addr %s759, 4
        %s761 = scalar_lea.vmem %s6, %s760
        %p762 = scmp.lt.s32.totalorder %s32, 1
        %s763 = scalar_select %p762, %s32, 1
        %s764 = scalar_lea.vmem %s7, %s763
        %p765 = scmp.lt.s32.totalorder %s32, 1
        %s766 = scalar_select %p765, %s32, 1
        %s767 = scalar_lea.vmem %s8, %s766
        %p768 = scmp.lt.s32.totalorder %s32, 1
        %s769 = scalar_select %p768, %s32, 1
        %s770 = scalar_lea.vmem %s9, %s769
        %p771 = scmp.lt.s32.totalorder %s32, 1
        %s772 = scalar_select %p771, %s32, 1
        %s773 = smul.addr %s772, 32
        %s774 = smul.addr %s773, 4
        %s775 = scalar_lea.vmem %s10, %s774
        %p776 = scmp.lt.s32.totalorder %s32, 1
        %s777 = scalar_select %p776, %s32, 1
        %s778 = smul.addr %s777, 2
        %s779 = scalar_lea.vmem %s11, %s778
        %p780 = scmp.lt.s32.totalorder %s32, 1
        %s781 = scalar_select %p780, %s32, 1
        %s782 = smul.addr %s781, 32
        %s783 = smul.addr %s782, 4
        %s784 = scalar_lea.vmem %s12, %s783
        %p785 = scmp.lt.s32.totalorder %s32, 1
        %s786 = scalar_select %p785, %s32, 1
        %s787 = scalar_lea.vmem %s13, %s786
        %p788 = scmp.lt.s32.totalorder %s32, 1
        %s789 = scalar_select %p788, %s32, 1
        %s790 = scalar_lea.vmem %s14, %s789
        %p791 = scmp.lt.s32.totalorder %s32, 1
        %s792 = scalar_select %p791, %s32, 1
        %s793 = scalar_lea.vmem %s15, %s792
        %p794 = scmp.eq.s32.totalorder %s32, 0
        // Predicated region
        $region101: #{forward.1} parent=99 // pred_check
          %p795 = pneg %p794
        $region102: #{forward.1} parent=99 // pred_check_branch
          %797 = sbr.rel (%p795) target = $region104
        $region103: #{forward.1} parent=99 // pred_region
          %v798 = vld [vmem:[%s0] sm:$0xff]
          %v799 = vld [vmem:[%s0 + $0x8] sm:$0xff]
          %v800 = vld [vmem:[%s0 + $0x10] sm:$0xff]
          %v801 = vld [vmem:[%s0 + $0x18] sm:$0xff]
          %v802 = vld [vmem:[%s0 + $0x20] sm:$0xff]
          %v803 = vld [vmem:[%s0 + $0x28] sm:$0xff]
          %v804 = vld [vmem:[%s0 + $0x30] sm:$0xff]
          %v805 = vld [vmem:[%s0 + $0x38] sm:$0xff]
          %v806 = vld [vmem:[%s0 + $0x40] sm:$0xff]
          %v807 = vld [vmem:[%s0 + $0x48] sm:$0xff]
          %v808 = vld [vmem:[%s0 + $0x50] sm:$0xff]
          %v809 = vld [vmem:[%s0 + $0x58] sm:$0xff]
          %v810 = vld [vmem:[%s0 + $0x60] sm:$0xff]
          %v811 = vld [vmem:[%s0 + $0x68] sm:$0xff]
          %v812 = vld [vmem:[%s0 + $0x70] sm:$0xff]
          %v813 = vld [vmem:[%s0 + $0x78] sm:$0xff]
          %v814 = vld [vmem:[%s2] sm:$0x1]
          %v815 = vld [vmem:[%s3] sm:$0x1]
          %816 = vadd.xlane.f32.xlu0 %v798
          %v817 = vpop.xlane.xlu0 %816
          %818 = vadd.xlane.f32.xlu0 %v799
          %v819 = vpop.xlane.xlu0 %818
          %820 = vadd.xlane.f32.xlu0 %v800
          %v821 = vpop.xlane.xlu0 %820
          %822 = vadd.xlane.f32.xlu0 %v801
          %v823 = vpop.xlane.xlu0 %822
          %824 = vadd.xlane.f32.xlu0 %v802
          %v825 = vpop.xlane.xlu0 %824
          %826 = vadd.xlane.f32.xlu0 %v803
          %v827 = vpop.xlane.xlu0 %826
          %828 = vadd.xlane.f32.xlu0 %v804
          %v829 = vpop.xlane.xlu0 %828
          %830 = vadd.xlane.f32.xlu0 %v805
          %v831 = vpop.xlane.xlu0 %830
          %832 = vadd.xlane.f32.xlu0 %v806
          %v833 = vpop.xlane.xlu0 %832
          %834 = vadd.xlane.f32.xlu0 %v807
          %v835 = vpop.xlane.xlu0 %834
          %836 = vadd.xlane.f32.xlu0 %v808
          %v837 = vpop.xlane.xlu0 %836
          %838 = vadd.xlane.f32.xlu0 %v809
          %v839 = vpop.xlane.xlu0 %838
          %840 = vadd.xlane.f32.xlu0 %v810
          %v841 = vpop.xlane.xlu0 %840
          %842 = vadd.xlane.f32.xlu0 %v811
          %v843 = vpop.xlane.xlu0 %842
          %844 = vadd.xlane.f32.xlu0 %v812
          %v845 = vpop.xlane.xlu0 %844
          %846 = vadd.xlane.f32.xlu0 %v813
          %v847 = vpop.xlane.xlu0 %846
          %v848 = vrcp.pop 128.0
          %v849 = vmul.f32 128.0, %v848
          %v850 = vsub.f32 1.0, %v849
          %v851 = vmul.f32 %v848, %v850
          %v852 = vadd.f32 %v848, %v851
          %vm853 = vweird.f32 %v848
          %v854 = vsel %vm853, %v848, %v852
          %v855 = vmul.f32 %v817, %v854
          %v856 = vmul.f32 %v819, %v854
          %v857 = vmul.f32 %v821, %v854
          %v858 = vmul.f32 %v823, %v854
          %v859 = vmul.f32 %v825, %v854
          %v860 = vmul.f32 %v827, %v854
          %v861 = vmul.f32 %v829, %v854
          %v862 = vmul.f32 %v831, %v854
          %v863 = vmul.f32 %v833, %v854
          %v864 = vmul.f32 %v835, %v854
          %v865 = vmul.f32 %v837, %v854
          %v866 = vmul.f32 %v839, %v854
          %v867 = vmul.f32 %v841, %v854
          %v868 = vmul.f32 %v843, %v854
          %v869 = vmul.f32 %v845, %v854
          %v870 = vmul.f32 %v847, %v854
          %v871 = vsub.f32 %v798, %v855
          %v872 = vsub.f32 %v799, %v856
          %v873 = vsub.f32 %v800, %v857
          %v874 = vsub.f32 %v801, %v858
          %v875 = vsub.f32 %v802, %v859
          %v876 = vsub.f32 %v803, %v860
          %v877 = vsub.f32 %v804, %v861
          %v878 = vsub.f32 %v805, %v862
          %v879 = vsub.f32 %v806, %v863
          %v880 = vsub.f32 %v807, %v864
          %v881 = vsub.f32 %v808, %v865
          %v882 = vsub.f32 %v809, %v866
          %v883 = vsub.f32 %v810, %v867
          %v884 = vsub.f32 %v811, %v868
          %v885 = vsub.f32 %v812, %v869
          %v886 = vsub.f32 %v813, %v870
          %v887 = vmul.f32 %v871, %v871
          %v888 = vmul.f32 %v872, %v872
          %v889 = vmul.f32 %v873, %v873
          %v890 = vmul.f32 %v874, %v874
          %v891 = vmul.f32 %v875, %v875
          %v892 = vmul.f32 %v876, %v876
          %v893 = vmul.f32 %v877, %v877
          %v894 = vmul.f32 %v878, %v878
          %v895 = vmul.f32 %v879, %v879
          %v896 = vmul.f32 %v880, %v880
          %v897 = vmul.f32 %v881, %v881
          %v898 = vmul.f32 %v882, %v882
          %v899 = vmul.f32 %v883, %v883
          %v900 = vmul.f32 %v884, %v884
          %v901 = vmul.f32 %v885, %v885
          %v902 = vmul.f32 %v886, %v886
          %903 = vadd.xlane.f32.xlu0 %v887
          %v904 = vpop.xlane.xlu0 %903
          %905 = vadd.xlane.f32.xlu0 %v888
          %v906 = vpop.xlane.xlu0 %905
          %907 = vadd.xlane.f32.xlu0 %v889
          %v908 = vpop.xlane.xlu0 %907
          %909 = vadd.xlane.f32.xlu0 %v890
          %v910 = vpop.xlane.xlu0 %909
          %911 = vadd.xlane.f32.xlu0 %v891
          %v912 = vpop.xlane.xlu0 %911
          %913 = vadd.xlane.f32.xlu0 %v892
          %v914 = vpop.xlane.xlu0 %913
          %915 = vadd.xlane.f32.xlu0 %v893
          %v916 = vpop.xlane.xlu0 %915
          %917 = vadd.xlane.f32.xlu0 %v894
          %v918 = vpop.xlane.xlu0 %917
          %919 = vadd.xlane.f32.xlu0 %v895
          %v920 = vpop.xlane.xlu0 %919
          %921 = vadd.xlane.f32.xlu0 %v896
          %v922 = vpop.xlane.xlu0 %921
          %923 = vadd.xlane.f32.xlu0 %v897
          %v924 = vpop.xlane.xlu0 %923
          %925 = vadd.xlane.f32.xlu0 %v898
          %v926 = vpop.xlane.xlu0 %925
          %927 = vadd.xlane.f32.xlu0 %v899
          %v928 = vpop.xlane.xlu0 %927
          %929 = vadd.xlane.f32.xlu0 %v900
          %v930 = vpop.xlane.xlu0 %929
          %931 = vadd.xlane.f32.xlu0 %v901
          %v932 = vpop.xlane.xlu0 %931
          %933 = vadd.xlane.f32.xlu0 %v902
          %v934 = vpop.xlane.xlu0 %933
          %v935 = vmul.f32 %v904, %v854
          %v936 = vmul.f32 %v906, %v854
          %v937 = vmul.f32 %v908, %v854
          %v938 = vmul.f32 %v910, %v854
          %v939 = vmul.f32 %v912, %v854
          %v940 = vmul.f32 %v914, %v854
          %v941 = vmul.f32 %v916, %v854
          %v942 = vmul.f32 %v918, %v854
          %v943 = vmul.f32 %v920, %v854
          %v944 = vmul.f32 %v922, %v854
          %v945 = vmul.f32 %v924, %v854
          %v946 = vmul.f32 %v926, %v854
          %v947 = vmul.f32 %v928, %v854
          %v948 = vmul.f32 %v930, %v854
          %v949 = vmul.f32 %v932, %v854
          %v950 = vmul.f32 %v934, %v854
          %v951 = vadd.f32 %v935, 1e-05
          %v952 = vadd.f32 %v936, 1e-05
          %v953 = vadd.f32 %v937, 1e-05
          %v954 = vadd.f32 %v938, 1e-05
          %v955 = vadd.f32 %v939, 1e-05
          %v956 = vadd.f32 %v940, 1e-05
          %v957 = vadd.f32 %v941, 1e-05
          %v958 = vadd.f32 %v942, 1e-05
          %v959 = vadd.f32 %v943, 1e-05
          %v960 = vadd.f32 %v944, 1e-05
          %v961 = vadd.f32 %v945, 1e-05
          %v962 = vadd.f32 %v946, 1e-05
          %v963 = vadd.f32 %v947, 1e-05
          %v964 = vadd.f32 %v948, 1e-05
          %v965 = vadd.f32 %v949, 1e-05
          %v966 = vadd.f32 %v950, 1e-05
          %v967 = vrsqrt.pop %v951
          %v968 = vmul.f32 %v967, %v951
          %v969 = vmul.f32 %v968, %v967
          %v970 = vmul.f32 0.5, %v969
          %v971 = vsub.f32 1.5, %v970
          %v972 = vmul.f32 %v967, %v971
          %vm973 = vweird.f32 %v951
          %vm974 = vweird.f32 %v967
          %vm975 = vmor %vm973, %vm974
          %v976 = vsel %vm975, %v967, %v972
          %v977 = vrsqrt.pop %v952
          %v978 = vmul.f32 %v977, %v952
          %v979 = vmul.f32 %v978, %v977
          %v980 = vmul.f32 0.5, %v979
          %v981 = vsub.f32 1.5, %v980
          %v982 = vmul.f32 %v977, %v981
          %vm983 = vweird.f32 %v952
          %vm984 = vweird.f32 %v977
          %vm985 = vmor %vm983, %vm984
          %v986 = vsel %vm985, %v977, %v982
          %v987 = vrsqrt.pop %v953
          %v988 = vmul.f32 %v987, %v953
          %v989 = vmul.f32 %v988, %v987
          %v990 = vmul.f32 0.5, %v989
          %v991 = vsub.f32 1.5, %v990
          %v992 = vmul.f32 %v987, %v991
          %vm993 = vweird.f32 %v953
          %vm994 = vweird.f32 %v987
          %vm995 = vmor %vm993, %vm994
          %v996 = vsel %vm995, %v987, %v992
          %v997 = vrsqrt.pop %v954
          %v998 = vmul.f32 %v997, %v954
          %v999 = vmul.f32 %v998, %v997
          %v1000 = vmul.f32 0.5, %v999
          %v1001 = vsub.f32 1.5, %v1000
          %v1002 = vmul.f32 %v997, %v1001
          %vm1003 = vweird.f32 %v954
          %vm1004 = vweird.f32 %v997
          %vm1005 = vmor %vm1003, %vm1004
          %v1006 = vsel %vm1005, %v997, %v1002
          %v1007 = vrsqrt.pop %v955
          %v1008 = vmul.f32 %v1007, %v955
          %v1009 = vmul.f32 %v1008, %v1007
          %v1010 = vmul.f32 0.5, %v1009
          %v1011 = vsub.f32 1.5, %v1010
          %v1012 = vmul.f32 %v1007, %v1011
          %vm1013 = vweird.f32 %v955
          %vm1014 = vweird.f32 %v1007
          %vm1015 = vmor %vm1013, %vm1014
          %v1016 = vsel %vm1015, %v1007, %v1012
          %v1017 = vrsqrt.pop %v956
          %v1018 = vmul.f32 %v1017, %v956
          %v1019 = vmul.f32 %v1018, %v1017
          %v1020 = vmul.f32 0.5, %v1019
          %v1021 = vsub.f32 1.5, %v1020
          %v1022 = vmul.f32 %v1017, %v1021
          %vm1023 = vweird.f32 %v956
          %vm1024 = vweird.f32 %v1017
          %vm1025 = vmor %vm1023, %vm1024
          %v1026 = vsel %vm1025, %v1017, %v1022
          %v1027 = vrsqrt.pop %v957
          %v1028 = vmul.f32 %v1027, %v957
          %v1029 = vmul.f32 %v1028, %v1027
          %v1030 = vmul.f32 0.5, %v1029
          %v1031 = vsub.f32 1.5, %v1030
          %v1032 = vmul.f32 %v1027, %v1031
          %vm1033 = vweird.f32 %v957
          %vm1034 = vweird.f32 %v1027
          %vm1035 = vmor %vm1033, %vm1034
          %v1036 = vsel %vm1035, %v1027, %v1032
          %v1037 = vrsqrt.pop %v958
          %v1038 = vmul.f32 %v1037, %v958
          %v1039 = vmul.f32 %v1038, %v1037
          %v1040 = vmul.f32 0.5, %v1039
          %v1041 = vsub.f32 1.5, %v1040
          %v1042 = vmul.f32 %v1037, %v1041
          %vm1043 = vweird.f32 %v958
          %vm1044 = vweird.f32 %v1037
          %vm1045 = vmor %vm1043, %vm1044
          %v1046 = vsel %vm1045, %v1037, %v1042
          %v1047 = vrsqrt.pop %v959
          %v1048 = vmul.f32 %v1047, %v959
          %v1049 = vmul.f32 %v1048, %v1047
          %v1050 = vmul.f32 0.5, %v1049
          %v1051 = vsub.f32 1.5, %v1050
          %v1052 = vmul.f32 %v1047, %v1051
          %vm1053 = vweird.f32 %v959
          %vm1054 = vweird.f32 %v1047
          %vm1055 = vmor %vm1053, %vm1054
          %v1056 = vsel %vm1055, %v1047, %v1052
          %v1057 = vrsqrt.pop %v960
          %v1058 = vmul.f32 %v1057, %v960
          %v1059 = vmul.f32 %v1058, %v1057
          %v1060 = vmul.f32 0.5, %v1059
          %v1061 = vsub.f32 1.5, %v1060
          %v1062 = vmul.f32 %v1057, %v1061
          %vm1063 = vweird.f32 %v960
          %vm1064 = vweird.f32 %v1057
          %vm1065 = vmor %vm1063, %vm1064
          %v1066 = vsel %vm1065, %v1057, %v1062
          %v1067 = vrsqrt.pop %v961
          %v1068 = vmul.f32 %v1067, %v961
          %v1069 = vmul.f32 %v1068, %v1067
          %v1070 = vmul.f32 0.5, %v1069
          %v1071 = vsub.f32 1.5, %v1070
          %v1072 = vmul.f32 %v1067, %v1071
          %vm1073 = vweird.f32 %v961
          %vm1074 = vweird.f32 %v1067
          %vm1075 = vmor %vm1073, %vm1074
          %v1076 = vsel %vm1075, %v1067, %v1072
          %v1077 = vrsqrt.pop %v962
          %v1078 = vmul.f32 %v1077, %v962
          %v1079 = vmul.f32 %v1078, %v1077
          %v1080 = vmul.f32 0.5, %v1079
          %v1081 = vsub.f32 1.5, %v1080
          %v1082 = vmul.f32 %v1077, %v1081
          %vm1083 = vweird.f32 %v962
          %vm1084 = vweird.f32 %v1077
          %vm1085 = vmor %vm1083, %vm1084
          %v1086 = vsel %vm1085, %v1077, %v1082
          %v1087 = vrsqrt.pop %v963
          %v1088 = vmul.f32 %v1087, %v963
          %v1089 = vmul.f32 %v1088, %v1087
          %v1090 = vmul.f32 0.5, %v1089
          %v1091 = vsub.f32 1.5, %v1090
          %v1092 = vmul.f32 %v1087, %v1091
          %vm1093 = vweird.f32 %v963
          %vm1094 = vweird.f32 %v1087
          %vm1095 = vmor %vm1093, %vm1094
          %v1096 = vsel %vm1095, %v1087, %v1092
          %v1097 = vrsqrt.pop %v964
          %v1098 = vmul.f32 %v1097, %v964
          %v1099 = vmul.f32 %v1098, %v1097
          %v1100 = vmul.f32 0.5, %v1099
          %v1101 = vsub.f32 1.5, %v1100
          %v1102 = vmul.f32 %v1097, %v1101
          %vm1103 = vweird.f32 %v964
          %vm1104 = vweird.f32 %v1097
          %vm1105 = vmor %vm1103, %vm1104
          %v1106 = vsel %vm1105, %v1097, %v1102
          %v1107 = vrsqrt.pop %v965
          %v1108 = vmul.f32 %v1107, %v965
          %v1109 = vmul.f32 %v1108, %v1107
          %v1110 = vmul.f32 0.5, %v1109
          %v1111 = vsub.f32 1.5, %v1110
          %v1112 = vmul.f32 %v1107, %v1111
          %vm1113 = vweird.f32 %v965
          %vm1114 = vweird.f32 %v1107
          %vm1115 = vmor %vm1113, %vm1114
          %v1116 = vsel %vm1115, %v1107, %v1112
          %v1117 = vrsqrt.pop %v966
          %v1118 = vmul.f32 %v1117, %v966
          %v1119 = vmul.f32 %v1118, %v1117
          %v1120 = vmul.f32 0.5, %v1119
          %v1121 = vsub.f32 1.5, %v1120
          %v1122 = vmul.f32 %v1117, %v1121
          %vm1123 = vweird.f32 %v966
          %vm1124 = vweird.f32 %v1117
          %vm1125 = vmor %vm1123, %vm1124
          %v1126 = vsel %vm1125, %v1117, %v1122
          %v1127 = vmul.f32 %v871, %v976
          %v1128 = vmul.f32 %v872, %v986
          %v1129 = vmul.f32 %v873, %v996
          %v1130 = vmul.f32 %v874, %v1006
          %v1131 = vmul.f32 %v875, %v1016
          %v1132 = vmul.f32 %v876, %v1026
          %v1133 = vmul.f32 %v877, %v1036
          %v1134 = vmul.f32 %v878, %v1046
          %v1135 = vmul.f32 %v879, %v1056
          %v1136 = vmul.f32 %v880, %v1066
          %v1137 = vmul.f32 %v881, %v1076
          %v1138 = vmul.f32 %v882, %v1086
          %v1139 = vmul.f32 %v883, %v1096
          %v1140 = vmul.f32 %v884, %v1106
          %v1141 = vmul.f32 %v885, %v1116
          %v1142 = vmul.f32 %v886, %v1126
          %v1144 = vperm.slane %v814, 0
          %v1146 = vmul.f32 %v1127, %v1144
          %v1147 = vmul.f32 %v1128, %v1144
          %v1148 = vmul.f32 %v1129, %v1144
          %v1149 = vmul.f32 %v1130, %v1144
          %v1150 = vmul.f32 %v1131, %v1144
          %v1151 = vmul.f32 %v1132, %v1144
          %v1152 = vmul.f32 %v1133, %v1144
          %v1153 = vmul.f32 %v1134, %v1144
          %v1154 = vmul.f32 %v1135, %v1144
          %v1155 = vmul.f32 %v1136, %v1144
          %v1156 = vmul.f32 %v1137, %v1144
          %v1157 = vmul.f32 %v1138, %v1144
          %v1158 = vmul.f32 %v1139, %v1144
          %v1159 = vmul.f32 %v1140, %v1144
          %v1160 = vmul.f32 %v1141, %v1144
          %v1161 = vmul.f32 %v1142, %v1144
          %v1163 = vperm.slane %v815, 0
          %v1165 = vadd.f32 %v1146, %v1163
          %v1166 = vadd.f32 %v1147, %v1163
          %v1167 = vadd.f32 %v1148, %v1163
          %v1168 = vadd.f32 %v1149, %v1163
          %v1169 = vadd.f32 %v1150, %v1163
          %v1170 = vadd.f32 %v1151, %v1163
          %v1171 = vadd.f32 %v1152, %v1163
          %v1172 = vadd.f32 %v1153, %v1163
          %v1173 = vadd.f32 %v1154, %v1163
          %v1174 = vadd.f32 %v1155, %v1163
          %v1175 = vadd.f32 %v1156, %v1163
          %v1176 = vadd.f32 %v1157, %v1163
          %v1177 = vadd.f32 %v1158, %v1163
          %v1178 = vadd.f32 %v1159, %v1163
          %v1179 = vadd.f32 %v1160, %v1163
          %v1180 = vadd.f32 %v1161, %v1163
          %1181 = vst [vmem:[#allocation2] sm:$0xff] %v1165
          %1182 = vst [vmem:[#allocation2 + $0x8] sm:$0xff] %v1166
          %1183 = vst [vmem:[#allocation2 + $0x10] sm:$0xff] %v1167
          %1184 = vst [vmem:[#allocation2 + $0x18] sm:$0xff] %v1168
          %1185 = vst [vmem:[#allocation2 + $0x20] sm:$0xff] %v1169
          %1186 = vst [vmem:[#allocation2 + $0x28] sm:$0xff] %v1170
          %1187 = vst [vmem:[#allocation2 + $0x30] sm:$0xff] %v1171
          %1188 = vst [vmem:[#allocation2 + $0x38] sm:$0xff] %v1172
          %1189 = vst [vmem:[#allocation2 + $0x40] sm:$0xff] %v1173
          %1190 = vst [vmem:[#allocation2 + $0x48] sm:$0xff] %v1174
          %1191 = vst [vmem:[#allocation2 + $0x50] sm:$0xff] %v1175
          %1192 = vst [vmem:[#allocation2 + $0x58] sm:$0xff] %v1176
          %1193 = vst [vmem:[#allocation2 + $0x60] sm:$0xff] %v1177
          %1194 = vst [vmem:[#allocation2 + $0x68] sm:$0xff] %v1178
          %1195 = vst [vmem:[#allocation2 + $0x70] sm:$0xff] %v1179
          %1196 = vst [vmem:[#allocation2 + $0x78] sm:$0xff] %v1180
        $region104: #{forward.1} parent=99 // pred_fallthru
          _
        %v1197 = vld [vmem:[#allocation2] sm:$0xff]
        %v1198 = vld [vmem:[#allocation2 + $0x8] sm:$0xff]
        %v1199 = vld [vmem:[#allocation2 + $0x10] sm:$0xff]
        %v1200 = vld [vmem:[#allocation2 + $0x18] sm:$0xff]
        %v1201 = vld [vmem:[#allocation2 + $0x20] sm:$0xff]
        %v1202 = vld [vmem:[#allocation2 + $0x28] sm:$0xff]
        %v1203 = vld [vmem:[#allocation2 + $0x30] sm:$0xff]
        %v1204 = vld [vmem:[#allocation2 + $0x38] sm:$0xff]
        %v1205 = vld [vmem:[#allocation2 + $0x40] sm:$0xff]
        %v1206 = vld [vmem:[#allocation2 + $0x48] sm:$0xff]
        %v1207 = vld [vmem:[#allocation2 + $0x50] sm:$0xff]
        %v1208 = vld [vmem:[#allocation2 + $0x58] sm:$0xff]
        %v1209 = vld [vmem:[#allocation2 + $0x60] sm:$0xff]
        %v1210 = vld [vmem:[#allocation2 + $0x68] sm:$0xff]
        %v1211 = vld [vmem:[#allocation2 + $0x70] sm:$0xff]
        %v1212 = vld [vmem:[#allocation2 + $0x78] sm:$0xff]
        %v1213 = vpack.c.bf16 %v1198, %v1197
        %v1214 = vpack.c.bf16 %v1200, %v1199
        %v1215 = vpack.c.bf16 %v1202, %v1201
        %v1216 = vpack.c.bf16 %v1204, %v1203
        %v1217 = vpack.c.bf16 %v1206, %v1205
        %v1218 = vpack.c.bf16 %v1208, %v1207
        %v1219 = vpack.c.bf16 %v1210, %v1209
        %v1220 = vpack.c.bf16 %v1212, %v1211
        %v1221 = vld [vmem:[%s752] sm:$0xff]
        %v1222 = vld [vmem:[%s752 + $0x8] sm:$0xf]
        %v1223 = vld [vmem:[%s752 + $0xc] sm:$0xff]
        %v1224 = vld [vmem:[%s752 + $0x14] sm:$0xf]
        %v1225 = vld [vmem:[%s752 + $0x18] sm:$0xff]
        %v1226 = vld [vmem:[%s752 + $0x20] sm:$0xf]
        %v1227 = vld [vmem:[%s752 + $0x24] sm:$0xff]
        %v1228 = vld [vmem:[%s752 + $0x2c] sm:$0xf]
        %v1229 = vld [vmem:[%s752 + $0x30] sm:$0xff]
        %v1230 = vld [vmem:[%s752 + $0x38] sm:$0xf]
        %v1231 = vld [vmem:[%s752 + $0x3c] sm:$0xff]
        %v1232 = vld [vmem:[%s752 + $0x44] sm:$0xf]
        %v1233 = vld [vmem:[%s752 + $0x48] sm:$0xff]
        %v1234 = vld [vmem:[%s752 + $0x50] sm:$0xf]
        %v1235 = vld [vmem:[%s752 + $0x54] sm:$0xff]
        %v1236 = vld [vmem:[%s752 + $0x5c] sm:$0xf]
        %v1237 = vld [vmem:[%s752 + $0x60] sm:$0xff]
        %v1238 = vld [vmem:[%s752 + $0x68] sm:$0xf]
        %v1239 = vld [vmem:[%s752 + $0x6c] sm:$0xff]
        %v1240 = vld [vmem:[%s752 + $0x74] sm:$0xf]
        %v1241 = vld [vmem:[%s752 + $0x78] sm:$0xff]
        %v1242 = vld [vmem:[%s752 + $0x80] sm:$0xf]
        %v1243 = vld [vmem:[%s752 + $0x84] sm:$0xff]
        %v1244 = vld [vmem:[%s752 + $0x8c] sm:$0xf]
        %v1245 = vld [vmem:[%s752 + $0x90] sm:$0xff]
        %v1246 = vld [vmem:[%s752 + $0x98] sm:$0xf]
        %v1247 = vld [vmem:[%s752 + $0x9c] sm:$0xff]
        %v1248 = vld [vmem:[%s752 + $0xa4] sm:$0xf]
        %v1249 = vld [vmem:[%s752 + $0xa8] sm:$0xff]
        %v1250 = vld [vmem:[%s752 + $0xb0] sm:$0xf]
        %v1251 = vld [vmem:[%s752 + $0xb4] sm:$0xff]
        %v1252 = vld [vmem:[%s752 + $0xbc] sm:$0xf]
        %v1253 = vld [vmem:[%s756] sm:$0x7]
        %v1255 = vperm.slane %v1253, 0
        %v1256 = vperm.slane %v1253, 1
        %v1257 = vperm.slane %v1253, 2
        %v1293 = vunpack.c.l.b16 %v1221
        %v1294 = vunpack.c.h.b16 %v1221
        %v1295 = vunpack.c.l.b16 %v1222
        %v1296 = vunpack.c.l.b16 %v1223
        %v1297 = vunpack.c.h.b16 %v1223
        %v1298 = vunpack.c.l.b16 %v1224
        %v1299 = vunpack.c.l.b16 %v1225
        %v1300 = vunpack.c.h.b16 %v1225
        %v1301 = vunpack.c.l.b16 %v1226
        %v1302 = vunpack.c.l.b16 %v1227
        %v1303 = vunpack.c.h.b16 %v1227
        %v1304 = vunpack.c.l.b16 %v1228
        %v1305 = vunpack.c.l.b16 %v1229
        %v1306 = vunpack.c.h.b16 %v1229
        %v1307 = vunpack.c.l.b16 %v1230
        %v1308 = vunpack.c.l.b16 %v1231
        %v1309 = vunpack.c.h.b16 %v1231
        %v1310 = vunpack.c.l.b16 %v1232
        %v1311 = vunpack.c.l.b16 %v1233
        %v1312 = vunpack.c.h.b16 %v1233
        %v1313 = vunpack.c.l.b16 %v1234
        %v1314 = vunpack.c.l.b16 %v1235
        %v1315 = vunpack.c.h.b16 %v1235
        %v1316 = vunpack.c.l.b16 %v1236
        %v1317 = vunpack.c.l.b16 %v1237
        %v1318 = vunpack.c.h.b16 %v1237
        %v1319 = vunpack.c.l.b16 %v1238
        %v1320 = vunpack.c.l.b16 %v1239
        %v1321 = vunpack.c.h.b16 %v1239
        %v1322 = vunpack.c.l.b16 %v1240
        %v1323 = vunpack.c.l.b16 %v1241
        %v1324 = vunpack.c.h.b16 %v1241
        %v1325 = vunpack.c.l.b16 %v1242
        %v1326 = vunpack.c.l.b16 %v1243
        %v1327 = vunpack.c.h.b16 %v1243
        %v1328 = vunpack.c.l.b16 %v1244
        %v1329 = vunpack.c.l.b16 %v1245
        %v1330 = vunpack.c.h.b16 %v1245
        %v1331 = vunpack.c.l.b16 %v1246
        %v1332 = vunpack.c.l.b16 %v1247
        %v1333 = vunpack.c.h.b16 %v1247
        %v1334 = vunpack.c.l.b16 %v1248
        %v1335 = vunpack.c.l.b16 %v1249
        %v1336 = vunpack.c.h.b16 %v1249
        %v1337 = vunpack.c.l.b16 %v1250
        %v1338 = vunpack.c.l.b16 %v1251
        %v1339 = vunpack.c.h.b16 %v1251
        %v1340 = vunpack.c.l.b16 %v1252
        %v1341 = vpack.c.b16 %v1296, %v1293
        %v1342 = vpack.c.b16 %v1297, %v1294
        %v1343 = vpack.c.b16 %v1298, %v1295
        %v1344 = vpack.c.b16 %v1302, %v1299
        %v1345 = vpack.c.b16 %v1303, %v1300
        %v1346 = vpack.c.b16 %v1304, %v1301
        %v1347 = vpack.c.b16 %v1308, %v1305
        %v1348 = vpack.c.b16 %v1309, %v1306
        %v1349 = vpack.c.b16 %v1310, %v1307
        %v1350 = vpack.c.b16 %v1314, %v1311
        %v1351 = vpack.c.b16 %v1315, %v1312
        %v1352 = vpack.c.b16 %v1316, %v1313
        %v1353 = vpack.c.b16 %v1320, %v1317
        %v1354 = vpack.c.b16 %v1321, %v1318
        %v1355 = vpack.c.b16 %v1322, %v1319
        %v1356 = vpack.c.b16 %v1326, %v1323
        %v1357 = vpack.c.b16 %v1327, %v1324
        %v1358 = vpack.c.b16 %v1328, %v1325
        %v1359 = vpack.c.b16 %v1332, %v1329
        %v1360 = vpack.c.b16 %v1333, %v1330
        %v1361 = vpack.c.b16 %v1334, %v1331
        %v1362 = vpack.c.b16 %v1338, %v1335
        %v1363 = vpack.c.b16 %v1339, %v1336
        %v1364 = vpack.c.b16 %v1340, %v1337
        %1389 = vmatpush.bf16.msra.mxu0 %v1362
        %1390 = vmatpush.bf16.msra.mxu0 %v1359
        %1391 = vmatpush.bf16.msra.mxu0 %v1356
        %1392 = vmatpush.bf16.msra.mxu0 %v1353
        %1393 = vmatpush.bf16.msra.mxu0 %v1350
        %1394 = vmatpush.bf16.msra.mxu0 %v1347
        %1395 = vmatpush.bf16.msra.mxu0 %v1344
        %1396 = vmatpush.bf16.msra.mxu0 %v1341
        %1397 = vmatmul.bf16.gmra.mxu0 %v1213
        %v1398 = vpop.f32.mrf.mxu0
        %v1399 = vadd.f32 %v1255, %v1398
        %v1400 = vpop.f32.mrf.mxu0
        %v1401 = vadd.f32 %v1255, %v1400
        %1402 = vmatmul.bf16.gmra.mxu0 %v1214
        %v1403 = vpop.f32.mrf.mxu0
        %v1404 = vadd.f32 %v1255, %v1403
        %v1405 = vpop.f32.mrf.mxu0
        %v1406 = vadd.f32 %v1255, %v1405
        %1407 = vmatmul.bf16.gmra.mxu0 %v1215
        %v1408 = vpop.f32.mrf.mxu0
        %v1409 = vadd.f32 %v1255, %v1408
        %v1410 = vpop.f32.mrf.mxu0
        %v1411 = vadd.f32 %v1255, %v1410
        %1412 = vmatmul.bf16.gmra.mxu0 %v1216
        %v1413 = vpop.f32.mrf.mxu0
        %v1414 = vadd.f32 %v1255, %v1413
        %v1415 = vpop.f32.mrf.mxu0
        %v1416 = vadd.f32 %v1255, %v1415
        %1417 = vmatmul.bf16.gmra.mxu0 %v1217
        %v1418 = vpop.f32.mrf.mxu0
        %v1419 = vadd.f32 %v1255, %v1418
        %v1420 = vpop.f32.mrf.mxu0
        %v1421 = vadd.f32 %v1255, %v1420
        %1422 = vmatmul.bf16.gmra.mxu0 %v1218
        %v1423 = vpop.f32.mrf.mxu0
        %v1424 = vadd.f32 %v1255, %v1423
        %v1425 = vpop.f32.mrf.mxu0
        %v1426 = vadd.f32 %v1255, %v1425
        %1427 = vmatmul.bf16.gmra.mxu0 %v1219
        %v1428 = vpop.f32.mrf.mxu0
        %v1429 = vadd.f32 %v1255, %v1428
        %v1430 = vpop.f32.mrf.mxu0
        %v1431 = vadd.f32 %v1255, %v1430
        %1432 = vmatmul.bf16.gmra.mxu0 %v1220
        %v1433 = vpop.f32.mrf.mxu0
        %v1434 = vadd.f32 %v1255, %v1433
        %v1435 = vpop.f32.mrf.mxu0
        %v1436 = vadd.f32 %v1255, %v1435
        %1437 = vdwg.mxu0
        %1438 = vmatpush.bf16.msra.mxu0 %v1363
        %1439 = vmatpush.bf16.msra.mxu0 %v1360
        %1440 = vmatpush.bf16.msra.mxu0 %v1357
        %1441 = vmatpush.bf16.msra.mxu0 %v1354
        %1442 = vmatpush.bf16.msra.mxu0 %v1351
        %1443 = vmatpush.bf16.msra.mxu0 %v1348
        %1444 = vmatpush.bf16.msra.mxu0 %v1345
        %1445 = vmatpush.bf16.msra.mxu0 %v1342
        %1446 = vmatmul.bf16.gmra.mxu0 %v1213
        %v1447 = vpop.f32.mrf.mxu0
        %v1448 = vadd.f32 %v1256, %v1447
        %v1449 = vpop.f32.mrf.mxu0
        %v1450 = vadd.f32 %v1256, %v1449
        %1451 = vmatmul.bf16.gmra.mxu0 %v1214
        %v1452 = vpop.f32.mrf.mxu0
        %v1453 = vadd.f32 %v1256, %v1452
        %v1454 = vpop.f32.mrf.mxu0
        %v1455 = vadd.f32 %v1256, %v1454
        %1456 = vmatmul.bf16.gmra.mxu0 %v1215
        %v1457 = vpop.f32.mrf.mxu0
        %v1458 = vadd.f32 %v1256, %v1457
        %v1459 = vpop.f32.mrf.mxu0
        %v1460 = vadd.f32 %v1256, %v1459
        %1461 = vmatmul.bf16.gmra.mxu0 %v1216
        %v1462 = vpop.f32.mrf.mxu0
        %v1463 = vadd.f32 %v1256, %v1462
        %v1464 = vpop.f32.mrf.mxu0
        %v1465 = vadd.f32 %v1256, %v1464
        %1466 = vmatmul.bf16.gmra.mxu0 %v1217
        %v1467 = vpop.f32.mrf.mxu0
        %v1468 = vadd.f32 %v1256, %v1467
        %v1469 = vpop.f32.mrf.mxu0
        %v1470 = vadd.f32 %v1256, %v1469
        %1471 = vmatmul.bf16.gmra.mxu0 %v1218
        %v1472 = vpop.f32.mrf.mxu0
        %v1473 = vadd.f32 %v1256, %v1472
        %v1474 = vpop.f32.mrf.mxu0
        %v1475 = vadd.f32 %v1256, %v1474
        %1476 = vmatmul.bf16.gmra.mxu0 %v1219
        %v1477 = vpop.f32.mrf.mxu0
        %v1478 = vadd.f32 %v1256, %v1477
        %v1479 = vpop.f32.mrf.mxu0
        %v1480 = vadd.f32 %v1256, %v1479
        %1481 = vmatmul.bf16.gmra.mxu0 %v1220
        %v1482 = vpop.f32.mrf.mxu0
        %v1483 = vadd.f32 %v1256, %v1482
        %v1484 = vpop.f32.mrf.mxu0
        %v1485 = vadd.f32 %v1256, %v1484
        %1486 = vdwg.mxu0
        %1487 = vmatpush.bf16.msra.mxu0 %v1364
        %1488 = vmatpush.bf16.msra.mxu0 %v1361
        %1489 = vmatpush.bf16.msra.mxu0 %v1358
        %1490 = vmatpush.bf16.msra.mxu0 %v1355
        %1491 = vmatpush.bf16.msra.mxu0 %v1352
        %1492 = vmatpush.bf16.msra.mxu0 %v1349
        %1493 = vmatpush.bf16.msra.mxu0 %v1346
        %1494 = vmatpush.bf16.msra.mxu0 %v1343
        %1495 = vmatmul.bf16.gmra.mxu0 %v1213
        %v1496 = vpop.f32.mrf.mxu0
        %v1497 = vadd.f32 %v1257, %v1496
        %v1498 = vpop.f32.mrf.mxu0
        %v1499 = vadd.f32 %v1257, %v1498
        %1500 = vmatmul.bf16.gmra.mxu0 %v1214
        %v1501 = vpop.f32.mrf.mxu0
        %v1502 = vadd.f32 %v1257, %v1501
        %v1503 = vpop.f32.mrf.mxu0
        %v1504 = vadd.f32 %v1257, %v1503
        %1505 = vmatmul.bf16.gmra.mxu0 %v1215
        %v1506 = vpop.f32.mrf.mxu0
        %v1507 = vadd.f32 %v1257, %v1506
        %v1508 = vpop.f32.mrf.mxu0
        %v1509 = vadd.f32 %v1257, %v1508
        %1510 = vmatmul.bf16.gmra.mxu0 %v1216
        %v1511 = vpop.f32.mrf.mxu0
        %v1512 = vadd.f32 %v1257, %v1511
        %v1513 = vpop.f32.mrf.mxu0
        %v1514 = vadd.f32 %v1257, %v1513
        %1515 = vmatmul.bf16.gmra.mxu0 %v1217
        %v1516 = vpop.f32.mrf.mxu0
        %v1517 = vadd.f32 %v1257, %v1516
        %v1518 = vpop.f32.mrf.mxu0
        %v1519 = vadd.f32 %v1257, %v1518
        %1520 = vmatmul.bf16.gmra.mxu0 %v1218
        %v1521 = vpop.f32.mrf.mxu0
        %v1522 = vadd.f32 %v1257, %v1521
        %v1523 = vpop.f32.mrf.mxu0
        %v1524 = vadd.f32 %v1257, %v1523
        %1525 = vmatmul.bf16.gmra.mxu0 %v1219
        %v1526 = vpop.f32.mrf.mxu0
        %v1527 = vadd.f32 %v1257, %v1526
        %v1528 = vpop.f32.mrf.mxu0
        %v1529 = vadd.f32 %v1257, %v1528
        %1530 = vmatmul.bf16.gmra.mxu0 %v1220
        %v1531 = vpop.f32.mrf.mxu0
        %v1532 = vadd.f32 %v1257, %v1531
        %v1533 = vpop.f32.mrf.mxu0
        %v1534 = vadd.f32 %v1257, %v1533
        %1535 = vdwg.mxu0
        %v1536 = vpack.c.bf16 %v1448, %v1399
        %v1537 = vpack.c.bf16 %v1497, %v1497
        %v1538 = vpack.c.bf16 %v1450, %v1401
        %v1539 = vpack.c.bf16 %v1499, %v1499
        %v1540 = vpack.c.bf16 %v1453, %v1404
        %v1541 = vpack.c.bf16 %v1502, %v1502
        %v1542 = vpack.c.bf16 %v1455, %v1406
        %v1543 = vpack.c.bf16 %v1504, %v1504
        %v1544 = vpack.c.bf16 %v1458, %v1409
        %v1545 = vpack.c.bf16 %v1507, %v1507
        %v1546 = vpack.c.bf16 %v1460, %v1411
        %v1547 = vpack.c.bf16 %v1509, %v1509
        %v1548 = vpack.c.bf16 %v1463, %v1414
        %v1549 = vpack.c.bf16 %v1512, %v1512
        %v1550 = vpack.c.bf16 %v1465, %v1416
        %v1551 = vpack.c.bf16 %v1514, %v1514
        %v1552 = vpack.c.bf16 %v1468, %v1419
        %v1553 = vpack.c.bf16 %v1517, %v1517
        %v1554 = vpack.c.bf16 %v1470, %v1421
        %v1555 = vpack.c.bf16 %v1519, %v1519
        %v1556 = vpack.c.bf16 %v1473, %v1424
        %v1557 = vpack.c.bf16 %v1522, %v1522
        %v1558 = vpack.c.bf16 %v1475, %v1426
        %v1559 = vpack.c.bf16 %v1524, %v1524
        %v1560 = vpack.c.bf16 %v1478, %v1429
        %v1561 = vpack.c.bf16 %v1527, %v1527
        %v1562 = vpack.c.bf16 %v1480, %v1431
        %v1563 = vpack.c.bf16 %v1529, %v1529
        %v1564 = vpack.c.bf16 %v1483, %v1434
        %v1565 = vpack.c.bf16 %v1532, %v1532
        %v1566 = vpack.c.bf16 %v1485, %v1436
        %v1567 = vpack.c.bf16 %v1534, %v1534
        %v1584 = vunpack.c.l.b16 %v1536
        %v1585 = vunpack.c.l.b16 %v1538
        %v1586 = vunpack.c.l.b16 %v1540
        %v1587 = vunpack.c.l.b16 %v1542
        %v1588 = vunpack.c.l.b16 %v1544
        %v1589 = vunpack.c.l.b16 %v1546
        %v1590 = vunpack.c.l.b16 %v1548
        %v1591 = vunpack.c.l.b16 %v1550
        %v1592 = vunpack.c.l.b16 %v1552
        %v1593 = vunpack.c.l.b16 %v1554
        %v1594 = vunpack.c.l.b16 %v1556
        %v1595 = vunpack.c.l.b16 %v1558
        %v1596 = vunpack.c.l.b16 %v1560
        %v1597 = vunpack.c.l.b16 %v1562
        %v1598 = vunpack.c.l.b16 %v1564
        %v1599 = vunpack.c.l.b16 %v1566
        %v1600 = vpack.c.b16 %v1585, %v1584
        %v1601 = vpack.c.b16 %v1587, %v1586
        %v1602 = vpack.c.b16 %v1589, %v1588
        %v1603 = vpack.c.b16 %v1591, %v1590
        %v1604 = vpack.c.b16 %v1593, %v1592
        %v1605 = vpack.c.b16 %v1595, %v1594
        %v1606 = vpack.c.b16 %v1597, %v1596
        %v1607 = vpack.c.b16 %v1599, %v1598
        %1608 = vrot.lane.b32.xlu0 %v1600, 96
        %v1609 = vpop.permute.xlu0 %1608
        %1610 = vrot.lane.b32.xlu0 %v1601, 96
        %v1611 = vpop.permute.xlu0 %1610
        %1612 = vrot.lane.b32.xlu0 %v1602, 96
        %v1613 = vpop.permute.xlu0 %1612
        %1614 = vrot.lane.b32.xlu0 %v1603, 96
        %v1615 = vpop.permute.xlu0 %1614
        %1616 = vrot.lane.b32.xlu0 %v1604, 96
        %v1617 = vpop.permute.xlu0 %1616
        %1618 = vrot.lane.b32.xlu0 %v1605, 96
        %v1619 = vpop.permute.xlu0 %1618
        %1620 = vrot.lane.b32.xlu0 %v1606, 96
        %v1621 = vpop.permute.xlu0 %1620
        %1622 = vrot.lane.b32.xlu0 %v1607, 96
        %v1623 = vpop.permute.xlu0 %1622
        %1624 = vrot.lane.b32.xlu0 %v1600, 64
        %v1625 = vpop.permute.xlu0 %1624
        %1626 = vrot.lane.b32.xlu0 %v1601, 64
        %v1627 = vpop.permute.xlu0 %1626
        %1628 = vrot.lane.b32.xlu0 %v1602, 64
        %v1629 = vpop.permute.xlu0 %1628
        %1630 = vrot.lane.b32.xlu0 %v1603, 64
        %v1631 = vpop.permute.xlu0 %1630
        %1632 = vrot.lane.b32.xlu0 %v1604, 64
        %v1633 = vpop.permute.xlu0 %1632
        %1634 = vrot.lane.b32.xlu0 %v1605, 64
        %v1635 = vpop.permute.xlu0 %1634
        %1636 = vrot.lane.b32.xlu0 %v1606, 64
        %v1637 = vpop.permute.xlu0 %1636
        %1638 = vrot.lane.b32.xlu0 %v1607, 64
        %v1639 = vpop.permute.xlu0 %1638
        %1640 = vrot.lane.b32.xlu0 %v1600, 32
        %v1641 = vpop.permute.xlu0 %1640
        %1642 = vrot.lane.b32.xlu0 %v1601, 32
        %v1643 = vpop.permute.xlu0 %1642
        %1644 = vrot.lane.b32.xlu0 %v1602, 32
        %v1645 = vpop.permute.xlu0 %1644
        %1646 = vrot.lane.b32.xlu0 %v1603, 32
        %v1647 = vpop.permute.xlu0 %1646
        %1648 = vrot.lane.b32.xlu0 %v1604, 32
        %v1649 = vpop.permute.xlu0 %1648
        %1650 = vrot.lane.b32.xlu0 %v1605, 32
        %v1651 = vpop.permute.xlu0 %1650
        %1652 = vrot.lane.b32.xlu0 %v1606, 32
        %v1653 = vpop.permute.xlu0 %1652
        %1654 = vrot.lane.b32.xlu0 %v1607, 32
        %v1655 = vpop.permute.xlu0 %1654
        %v1656 = vunpack.c.h.b16 %v1536
        %v1657 = vunpack.c.h.b16 %v1538
        %v1658 = vunpack.c.h.b16 %v1540
        %v1659 = vunpack.c.h.b16 %v1542
        %v1660 = vunpack.c.h.b16 %v1544
        %v1661 = vunpack.c.h.b16 %v1546
        %v1662 = vunpack.c.h.b16 %v1548
        %v1663 = vunpack.c.h.b16 %v1550
        %v1664 = vunpack.c.h.b16 %v1552
        %v1665 = vunpack.c.h.b16 %v1554
        %v1666 = vunpack.c.h.b16 %v1556
        %v1667 = vunpack.c.h.b16 %v1558
        %v1668 = vunpack.c.h.b16 %v1560
        %v1669 = vunpack.c.h.b16 %v1562
        %v1670 = vunpack.c.h.b16 %v1564
        %v1671 = vunpack.c.h.b16 %v1566
        %v1672 = vpack.c.b16 %v1657, %v1656
        %v1673 = vpack.c.b16 %v1659, %v1658
        %v1674 = vpack.c.b16 %v1661, %v1660
        %v1675 = vpack.c.b16 %v1663, %v1662
        %v1676 = vpack.c.b16 %v1665, %v1664
        %v1677 = vpack.c.b16 %v1667, %v1666
        %v1678 = vpack.c.b16 %v1669, %v1668
        %v1679 = vpack.c.b16 %v1671, %v1670
        %1680 = vrot.lane.b32.xlu0 %v1672, 96
        %v1681 = vpop.permute.xlu0 %1680
        %1682 = vrot.lane.b32.xlu0 %v1673, 96
        %v1683 = vpop.permute.xlu0 %1682
        %1684 = vrot.lane.b32.xlu0 %v1674, 96
        %v1685 = vpop.permute.xlu0 %1684
        %1686 = vrot.lane.b32.xlu0 %v1675, 96
        %v1687 = vpop.permute.xlu0 %1686
        %1688 = vrot.lane.b32.xlu0 %v1676, 96
        %v1689 = vpop.permute.xlu0 %1688
        %1690 = vrot.lane.b32.xlu0 %v1677, 96
        %v1691 = vpop.permute.xlu0 %1690
        %1692 = vrot.lane.b32.xlu0 %v1678, 96
        %v1693 = vpop.permute.xlu0 %1692
        %1694 = vrot.lane.b32.xlu0 %v1679, 96
        %v1695 = vpop.permute.xlu0 %1694
        %1696 = vrot.lane.b32.xlu0 %v1672, 64
        %v1697 = vpop.permute.xlu0 %1696
        %1698 = vrot.lane.b32.xlu0 %v1673, 64
        %v1699 = vpop.permute.xlu0 %1698
        %1700 = vrot.lane.b32.xlu0 %v1674, 64
        %v1701 = vpop.permute.xlu0 %1700
        %1702 = vrot.lane.b32.xlu0 %v1675, 64
        %v1703 = vpop.permute.xlu0 %1702
        %1704 = vrot.lane.b32.xlu0 %v1676, 64
        %v1705 = vpop.permute.xlu0 %1704
        %1706 = vrot.lane.b32.xlu0 %v1677, 64
        %v1707 = vpop.permute.xlu0 %1706
        %1708 = vrot.lane.b32.xlu0 %v1678, 64
        %v1709 = vpop.permute.xlu0 %1708
        %1710 = vrot.lane.b32.xlu0 %v1679, 64
        %v1711 = vpop.permute.xlu0 %1710
        %1712 = vrot.lane.b32.xlu0 %v1672, 32
        %v1713 = vpop.permute.xlu0 %1712
        %1714 = vrot.lane.b32.xlu0 %v1673, 32
        %v1715 = vpop.permute.xlu0 %1714
        %1716 = vrot.lane.b32.xlu0 %v1674, 32
        %v1717 = vpop.permute.xlu0 %1716
        %1718 = vrot.lane.b32.xlu0 %v1675, 32
        %v1719 = vpop.permute.xlu0 %1718
        %1720 = vrot.lane.b32.xlu0 %v1676, 32
        %v1721 = vpop.permute.xlu0 %1720
        %1722 = vrot.lane.b32.xlu0 %v1677, 32
        %v1723 = vpop.permute.xlu0 %1722
        %1724 = vrot.lane.b32.xlu0 %v1678, 32
        %v1725 = vpop.permute.xlu0 %1724
        %1726 = vrot.lane.b32.xlu0 %v1679, 32
        %v1727 = vpop.permute.xlu0 %1726
        %v1744 = vunpack.c.l.b16 %v1537
        %v1745 = vunpack.c.l.b16 %v1539
        %v1746 = vunpack.c.l.b16 %v1541
        %v1747 = vunpack.c.l.b16 %v1543
        %v1748 = vunpack.c.l.b16 %v1545
        %v1749 = vunpack.c.l.b16 %v1547
        %v1750 = vunpack.c.l.b16 %v1549
        %v1751 = vunpack.c.l.b16 %v1551
        %v1752 = vunpack.c.l.b16 %v1553
        %v1753 = vunpack.c.l.b16 %v1555
        %v1754 = vunpack.c.l.b16 %v1557
        %v1755 = vunpack.c.l.b16 %v1559
        %v1756 = vunpack.c.l.b16 %v1561
        %v1757 = vunpack.c.l.b16 %v1563
        %v1758 = vunpack.c.l.b16 %v1565
        %v1759 = vunpack.c.l.b16 %v1567
        %v1760 = vpack.c.b16 %v1745, %v1744
        %v1761 = vpack.c.b16 %v1747, %v1746
        %v1762 = vpack.c.b16 %v1749, %v1748
        %v1763 = vpack.c.b16 %v1751, %v1750
        %v1764 = vpack.c.b16 %v1753, %v1752
        %v1765 = vpack.c.b16 %v1755, %v1754
        %v1766 = vpack.c.b16 %v1757, %v1756
        %v1767 = vpack.c.b16 %v1759, %v1758
        %1776 = vrot.lane.b32.xlu0 %v1760, 96
        %v1777 = vpop.permute.xlu0 %1776
        %1778 = vrot.lane.b32.xlu0 %v1761, 96
        %v1779 = vpop.permute.xlu0 %1778
        %1780 = vrot.lane.b32.xlu0 %v1762, 96
        %v1781 = vpop.permute.xlu0 %1780
        %1782 = vrot.lane.b32.xlu0 %v1763, 96
        %v1783 = vpop.permute.xlu0 %1782
        %1784 = vrot.lane.b32.xlu0 %v1764, 96
        %v1785 = vpop.permute.xlu0 %1784
        %1786 = vrot.lane.b32.xlu0 %v1765, 96
        %v1787 = vpop.permute.xlu0 %1786
        %1788 = vrot.lane.b32.xlu0 %v1766, 96
        %v1789 = vpop.permute.xlu0 %1788
        %1790 = vrot.lane.b32.xlu0 %v1767, 96
        %v1791 = vpop.permute.xlu0 %1790
        %1800 = vrot.lane.b32.xlu0 %v1760, 64
        %v1801 = vpop.permute.xlu0 %1800
        %1802 = vrot.lane.b32.xlu0 %v1761, 64
        %v1803 = vpop.permute.xlu0 %1802
        %1804 = vrot.lane.b32.xlu0 %v1762, 64
        %v1805 = vpop.permute.xlu0 %1804
        %1806 = vrot.lane.b32.xlu0 %v1763, 64
        %v1807 = vpop.permute.xlu0 %1806
        %1808 = vrot.lane.b32.xlu0 %v1764, 64
        %v1809 = vpop.permute.xlu0 %1808
        %1810 = vrot.lane.b32.xlu0 %v1765, 64
        %v1811 = vpop.permute.xlu0 %1810
        %1812 = vrot.lane.b32.xlu0 %v1766, 64
        %v1813 = vpop.permute.xlu0 %1812
        %1814 = vrot.lane.b32.xlu0 %v1767, 64
        %v1815 = vpop.permute.xlu0 %1814
        %1824 = vrot.lane.b32.xlu0 %v1760, 32
        %v1825 = vpop.permute.xlu0 %1824
        %1826 = vrot.lane.b32.xlu0 %v1761, 32
        %v1827 = vpop.permute.xlu0 %1826
        %1828 = vrot.lane.b32.xlu0 %v1762, 32
        %v1829 = vpop.permute.xlu0 %1828
        %1830 = vrot.lane.b32.xlu0 %v1763, 32
        %v1831 = vpop.permute.xlu0 %1830
        %1832 = vrot.lane.b32.xlu0 %v1764, 32
        %v1833 = vpop.permute.xlu0 %1832
        %1834 = vrot.lane.b32.xlu0 %v1765, 32
        %v1835 = vpop.permute.xlu0 %1834
        %1836 = vrot.lane.b32.xlu0 %v1766, 32
        %v1837 = vpop.permute.xlu0 %1836
        %1838 = vrot.lane.b32.xlu0 %v1767, 32
        %v1839 = vpop.permute.xlu0 %1838
        %vm1848 = vcmask 261120
        %v1850 = vsel %vm1848, %v1600, 0
        %v1853 = vsel %vm1848, %v1601, 0
        %v1856 = vsel %vm1848, %v1602, 0
        %v1859 = vsel %vm1848, %v1603, 0
        %v1862 = vsel %vm1848, %v1604, 0
        %v1865 = vsel %vm1848, %v1605, 0
        %v1868 = vsel %vm1848, %v1606, 0
        %v1871 = vsel %vm1848, %v1607, 0
        %v1874 = vsel %vm1848, %v1609, 0
        %v1877 = vsel %vm1848, %v1611, 0
        %v1880 = vsel %vm1848, %v1613, 0
        %v1883 = vsel %vm1848, %v1615, 0
        %v1886 = vsel %vm1848, %v1617, 0
        %v1889 = vsel %vm1848, %v1619, 0
        %v1892 = vsel %vm1848, %v1621, 0
        %v1895 = vsel %vm1848, %v1623, 0
        %v1898 = vsel %vm1848, %v1625, 0
        %v1901 = vsel %vm1848, %v1627, 0
        %v1904 = vsel %vm1848, %v1629, 0
        %v1907 = vsel %vm1848, %v1631, 0
        %v1910 = vsel %vm1848, %v1633, 0
        %v1913 = vsel %vm1848, %v1635, 0
        %v1916 = vsel %vm1848, %v1637, 0
        %v1919 = vsel %vm1848, %v1639, 0
        %v1922 = vsel %vm1848, %v1641, 0
        %v1925 = vsel %vm1848, %v1643, 0
        %v1928 = vsel %vm1848, %v1645, 0
        %v1931 = vsel %vm1848, %v1647, 0
        %v1934 = vsel %vm1848, %v1649, 0
        %v1937 = vsel %vm1848, %v1651, 0
        %v1940 = vsel %vm1848, %v1653, 0
        %v1943 = vsel %vm1848, %v1655, 0
        %v1946 = vsel %vm1848, %v1672, 0
        %v1949 = vsel %vm1848, %v1673, 0
        %v1952 = vsel %vm1848, %v1674, 0
        %v1955 = vsel %vm1848, %v1675, 0
        %v1958 = vsel %vm1848, %v1676, 0
        %v1961 = vsel %vm1848, %v1677, 0
        %v1964 = vsel %vm1848, %v1678, 0
        %v1967 = vsel %vm1848, %v1679, 0
        %v1970 = vsel %vm1848, %v1681, 0
        %v1973 = vsel %vm1848, %v1683, 0
        %v1976 = vsel %vm1848, %v1685, 0
        %v1979 = vsel %vm1848, %v1687, 0
        %v1982 = vsel %vm1848, %v1689, 0
        %v1985 = vsel %vm1848, %v1691, 0
        %v1988 = vsel %vm1848, %v1693, 0
        %v1991 = vsel %vm1848, %v1695, 0
        %v1994 = vsel %vm1848, %v1697, 0
        %v1997 = vsel %vm1848, %v1699, 0
        %v2000 = vsel %vm1848, %v1701, 0
        %v2003 = vsel %vm1848, %v1703, 0
        %v2006 = vsel %vm1848, %v1705, 0
        %v2009 = vsel %vm1848, %v1707, 0
        %v2012 = vsel %vm1848, %v1709, 0
        %v2015 = vsel %vm1848, %v1711, 0
        %v2018 = vsel %vm1848, %v1713, 0
        %v2021 = vsel %vm1848, %v1715, 0
        %v2024 = vsel %vm1848, %v1717, 0
        %v2027 = vsel %vm1848, %v1719, 0
        %v2030 = vsel %vm1848, %v1721, 0
        %v2033 = vsel %vm1848, %v1723, 0
        %v2036 = vsel %vm1848, %v1725, 0
        %v2039 = vsel %vm1848, %v1727, 0
        %2041 = vmatpush.bf16.xpose.msra.mxu0 %v1967
        %2042 = vmatpush.bf16.xpose.msra.mxu0 %v1964
        %2043 = vmatpush.bf16.xpose.msra.mxu0 %v1961
        %2044 = vmatpush.bf16.xpose.msra.mxu0 %v1958
        %2045 = vmatpush.bf16.xpose.msra.mxu0 %v1955
        %2046 = vmatpush.bf16.xpose.msra.mxu0 %v1952
        %2047 = vmatpush.bf16.xpose.msra.mxu0 %v1949
        %2048 = vmatpush.bf16.xpose.msra.mxu0 %v1946
        %2049 = vmatmul.bf16.gmra.mxu0 %v1850
        %v2050 = vpop.f32.mrf.mxu0
        %v2051 = vadd.f32 0.0, %v2050
        %v2052 = vpop.f32.mrf.mxu0
        %v2053 = vadd.f32 0.0, %v2052
        %2054 = vmatmul.bf16.gmra.mxu0 %v1853
        %v2055 = vpop.f32.mrf.mxu0
        %v2056 = vadd.f32 0.0, %v2055
        %v2057 = vpop.f32.mrf.mxu0
        %v2058 = vadd.f32 0.0, %v2057
        %2059 = vmatmul.bf16.gmra.mxu0 %v1856
        %v2060 = vpop.f32.mrf.mxu0
        %v2061 = vadd.f32 0.0, %v2060
        %v2062 = vpop.f32.mrf.mxu0
        %v2063 = vadd.f32 0.0, %v2062
        %2064 = vmatmul.bf16.gmra.mxu0 %v1859
        %v2065 = vpop.f32.mrf.mxu0
        %v2066 = vadd.f32 0.0, %v2065
        %v2067 = vpop.f32.mrf.mxu0
        %v2068 = vadd.f32 0.0, %v2067
        %2069 = vmatmul.bf16.gmra.mxu0 %v1862
        %v2070 = vpop.f32.mrf.mxu0
        %v2071 = vadd.f32 0.0, %v2070
        %v2072 = vpop.f32.mrf.mxu0
        %v2073 = vadd.f32 0.0, %v2072
        %2074 = vmatmul.bf16.gmra.mxu0 %v1865
        %v2075 = vpop.f32.mrf.mxu0
        %v2076 = vadd.f32 0.0, %v2075
        %v2077 = vpop.f32.mrf.mxu0
        %v2078 = vadd.f32 0.0, %v2077
        %2079 = vmatmul.bf16.gmra.mxu0 %v1868
        %v2080 = vpop.f32.mrf.mxu0
        %v2081 = vadd.f32 0.0, %v2080
        %v2082 = vpop.f32.mrf.mxu0
        %v2083 = vadd.f32 0.0, %v2082
        %2084 = vmatmul.bf16.gmra.mxu0 %v1871
        %v2085 = vpop.f32.mrf.mxu0
        %v2086 = vadd.f32 0.0, %v2085
        %v2087 = vpop.f32.mrf.mxu0
        %v2088 = vadd.f32 0.0, %v2087
        %2089 = vmatmul.bf16.gmra.mxu0 %v1874
        %v2090 = vpop.f32.mrf.mxu0
        %v2091 = vadd.f32 0.0, %v2090
        %v2092 = vpop.f32.mrf.mxu0
        %v2093 = vadd.f32 0.0, %v2092
        %2094 = vmatmul.bf16.gmra.mxu0 %v1877
        %v2095 = vpop.f32.mrf.mxu0
        %v2096 = vadd.f32 0.0, %v2095
        %v2097 = vpop.f32.mrf.mxu0
        %v2098 = vadd.f32 0.0, %v2097
        %2099 = vmatmul.bf16.gmra.mxu0 %v1880
        %v2100 = vpop.f32.mrf.mxu0
        %v2101 = vadd.f32 0.0, %v2100
        %v2102 = vpop.f32.mrf.mxu0
        %v2103 = vadd.f32 0.0, %v2102
        %2104 = vmatmul.bf16.gmra.mxu0 %v1883
        %v2105 = vpop.f32.mrf.mxu0
        %v2106 = vadd.f32 0.0, %v2105
        %v2107 = vpop.f32.mrf.mxu0
        %v2108 = vadd.f32 0.0, %v2107
        %2109 = vmatmul.bf16.gmra.mxu0 %v1886
        %v2110 = vpop.f32.mrf.mxu0
        %v2111 = vadd.f32 0.0, %v2110
        %v2112 = vpop.f32.mrf.mxu0
        %v2113 = vadd.f32 0.0, %v2112
        %2114 = vmatmul.bf16.gmra.mxu0 %v1889
        %v2115 = vpop.f32.mrf.mxu0
        %v2116 = vadd.f32 0.0, %v2115
        %v2117 = vpop.f32.mrf.mxu0
        %v2118 = vadd.f32 0.0, %v2117
        %2119 = vmatmul.bf16.gmra.mxu0 %v1892
        %v2120 = vpop.f32.mrf.mxu0
        %v2121 = vadd.f32 0.0, %v2120
        %v2122 = vpop.f32.mrf.mxu0
        %v2123 = vadd.f32 0.0, %v2122
        %2124 = vmatmul.bf16.gmra.mxu0 %v1895
        %v2125 = vpop.f32.mrf.mxu0
        %v2126 = vadd.f32 0.0, %v2125
        %v2127 = vpop.f32.mrf.mxu0
        %v2128 = vadd.f32 0.0, %v2127
        %2129 = vmatmul.bf16.gmra.mxu0 %v1898
        %v2130 = vpop.f32.mrf.mxu0
        %v2131 = vadd.f32 0.0, %v2130
        %v2132 = vpop.f32.mrf.mxu0
        %v2133 = vadd.f32 0.0, %v2132
        %2134 = vmatmul.bf16.gmra.mxu0 %v1901
        %v2135 = vpop.f32.mrf.mxu0
        %v2136 = vadd.f32 0.0, %v2135
        %v2137 = vpop.f32.mrf.mxu0
        %v2138 = vadd.f32 0.0, %v2137
        %2139 = vmatmul.bf16.gmra.mxu0 %v1904
        %v2140 = vpop.f32.mrf.mxu0
        %v2141 = vadd.f32 0.0, %v2140
        %v2142 = vpop.f32.mrf.mxu0
        %v2143 = vadd.f32 0.0, %v2142
        %2144 = vmatmul.bf16.gmra.mxu0 %v1907
        %v2145 = vpop.f32.mrf.mxu0
        %v2146 = vadd.f32 0.0, %v2145
        %v2147 = vpop.f32.mrf.mxu0
        %v2148 = vadd.f32 0.0, %v2147
        %2149 = vmatmul.bf16.gmra.mxu0 %v1910
        %v2150 = vpop.f32.mrf.mxu0
        %v2151 = vadd.f32 0.0, %v2150
        %v2152 = vpop.f32.mrf.mxu0
        %v2153 = vadd.f32 0.0, %v2152
        %2154 = vmatmul.bf16.gmra.mxu0 %v1913
        %v2155 = vpop.f32.mrf.mxu0
        %v2156 = vadd.f32 0.0, %v2155
        %v2157 = vpop.f32.mrf.mxu0
        %v2158 = vadd.f32 0.0, %v2157
        %2159 = vmatmul.bf16.gmra.mxu0 %v1916
        %v2160 = vpop.f32.mrf.mxu0
        %v2161 = vadd.f32 0.0, %v2160
        %v2162 = vpop.f32.mrf.mxu0
        %v2163 = vadd.f32 0.0, %v2162
        %2164 = vmatmul.bf16.gmra.mxu0 %v1919
        %v2165 = vpop.f32.mrf.mxu0
        %v2166 = vadd.f32 0.0, %v2165
        %v2167 = vpop.f32.mrf.mxu0
        %v2168 = vadd.f32 0.0, %v2167
        %2169 = vmatmul.bf16.gmra.mxu0 %v1922
        %v2170 = vpop.f32.mrf.mxu0
        %v2171 = vadd.f32 0.0, %v2170
        %v2172 = vpop.f32.mrf.mxu0
        %v2173 = vadd.f32 0.0, %v2172
        %2174 = vmatmul.bf16.gmra.mxu0 %v1925
        %v2175 = vpop.f32.mrf.mxu0
        %v2176 = vadd.f32 0.0, %v2175
        %v2177 = vpop.f32.mrf.mxu0
        %v2178 = vadd.f32 0.0, %v2177
        %2179 = vmatmul.bf16.gmra.mxu0 %v1928
        %v2180 = vpop.f32.mrf.mxu0
        %v2181 = vadd.f32 0.0, %v2180
        %v2182 = vpop.f32.mrf.mxu0
        %v2183 = vadd.f32 0.0, %v2182
        %2184 = vmatmul.bf16.gmra.mxu0 %v1931
        %v2185 = vpop.f32.mrf.mxu0
        %v2186 = vadd.f32 0.0, %v2185
        %v2187 = vpop.f32.mrf.mxu0
        %v2188 = vadd.f32 0.0, %v2187
        %2189 = vmatmul.bf16.gmra.mxu0 %v1934
        %v2190 = vpop.f32.mrf.mxu0
        %v2191 = vadd.f32 0.0, %v2190
        %v2192 = vpop.f32.mrf.mxu0
        %v2193 = vadd.f32 0.0, %v2192
        %2194 = vmatmul.bf16.gmra.mxu0 %v1937
        %v2195 = vpop.f32.mrf.mxu0
        %v2196 = vadd.f32 0.0, %v2195
        %v2197 = vpop.f32.mrf.mxu0
        %v2198 = vadd.f32 0.0, %v2197
        %2199 = vmatmul.bf16.gmra.mxu0 %v1940
        %v2200 = vpop.f32.mrf.mxu0
        %v2201 = vadd.f32 0.0, %v2200
        %v2202 = vpop.f32.mrf.mxu0
        %v2203 = vadd.f32 0.0, %v2202
        %2204 = vmatmul.bf16.gmra.mxu0 %v1943
        %v2205 = vpop.f32.mrf.mxu0
        %v2206 = vadd.f32 0.0, %v2205
        %v2207 = vpop.f32.mrf.mxu0
        %v2208 = vadd.f32 0.0, %v2207
        %2209 = vdwg.mxu0
        %2210 = vmatpush.bf16.xpose.msra.mxu0 %v1991
        %2211 = vmatpush.bf16.xpose.msra.mxu0 %v1988
        %2212 = vmatpush.bf16.xpose.msra.mxu0 %v1985
        %2213 = vmatpush.bf16.xpose.msra.mxu0 %v1982
        %2214 = vmatpush.bf16.xpose.msra.mxu0 %v1979
        %2215 = vmatpush.bf16.xpose.msra.mxu0 %v1976
        %2216 = vmatpush.bf16.xpose.msra.mxu0 %v1973
        %2217 = vmatpush.bf16.xpose.msra.mxu0 %v1970
        %2218 = vmatmul.bf16.gmra.mxu0 %v1850
        %v2219 = vpop.f32.mrf.mxu0
        %v2220 = vadd.f32 0.0, %v2219
        %v2221 = vpop.f32.mrf.mxu0
        %v2222 = vadd.f32 0.0, %v2221
        %2223 = vmatmul.bf16.gmra.mxu0 %v1853
        %v2224 = vpop.f32.mrf.mxu0
        %v2225 = vadd.f32 0.0, %v2224
        %v2226 = vpop.f32.mrf.mxu0
        %v2227 = vadd.f32 0.0, %v2226
        %2228 = vmatmul.bf16.gmra.mxu0 %v1856
        %v2229 = vpop.f32.mrf.mxu0
        %v2230 = vadd.f32 0.0, %v2229
        %v2231 = vpop.f32.mrf.mxu0
        %v2232 = vadd.f32 0.0, %v2231
        %2233 = vmatmul.bf16.gmra.mxu0 %v1859
        %v2234 = vpop.f32.mrf.mxu0
        %v2235 = vadd.f32 0.0, %v2234
        %v2236 = vpop.f32.mrf.mxu0
        %v2237 = vadd.f32 0.0, %v2236
        %2238 = vmatmul.bf16.gmra.mxu0 %v1862
        %v2239 = vpop.f32.mrf.mxu0
        %v2240 = vadd.f32 0.0, %v2239
        %v2241 = vpop.f32.mrf.mxu0
        %v2242 = vadd.f32 0.0, %v2241
        %2243 = vmatmul.bf16.gmra.mxu0 %v1865
        %v2244 = vpop.f32.mrf.mxu0
        %v2245 = vadd.f32 0.0, %v2244
        %v2246 = vpop.f32.mrf.mxu0
        %v2247 = vadd.f32 0.0, %v2246
        %2248 = vmatmul.bf16.gmra.mxu0 %v1868
        %v2249 = vpop.f32.mrf.mxu0
        %v2250 = vadd.f32 0.0, %v2249
        %v2251 = vpop.f32.mrf.mxu0
        %v2252 = vadd.f32 0.0, %v2251
        %2253 = vmatmul.bf16.gmra.mxu0 %v1871
        %v2254 = vpop.f32.mrf.mxu0
        %v2255 = vadd.f32 0.0, %v2254
        %v2256 = vpop.f32.mrf.mxu0
        %v2257 = vadd.f32 0.0, %v2256
        %2258 = vmatmul.bf16.gmra.mxu0 %v1874
        %v2259 = vpop.f32.mrf.mxu0
        %v2260 = vadd.f32 0.0, %v2259
        %v2261 = vpop.f32.mrf.mxu0
        %v2262 = vadd.f32 0.0, %v2261
        %2263 = vmatmul.bf16.gmra.mxu0 %v1877
        %v2264 = vpop.f32.mrf.mxu0
        %v2265 = vadd.f32 0.0, %v2264
        %v2266 = vpop.f32.mrf.mxu0
        %v2267 = vadd.f32 0.0, %v2266
        %2268 = vmatmul.bf16.gmra.mxu0 %v1880
        %v2269 = vpop.f32.mrf.mxu0
        %v2270 = vadd.f32 0.0, %v2269
        %v2271 = vpop.f32.mrf.mxu0
        %v2272 = vadd.f32 0.0, %v2271
        %2273 = vmatmul.bf16.gmra.mxu0 %v1883
        %v2274 = vpop.f32.mrf.mxu0
        %v2275 = vadd.f32 0.0, %v2274
        %v2276 = vpop.f32.mrf.mxu0
        %v2277 = vadd.f32 0.0, %v2276
        %2278 = vmatmul.bf16.gmra.mxu0 %v1886
        %v2279 = vpop.f32.mrf.mxu0
        %v2280 = vadd.f32 0.0, %v2279
        %v2281 = vpop.f32.mrf.mxu0
        %v2282 = vadd.f32 0.0, %v2281
        %2283 = vmatmul.bf16.gmra.mxu0 %v1889
        %v2284 = vpop.f32.mrf.mxu0
        %v2285 = vadd.f32 0.0, %v2284
        %v2286 = vpop.f32.mrf.mxu0
        %v2287 = vadd.f32 0.0, %v2286
        %2288 = vmatmul.bf16.gmra.mxu0 %v1892
        %v2289 = vpop.f32.mrf.mxu0
        %v2290 = vadd.f32 0.0, %v2289
        %v2291 = vpop.f32.mrf.mxu0
        %v2292 = vadd.f32 0.0, %v2291
        %2293 = vmatmul.bf16.gmra.mxu0 %v1895
        %v2294 = vpop.f32.mrf.mxu0
        %v2295 = vadd.f32 0.0, %v2294
        %v2296 = vpop.f32.mrf.mxu0
        %v2297 = vadd.f32 0.0, %v2296
        %2298 = vmatmul.bf16.gmra.mxu0 %v1898
        %v2299 = vpop.f32.mrf.mxu0
        %v2300 = vadd.f32 0.0, %v2299
        %v2301 = vpop.f32.mrf.mxu0
        %v2302 = vadd.f32 0.0, %v2301
        %2303 = vmatmul.bf16.gmra.mxu0 %v1901
        %v2304 = vpop.f32.mrf.mxu0
        %v2305 = vadd.f32 0.0, %v2304
        %v2306 = vpop.f32.mrf.mxu0
        %v2307 = vadd.f32 0.0, %v2306
        %2308 = vmatmul.bf16.gmra.mxu0 %v1904
        %v2309 = vpop.f32.mrf.mxu0
        %v2310 = vadd.f32 0.0, %v2309
        %v2311 = vpop.f32.mrf.mxu0
        %v2312 = vadd.f32 0.0, %v2311
        %2313 = vmatmul.bf16.gmra.mxu0 %v1907
        %v2314 = vpop.f32.mrf.mxu0
        %v2315 = vadd.f32 0.0, %v2314
        %v2316 = vpop.f32.mrf.mxu0
        %v2317 = vadd.f32 0.0, %v2316
        %2318 = vmatmul.bf16.gmra.mxu0 %v1910
        %v2319 = vpop.f32.mrf.mxu0
        %v2320 = vadd.f32 0.0, %v2319
        %v2321 = vpop.f32.mrf.mxu0
        %v2322 = vadd.f32 0.0, %v2321
        %2323 = vmatmul.bf16.gmra.mxu0 %v1913
        %v2324 = vpop.f32.mrf.mxu0
        %v2325 = vadd.f32 0.0, %v2324
        %v2326 = vpop.f32.mrf.mxu0
        %v2327 = vadd.f32 0.0, %v2326
        %2328 = vmatmul.bf16.gmra.mxu0 %v1916
        %v2329 = vpop.f32.mrf.mxu0
        %v2330 = vadd.f32 0.0, %v2329
        %v2331 = vpop.f32.mrf.mxu0
        %v2332 = vadd.f32 0.0, %v2331
        %2333 = vmatmul.bf16.gmra.mxu0 %v1919
        %v2334 = vpop.f32.mrf.mxu0
        %v2335 = vadd.f32 0.0, %v2334
        %v2336 = vpop.f32.mrf.mxu0
        %v2337 = vadd.f32 0.0, %v2336
        %2338 = vmatmul.bf16.gmra.mxu0 %v1922
        %v2339 = vpop.f32.mrf.mxu0
        %v2340 = vadd.f32 0.0, %v2339
        %v2341 = vpop.f32.mrf.mxu0
        %v2342 = vadd.f32 0.0, %v2341
        %2343 = vmatmul.bf16.gmra.mxu0 %v1925
        %v2344 = vpop.f32.mrf.mxu0
        %v2345 = vadd.f32 0.0, %v2344
        %v2346 = vpop.f32.mrf.mxu0
        %v2347 = vadd.f32 0.0, %v2346
        %2348 = vmatmul.bf16.gmra.mxu0 %v1928
        %v2349 = vpop.f32.mrf.mxu0
        %v2350 = vadd.f32 0.0, %v2349
        %v2351 = vpop.f32.mrf.mxu0
        %v2352 = vadd.f32 0.0, %v2351
        %2353 = vmatmul.bf16.gmra.mxu0 %v1931
        %v2354 = vpop.f32.mrf.mxu0
        %v2355 = vadd.f32 0.0, %v2354
        %v2356 = vpop.f32.mrf.mxu0
        %v2357 = vadd.f32 0.0, %v2356
        %2358 = vmatmul.bf16.gmra.mxu0 %v1934
        %v2359 = vpop.f32.mrf.mxu0
        %v2360 = vadd.f32 0.0, %v2359
        %v2361 = vpop.f32.mrf.mxu0
        %v2362 = vadd.f32 0.0, %v2361
        %2363 = vmatmul.bf16.gmra.mxu0 %v1937
        %v2364 = vpop.f32.mrf.mxu0
        %v2365 = vadd.f32 0.0, %v2364
        %v2366 = vpop.f32.mrf.mxu0
        %v2367 = vadd.f32 0.0, %v2366
        %2368 = vmatmul.bf16.gmra.mxu0 %v1940
        %v2369 = vpop.f32.mrf.mxu0
        %v2370 = vadd.f32 0.0, %v2369
        %v2371 = vpop.f32.mrf.mxu0
        %v2372 = vadd.f32 0.0, %v2371
        %2373 = vmatmul.bf16.gmra.mxu0 %v1943
        %v2374 = vpop.f32.mrf.mxu0
        %v2375 = vadd.f32 0.0, %v2374
        %v2376 = vpop.f32.mrf.mxu0
        %v2377 = vadd.f32 0.0, %v2376
        %2378 = vdwg.mxu0
        %2379 = vmatpush.bf16.xpose.msra.mxu0 %v2015
        %2380 = vmatpush.bf16.xpose.msra.mxu0 %v2012
        %2381 = vmatpush.bf16.xpose.msra.mxu0 %v2009
        %2382 = vmatpush.bf16.xpose.msra.mxu0 %v2006
        %2383 = vmatpush.bf16.xpose.msra.mxu0 %v2003
        %2384 = vmatpush.bf16.xpose.msra.mxu0 %v2000
        %2385 = vmatpush.bf16.xpose.msra.mxu0 %v1997
        %2386 = vmatpush.bf16.xpose.msra.mxu0 %v1994
        %2387 = vmatmul.bf16.gmra.mxu0 %v1850
        %v2388 = vpop.f32.mrf.mxu0
        %v2389 = vadd.f32 0.0, %v2388
        %v2390 = vpop.f32.mrf.mxu0
        %v2391 = vadd.f32 0.0, %v2390
        %2392 = vmatmul.bf16.gmra.mxu0 %v1853
        %v2393 = vpop.f32.mrf.mxu0
        %v2394 = vadd.f32 0.0, %v2393
        %v2395 = vpop.f32.mrf.mxu0
        %v2396 = vadd.f32 0.0, %v2395
        %2397 = vmatmul.bf16.gmra.mxu0 %v1856
        %v2398 = vpop.f32.mrf.mxu0
        %v2399 = vadd.f32 0.0, %v2398
        %v2400 = vpop.f32.mrf.mxu0
        %v2401 = vadd.f32 0.0, %v2400
        %2402 = vmatmul.bf16.gmra.mxu0 %v1859
        %v2403 = vpop.f32.mrf.mxu0
        %v2404 = vadd.f32 0.0, %v2403
        %v2405 = vpop.f32.mrf.mxu0
        %v2406 = vadd.f32 0.0, %v2405
        %2407 = vmatmul.bf16.gmra.mxu0 %v1862
        %v2408 = vpop.f32.mrf.mxu0
        %v2409 = vadd.f32 0.0, %v2408
        %v2410 = vpop.f32.mrf.mxu0
        %v2411 = vadd.f32 0.0, %v2410
        %2412 = vmatmul.bf16.gmra.mxu0 %v1865
        %v2413 = vpop.f32.mrf.mxu0
        %v2414 = vadd.f32 0.0, %v2413
        %v2415 = vpop.f32.mrf.mxu0
        %v2416 = vadd.f32 0.0, %v2415
        %2417 = vmatmul.bf16.gmra.mxu0 %v1868
        %v2418 = vpop.f32.mrf.mxu0
        %v2419 = vadd.f32 0.0, %v2418
        %v2420 = vpop.f32.mrf.mxu0
        %v2421 = vadd.f32 0.0, %v2420
        %2422 = vmatmul.bf16.gmra.mxu0 %v1871
        %v2423 = vpop.f32.mrf.mxu0
        %v2424 = vadd.f32 0.0, %v2423
        %v2425 = vpop.f32.mrf.mxu0
        %v2426 = vadd.f32 0.0, %v2425
        %2427 = vmatmul.bf16.gmra.mxu0 %v1874
        %v2428 = vpop.f32.mrf.mxu0
        %v2429 = vadd.f32 0.0, %v2428
        %v2430 = vpop.f32.mrf.mxu0
        %v2431 = vadd.f32 0.0, %v2430
        %2432 = vmatmul.bf16.gmra.mxu0 %v1877
        %v2433 = vpop.f32.mrf.mxu0
        %v2434 = vadd.f32 0.0, %v2433
        %v2435 = vpop.f32.mrf.mxu0
        %v2436 = vadd.f32 0.0, %v2435
        %2437 = vmatmul.bf16.gmra.mxu0 %v1880
        %v2438 = vpop.f32.mrf.mxu0
        %v2439 = vadd.f32 0.0, %v2438
        %v2440 = vpop.f32.mrf.mxu0
        %v2441 = vadd.f32 0.0, %v2440
        %2442 = vmatmul.bf16.gmra.mxu0 %v1883
        %v2443 = vpop.f32.mrf.mxu0
        %v2444 = vadd.f32 0.0, %v2443
        %v2445 = vpop.f32.mrf.mxu0
        %v2446 = vadd.f32 0.0, %v2445
        %2447 = vmatmul.bf16.gmra.mxu0 %v1886
        %v2448 = vpop.f32.mrf.mxu0
        %v2449 = vadd.f32 0.0, %v2448
        %v2450 = vpop.f32.mrf.mxu0
        %v2451 = vadd.f32 0.0, %v2450
        %2452 = vmatmul.bf16.gmra.mxu0 %v1889
        %v2453 = vpop.f32.mrf.mxu0
        %v2454 = vadd.f32 0.0, %v2453
        %v2455 = vpop.f32.mrf.mxu0
        %v2456 = vadd.f32 0.0, %v2455
        %2457 = vmatmul.bf16.gmra.mxu0 %v1892
        %v2458 = vpop.f32.mrf.mxu0
        %v2459 = vadd.f32 0.0, %v2458
        %v2460 = vpop.f32.mrf.mxu0
        %v2461 = vadd.f32 0.0, %v2460
        %2462 = vmatmul.bf16.gmra.mxu0 %v1895
        %v2463 = vpop.f32.mrf.mxu0
        %v2464 = vadd.f32 0.0, %v2463
        %v2465 = vpop.f32.mrf.mxu0
        %v2466 = vadd.f32 0.0, %v2465
        %2467 = vmatmul.bf16.gmra.mxu0 %v1898
        %v2468 = vpop.f32.mrf.mxu0
        %v2469 = vadd.f32 0.0, %v2468
        %v2470 = vpop.f32.mrf.mxu0
        %v2471 = vadd.f32 0.0, %v2470
        %2472 = vmatmul.bf16.gmra.mxu0 %v1901
        %v2473 = vpop.f32.mrf.mxu0
        %v2474 = vadd.f32 0.0, %v2473
        %v2475 = vpop.f32.mrf.mxu0
        %v2476 = vadd.f32 0.0, %v2475
        %2477 = vmatmul.bf16.gmra.mxu0 %v1904
        %v2478 = vpop.f32.mrf.mxu0
        %v2479 = vadd.f32 0.0, %v2478
        %v2480 = vpop.f32.mrf.mxu0
        %v2481 = vadd.f32 0.0, %v2480
        %2482 = vmatmul.bf16.gmra.mxu0 %v1907
        %v2483 = vpop.f32.mrf.mxu0
        %v2484 = vadd.f32 0.0, %v2483
        %v2485 = vpop.f32.mrf.mxu0
        %v2486 = vadd.f32 0.0, %v2485
        %2487 = vmatmul.bf16.gmra.mxu0 %v1910
        %v2488 = vpop.f32.mrf.mxu0
        %v2489 = vadd.f32 0.0, %v2488
        %v2490 = vpop.f32.mrf.mxu0
        %v2491 = vadd.f32 0.0, %v2490
        %2492 = vmatmul.bf16.gmra.mxu0 %v1913
        %v2493 = vpop.f32.mrf.mxu0
        %v2494 = vadd.f32 0.0, %v2493
        %v2495 = vpop.f32.mrf.mxu0
        %v2496 = vadd.f32 0.0, %v2495
        %2497 = vmatmul.bf16.gmra.mxu0 %v1916
        %v2498 = vpop.f32.mrf.mxu0
        %v2499 = vadd.f32 0.0, %v2498
        %v2500 = vpop.f32.mrf.mxu0
        %v2501 = vadd.f32 0.0, %v2500
        %2502 = vmatmul.bf16.gmra.mxu0 %v1919
        %v2503 = vpop.f32.mrf.mxu0
        %v2504 = vadd.f32 0.0, %v2503
        %v2505 = vpop.f32.mrf.mxu0
        %v2506 = vadd.f32 0.0, %v2505
        %2507 = vmatmul.bf16.gmra.mxu0 %v1922
        %v2508 = vpop.f32.mrf.mxu0
        %v2509 = vadd.f32 0.0, %v2508
        %v2510 = vpop.f32.mrf.mxu0
        %v2511 = vadd.f32 0.0, %v2510
        %2512 = vmatmul.bf16.gmra.mxu0 %v1925
        %v2513 = vpop.f32.mrf.mxu0
        %v2514 = vadd.f32 0.0, %v2513
        %v2515 = vpop.f32.mrf.mxu0
        %v2516 = vadd.f32 0.0, %v2515
        %2517 = vmatmul.bf16.gmra.mxu0 %v1928
        %v2518 = vpop.f32.mrf.mxu0
        %v2519 = vadd.f32 0.0, %v2518
        %v2520 = vpop.f32.mrf.mxu0
        %v2521 = vadd.f32 0.0, %v2520
        %2522 = vmatmul.bf16.gmra.mxu0 %v1931
        %v2523 = vpop.f32.mrf.mxu0
        %v2524 = vadd.f32 0.0, %v2523
        %v2525 = vpop.f32.mrf.mxu0
        %v2526 = vadd.f32 0.0, %v2525
        %2527 = vmatmul.bf16.gmra.mxu0 %v1934
        %v2528 = vpop.f32.mrf.mxu0
        %v2529 = vadd.f32 0.0, %v2528
        %v2530 = vpop.f32.mrf.mxu0
        %v2531 = vadd.f32 0.0, %v2530
        %2532 = vmatmul.bf16.gmra.mxu0 %v1937
        %v2533 = vpop.f32.mrf.mxu0
        %v2534 = vadd.f32 0.0, %v2533
        %v2535 = vpop.f32.mrf.mxu0
        %v2536 = vadd.f32 0.0, %v2535
        %2537 = vmatmul.bf16.gmra.mxu0 %v1940
        %v2538 = vpop.f32.mrf.mxu0
        %v2539 = vadd.f32 0.0, %v2538
        %v2540 = vpop.f32.mrf.mxu0
        %v2541 = vadd.f32 0.0, %v2540
        %2542 = vmatmul.bf16.gmra.mxu0 %v1943
        %v2543 = vpop.f32.mrf.mxu0
        %v2544 = vadd.f32 0.0, %v2543
        %v2545 = vpop.f32.mrf.mxu0
        %v2546 = vadd.f32 0.0, %v2545
        %2547 = vdwg.mxu0
        %2548 = vmatpush.bf16.xpose.msra.mxu0 %v2039
        %2549 = vmatpush.bf16.xpose.msra.mxu0 %v2036
        %2550 = vmatpush.bf16.xpose.msra.mxu0 %v2033
        %2551 = vmatpush.bf16.xpose.msra.mxu0 %v2030
        %2552 = vmatpush.bf16.xpose.msra.mxu0 %v2027
        %2553 = vmatpush.bf16.xpose.msra.mxu0 %v2024
        %2554 = vmatpush.bf16.xpose.msra.mxu0 %v2021
        %2555 = vmatpush.bf16.xpose.msra.mxu0 %v2018
        %2556 = vmatmul.bf16.gmra.mxu0 %v1850
        %v2557 = vpop.f32.mrf.mxu0
        %v2558 = vadd.f32 0.0, %v2557
        %v2559 = vpop.f32.mrf.mxu0
        %v2560 = vadd.f32 0.0, %v2559
        %2561 = vmatmul.bf16.gmra.mxu0 %v1853
        %v2562 = vpop.f32.mrf.mxu0
        %v2563 = vadd.f32 0.0, %v2562
        %v2564 = vpop.f32.mrf.mxu0
        %v2565 = vadd.f32 0.0, %v2564
        %2566 = vmatmul.bf16.gmra.mxu0 %v1856
        %v2567 = vpop.f32.mrf.mxu0
        %v2568 = vadd.f32 0.0, %v2567
        %v2569 = vpop.f32.mrf.mxu0
        %v2570 = vadd.f32 0.0, %v2569
        %2571 = vmatmul.bf16.gmra.mxu0 %v1859
        %v2572 = vpop.f32.mrf.mxu0
        %v2573 = vadd.f32 0.0, %v2572
        %v2574 = vpop.f32.mrf.mxu0
        %v2575 = vadd.f32 0.0, %v2574
        %2576 = vmatmul.bf16.gmra.mxu0 %v1862
        %v2577 = vpop.f32.mrf.mxu0
        %v2578 = vadd.f32 0.0, %v2577
        %v2579 = vpop.f32.mrf.mxu0
        %v2580 = vadd.f32 0.0, %v2579
        %2581 = vmatmul.bf16.gmra.mxu0 %v1865
        %v2582 = vpop.f32.mrf.mxu0
        %v2583 = vadd.f32 0.0, %v2582
        %v2584 = vpop.f32.mrf.mxu0
        %v2585 = vadd.f32 0.0, %v2584
        %2586 = vmatmul.bf16.gmra.mxu0 %v1868
        %v2587 = vpop.f32.mrf.mxu0
        %v2588 = vadd.f32 0.0, %v2587
        %v2589 = vpop.f32.mrf.mxu0
        %v2590 = vadd.f32 0.0, %v2589
        %2591 = vmatmul.bf16.gmra.mxu0 %v1871
        %v2592 = vpop.f32.mrf.mxu0
        %v2593 = vadd.f32 0.0, %v2592
        %v2594 = vpop.f32.mrf.mxu0
        %v2595 = vadd.f32 0.0, %v2594
        %2596 = vmatmul.bf16.gmra.mxu0 %v1874
        %v2597 = vpop.f32.mrf.mxu0
        %v2598 = vadd.f32 0.0, %v2597
        %v2599 = vpop.f32.mrf.mxu0
        %v2600 = vadd.f32 0.0, %v2599
        %2601 = vmatmul.bf16.gmra.mxu0 %v1877
        %v2602 = vpop.f32.mrf.mxu0
        %v2603 = vadd.f32 0.0, %v2602
        %v2604 = vpop.f32.mrf.mxu0
        %v2605 = vadd.f32 0.0, %v2604
        %2606 = vmatmul.bf16.gmra.mxu0 %v1880
        %v2607 = vpop.f32.mrf.mxu0
        %v2608 = vadd.f32 0.0, %v2607
        %v2609 = vpop.f32.mrf.mxu0
        %v2610 = vadd.f32 0.0, %v2609
        %2611 = vmatmul.bf16.gmra.mxu0 %v1883
        %v2612 = vpop.f32.mrf.mxu0
        %v2613 = vadd.f32 0.0, %v2612
        %v2614 = vpop.f32.mrf.mxu0
        %v2615 = vadd.f32 0.0, %v2614
        %2616 = vmatmul.bf16.gmra.mxu0 %v1886
        %v2617 = vpop.f32.mrf.mxu0
        %v2618 = vadd.f32 0.0, %v2617
        %v2619 = vpop.f32.mrf.mxu0
        %v2620 = vadd.f32 0.0, %v2619
        %2621 = vmatmul.bf16.gmra.mxu0 %v1889
        %v2622 = vpop.f32.mrf.mxu0
        %v2623 = vadd.f32 0.0, %v2622
        %v2624 = vpop.f32.mrf.mxu0
        %v2625 = vadd.f32 0.0, %v2624
        %2626 = vmatmul.bf16.gmra.mxu0 %v1892
        %v2627 = vpop.f32.mrf.mxu0
        %v2628 = vadd.f32 0.0, %v2627
        %v2629 = vpop.f32.mrf.mxu0
        %v2630 = vadd.f32 0.0, %v2629
        %2631 = vmatmul.bf16.gmra.mxu0 %v1895
        %v2632 = vpop.f32.mrf.mxu0
        %v2633 = vadd.f32 0.0, %v2632
        %v2634 = vpop.f32.mrf.mxu0
        %v2635 = vadd.f32 0.0, %v2634
        %2636 = vmatmul.bf16.gmra.mxu0 %v1898
        %v2637 = vpop.f32.mrf.mxu0
        %v2638 = vadd.f32 0.0, %v2637
        %v2639 = vpop.f32.mrf.mxu0
        %v2640 = vadd.f32 0.0, %v2639
        %2641 = vmatmul.bf16.gmra.mxu0 %v1901
        %v2642 = vpop.f32.mrf.mxu0
        %v2643 = vadd.f32 0.0, %v2642
        %v2644 = vpop.f32.mrf.mxu0
        %v2645 = vadd.f32 0.0, %v2644
        %2646 = vmatmul.bf16.gmra.mxu0 %v1904
        %v2647 = vpop.f32.mrf.mxu0
        %v2648 = vadd.f32 0.0, %v2647
        %v2649 = vpop.f32.mrf.mxu0
        %v2650 = vadd.f32 0.0, %v2649
        %2651 = vmatmul.bf16.gmra.mxu0 %v1907
        %v2652 = vpop.f32.mrf.mxu0
        %v2653 = vadd.f32 0.0, %v2652
        %v2654 = vpop.f32.mrf.mxu0
        %v2655 = vadd.f32 0.0, %v2654
        %2656 = vmatmul.bf16.gmra.mxu0 %v1910
        %v2657 = vpop.f32.mrf.mxu0
        %v2658 = vadd.f32 0.0, %v2657
        %v2659 = vpop.f32.mrf.mxu0
        %v2660 = vadd.f32 0.0, %v2659
        %2661 = vmatmul.bf16.gmra.mxu0 %v1913
        %v2662 = vpop.f32.mrf.mxu0
        %v2663 = vadd.f32 0.0, %v2662
        %v2664 = vpop.f32.mrf.mxu0
        %v2665 = vadd.f32 0.0, %v2664
        %2666 = vmatmul.bf16.gmra.mxu0 %v1916
        %v2667 = vpop.f32.mrf.mxu0
        %v2668 = vadd.f32 0.0, %v2667
        %v2669 = vpop.f32.mrf.mxu0
        %v2670 = vadd.f32 0.0, %v2669
        %2671 = vmatmul.bf16.gmra.mxu0 %v1919
        %v2672 = vpop.f32.mrf.mxu0
        %v2673 = vadd.f32 0.0, %v2672
        %v2674 = vpop.f32.mrf.mxu0
        %v2675 = vadd.f32 0.0, %v2674
        %2676 = vmatmul.bf16.gmra.mxu0 %v1922
        %v2677 = vpop.f32.mrf.mxu0
        %v2678 = vadd.f32 0.0, %v2677
        %v2679 = vpop.f32.mrf.mxu0
        %v2680 = vadd.f32 0.0, %v2679
        %2681 = vmatmul.bf16.gmra.mxu0 %v1925
        %v2682 = vpop.f32.mrf.mxu0
        %v2683 = vadd.f32 0.0, %v2682
        %v2684 = vpop.f32.mrf.mxu0
        %v2685 = vadd.f32 0.0, %v2684
        %2686 = vmatmul.bf16.gmra.mxu0 %v1928
        %v2687 = vpop.f32.mrf.mxu0
        %v2688 = vadd.f32 0.0, %v2687
        %v2689 = vpop.f32.mrf.mxu0
        %v2690 = vadd.f32 0.0, %v2689
        %2691 = vmatmul.bf16.gmra.mxu0 %v1931
        %v2692 = vpop.f32.mrf.mxu0
        %v2693 = vadd.f32 0.0, %v2692
        %v2694 = vpop.f32.mrf.mxu0
        %v2695 = vadd.f32 0.0, %v2694
        %2696 = vmatmul.bf16.gmra.mxu0 %v1934
        %v2697 = vpop.f32.mrf.mxu0
        %v2698 = vadd.f32 0.0, %v2697
        %v2699 = vpop.f32.mrf.mxu0
        %v2700 = vadd.f32 0.0, %v2699
        %2701 = vmatmul.bf16.gmra.mxu0 %v1937
        %v2702 = vpop.f32.mrf.mxu0
        %v2703 = vadd.f32 0.0, %v2702
        %v2704 = vpop.f32.mrf.mxu0
        %v2705 = vadd.f32 0.0, %v2704
        %2706 = vmatmul.bf16.gmra.mxu0 %v1940
        %v2707 = vpop.f32.mrf.mxu0
        %v2708 = vadd.f32 0.0, %v2707
        %v2709 = vpop.f32.mrf.mxu0
        %v2710 = vadd.f32 0.0, %v2709
        %2711 = vmatmul.bf16.gmra.mxu0 %v1943
        %v2712 = vpop.f32.mrf.mxu0
        %v2713 = vadd.f32 0.0, %v2712
        %v2714 = vpop.f32.mrf.mxu0
        %v2715 = vadd.f32 0.0, %v2714
        %2716 = vdwg.mxu0
        %v2717 = vmul.f32 %v2051, 0.17677669
        %v2718 = vmul.f32 %v2220, 0.17677669
        %v2719 = vmul.f32 %v2389, 0.17677669
        %v2720 = vmul.f32 %v2558, 0.17677669
        %v2721 = vmul.f32 %v2053, 0.17677669
        %v2722 = vmul.f32 %v2222, 0.17677669
        %v2723 = vmul.f32 %v2391, 0.17677669
        %v2724 = vmul.f32 %v2560, 0.17677669
        %v2725 = vmul.f32 %v2056, 0.17677669
        %v2726 = vmul.f32 %v2225, 0.17677669
        %v2727 = vmul.f32 %v2394, 0.17677669
        %v2728 = vmul.f32 %v2563, 0.17677669
        %v2729 = vmul.f32 %v2058, 0.17677669
        %v2730 = vmul.f32 %v2227, 0.17677669
        %v2731 = vmul.f32 %v2396, 0.17677669
        %v2732 = vmul.f32 %v2565, 0.17677669
        %v2733 = vmul.f32 %v2061, 0.17677669
        %v2734 = vmul.f32 %v2230, 0.17677669
        %v2735 = vmul.f32 %v2399, 0.17677669
        %v2736 = vmul.f32 %v2568, 0.17677669
        %v2737 = vmul.f32 %v2063, 0.17677669
        %v2738 = vmul.f32 %v2232, 0.17677669
        %v2739 = vmul.f32 %v2401, 0.17677669
        %v2740 = vmul.f32 %v2570, 0.17677669
        %v2741 = vmul.f32 %v2066, 0.17677669
        %v2742 = vmul.f32 %v2235, 0.17677669
        %v2743 = vmul.f32 %v2404, 0.17677669
        %v2744 = vmul.f32 %v2573, 0.17677669
        %v2745 = vmul.f32 %v2068, 0.17677669
        %v2746 = vmul.f32 %v2237, 0.17677669
        %v2747 = vmul.f32 %v2406, 0.17677669
        %v2748 = vmul.f32 %v2575, 0.17677669
        %v2749 = vmul.f32 %v2071, 0.17677669
        %v2750 = vmul.f32 %v2240, 0.17677669
        %v2751 = vmul.f32 %v2409, 0.17677669
        %v2752 = vmul.f32 %v2578, 0.17677669
        %v2753 = vmul.f32 %v2073, 0.17677669
        %v2754 = vmul.f32 %v2242, 0.17677669
        %v2755 = vmul.f32 %v2411, 0.17677669
        %v2756 = vmul.f32 %v2580, 0.17677669
        %v2757 = vmul.f32 %v2076, 0.17677669
        %v2758 = vmul.f32 %v2245, 0.17677669
        %v2759 = vmul.f32 %v2414, 0.17677669
        %v2760 = vmul.f32 %v2583, 0.17677669
        %v2761 = vmul.f32 %v2078, 0.17677669
        %v2762 = vmul.f32 %v2247, 0.17677669
        %v2763 = vmul.f32 %v2416, 0.17677669
        %v2764 = vmul.f32 %v2585, 0.17677669
        %v2765 = vmul.f32 %v2081, 0.17677669
        %v2766 = vmul.f32 %v2250, 0.17677669
        %v2767 = vmul.f32 %v2419, 0.17677669
        %v2768 = vmul.f32 %v2588, 0.17677669
        %v2769 = vmul.f32 %v2083, 0.17677669
        %v2770 = vmul.f32 %v2252, 0.17677669
        %v2771 = vmul.f32 %v2421, 0.17677669
        %v2772 = vmul.f32 %v2590, 0.17677669
        %v2773 = vmul.f32 %v2086, 0.17677669
        %v2774 = vmul.f32 %v2255, 0.17677669
        %v2775 = vmul.f32 %v2424, 0.17677669
        %v2776 = vmul.f32 %v2593, 0.17677669
        %v2777 = vmul.f32 %v2088, 0.17677669
        %v2778 = vmul.f32 %v2257, 0.17677669
        %v2779 = vmul.f32 %v2426, 0.17677669
        %v2780 = vmul.f32 %v2595, 0.17677669
        %v2781 = vmul.f32 %v2091, 0.17677669
        %v2782 = vmul.f32 %v2260, 0.17677669
        %v2783 = vmul.f32 %v2429, 0.17677669
        %v2784 = vmul.f32 %v2598, 0.17677669
        %v2785 = vmul.f32 %v2093, 0.17677669
        %v2786 = vmul.f32 %v2262, 0.17677669
        %v2787 = vmul.f32 %v2431, 0.17677669
        %v2788 = vmul.f32 %v2600, 0.17677669
        %v2789 = vmul.f32 %v2096, 0.17677669
        %v2790 = vmul.f32 %v2265, 0.17677669
        %v2791 = vmul.f32 %v2434, 0.17677669
        %v2792 = vmul.f32 %v2603, 0.17677669
        %v2793 = vmul.f32 %v2098, 0.17677669
        %v2794 = vmul.f32 %v2267, 0.17677669
        %v2795 = vmul.f32 %v2436, 0.17677669
        %v2796 = vmul.f32 %v2605, 0.17677669
        %v2797 = vmul.f32 %v2101, 0.17677669
        %v2798 = vmul.f32 %v2270, 0.17677669
        %v2799 = vmul.f32 %v2439, 0.17677669
        %v2800 = vmul.f32 %v2608, 0.17677669
        %v2801 = vmul.f32 %v2103, 0.17677669
        %v2802 = vmul.f32 %v2272, 0.17677669
        %v2803 = vmul.f32 %v2441, 0.17677669
        %v2804 = vmul.f32 %v2610, 0.17677669
        %v2805 = vmul.f32 %v2106, 0.17677669
        %v2806 = vmul.f32 %v2275, 0.17677669
        %v2807 = vmul.f32 %v2444, 0.17677669
        %v2808 = vmul.f32 %v2613, 0.17677669
        %v2809 = vmul.f32 %v2108, 0.17677669
        %v2810 = vmul.f32 %v2277, 0.17677669
        %v2811 = vmul.f32 %v2446, 0.17677669
        %v2812 = vmul.f32 %v2615, 0.17677669
        %v2813 = vmul.f32 %v2111, 0.17677669
        %v2814 = vmul.f32 %v2280, 0.17677669
        %v2815 = vmul.f32 %v2449, 0.17677669
        %v2816 = vmul.f32 %v2618, 0.17677669
        %v2817 = vmul.f32 %v2113, 0.17677669
        %v2818 = vmul.f32 %v2282, 0.17677669
        %v2819 = vmul.f32 %v2451, 0.17677669
        %v2820 = vmul.f32 %v2620, 0.17677669
        %v2821 = vmul.f32 %v2116, 0.17677669
        %v2822 = vmul.f32 %v2285, 0.17677669
        %v2823 = vmul.f32 %v2454, 0.17677669
        %v2824 = vmul.f32 %v2623, 0.17677669
        %v2825 = vmul.f32 %v2118, 0.17677669
        %v2826 = vmul.f32 %v2287, 0.17677669
        %v2827 = vmul.f32 %v2456, 0.17677669
        %v2828 = vmul.f32 %v2625, 0.17677669
        %v2829 = vmul.f32 %v2121, 0.17677669
        %v2830 = vmul.f32 %v2290, 0.17677669
        %v2831 = vmul.f32 %v2459, 0.17677669
        %v2832 = vmul.f32 %v2628, 0.17677669
        %v2833 = vmul.f32 %v2123, 0.17677669
        %v2834 = vmul.f32 %v2292, 0.17677669
        %v2835 = vmul.f32 %v2461, 0.17677669
        %v2836 = vmul.f32 %v2630, 0.17677669
        %v2837 = vmul.f32 %v2126, 0.17677669
        %v2838 = vmul.f32 %v2295, 0.17677669
        %v2839 = vmul.f32 %v2464, 0.17677669
        %v2840 = vmul.f32 %v2633, 0.17677669
        %v2841 = vmul.f32 %v2128, 0.17677669
        %v2842 = vmul.f32 %v2297, 0.17677669
        %v2843 = vmul.f32 %v2466, 0.17677669
        %v2844 = vmul.f32 %v2635, 0.17677669
        %v2845 = vmul.f32 %v2131, 0.17677669
        %v2846 = vmul.f32 %v2300, 0.17677669
        %v2847 = vmul.f32 %v2469, 0.17677669
        %v2848 = vmul.f32 %v2638, 0.17677669
        %v2849 = vmul.f32 %v2133, 0.17677669
        %v2850 = vmul.f32 %v2302, 0.17677669
        %v2851 = vmul.f32 %v2471, 0.17677669
        %v2852 = vmul.f32 %v2640, 0.17677669
        %v2853 = vmul.f32 %v2136, 0.17677669
        %v2854 = vmul.f32 %v2305, 0.17677669
        %v2855 = vmul.f32 %v2474, 0.17677669
        %v2856 = vmul.f32 %v2643, 0.17677669
        %v2857 = vmul.f32 %v2138, 0.17677669
        %v2858 = vmul.f32 %v2307, 0.17677669
        %v2859 = vmul.f32 %v2476, 0.17677669
        %v2860 = vmul.f32 %v2645, 0.17677669
        %v2861 = vmul.f32 %v2141, 0.17677669
        %v2862 = vmul.f32 %v2310, 0.17677669
        %v2863 = vmul.f32 %v2479, 0.17677669
        %v2864 = vmul.f32 %v2648, 0.17677669
        %v2865 = vmul.f32 %v2143, 0.17677669
        %v2866 = vmul.f32 %v2312, 0.17677669
        %v2867 = vmul.f32 %v2481, 0.17677669
        %v2868 = vmul.f32 %v2650, 0.17677669
        %v2869 = vmul.f32 %v2146, 0.17677669
        %v2870 = vmul.f32 %v2315, 0.17677669
        %v2871 = vmul.f32 %v2484, 0.17677669
        %v2872 = vmul.f32 %v2653, 0.17677669
        %v2873 = vmul.f32 %v2148, 0.17677669
        %v2874 = vmul.f32 %v2317, 0.17677669
        %v2875 = vmul.f32 %v2486, 0.17677669
        %v2876 = vmul.f32 %v2655, 0.17677669
        %v2877 = vmul.f32 %v2151, 0.17677669
        %v2878 = vmul.f32 %v2320, 0.17677669
        %v2879 = vmul.f32 %v2489, 0.17677669
        %v2880 = vmul.f32 %v2658, 0.17677669
        %v2881 = vmul.f32 %v2153, 0.17677669
        %v2882 = vmul.f32 %v2322, 0.17677669
        %v2883 = vmul.f32 %v2491, 0.17677669
        %v2884 = vmul.f32 %v2660, 0.17677669
        %v2885 = vmul.f32 %v2156, 0.17677669
        %v2886 = vmul.f32 %v2325, 0.17677669
        %v2887 = vmul.f32 %v2494, 0.17677669
        %v2888 = vmul.f32 %v2663, 0.17677669
        %v2889 = vmul.f32 %v2158, 0.17677669
        %v2890 = vmul.f32 %v2327, 0.17677669
        %v2891 = vmul.f32 %v2496, 0.17677669
        %v2892 = vmul.f32 %v2665, 0.17677669
        %v2893 = vmul.f32 %v2161, 0.17677669
        %v2894 = vmul.f32 %v2330, 0.17677669
        %v2895 = vmul.f32 %v2499, 0.17677669
        %v2896 = vmul.f32 %v2668, 0.17677669
        %v2897 = vmul.f32 %v2163, 0.17677669
        %v2898 = vmul.f32 %v2332, 0.17677669
        %v2899 = vmul.f32 %v2501, 0.17677669
        %v2900 = vmul.f32 %v2670, 0.17677669
        %v2901 = vmul.f32 %v2166, 0.17677669
        %v2902 = vmul.f32 %v2335, 0.17677669
        %v2903 = vmul.f32 %v2504, 0.17677669
        %v2904 = vmul.f32 %v2673, 0.17677669
        %v2905 = vmul.f32 %v2168, 0.17677669
        %v2906 = vmul.f32 %v2337, 0.17677669
        %v2907 = vmul.f32 %v2506, 0.17677669
        %v2908 = vmul.f32 %v2675, 0.17677669
        %v2909 = vmul.f32 %v2171, 0.17677669
        %v2910 = vmul.f32 %v2340, 0.17677669
        %v2911 = vmul.f32 %v2509, 0.17677669
        %v2912 = vmul.f32 %v2678, 0.17677669
        %v2913 = vmul.f32 %v2173, 0.17677669
        %v2914 = vmul.f32 %v2342, 0.17677669
        %v2915 = vmul.f32 %v2511, 0.17677669
        %v2916 = vmul.f32 %v2680, 0.17677669
        %v2917 = vmul.f32 %v2176, 0.17677669
        %v2918 = vmul.f32 %v2345, 0.17677669
        %v2919 = vmul.f32 %v2514, 0.17677669
        %v2920 = vmul.f32 %v2683, 0.17677669
        %v2921 = vmul.f32 %v2178, 0.17677669
        %v2922 = vmul.f32 %v2347, 0.17677669
        %v2923 = vmul.f32 %v2516, 0.17677669
        %v2924 = vmul.f32 %v2685, 0.17677669
        %v2925 = vmul.f32 %v2181, 0.17677669
        %v2926 = vmul.f32 %v2350, 0.17677669
        %v2927 = vmul.f32 %v2519, 0.17677669
        %v2928 = vmul.f32 %v2688, 0.17677669
        %v2929 = vmul.f32 %v2183, 0.17677669
        %v2930 = vmul.f32 %v2352, 0.17677669
        %v2931 = vmul.f32 %v2521, 0.17677669
        %v2932 = vmul.f32 %v2690, 0.17677669
        %v2933 = vmul.f32 %v2186, 0.17677669
        %v2934 = vmul.f32 %v2355, 0.17677669
        %v2935 = vmul.f32 %v2524, 0.17677669
        %v2936 = vmul.f32 %v2693, 0.17677669
        %v2937 = vmul.f32 %v2188, 0.17677669
        %v2938 = vmul.f32 %v2357, 0.17677669
        %v2939 = vmul.f32 %v2526, 0.17677669
        %v2940 = vmul.f32 %v2695, 0.17677669
        %v2941 = vmul.f32 %v2191, 0.17677669
        %v2942 = vmul.f32 %v2360, 0.17677669
        %v2943 = vmul.f32 %v2529, 0.17677669
        %v2944 = vmul.f32 %v2698, 0.17677669
        %v2945 = vmul.f32 %v2193, 0.17677669
        %v2946 = vmul.f32 %v2362, 0.17677669
        %v2947 = vmul.f32 %v2531, 0.17677669
        %v2948 = vmul.f32 %v2700, 0.17677669
        %v2949 = vmul.f32 %v2196, 0.17677669
        %v2950 = vmul.f32 %v2365, 0.17677669
        %v2951 = vmul.f32 %v2534, 0.17677669
        %v2952 = vmul.f32 %v2703, 0.17677669
        %v2953 = vmul.f32 %v2198, 0.17677669
        %v2954 = vmul.f32 %v2367, 0.17677669
        %v2955 = vmul.f32 %v2536, 0.17677669
        %v2956 = vmul.f32 %v2705, 0.17677669
        %v2957 = vmul.f32 %v2201, 0.17677669
        %v2958 = vmul.f32 %v2370, 0.17677669
        %v2959 = vmul.f32 %v2539, 0.17677669
        %v2960 = vmul.f32 %v2708, 0.17677669
        %v2961 = vmul.f32 %v2203, 0.17677669
        %v2962 = vmul.f32 %v2372, 0.17677669
        %v2963 = vmul.f32 %v2541, 0.17677669
        %v2964 = vmul.f32 %v2710, 0.17677669
        %v2965 = vmul.f32 %v2206, 0.17677669
        %v2966 = vmul.f32 %v2375, 0.17677669
        %v2967 = vmul.f32 %v2544, 0.17677669
        %v2968 = vmul.f32 %v2713, 0.17677669
        %v2969 = vmul.f32 %v2208, 0.17677669
        %v2970 = vmul.f32 %v2377, 0.17677669
        %v2971 = vmul.f32 %v2546, 0.17677669
        %v2972 = vmul.f32 %v2715, 0.17677669
        %v2973 = vld [vmem:[%s1] sm:$0xff]
        %v2974 = vld [vmem:[%s1 + $0x8] sm:$0xff]
        %v2975 = vld [vmem:[%s1 + $0x10] sm:$0xff]
        %v2976 = vld [vmem:[%s1 + $0x18] sm:$0xff]
        %v2977 = vld [vmem:[%s1 + $0x20] sm:$0xff]
        %v2978 = vld [vmem:[%s1 + $0x28] sm:$0xff]
        %v2979 = vld [vmem:[%s1 + $0x30] sm:$0xff]
        %v2980 = vld [vmem:[%s1 + $0x38] sm:$0xff]
        %v2981 = vld [vmem:[%s1 + $0x40] sm:$0xff]
        %v2982 = vld [vmem:[%s1 + $0x48] sm:$0xff]
        %v2983 = vld [vmem:[%s1 + $0x50] sm:$0xff]
        %v2984 = vld [vmem:[%s1 + $0x58] sm:$0xff]
        %v2985 = vld [vmem:[%s1 + $0x60] sm:$0xff]
        %v2986 = vld [vmem:[%s1 + $0x68] sm:$0xff]
        %v2987 = vld [vmem:[%s1 + $0x70] sm:$0xff]
        %v2988 = vld [vmem:[%s1 + $0x78] sm:$0xff]
        %v2989 = vld [vmem:[%s1 + $0x80] sm:$0xff]
        %v2990 = vld [vmem:[%s1 + $0x88] sm:$0xff]
        %v2991 = vld [vmem:[%s1 + $0x90] sm:$0xff]
        %v2992 = vld [vmem:[%s1 + $0x98] sm:$0xff]
        %v2993 = vld [vmem:[%s1 + $0xa0] sm:$0xff]
        %v2994 = vld [vmem:[%s1 + $0xa8] sm:$0xff]
        %v2995 = vld [vmem:[%s1 + $0xb0] sm:$0xff]
        %v2996 = vld [vmem:[%s1 + $0xb8] sm:$0xff]
        %v2997 = vld [vmem:[%s1 + $0xc0] sm:$0xff]
        %v2998 = vld [vmem:[%s1 + $0xc8] sm:$0xff]
        %v2999 = vld [vmem:[%s1 + $0xd0] sm:$0xff]
        %v3000 = vld [vmem:[%s1 + $0xd8] sm:$0xff]
        %v3001 = vld [vmem:[%s1 + $0xe0] sm:$0xff]
        %v3002 = vld [vmem:[%s1 + $0xe8] sm:$0xff]
        %v3003 = vld [vmem:[%s1 + $0xf0] sm:$0xff]
        %v3004 = vld [vmem:[%s1 + $0xf8] sm:$0xff]
        %v3005 = vld [vmem:[%s1 + $0x100] sm:$0xff]
        %v3006 = vld [vmem:[%s1 + $0x108] sm:$0xff]
        %v3007 = vld [vmem:[%s1 + $0x110] sm:$0xff]
        %v3008 = vld [vmem:[%s1 + $0x118] sm:$0xff]
        %v3009 = vld [vmem:[%s1 + $0x120] sm:$0xff]
        %v3010 = vld [vmem:[%s1 + $0x128] sm:$0xff]
        %v3011 = vld [vmem:[%s1 + $0x130] sm:$0xff]
        %v3012 = vld [vmem:[%s1 + $0x138] sm:$0xff]
        %v3013 = vld [vmem:[%s1 + $0x140] sm:$0xff]
        %v3014 = vld [vmem:[%s1 + $0x148] sm:$0xff]
        %v3015 = vld [vmem:[%s1 + $0x150] sm:$0xff]
        %v3016 = vld [vmem:[%s1 + $0x158] sm:$0xff]
        %v3017 = vld [vmem:[%s1 + $0x160] sm:$0xff]
        %v3018 = vld [vmem:[%s1 + $0x168] sm:$0xff]
        %v3019 = vld [vmem:[%s1 + $0x170] sm:$0xff]
        %v3020 = vld [vmem:[%s1 + $0x178] sm:$0xff]
        %v3021 = vld [vmem:[%s1 + $0x180] sm:$0xff]
        %v3022 = vld [vmem:[%s1 + $0x188] sm:$0xff]
        %v3023 = vld [vmem:[%s1 + $0x190] sm:$0xff]
        %v3024 = vld [vmem:[%s1 + $0x198] sm:$0xff]
        %v3025 = vld [vmem:[%s1 + $0x1a0] sm:$0xff]
        %v3026 = vld [vmem:[%s1 + $0x1a8] sm:$0xff]
        %v3027 = vld [vmem:[%s1 + $0x1b0] sm:$0xff]
        %v3028 = vld [vmem:[%s1 + $0x1b8] sm:$0xff]
        %v3029 = vld [vmem:[%s1 + $0x1c0] sm:$0xff]
        %v3030 = vld [vmem:[%s1 + $0x1c8] sm:$0xff]
        %v3031 = vld [vmem:[%s1 + $0x1d0] sm:$0xff]
        %v3032 = vld [vmem:[%s1 + $0x1d8] sm:$0xff]
        %v3033 = vld [vmem:[%s1 + $0x1e0] sm:$0xff]
        %v3034 = vld [vmem:[%s1 + $0x1e8] sm:$0xff]
        %v3035 = vld [vmem:[%s1 + $0x1f0] sm:$0xff]
        %v3036 = vld [vmem:[%s1 + $0x1f8] sm:$0xff]
        %v3037 = vld [vmem:[%s1 + $0x200] sm:$0xff]
        %v3038 = vld [vmem:[%s1 + $0x208] sm:$0xff]
        %v3039 = vld [vmem:[%s1 + $0x210] sm:$0xff]
        %v3040 = vld [vmem:[%s1 + $0x218] sm:$0xff]
        %v3041 = vld [vmem:[%s1 + $0x220] sm:$0xff]
        %v3042 = vld [vmem:[%s1 + $0x228] sm:$0xff]
        %v3043 = vld [vmem:[%s1 + $0x230] sm:$0xff]
        %v3044 = vld [vmem:[%s1 + $0x238] sm:$0xff]
        %v3045 = vld [vmem:[%s1 + $0x240] sm:$0xff]
        %v3046 = vld [vmem:[%s1 + $0x248] sm:$0xff]
        %v3047 = vld [vmem:[%s1 + $0x250] sm:$0xff]
        %v3048 = vld [vmem:[%s1 + $0x258] sm:$0xff]
        %v3049 = vld [vmem:[%s1 + $0x260] sm:$0xff]
        %v3050 = vld [vmem:[%s1 + $0x268] sm:$0xff]
        %v3051 = vld [vmem:[%s1 + $0x270] sm:$0xff]
        %v3052 = vld [vmem:[%s1 + $0x278] sm:$0xff]
        %v3053 = vld [vmem:[%s1 + $0x280] sm:$0xff]
        %v3054 = vld [vmem:[%s1 + $0x288] sm:$0xff]
        %v3055 = vld [vmem:[%s1 + $0x290] sm:$0xff]
        %v3056 = vld [vmem:[%s1 + $0x298] sm:$0xff]
        %v3057 = vld [vmem:[%s1 + $0x2a0] sm:$0xff]
        %v3058 = vld [vmem:[%s1 + $0x2a8] sm:$0xff]
        %v3059 = vld [vmem:[%s1 + $0x2b0] sm:$0xff]
        %v3060 = vld [vmem:[%s1 + $0x2b8] sm:$0xff]
        %v3061 = vld [vmem:[%s1 + $0x2c0] sm:$0xff]
        %v3062 = vld [vmem:[%s1 + $0x2c8] sm:$0xff]
        %v3063 = vld [vmem:[%s1 + $0x2d0] sm:$0xff]
        %v3064 = vld [vmem:[%s1 + $0x2d8] sm:$0xff]
        %v3065 = vld [vmem:[%s1 + $0x2e0] sm:$0xff]
        %v3066 = vld [vmem:[%s1 + $0x2e8] sm:$0xff]
        %v3067 = vld [vmem:[%s1 + $0x2f0] sm:$0xff]
        %v3068 = vld [vmem:[%s1 + $0x2f8] sm:$0xff]
        %v3069 = vld [vmem:[%s1 + $0x300] sm:$0xff]
        %v3070 = vld [vmem:[%s1 + $0x308] sm:$0xff]
        %v3071 = vld [vmem:[%s1 + $0x310] sm:$0xff]
        %v3072 = vld [vmem:[%s1 + $0x318] sm:$0xff]
        %v3073 = vld [vmem:[%s1 + $0x320] sm:$0xff]
        %v3074 = vld [vmem:[%s1 + $0x328] sm:$0xff]
        %v3075 = vld [vmem:[%s1 + $0x330] sm:$0xff]
        %v3076 = vld [vmem:[%s1 + $0x338] sm:$0xff]
        %v3077 = vld [vmem:[%s1 + $0x340] sm:$0xff]
        %v3078 = vld [vmem:[%s1 + $0x348] sm:$0xff]
        %v3079 = vld [vmem:[%s1 + $0x350] sm:$0xff]
        %v3080 = vld [vmem:[%s1 + $0x358] sm:$0xff]
        %v3081 = vld [vmem:[%s1 + $0x360] sm:$0xff]
        %v3082 = vld [vmem:[%s1 + $0x368] sm:$0xff]
        %v3083 = vld [vmem:[%s1 + $0x370] sm:$0xff]
        %v3084 = vld [vmem:[%s1 + $0x378] sm:$0xff]
        %v3085 = vld [vmem:[%s1 + $0x380] sm:$0xff]
        %v3086 = vld [vmem:[%s1 + $0x388] sm:$0xff]
        %v3087 = vld [vmem:[%s1 + $0x390] sm:$0xff]
        %v3088 = vld [vmem:[%s1 + $0x398] sm:$0xff]
        %v3089 = vld [vmem:[%s1 + $0x3a0] sm:$0xff]
        %v3090 = vld [vmem:[%s1 + $0x3a8] sm:$0xff]
        %v3091 = vld [vmem:[%s1 + $0x3b0] sm:$0xff]
        %v3092 = vld [vmem:[%s1 + $0x3b8] sm:$0xff]
        %v3093 = vld [vmem:[%s1 + $0x3c0] sm:$0xff]
        %v3094 = vld [vmem:[%s1 + $0x3c8] sm:$0xff]
        %v3095 = vld [vmem:[%s1 + $0x3d0] sm:$0xff]
        %v3096 = vld [vmem:[%s1 + $0x3d8] sm:$0xff]
        %v3097 = vld [vmem:[%s1 + $0x3e0] sm:$0xff]
        %v3098 = vld [vmem:[%s1 + $0x3e8] sm:$0xff]
        %v3099 = vld [vmem:[%s1 + $0x3f0] sm:$0xff]
        %v3100 = vld [vmem:[%s1 + $0x3f8] sm:$0xff]
        %v3101 = vld [vmem:[%s1 + $0x400] sm:$0xff]
        %v3102 = vld [vmem:[%s1 + $0x408] sm:$0xff]
        %v3103 = vld [vmem:[%s1 + $0x410] sm:$0xff]
        %v3104 = vld [vmem:[%s1 + $0x418] sm:$0xff]
        %v3105 = vld [vmem:[%s1 + $0x420] sm:$0xff]
        %v3106 = vld [vmem:[%s1 + $0x428] sm:$0xff]
        %v3107 = vld [vmem:[%s1 + $0x430] sm:$0xff]
        %v3108 = vld [vmem:[%s1 + $0x438] sm:$0xff]
        %v3109 = vld [vmem:[%s1 + $0x440] sm:$0xff]
        %v3110 = vld [vmem:[%s1 + $0x448] sm:$0xff]
        %v3111 = vld [vmem:[%s1 + $0x450] sm:$0xff]
        %v3112 = vld [vmem:[%s1 + $0x458] sm:$0xff]
        %v3113 = vld [vmem:[%s1 + $0x460] sm:$0xff]
        %v3114 = vld [vmem:[%s1 + $0x468] sm:$0xff]
        %v3115 = vld [vmem:[%s1 + $0x470] sm:$0xff]
        %v3116 = vld [vmem:[%s1 + $0x478] sm:$0xff]
        %v3117 = vld [vmem:[%s1 + $0x480] sm:$0xff]
        %v3118 = vld [vmem:[%s1 + $0x488] sm:$0xff]
        %v3119 = vld [vmem:[%s1 + $0x490] sm:$0xff]
        %v3120 = vld [vmem:[%s1 + $0x498] sm:$0xff]
        %v3121 = vld [vmem:[%s1 + $0x4a0] sm:$0xff]
        %v3122 = vld [vmem:[%s1 + $0x4a8] sm:$0xff]
        %v3123 = vld [vmem:[%s1 + $0x4b0] sm:$0xff]
        %v3124 = vld [vmem:[%s1 + $0x4b8] sm:$0xff]
        %v3125 = vld [vmem:[%s1 + $0x4c0] sm:$0xff]
        %v3126 = vld [vmem:[%s1 + $0x4c8] sm:$0xff]
        %v3127 = vld [vmem:[%s1 + $0x4d0] sm:$0xff]
        %v3128 = vld [vmem:[%s1 + $0x4d8] sm:$0xff]
        %v3129 = vld [vmem:[%s1 + $0x4e0] sm:$0xff]
        %v3130 = vld [vmem:[%s1 + $0x4e8] sm:$0xff]
        %v3131 = vld [vmem:[%s1 + $0x4f0] sm:$0xff]
        %v3132 = vld [vmem:[%s1 + $0x4f8] sm:$0xff]
        %v3133 = vld [vmem:[%s1 + $0x500] sm:$0xff]
        %v3134 = vld [vmem:[%s1 + $0x508] sm:$0xff]
        %v3135 = vld [vmem:[%s1 + $0x510] sm:$0xff]
        %v3136 = vld [vmem:[%s1 + $0x518] sm:$0xff]
        %v3137 = vld [vmem:[%s1 + $0x520] sm:$0xff]
        %v3138 = vld [vmem:[%s1 + $0x528] sm:$0xff]
        %v3139 = vld [vmem:[%s1 + $0x530] sm:$0xff]
        %v3140 = vld [vmem:[%s1 + $0x538] sm:$0xff]
        %v3141 = vld [vmem:[%s1 + $0x540] sm:$0xff]
        %v3142 = vld [vmem:[%s1 + $0x548] sm:$0xff]
        %v3143 = vld [vmem:[%s1 + $0x550] sm:$0xff]
        %v3144 = vld [vmem:[%s1 + $0x558] sm:$0xff]
        %v3145 = vld [vmem:[%s1 + $0x560] sm:$0xff]
        %v3146 = vld [vmem:[%s1 + $0x568] sm:$0xff]
        %v3147 = vld [vmem:[%s1 + $0x570] sm:$0xff]
        %v3148 = vld [vmem:[%s1 + $0x578] sm:$0xff]
        %v3149 = vld [vmem:[%s1 + $0x580] sm:$0xff]
        %v3150 = vld [vmem:[%s1 + $0x588] sm:$0xff]
        %v3151 = vld [vmem:[%s1 + $0x590] sm:$0xff]
        %v3152 = vld [vmem:[%s1 + $0x598] sm:$0xff]
        %v3153 = vld [vmem:[%s1 + $0x5a0] sm:$0xff]
        %v3154 = vld [vmem:[%s1 + $0x5a8] sm:$0xff]
        %v3155 = vld [vmem:[%s1 + $0x5b0] sm:$0xff]
        %v3156 = vld [vmem:[%s1 + $0x5b8] sm:$0xff]
        %v3157 = vld [vmem:[%s1 + $0x5c0] sm:$0xff]
        %v3158 = vld [vmem:[%s1 + $0x5c8] sm:$0xff]
        %v3159 = vld [vmem:[%s1 + $0x5d0] sm:$0xff]
        %v3160 = vld [vmem:[%s1 + $0x5d8] sm:$0xff]
        %v3161 = vld [vmem:[%s1 + $0x5e0] sm:$0xff]
        %v3162 = vld [vmem:[%s1 + $0x5e8] sm:$0xff]
        %v3163 = vld [vmem:[%s1 + $0x5f0] sm:$0xff]
        %v3164 = vld [vmem:[%s1 + $0x5f8] sm:$0xff]
        %v3165 = vld [vmem:[%s1 + $0x600] sm:$0xff]
        %v3166 = vld [vmem:[%s1 + $0x608] sm:$0xff]
        %v3167 = vld [vmem:[%s1 + $0x610] sm:$0xff]
        %v3168 = vld [vmem:[%s1 + $0x618] sm:$0xff]
        %v3169 = vld [vmem:[%s1 + $0x620] sm:$0xff]
        %v3170 = vld [vmem:[%s1 + $0x628] sm:$0xff]
        %v3171 = vld [vmem:[%s1 + $0x630] sm:$0xff]
        %v3172 = vld [vmem:[%s1 + $0x638] sm:$0xff]
        %v3173 = vld [vmem:[%s1 + $0x640] sm:$0xff]
        %v3174 = vld [vmem:[%s1 + $0x648] sm:$0xff]
        %v3175 = vld [vmem:[%s1 + $0x650] sm:$0xff]
        %v3176 = vld [vmem:[%s1 + $0x658] sm:$0xff]
        %v3177 = vld [vmem:[%s1 + $0x660] sm:$0xff]
        %v3178 = vld [vmem:[%s1 + $0x668] sm:$0xff]
        %v3179 = vld [vmem:[%s1 + $0x670] sm:$0xff]
        %v3180 = vld [vmem:[%s1 + $0x678] sm:$0xff]
        %v3181 = vld [vmem:[%s1 + $0x680] sm:$0xff]
        %v3182 = vld [vmem:[%s1 + $0x688] sm:$0xff]
        %v3183 = vld [vmem:[%s1 + $0x690] sm:$0xff]
        %v3184 = vld [vmem:[%s1 + $0x698] sm:$0xff]
        %v3185 = vld [vmem:[%s1 + $0x6a0] sm:$0xff]
        %v3186 = vld [vmem:[%s1 + $0x6a8] sm:$0xff]
        %v3187 = vld [vmem:[%s1 + $0x6b0] sm:$0xff]
        %v3188 = vld [vmem:[%s1 + $0x6b8] sm:$0xff]
        %v3189 = vld [vmem:[%s1 + $0x6c0] sm:$0xff]
        %v3190 = vld [vmem:[%s1 + $0x6c8] sm:$0xff]
        %v3191 = vld [vmem:[%s1 + $0x6d0] sm:$0xff]
        %v3192 = vld [vmem:[%s1 + $0x6d8] sm:$0xff]
        %v3193 = vld [vmem:[%s1 + $0x6e0] sm:$0xff]
        %v3194 = vld [vmem:[%s1 + $0x6e8] sm:$0xff]
        %v3195 = vld [vmem:[%s1 + $0x6f0] sm:$0xff]
        %v3196 = vld [vmem:[%s1 + $0x6f8] sm:$0xff]
        %v3197 = vld [vmem:[%s1 + $0x700] sm:$0xff]
        %v3198 = vld [vmem:[%s1 + $0x708] sm:$0xff]
        %v3199 = vld [vmem:[%s1 + $0x710] sm:$0xff]
        %v3200 = vld [vmem:[%s1 + $0x718] sm:$0xff]
        %v3201 = vld [vmem:[%s1 + $0x720] sm:$0xff]
        %v3202 = vld [vmem:[%s1 + $0x728] sm:$0xff]
        %v3203 = vld [vmem:[%s1 + $0x730] sm:$0xff]
        %v3204 = vld [vmem:[%s1 + $0x738] sm:$0xff]
        %v3205 = vld [vmem:[%s1 + $0x740] sm:$0xff]
        %v3206 = vld [vmem:[%s1 + $0x748] sm:$0xff]
        %v3207 = vld [vmem:[%s1 + $0x750] sm:$0xff]
        %v3208 = vld [vmem:[%s1 + $0x758] sm:$0xff]
        %v3209 = vld [vmem:[%s1 + $0x760] sm:$0xff]
        %v3210 = vld [vmem:[%s1 + $0x768] sm:$0xff]
        %v3211 = vld [vmem:[%s1 + $0x770] sm:$0xff]
        %v3212 = vld [vmem:[%s1 + $0x778] sm:$0xff]
        %v3213 = vld [vmem:[%s1 + $0x780] sm:$0xff]
        %v3214 = vld [vmem:[%s1 + $0x788] sm:$0xff]
        %v3215 = vld [vmem:[%s1 + $0x790] sm:$0xff]
        %v3216 = vld [vmem:[%s1 + $0x798] sm:$0xff]
        %v3217 = vld [vmem:[%s1 + $0x7a0] sm:$0xff]
        %v3218 = vld [vmem:[%s1 + $0x7a8] sm:$0xff]
        %v3219 = vld [vmem:[%s1 + $0x7b0] sm:$0xff]
        %v3220 = vld [vmem:[%s1 + $0x7b8] sm:$0xff]
        %v3221 = vld [vmem:[%s1 + $0x7c0] sm:$0xff]
        %v3222 = vld [vmem:[%s1 + $0x7c8] sm:$0xff]
        %v3223 = vld [vmem:[%s1 + $0x7d0] sm:$0xff]
        %v3224 = vld [vmem:[%s1 + $0x7d8] sm:$0xff]
        %v3225 = vld [vmem:[%s1 + $0x7e0] sm:$0xff]
        %v3226 = vld [vmem:[%s1 + $0x7e8] sm:$0xff]
        %v3227 = vld [vmem:[%s1 + $0x7f0] sm:$0xff]
        %v3228 = vld [vmem:[%s1 + $0x7f8] sm:$0xff]
        %v3229 = vadd.f32 %v2717, %v2973
        %v3230 = vadd.f32 %v2718, %v2974
        %v3231 = vadd.f32 %v2719, %v2975
        %v3232 = vadd.f32 %v2720, %v2976
        %v3233 = vadd.f32 %v2721, %v2977
        %v3234 = vadd.f32 %v2722, %v2978
        %v3235 = vadd.f32 %v2723, %v2979
        %v3236 = vadd.f32 %v2724, %v2980
        %v3237 = vadd.f32 %v2725, %v2981
        %v3238 = vadd.f32 %v2726, %v2982
        %v3239 = vadd.f32 %v2727, %v2983
        %v3240 = vadd.f32 %v2728, %v2984
        %v3241 = vadd.f32 %v2729, %v2985
        %v3242 = vadd.f32 %v2730, %v2986
        %v3243 = vadd.f32 %v2731, %v2987
        %v3244 = vadd.f32 %v2732, %v2988
        %v3245 = vadd.f32 %v2733, %v2989
        %v3246 = vadd.f32 %v2734, %v2990
        %v3247 = vadd.f32 %v2735, %v2991
        %v3248 = vadd.f32 %v2736, %v2992
        %v3249 = vadd.f32 %v2737, %v2993
        %v3250 = vadd.f32 %v2738, %v2994
        %v3251 = vadd.f32 %v2739, %v2995
        %v3252 = vadd.f32 %v2740, %v2996
        %v3253 = vadd.f32 %v2741, %v2997
        %v3254 = vadd.f32 %v2742, %v2998
        %v3255 = vadd.f32 %v2743, %v2999
        %v3256 = vadd.f32 %v2744, %v3000
        %v3257 = vadd.f32 %v2745, %v3001
        %v3258 = vadd.f32 %v2746, %v3002
        %v3259 = vadd.f32 %v2747, %v3003
        %v3260 = vadd.f32 %v2748, %v3004
        %v3261 = vadd.f32 %v2749, %v3005
        %v3262 = vadd.f32 %v2750, %v3006
        %v3263 = vadd.f32 %v2751, %v3007
        %v3264 = vadd.f32 %v2752, %v3008
        %v3265 = vadd.f32 %v2753, %v3009
        %v3266 = vadd.f32 %v2754, %v3010
        %v3267 = vadd.f32 %v2755, %v3011
        %v3268 = vadd.f32 %v2756, %v3012
        %v3269 = vadd.f32 %v2757, %v3013
        %v3270 = vadd.f32 %v2758, %v3014
        %v3271 = vadd.f32 %v2759, %v3015
        %v3272 = vadd.f32 %v2760, %v3016
        %v3273 = vadd.f32 %v2761, %v3017
        %v3274 = vadd.f32 %v2762, %v3018
        %v3275 = vadd.f32 %v2763, %v3019
        %v3276 = vadd.f32 %v2764, %v3020
        %v3277 = vadd.f32 %v2765, %v3021
        %v3278 = vadd.f32 %v2766, %v3022
        %v3279 = vadd.f32 %v2767, %v3023
        %v3280 = vadd.f32 %v2768, %v3024
        %v3281 = vadd.f32 %v2769, %v3025
        %v3282 = vadd.f32 %v2770, %v3026
        %v3283 = vadd.f32 %v2771, %v3027
        %v3284 = vadd.f32 %v2772, %v3028
        %v3285 = vadd.f32 %v2773, %v3029
        %v3286 = vadd.f32 %v2774, %v3030
        %v3287 = vadd.f32 %v2775, %v3031
        %v3288 = vadd.f32 %v2776, %v3032
        %v3289 = vadd.f32 %v2777, %v3033
        %v3290 = vadd.f32 %v2778, %v3034
        %v3291 = vadd.f32 %v2779, %v3035
        %v3292 = vadd.f32 %v2780, %v3036
        %v3293 = vadd.f32 %v2781, %v3037
        %v3294 = vadd.f32 %v2782, %v3038
        %v3295 = vadd.f32 %v2783, %v3039
        %v3296 = vadd.f32 %v2784, %v3040
        %v3297 = vadd.f32 %v2785, %v3041
        %v3298 = vadd.f32 %v2786, %v3042
        %v3299 = vadd.f32 %v2787, %v3043
        %v3300 = vadd.f32 %v2788, %v3044
        %v3301 = vadd.f32 %v2789, %v3045
        %v3302 = vadd.f32 %v2790, %v3046
        %v3303 = vadd.f32 %v2791, %v3047
        %v3304 = vadd.f32 %v2792, %v3048
        %v3305 = vadd.f32 %v2793, %v3049
        %v3306 = vadd.f32 %v2794, %v3050
        %v3307 = vadd.f32 %v2795, %v3051
        %v3308 = vadd.f32 %v2796, %v3052
        %v3309 = vadd.f32 %v2797, %v3053
        %v3310 = vadd.f32 %v2798, %v3054
        %v3311 = vadd.f32 %v2799, %v3055
        %v3312 = vadd.f32 %v2800, %v3056
        %v3313 = vadd.f32 %v2801, %v3057
        %v3314 = vadd.f32 %v2802, %v3058
        %v3315 = vadd.f32 %v2803, %v3059
        %v3316 = vadd.f32 %v2804, %v3060
        %v3317 = vadd.f32 %v2805, %v3061
        %v3318 = vadd.f32 %v2806, %v3062
        %v3319 = vadd.f32 %v2807, %v3063
        %v3320 = vadd.f32 %v2808, %v3064
        %v3321 = vadd.f32 %v2809, %v3065
        %v3322 = vadd.f32 %v2810, %v3066
        %v3323 = vadd.f32 %v2811, %v3067
        %v3324 = vadd.f32 %v2812, %v3068
        %v3325 = vadd.f32 %v2813, %v3069
        %v3326 = vadd.f32 %v2814, %v3070
        %v3327 = vadd.f32 %v2815, %v3071
        %v3328 = vadd.f32 %v2816, %v3072
        %v3329 = vadd.f32 %v2817, %v3073
        %v3330 = vadd.f32 %v2818, %v3074
        %v3331 = vadd.f32 %v2819, %v3075
        %v3332 = vadd.f32 %v2820, %v3076
        %v3333 = vadd.f32 %v2821, %v3077
        %v3334 = vadd.f32 %v2822, %v3078
        %v3335 = vadd.f32 %v2823, %v3079
        %v3336 = vadd.f32 %v2824, %v3080
        %v3337 = vadd.f32 %v2825, %v3081
        %v3338 = vadd.f32 %v2826, %v3082
        %v3339 = vadd.f32 %v2827, %v3083
        %v3340 = vadd.f32 %v2828, %v3084
        %v3341 = vadd.f32 %v2829, %v3085
        %v3342 = vadd.f32 %v2830, %v3086
        %v3343 = vadd.f32 %v2831, %v3087
        %v3344 = vadd.f32 %v2832, %v3088
        %v3345 = vadd.f32 %v2833, %v3089
        %v3346 = vadd.f32 %v2834, %v3090
        %v3347 = vadd.f32 %v2835, %v3091
        %v3348 = vadd.f32 %v2836, %v3092
        %v3349 = vadd.f32 %v2837, %v3093
        %v3350 = vadd.f32 %v2838, %v3094
        %v3351 = vadd.f32 %v2839, %v3095
        %v3352 = vadd.f32 %v2840, %v3096
        %v3353 = vadd.f32 %v2841, %v3097
        %v3354 = vadd.f32 %v2842, %v3098
        %v3355 = vadd.f32 %v2843, %v3099
        %v3356 = vadd.f32 %v2844, %v3100
        %v3357 = vadd.f32 %v2845, %v3101
        %v3358 = vadd.f32 %v2846, %v3102
        %v3359 = vadd.f32 %v2847, %v3103
        %v3360 = vadd.f32 %v2848, %v3104
        %v3361 = vadd.f32 %v2849, %v3105
        %v3362 = vadd.f32 %v2850, %v3106
        %v3363 = vadd.f32 %v2851, %v3107
        %v3364 = vadd.f32 %v2852, %v3108
        %v3365 = vadd.f32 %v2853, %v3109
        %v3366 = vadd.f32 %v2854, %v3110
        %v3367 = vadd.f32 %v2855, %v3111
        %v3368 = vadd.f32 %v2856, %v3112
        %v3369 = vadd.f32 %v2857, %v3113
        %v3370 = vadd.f32 %v2858, %v3114
        %v3371 = vadd.f32 %v2859, %v3115
        %v3372 = vadd.f32 %v2860, %v3116
        %v3373 = vadd.f32 %v2861, %v3117
        %v3374 = vadd.f32 %v2862, %v3118
        %v3375 = vadd.f32 %v2863, %v3119
        %v3376 = vadd.f32 %v2864, %v3120
        %v3377 = vadd.f32 %v2865, %v3121
        %v3378 = vadd.f32 %v2866, %v3122
        %v3379 = vadd.f32 %v2867, %v3123
        %v3380 = vadd.f32 %v2868, %v3124
        %v3381 = vadd.f32 %v2869, %v3125
        %v3382 = vadd.f32 %v2870, %v3126
        %v3383 = vadd.f32 %v2871, %v3127
        %v3384 = vadd.f32 %v2872, %v3128
        %v3385 = vadd.f32 %v2873, %v3129
        %v3386 = vadd.f32 %v2874, %v3130
        %v3387 = vadd.f32 %v2875, %v3131
        %v3388 = vadd.f32 %v2876, %v3132
        %v3389 = vadd.f32 %v2877, %v3133
        %v3390 = vadd.f32 %v2878, %v3134
        %v3391 = vadd.f32 %v2879, %v3135
        %v3392 = vadd.f32 %v2880, %v3136
        %v3393 = vadd.f32 %v2881, %v3137
        %v3394 = vadd.f32 %v2882, %v3138
        %v3395 = vadd.f32 %v2883, %v3139
        %v3396 = vadd.f32 %v2884, %v3140
        %v3397 = vadd.f32 %v2885, %v3141
        %v3398 = vadd.f32 %v2886, %v3142
        %v3399 = vadd.f32 %v2887, %v3143
        %v3400 = vadd.f32 %v2888, %v3144
        %v3401 = vadd.f32 %v2889, %v3145
        %v3402 = vadd.f32 %v2890, %v3146
        %v3403 = vadd.f32 %v2891, %v3147
        %v3404 = vadd.f32 %v2892, %v3148
        %v3405 = vadd.f32 %v2893, %v3149
        %v3406 = vadd.f32 %v2894, %v3150
        %v3407 = vadd.f32 %v2895, %v3151
        %v3408 = vadd.f32 %v2896, %v3152
        %v3409 = vadd.f32 %v2897, %v3153
        %v3410 = vadd.f32 %v2898, %v3154
        %v3411 = vadd.f32 %v2899, %v3155
        %v3412 = vadd.f32 %v2900, %v3156
        %v3413 = vadd.f32 %v2901, %v3157
        %v3414 = vadd.f32 %v2902, %v3158
        %v3415 = vadd.f32 %v2903, %v3159
        %v3416 = vadd.f32 %v2904, %v3160
        %v3417 = vadd.f32 %v2905, %v3161
        %v3418 = vadd.f32 %v2906, %v3162
        %v3419 = vadd.f32 %v2907, %v3163
        %v3420 = vadd.f32 %v2908, %v3164
        %v3421 = vadd.f32 %v2909, %v3165
        %v3422 = vadd.f32 %v2910, %v3166
        %v3423 = vadd.f32 %v2911, %v3167
        %v3424 = vadd.f32 %v2912, %v3168
        %v3425 = vadd.f32 %v2913, %v3169
        %v3426 = vadd.f32 %v2914, %v3170
        %v3427 = vadd.f32 %v2915, %v3171
        %v3428 = vadd.f32 %v2916, %v3172
        %v3429 = vadd.f32 %v2917, %v3173
        %v3430 = vadd.f32 %v2918, %v3174
        %v3431 = vadd.f32 %v2919, %v3175
        %v3432 = vadd.f32 %v2920, %v3176
        %v3433 = vadd.f32 %v2921, %v3177
        %v3434 = vadd.f32 %v2922, %v3178
        %v3435 = vadd.f32 %v2923, %v3179
        %v3436 = vadd.f32 %v2924, %v3180
        %v3437 = vadd.f32 %v2925, %v3181
        %v3438 = vadd.f32 %v2926, %v3182
        %v3439 = vadd.f32 %v2927, %v3183
        %v3440 = vadd.f32 %v2928, %v3184
        %v3441 = vadd.f32 %v2929, %v3185
        %v3442 = vadd.f32 %v2930, %v3186
        %v3443 = vadd.f32 %v2931, %v3187
        %v3444 = vadd.f32 %v2932, %v3188
        %v3445 = vadd.f32 %v2933, %v3189
        %v3446 = vadd.f32 %v2934, %v3190
        %v3447 = vadd.f32 %v2935, %v3191
        %v3448 = vadd.f32 %v2936, %v3192
        %v3449 = vadd.f32 %v2937, %v3193
        %v3450 = vadd.f32 %v2938, %v3194
        %v3451 = vadd.f32 %v2939, %v3195
        %v3452 = vadd.f32 %v2940, %v3196
        %v3453 = vadd.f32 %v2941, %v3197
        %v3454 = vadd.f32 %v2942, %v3198
        %v3455 = vadd.f32 %v2943, %v3199
        %v3456 = vadd.f32 %v2944, %v3200
        %v3457 = vadd.f32 %v2945, %v3201
        %v3458 = vadd.f32 %v2946, %v3202
        %v3459 = vadd.f32 %v2947, %v3203
        %v3460 = vadd.f32 %v2948, %v3204
        %v3461 = vadd.f32 %v2949, %v3205
        %v3462 = vadd.f32 %v2950, %v3206
        %v3463 = vadd.f32 %v2951, %v3207
        %v3464 = vadd.f32 %v2952, %v3208
        %v3465 = vadd.f32 %v2953, %v3209
        %v3466 = vadd.f32 %v2954, %v3210
        %v3467 = vadd.f32 %v2955, %v3211
        %v3468 = vadd.f32 %v2956, %v3212
        %v3469 = vadd.f32 %v2957, %v3213
        %v3470 = vadd.f32 %v2958, %v3214
        %v3471 = vadd.f32 %v2959, %v3215
        %v3472 = vadd.f32 %v2960, %v3216
        %v3473 = vadd.f32 %v2961, %v3217
        %v3474 = vadd.f32 %v2962, %v3218
        %v3475 = vadd.f32 %v2963, %v3219
        %v3476 = vadd.f32 %v2964, %v3220
        %v3477 = vadd.f32 %v2965, %v3221
        %v3478 = vadd.f32 %v2966, %v3222
        %v3479 = vadd.f32 %v2967, %v3223
        %v3480 = vadd.f32 %v2968, %v3224
        %v3481 = vadd.f32 %v2969, %v3225
        %v3482 = vadd.f32 %v2970, %v3226
        %v3483 = vadd.f32 %v2971, %v3227
        %v3484 = vadd.f32 %v2972, %v3228
        %v3485 = vmax.f32 %v3229, %v3230
        %v3486 = vmax.f32 %v3485, %v3231
        %v3487 = vmax.f32 %v3486, %v3232
        %3488 = vmax.xlane.f32.xlu0 %v3487
        %v3489 = vpop.xlane.xlu0 %3488
        %v3490 = vmax.f32 %v3233, %v3234
        %v3491 = vmax.f32 %v3490, %v3235
        %v3492 = vmax.f32 %v3491, %v3236
        %3493 = vmax.xlane.f32.xlu0 %v3492
        %v3494 = vpop.xlane.xlu0 %3493
        %v3495 = vmax.f32 %v3237, %v3238
        %v3496 = vmax.f32 %v3495, %v3239
        %v3497 = vmax.f32 %v3496, %v3240
        %3498 = vmax.xlane.f32.xlu0 %v3497
        %v3499 = vpop.xlane.xlu0 %3498
        %v3500 = vmax.f32 %v3241, %v3242
        %v3501 = vmax.f32 %v3500, %v3243
        %v3502 = vmax.f32 %v3501, %v3244
        %3503 = vmax.xlane.f32.xlu0 %v3502
        %v3504 = vpop.xlane.xlu0 %3503
        %v3505 = vmax.f32 %v3245, %v3246
        %v3506 = vmax.f32 %v3505, %v3247
        %v3507 = vmax.f32 %v3506, %v3248
        %3508 = vmax.xlane.f32.xlu0 %v3507
        %v3509 = vpop.xlane.xlu0 %3508
        %v3510 = vmax.f32 %v3249, %v3250
        %v3511 = vmax.f32 %v3510, %v3251
        %v3512 = vmax.f32 %v3511, %v3252
        %3513 = vmax.xlane.f32.xlu0 %v3512
        %v3514 = vpop.xlane.xlu0 %3513
        %v3515 = vmax.f32 %v3253, %v3254
        %v3516 = vmax.f32 %v3515, %v3255
        %v3517 = vmax.f32 %v3516, %v3256
        %3518 = vmax.xlane.f32.xlu0 %v3517
        %v3519 = vpop.xlane.xlu0 %3518
        %v3520 = vmax.f32 %v3257, %v3258
        %v3521 = vmax.f32 %v3520, %v3259
        %v3522 = vmax.f32 %v3521, %v3260
        %3523 = vmax.xlane.f32.xlu0 %v3522
        %v3524 = vpop.xlane.xlu0 %3523
        %v3525 = vmax.f32 %v3261, %v3262
        %v3526 = vmax.f32 %v3525, %v3263
        %v3527 = vmax.f32 %v3526, %v3264
        %3528 = vmax.xlane.f32.xlu0 %v3527
        %v3529 = vpop.xlane.xlu0 %3528
        %v3530 = vmax.f32 %v3265, %v3266
        %v3531 = vmax.f32 %v3530, %v3267
        %v3532 = vmax.f32 %v3531, %v3268
        %3533 = vmax.xlane.f32.xlu0 %v3532
        %v3534 = vpop.xlane.xlu0 %3533
        %v3535 = vmax.f32 %v3269, %v3270
        %v3536 = vmax.f32 %v3535, %v3271
        %v3537 = vmax.f32 %v3536, %v3272
        %3538 = vmax.xlane.f32.xlu0 %v3537
        %v3539 = vpop.xlane.xlu0 %3538
        %v3540 = vmax.f32 %v3273, %v3274
        %v3541 = vmax.f32 %v3540, %v3275
        %v3542 = vmax.f32 %v3541, %v3276
        %3543 = vmax.xlane.f32.xlu0 %v3542
        %v3544 = vpop.xlane.xlu0 %3543
        %v3545 = vmax.f32 %v3277, %v3278
        %v3546 = vmax.f32 %v3545, %v3279
        %v3547 = vmax.f32 %v3546, %v3280
        %3548 = vmax.xlane.f32.xlu0 %v3547
        %v3549 = vpop.xlane.xlu0 %3548
        %v3550 = vmax.f32 %v3281, %v3282
        %v3551 = vmax.f32 %v3550, %v3283
        %v3552 = vmax.f32 %v3551, %v3284
        %3553 = vmax.xlane.f32.xlu0 %v3552
        %v3554 = vpop.xlane.xlu0 %3553
        %v3555 = vmax.f32 %v3285, %v3286
        %v3556 = vmax.f32 %v3555, %v3287
        %v3557 = vmax.f32 %v3556, %v3288
        %3558 = vmax.xlane.f32.xlu0 %v3557
        %v3559 = vpop.xlane.xlu0 %3558
        %v3560 = vmax.f32 %v3289, %v3290
        %v3561 = vmax.f32 %v3560, %v3291
        %v3562 = vmax.f32 %v3561, %v3292
        %3563 = vmax.xlane.f32.xlu0 %v3562
        %v3564 = vpop.xlane.xlu0 %3563
        %v3565 = vmax.f32 %v3293, %v3294
        %v3566 = vmax.f32 %v3565, %v3295
        %v3567 = vmax.f32 %v3566, %v3296
        %3568 = vmax.xlane.f32.xlu0 %v3567
        %v3569 = vpop.xlane.xlu0 %3568
        %v3570 = vmax.f32 %v3297, %v3298
        %v3571 = vmax.f32 %v3570, %v3299
        %v3572 = vmax.f32 %v3571, %v3300
        %3573 = vmax.xlane.f32.xlu0 %v3572
        %v3574 = vpop.xlane.xlu0 %3573
        %v3575 = vmax.f32 %v3301, %v3302
        %v3576 = vmax.f32 %v3575, %v3303
        %v3577 = vmax.f32 %v3576, %v3304
        %3578 = vmax.xlane.f32.xlu0 %v3577
        %v3579 = vpop.xlane.xlu0 %3578
        %v3580 = vmax.f32 %v3305, %v3306
        %v3581 = vmax.f32 %v3580, %v3307
        %v3582 = vmax.f32 %v3581, %v3308
        %3583 = vmax.xlane.f32.xlu0 %v3582
        %v3584 = vpop.xlane.xlu0 %3583
        %v3585 = vmax.f32 %v3309, %v3310
        %v3586 = vmax.f32 %v3585, %v3311
        %v3587 = vmax.f32 %v3586, %v3312
        %3588 = vmax.xlane.f32.xlu0 %v3587
        %v3589 = vpop.xlane.xlu0 %3588
        %v3590 = vmax.f32 %v3313, %v3314
        %v3591 = vmax.f32 %v3590, %v3315
        %v3592 = vmax.f32 %v3591, %v3316
        %3593 = vmax.xlane.f32.xlu0 %v3592
        %v3594 = vpop.xlane.xlu0 %3593
        %v3595 = vmax.f32 %v3317, %v3318
        %v3596 = vmax.f32 %v3595, %v3319
        %v3597 = vmax.f32 %v3596, %v3320
        %3598 = vmax.xlane.f32.xlu0 %v3597
        %v3599 = vpop.xlane.xlu0 %3598
        %v3600 = vmax.f32 %v3321, %v3322
        %v3601 = vmax.f32 %v3600, %v3323
        %v3602 = vmax.f32 %v3601, %v3324
        %3603 = vmax.xlane.f32.xlu0 %v3602
        %v3604 = vpop.xlane.xlu0 %3603
        %v3605 = vmax.f32 %v3325, %v3326
        %v3606 = vmax.f32 %v3605, %v3327
        %v3607 = vmax.f32 %v3606, %v3328
        %3608 = vmax.xlane.f32.xlu0 %v3607
        %v3609 = vpop.xlane.xlu0 %3608
        %v3610 = vmax.f32 %v3329, %v3330
        %v3611 = vmax.f32 %v3610, %v3331
        %v3612 = vmax.f32 %v3611, %v3332
        %3613 = vmax.xlane.f32.xlu0 %v3612
        %v3614 = vpop.xlane.xlu0 %3613
        %v3615 = vmax.f32 %v3333, %v3334
        %v3616 = vmax.f32 %v3615, %v3335
        %v3617 = vmax.f32 %v3616, %v3336
        %3618 = vmax.xlane.f32.xlu0 %v3617
        %v3619 = vpop.xlane.xlu0 %3618
        %v3620 = vmax.f32 %v3337, %v3338
        %v3621 = vmax.f32 %v3620, %v3339
        %v3622 = vmax.f32 %v3621, %v3340
        %3623 = vmax.xlane.f32.xlu0 %v3622
        %v3624 = vpop.xlane.xlu0 %3623
        %v3625 = vmax.f32 %v3341, %v3342
        %v3626 = vmax.f32 %v3625, %v3343
        %v3627 = vmax.f32 %v3626, %v3344
        %3628 = vmax.xlane.f32.xlu0 %v3627
        %v3629 = vpop.xlane.xlu0 %3628
        %v3630 = vmax.f32 %v3345, %v3346
        %v3631 = vmax.f32 %v3630, %v3347
        %v3632 = vmax.f32 %v3631, %v3348
        %3633 = vmax.xlane.f32.xlu0 %v3632
        %v3634 = vpop.xlane.xlu0 %3633
        %v3635 = vmax.f32 %v3349, %v3350
        %v3636 = vmax.f32 %v3635, %v3351
        %v3637 = vmax.f32 %v3636, %v3352
        %3638 = vmax.xlane.f32.xlu0 %v3637
        %v3639 = vpop.xlane.xlu0 %3638
        %v3640 = vmax.f32 %v3353, %v3354
        %v3641 = vmax.f32 %v3640, %v3355
        %v3642 = vmax.f32 %v3641, %v3356
        %3643 = vmax.xlane.f32.xlu0 %v3642
        %v3644 = vpop.xlane.xlu0 %3643
        %v3645 = vmax.f32 %v3357, %v3358
        %v3646 = vmax.f32 %v3645, %v3359
        %v3647 = vmax.f32 %v3646, %v3360
        %3648 = vmax.xlane.f32.xlu0 %v3647
        %v3649 = vpop.xlane.xlu0 %3648
        %v3650 = vmax.f32 %v3361, %v3362
        %v3651 = vmax.f32 %v3650, %v3363
        %v3652 = vmax.f32 %v3651, %v3364
        %3653 = vmax.xlane.f32.xlu0 %v3652
        %v3654 = vpop.xlane.xlu0 %3653
        %v3655 = vmax.f32 %v3365, %v3366
        %v3656 = vmax.f32 %v3655, %v3367
        %v3657 = vmax.f32 %v3656, %v3368
        %3658 = vmax.xlane.f32.xlu0 %v3657
        %v3659 = vpop.xlane.xlu0 %3658
        %v3660 = vmax.f32 %v3369, %v3370
        %v3661 = vmax.f32 %v3660, %v3371
        %v3662 = vmax.f32 %v3661, %v3372
        %3663 = vmax.xlane.f32.xlu0 %v3662
        %v3664 = vpop.xlane.xlu0 %3663
        %v3665 = vmax.f32 %v3373, %v3374
        %v3666 = vmax.f32 %v3665, %v3375
        %v3667 = vmax.f32 %v3666, %v3376
        %3668 = vmax.xlane.f32.xlu0 %v3667
        %v3669 = vpop.xlane.xlu0 %3668
        %v3670 = vmax.f32 %v3377, %v3378
        %v3671 = vmax.f32 %v3670, %v3379
        %v3672 = vmax.f32 %v3671, %v3380
        %3673 = vmax.xlane.f32.xlu0 %v3672
        %v3674 = vpop.xlane.xlu0 %3673
        %v3675 = vmax.f32 %v3381, %v3382
        %v3676 = vmax.f32 %v3675, %v3383
        %v3677 = vmax.f32 %v3676, %v3384
        %3678 = vmax.xlane.f32.xlu0 %v3677
        %v3679 = vpop.xlane.xlu0 %3678
        %v3680 = vmax.f32 %v3385, %v3386
        %v3681 = vmax.f32 %v3680, %v3387
        %v3682 = vmax.f32 %v3681, %v3388
        %3683 = vmax.xlane.f32.xlu0 %v3682
        %v3684 = vpop.xlane.xlu0 %3683
        %v3685 = vmax.f32 %v3389, %v3390
        %v3686 = vmax.f32 %v3685, %v3391
        %v3687 = vmax.f32 %v3686, %v3392
        %3688 = vmax.xlane.f32.xlu0 %v3687
        %v3689 = vpop.xlane.xlu0 %3688
        %v3690 = vmax.f32 %v3393, %v3394
        %v3691 = vmax.f32 %v3690, %v3395
        %v3692 = vmax.f32 %v3691, %v3396
        %3693 = vmax.xlane.f32.xlu0 %v3692
        %v3694 = vpop.xlane.xlu0 %3693
        %v3695 = vmax.f32 %v3397, %v3398
        %v3696 = vmax.f32 %v3695, %v3399
        %v3697 = vmax.f32 %v3696, %v3400
        %3698 = vmax.xlane.f32.xlu0 %v3697
        %v3699 = vpop.xlane.xlu0 %3698
        %v3700 = vmax.f32 %v3401, %v3402
        %v3701 = vmax.f32 %v3700, %v3403
        %v3702 = vmax.f32 %v3701, %v3404
        %3703 = vmax.xlane.f32.xlu0 %v3702
        %v3704 = vpop.xlane.xlu0 %3703
        %v3705 = vmax.f32 %v3405, %v3406
        %v3706 = vmax.f32 %v3705, %v3407
        %v3707 = vmax.f32 %v3706, %v3408
        %3708 = vmax.xlane.f32.xlu0 %v3707
        %v3709 = vpop.xlane.xlu0 %3708
        %v3710 = vmax.f32 %v3409, %v3410
        %v3711 = vmax.f32 %v3710, %v3411
        %v3712 = vmax.f32 %v3711, %v3412
        %3713 = vmax.xlane.f32.xlu0 %v3712
        %v3714 = vpop.xlane.xlu0 %3713
        %v3715 = vmax.f32 %v3413, %v3414
        %v3716 = vmax.f32 %v3715, %v3415
        %v3717 = vmax.f32 %v3716, %v3416
        %3718 = vmax.xlane.f32.xlu0 %v3717
        %v3719 = vpop.xlane.xlu0 %3718
        %v3720 = vmax.f32 %v3417, %v3418
        %v3721 = vmax.f32 %v3720, %v3419
        %v3722 = vmax.f32 %v3721, %v3420
        %3723 = vmax.xlane.f32.xlu0 %v3722
        %v3724 = vpop.xlane.xlu0 %3723
        %v3725 = vmax.f32 %v3421, %v3422
        %v3726 = vmax.f32 %v3725, %v3423
        %v3727 = vmax.f32 %v3726, %v3424
        %3728 = vmax.xlane.f32.xlu0 %v3727
        %v3729 = vpop.xlane.xlu0 %3728
        %v3730 = vmax.f32 %v3425, %v3426
        %v3731 = vmax.f32 %v3730, %v3427
        %v3732 = vmax.f32 %v3731, %v3428
        %3733 = vmax.xlane.f32.xlu0 %v3732
        %v3734 = vpop.xlane.xlu0 %3733
        %v3735 = vmax.f32 %v3429, %v3430
        %v3736 = vmax.f32 %v3735, %v3431
        %v3737 = vmax.f32 %v3736, %v3432
        %3738 = vmax.xlane.f32.xlu0 %v3737
        %v3739 = vpop.xlane.xlu0 %3738
        %v3740 = vmax.f32 %v3433, %v3434
        %v3741 = vmax.f32 %v3740, %v3435
        %v3742 = vmax.f32 %v3741, %v3436
        %3743 = vmax.xlane.f32.xlu0 %v3742
        %v3744 = vpop.xlane.xlu0 %3743
        %v3745 = vmax.f32 %v3437, %v3438
        %v3746 = vmax.f32 %v3745, %v3439
        %v3747 = vmax.f32 %v3746, %v3440
        %3748 = vmax.xlane.f32.xlu0 %v3747
        %v3749 = vpop.xlane.xlu0 %3748
        %v3750 = vmax.f32 %v3441, %v3442
        %v3751 = vmax.f32 %v3750, %v3443
        %v3752 = vmax.f32 %v3751, %v3444
        %3753 = vmax.xlane.f32.xlu0 %v3752
        %v3754 = vpop.xlane.xlu0 %3753
        %v3755 = vmax.f32 %v3445, %v3446
        %v3756 = vmax.f32 %v3755, %v3447
        %v3757 = vmax.f32 %v3756, %v3448
        %3758 = vmax.xlane.f32.xlu0 %v3757
        %v3759 = vpop.xlane.xlu0 %3758
        %v3760 = vmax.f32 %v3449, %v3450
        %v3761 = vmax.f32 %v3760, %v3451
        %v3762 = vmax.f32 %v3761, %v3452
        %3763 = vmax.xlane.f32.xlu0 %v3762
        %v3764 = vpop.xlane.xlu0 %3763
        %v3765 = vmax.f32 %v3453, %v3454
        %v3766 = vmax.f32 %v3765, %v3455
        %v3767 = vmax.f32 %v3766, %v3456
        %3768 = vmax.xlane.f32.xlu0 %v3767
        %v3769 = vpop.xlane.xlu0 %3768
        %v3770 = vmax.f32 %v3457, %v3458
        %v3771 = vmax.f32 %v3770, %v3459
        %v3772 = vmax.f32 %v3771, %v3460
        %3773 = vmax.xlane.f32.xlu0 %v3772
        %v3774 = vpop.xlane.xlu0 %3773
        %v3775 = vmax.f32 %v3461, %v3462
        %v3776 = vmax.f32 %v3775, %v3463
        %v3777 = vmax.f32 %v3776, %v3464
        %3778 = vmax.xlane.f32.xlu0 %v3777
        %v3779 = vpop.xlane.xlu0 %3778
        %v3780 = vmax.f32 %v3465, %v3466
        %v3781 = vmax.f32 %v3780, %v3467
        %v3782 = vmax.f32 %v3781, %v3468
        %3783 = vmax.xlane.f32.xlu0 %v3782
        %v3784 = vpop.xlane.xlu0 %3783
        %v3785 = vmax.f32 %v3469, %v3470
        %v3786 = vmax.f32 %v3785, %v3471
        %v3787 = vmax.f32 %v3786, %v3472
        %3788 = vmax.xlane.f32.xlu0 %v3787
        %v3789 = vpop.xlane.xlu0 %3788
        %v3790 = vmax.f32 %v3473, %v3474
        %v3791 = vmax.f32 %v3790, %v3475
        %v3792 = vmax.f32 %v3791, %v3476
        %3793 = vmax.xlane.f32.xlu0 %v3792
        %v3794 = vpop.xlane.xlu0 %3793
        %v3795 = vmax.f32 %v3477, %v3478
        %v3796 = vmax.f32 %v3795, %v3479
        %v3797 = vmax.f32 %v3796, %v3480
        %3798 = vmax.xlane.f32.xlu0 %v3797
        %v3799 = vpop.xlane.xlu0 %3798
        %v3800 = vmax.f32 %v3481, %v3482
        %v3801 = vmax.f32 %v3800, %v3483
        %v3802 = vmax.f32 %v3801, %v3484
        %3803 = vmax.xlane.f32.xlu0 %v3802
        %v3804 = vpop.xlane.xlu0 %3803
        %v3805 = vsub.f32 %v3229, %v3489
        %v3806 = vsub.f32 %v3230, %v3489
        %v3807 = vsub.f32 %v3231, %v3489
        %v3808 = vsub.f32 %v3232, %v3489
        %v3809 = vsub.f32 %v3233, %v3494
        %v3810 = vsub.f32 %v3234, %v3494
        %v3811 = vsub.f32 %v3235, %v3494
        %v3812 = vsub.f32 %v3236, %v3494
        %v3813 = vsub.f32 %v3237, %v3499
        %v3814 = vsub.f32 %v3238, %v3499
        %v3815 = vsub.f32 %v3239, %v3499
        %v3816 = vsub.f32 %v3240, %v3499
        %v3817 = vsub.f32 %v3241, %v3504
        %v3818 = vsub.f32 %v3242, %v3504
        %v3819 = vsub.f32 %v3243, %v3504
        %v3820 = vsub.f32 %v3244, %v3504
        %v3821 = vsub.f32 %v3245, %v3509
        %v3822 = vsub.f32 %v3246, %v3509
        %v3823 = vsub.f32 %v3247, %v3509
        %v3824 = vsub.f32 %v3248, %v3509
        %v3825 = vsub.f32 %v3249, %v3514
        %v3826 = vsub.f32 %v3250, %v3514
        %v3827 = vsub.f32 %v3251, %v3514
        %v3828 = vsub.f32 %v3252, %v3514
        %v3829 = vsub.f32 %v3253, %v3519
        %v3830 = vsub.f32 %v3254, %v3519
        %v3831 = vsub.f32 %v3255, %v3519
        %v3832 = vsub.f32 %v3256, %v3519
        %v3833 = vsub.f32 %v3257, %v3524
        %v3834 = vsub.f32 %v3258, %v3524
        %v3835 = vsub.f32 %v3259, %v3524
        %v3836 = vsub.f32 %v3260, %v3524
        %v3837 = vsub.f32 %v3261, %v3529
        %v3838 = vsub.f32 %v3262, %v3529
        %v3839 = vsub.f32 %v3263, %v3529
        %v3840 = vsub.f32 %v3264, %v3529
        %v3841 = vsub.f32 %v3265, %v3534
        %v3842 = vsub.f32 %v3266, %v3534
        %v3843 = vsub.f32 %v3267, %v3534
        %v3844 = vsub.f32 %v3268, %v3534
        %v3845 = vsub.f32 %v3269, %v3539
        %v3846 = vsub.f32 %v3270, %v3539
        %v3847 = vsub.f32 %v3271, %v3539
        %v3848 = vsub.f32 %v3272, %v3539
        %v3849 = vsub.f32 %v3273, %v3544
        %v3850 = vsub.f32 %v3274, %v3544
        %v3851 = vsub.f32 %v3275, %v3544
        %v3852 = vsub.f32 %v3276, %v3544
        %v3853 = vsub.f32 %v3277, %v3549
        %v3854 = vsub.f32 %v3278, %v3549
        %v3855 = vsub.f32 %v3279, %v3549
        %v3856 = vsub.f32 %v3280, %v3549
        %v3857 = vsub.f32 %v3281, %v3554
        %v3858 = vsub.f32 %v3282, %v3554
        %v3859 = vsub.f32 %v3283, %v3554
        %v3860 = vsub.f32 %v3284, %v3554
        %v3861 = vsub.f32 %v3285, %v3559
        %v3862 = vsub.f32 %v3286, %v3559
        %v3863 = vsub.f32 %v3287, %v3559
        %v3864 = vsub.f32 %v3288, %v3559
        %v3865 = vsub.f32 %v3289, %v3564
        %v3866 = vsub.f32 %v3290, %v3564
        %v3867 = vsub.f32 %v3291, %v3564
        %v3868 = vsub.f32 %v3292, %v3564
        %v3869 = vsub.f32 %v3293, %v3569
        %v3870 = vsub.f32 %v3294, %v3569
        %v3871 = vsub.f32 %v3295, %v3569
        %v3872 = vsub.f32 %v3296, %v3569
        %v3873 = vsub.f32 %v3297, %v3574
        %v3874 = vsub.f32 %v3298, %v3574
        %v3875 = vsub.f32 %v3299, %v3574
        %v3876 = vsub.f32 %v3300, %v3574
        %v3877 = vsub.f32 %v3301, %v3579
        %v3878 = vsub.f32 %v3302, %v3579
        %v3879 = vsub.f32 %v3303, %v3579
        %v3880 = vsub.f32 %v3304, %v3579
        %v3881 = vsub.f32 %v3305, %v3584
        %v3882 = vsub.f32 %v3306, %v3584
        %v3883 = vsub.f32 %v3307, %v3584
        %v3884 = vsub.f32 %v3308, %v3584
        %v3885 = vsub.f32 %v3309, %v3589
        %v3886 = vsub.f32 %v3310, %v3589
        %v3887 = vsub.f32 %v3311, %v3589
        %v3888 = vsub.f32 %v3312, %v3589
        %v3889 = vsub.f32 %v3313, %v3594
        %v3890 = vsub.f32 %v3314, %v3594
        %v3891 = vsub.f32 %v3315, %v3594
        %v3892 = vsub.f32 %v3316, %v3594
        %v3893 = vsub.f32 %v3317, %v3599
        %v3894 = vsub.f32 %v3318, %v3599
        %v3895 = vsub.f32 %v3319, %v3599
        %v3896 = vsub.f32 %v3320, %v3599
        %v3897 = vsub.f32 %v3321, %v3604
        %v3898 = vsub.f32 %v3322, %v3604
        %v3899 = vsub.f32 %v3323, %v3604
        %v3900 = vsub.f32 %v3324, %v3604
        %v3901 = vsub.f32 %v3325, %v3609
        %v3902 = vsub.f32 %v3326, %v3609
        %v3903 = vsub.f32 %v3327, %v3609
        %v3904 = vsub.f32 %v3328, %v3609
        %v3905 = vsub.f32 %v3329, %v3614
        %v3906 = vsub.f32 %v3330, %v3614
        %v3907 = vsub.f32 %v3331, %v3614
        %v3908 = vsub.f32 %v3332, %v3614
        %v3909 = vsub.f32 %v3333, %v3619
        %v3910 = vsub.f32 %v3334, %v3619
        %v3911 = vsub.f32 %v3335, %v3619
        %v3912 = vsub.f32 %v3336, %v3619
        %v3913 = vsub.f32 %v3337, %v3624
        %v3914 = vsub.f32 %v3338, %v3624
        %v3915 = vsub.f32 %v3339, %v3624
        %v3916 = vsub.f32 %v3340, %v3624
        %v3917 = vsub.f32 %v3341, %v3629
        %v3918 = vsub.f32 %v3342, %v3629
        %v3919 = vsub.f32 %v3343, %v3629
        %v3920 = vsub.f32 %v3344, %v3629
        %v3921 = vsub.f32 %v3345, %v3634
        %v3922 = vsub.f32 %v3346, %v3634
        %v3923 = vsub.f32 %v3347, %v3634
        %v3924 = vsub.f32 %v3348, %v3634
        %v3925 = vsub.f32 %v3349, %v3639
        %v3926 = vsub.f32 %v3350, %v3639
        %v3927 = vsub.f32 %v3351, %v3639
        %v3928 = vsub.f32 %v3352, %v3639
        %v3929 = vsub.f32 %v3353, %v3644
        %v3930 = vsub.f32 %v3354, %v3644
        %v3931 = vsub.f32 %v3355, %v3644
        %v3932 = vsub.f32 %v3356, %v3644
        %v3933 = vsub.f32 %v3357, %v3649
        %v3934 = vsub.f32 %v3358, %v3649
        %v3935 = vsub.f32 %v3359, %v3649
        %v3936 = vsub.f32 %v3360, %v3649
        %v3937 = vsub.f32 %v3361, %v3654
        %v3938 = vsub.f32 %v3362, %v3654
        %v3939 = vsub.f32 %v3363, %v3654
        %v3940 = vsub.f32 %v3364, %v3654
        %v3941 = vsub.f32 %v3365, %v3659
        %v3942 = vsub.f32 %v3366, %v3659
        %v3943 = vsub.f32 %v3367, %v3659
        %v3944 = vsub.f32 %v3368, %v3659
        %v3945 = vsub.f32 %v3369, %v3664
        %v3946 = vsub.f32 %v3370, %v3664
        %v3947 = vsub.f32 %v3371, %v3664
        %v3948 = vsub.f32 %v3372, %v3664
        %v3949 = vsub.f32 %v3373, %v3669
        %v3950 = vsub.f32 %v3374, %v3669
        %v3951 = vsub.f32 %v3375, %v3669
        %v3952 = vsub.f32 %v3376, %v3669
        %v3953 = vsub.f32 %v3377, %v3674
        %v3954 = vsub.f32 %v3378, %v3674
        %v3955 = vsub.f32 %v3379, %v3674
        %v3956 = vsub.f32 %v3380, %v3674
        %v3957 = vsub.f32 %v3381, %v3679
        %v3958 = vsub.f32 %v3382, %v3679
        %v3959 = vsub.f32 %v3383, %v3679
        %v3960 = vsub.f32 %v3384, %v3679
        %v3961 = vsub.f32 %v3385, %v3684
        %v3962 = vsub.f32 %v3386, %v3684
        %v3963 = vsub.f32 %v3387, %v3684
        %v3964 = vsub.f32 %v3388, %v3684
        %v3965 = vsub.f32 %v3389, %v3689
        %v3966 = vsub.f32 %v3390, %v3689
        %v3967 = vsub.f32 %v3391, %v3689
        %v3968 = vsub.f32 %v3392, %v3689
        %v3969 = vsub.f32 %v3393, %v3694
        %v3970 = vsub.f32 %v3394, %v3694
        %v3971 = vsub.f32 %v3395, %v3694
        %v3972 = vsub.f32 %v3396, %v3694
        %v3973 = vsub.f32 %v3397, %v3699
        %v3974 = vsub.f32 %v3398, %v3699
        %v3975 = vsub.f32 %v3399, %v3699
        %v3976 = vsub.f32 %v3400, %v3699
        %v3977 = vsub.f32 %v3401, %v3704
        %v3978 = vsub.f32 %v3402, %v3704
        %v3979 = vsub.f32 %v3403, %v3704
        %v3980 = vsub.f32 %v3404, %v3704
        %v3981 = vsub.f32 %v3405, %v3709
        %v3982 = vsub.f32 %v3406, %v3709
        %v3983 = vsub.f32 %v3407, %v3709
        %v3984 = vsub.f32 %v3408, %v3709
        %v3985 = vsub.f32 %v3409, %v3714
        %v3986 = vsub.f32 %v3410, %v3714
        %v3987 = vsub.f32 %v3411, %v3714
        %v3988 = vsub.f32 %v3412, %v3714
        %v3989 = vsub.f32 %v3413, %v3719
        %v3990 = vsub.f32 %v3414, %v3719
        %v3991 = vsub.f32 %v3415, %v3719
        %v3992 = vsub.f32 %v3416, %v3719
        %v3993 = vsub.f32 %v3417, %v3724
        %v3994 = vsub.f32 %v3418, %v3724
        %v3995 = vsub.f32 %v3419, %v3724
        %v3996 = vsub.f32 %v3420, %v3724
        %v3997 = vsub.f32 %v3421, %v3729
        %v3998 = vsub.f32 %v3422, %v3729
        %v3999 = vsub.f32 %v3423, %v3729
        %v4000 = vsub.f32 %v3424, %v3729
        %v4001 = vsub.f32 %v3425, %v3734
        %v4002 = vsub.f32 %v3426, %v3734
        %v4003 = vsub.f32 %v3427, %v3734
        %v4004 = vsub.f32 %v3428, %v3734
        %v4005 = vsub.f32 %v3429, %v3739
        %v4006 = vsub.f32 %v3430, %v3739
        %v4007 = vsub.f32 %v3431, %v3739
        %v4008 = vsub.f32 %v3432, %v3739
        %v4009 = vsub.f32 %v3433, %v3744
        %v4010 = vsub.f32 %v3434, %v3744
        %v4011 = vsub.f32 %v3435, %v3744
        %v4012 = vsub.f32 %v3436, %v3744
        %v4013 = vsub.f32 %v3437, %v3749
        %v4014 = vsub.f32 %v3438, %v3749
        %v4015 = vsub.f32 %v3439, %v3749
        %v4016 = vsub.f32 %v3440, %v3749
        %v4017 = vsub.f32 %v3441, %v3754
        %v4018 = vsub.f32 %v3442, %v3754
        %v4019 = vsub.f32 %v3443, %v3754
        %v4020 = vsub.f32 %v3444, %v3754
        %v4021 = vsub.f32 %v3445, %v3759
        %v4022 = vsub.f32 %v3446, %v3759
        %v4023 = vsub.f32 %v3447, %v3759
        %v4024 = vsub.f32 %v3448, %v3759
        %v4025 = vsub.f32 %v3449, %v3764
        %v4026 = vsub.f32 %v3450, %v3764
        %v4027 = vsub.f32 %v3451, %v3764
        %v4028 = vsub.f32 %v3452, %v3764
        %v4029 = vsub.f32 %v3453, %v3769
        %v4030 = vsub.f32 %v3454, %v3769
        %v4031 = vsub.f32 %v3455, %v3769
        %v4032 = vsub.f32 %v3456, %v3769
        %v4033 = vsub.f32 %v3457, %v3774
        %v4034 = vsub.f32 %v3458, %v3774
        %v4035 = vsub.f32 %v3459, %v3774
        %v4036 = vsub.f32 %v3460, %v3774
        %v4037 = vsub.f32 %v3461, %v3779
        %v4038 = vsub.f32 %v3462, %v3779
        %v4039 = vsub.f32 %v3463, %v3779
        %v4040 = vsub.f32 %v3464, %v3779
        %v4041 = vsub.f32 %v3465, %v3784
        %v4042 = vsub.f32 %v3466, %v3784
        %v4043 = vsub.f32 %v3467, %v3784
        %v4044 = vsub.f32 %v3468, %v3784
        %v4045 = vsub.f32 %v3469, %v3789
        %v4046 = vsub.f32 %v3470, %v3789
        %v4047 = vsub.f32 %v3471, %v3789
        %v4048 = vsub.f32 %v3472, %v3789
        %v4049 = vsub.f32 %v3473, %v3794
        %v4050 = vsub.f32 %v3474, %v3794
        %v4051 = vsub.f32 %v3475, %v3794
        %v4052 = vsub.f32 %v3476, %v3794
        %v4053 = vsub.f32 %v3477, %v3799
        %v4054 = vsub.f32 %v3478, %v3799
        %v4055 = vsub.f32 %v3479, %v3799
        %v4056 = vsub.f32 %v3480, %v3799
        %v4057 = vsub.f32 %v3481, %v3804
        %v4058 = vsub.f32 %v3482, %v3804
        %v4059 = vsub.f32 %v3483, %v3804
        %v4060 = vsub.f32 %v3484, %v3804
        %v4061 = vmul.f32 %v3805, 1.442695
        %v4062 = vpow.pop %v4061
        %v4063 = vmul.f32 %v3806, 1.442695
        %v4064 = vpow.pop %v4063
        %v4065 = vmul.f32 %v3807, 1.442695
        %v4066 = vpow.pop %v4065
        %v4067 = vmul.f32 %v3808, 1.442695
        %v4068 = vpow.pop %v4067
        %v4069 = vmul.f32 %v3809, 1.442695
        %v4070 = vpow.pop %v4069
        %v4071 = vmul.f32 %v3810, 1.442695
        %v4072 = vpow.pop %v4071
        %v4073 = vmul.f32 %v3811, 1.442695
        %v4074 = vpow.pop %v4073
        %v4075 = vmul.f32 %v3812, 1.442695
        %v4076 = vpow.pop %v4075
        %v4077 = vmul.f32 %v3813, 1.442695
        %v4078 = vpow.pop %v4077
        %v4079 = vmul.f32 %v3814, 1.442695
        %v4080 = vpow.pop %v4079
        %v4081 = vmul.f32 %v3815, 1.442695
        %v4082 = vpow.pop %v4081
        %v4083 = vmul.f32 %v3816, 1.442695
        %v4084 = vpow.pop %v4083
        %v4085 = vmul.f32 %v3817, 1.442695
        %v4086 = vpow.pop %v4085
        %v4087 = vmul.f32 %v3818, 1.442695
        %v4088 = vpow.pop %v4087
        %v4089 = vmul.f32 %v3819, 1.442695
        %v4090 = vpow.pop %v4089
        %v4091 = vmul.f32 %v3820, 1.442695
        %v4092 = vpow.pop %v4091
        %v4093 = vmul.f32 %v3821, 1.442695
        %v4094 = vpow.pop %v4093
        %v4095 = vmul.f32 %v3822, 1.442695
        %v4096 = vpow.pop %v4095
        %v4097 = vmul.f32 %v3823, 1.442695
        %v4098 = vpow.pop %v4097
        %v4099 = vmul.f32 %v3824, 1.442695
        %v4100 = vpow.pop %v4099
        %v4101 = vmul.f32 %v3825, 1.442695
        %v4102 = vpow.pop %v4101
        %v4103 = vmul.f32 %v3826, 1.442695
        %v4104 = vpow.pop %v4103
        %v4105 = vmul.f32 %v3827, 1.442695
        %v4106 = vpow.pop %v4105
        %v4107 = vmul.f32 %v3828, 1.442695
        %v4108 = vpow.pop %v4107
        %v4109 = vmul.f32 %v3829, 1.442695
        %v4110 = vpow.pop %v4109
        %v4111 = vmul.f32 %v3830, 1.442695
        %v4112 = vpow.pop %v4111
        %v4113 = vmul.f32 %v3831, 1.442695
        %v4114 = vpow.pop %v4113
        %v4115 = vmul.f32 %v3832, 1.442695
        %v4116 = vpow.pop %v4115
        %v4117 = vmul.f32 %v3833, 1.442695
        %v4118 = vpow.pop %v4117
        %v4119 = vmul.f32 %v3834, 1.442695
        %v4120 = vpow.pop %v4119
        %v4121 = vmul.f32 %v3835, 1.442695
        %v4122 = vpow.pop %v4121
        %v4123 = vmul.f32 %v3836, 1.442695
        %v4124 = vpow.pop %v4123
        %v4125 = vmul.f32 %v3837, 1.442695
        %v4126 = vpow.pop %v4125
        %v4127 = vmul.f32 %v3838, 1.442695
        %v4128 = vpow.pop %v4127
        %v4129 = vmul.f32 %v3839, 1.442695
        %v4130 = vpow.pop %v4129
        %v4131 = vmul.f32 %v3840, 1.442695
        %v4132 = vpow.pop %v4131
        %v4133 = vmul.f32 %v3841, 1.442695
        %v4134 = vpow.pop %v4133
        %v4135 = vmul.f32 %v3842, 1.442695
        %v4136 = vpow.pop %v4135
        %v4137 = vmul.f32 %v3843, 1.442695
        %v4138 = vpow.pop %v4137
        %v4139 = vmul.f32 %v3844, 1.442695
        %v4140 = vpow.pop %v4139
        %v4141 = vmul.f32 %v3845, 1.442695
        %v4142 = vpow.pop %v4141
        %v4143 = vmul.f32 %v3846, 1.442695
        %v4144 = vpow.pop %v4143
        %v4145 = vmul.f32 %v3847, 1.442695
        %v4146 = vpow.pop %v4145
        %v4147 = vmul.f32 %v3848, 1.442695
        %v4148 = vpow.pop %v4147
        %v4149 = vmul.f32 %v3849, 1.442695
        %v4150 = vpow.pop %v4149
        %v4151 = vmul.f32 %v3850, 1.442695
        %v4152 = vpow.pop %v4151
        %v4153 = vmul.f32 %v3851, 1.442695
        %v4154 = vpow.pop %v4153
        %v4155 = vmul.f32 %v3852, 1.442695
        %v4156 = vpow.pop %v4155
        %v4157 = vmul.f32 %v3853, 1.442695
        %v4158 = vpow.pop %v4157
        %v4159 = vmul.f32 %v3854, 1.442695
        %v4160 = vpow.pop %v4159
        %v4161 = vmul.f32 %v3855, 1.442695
        %v4162 = vpow.pop %v4161
        %v4163 = vmul.f32 %v3856, 1.442695
        %v4164 = vpow.pop %v4163
        %v4165 = vmul.f32 %v3857, 1.442695
        %v4166 = vpow.pop %v4165
        %v4167 = vmul.f32 %v3858, 1.442695
        %v4168 = vpow.pop %v4167
        %v4169 = vmul.f32 %v3859, 1.442695
        %v4170 = vpow.pop %v4169
        %v4171 = vmul.f32 %v3860, 1.442695
        %v4172 = vpow.pop %v4171
        %v4173 = vmul.f32 %v3861, 1.442695
        %v4174 = vpow.pop %v4173
        %v4175 = vmul.f32 %v3862, 1.442695
        %v4176 = vpow.pop %v4175
        %v4177 = vmul.f32 %v3863, 1.442695
        %v4178 = vpow.pop %v4177
        %v4179 = vmul.f32 %v3864, 1.442695
        %v4180 = vpow.pop %v4179
        %v4181 = vmul.f32 %v3865, 1.442695
        %v4182 = vpow.pop %v4181
        %v4183 = vmul.f32 %v3866, 1.442695
        %v4184 = vpow.pop %v4183
        %v4185 = vmul.f32 %v3867, 1.442695
        %v4186 = vpow.pop %v4185
        %v4187 = vmul.f32 %v3868, 1.442695
        %v4188 = vpow.pop %v4187
        %v4189 = vmul.f32 %v3869, 1.442695
        %v4190 = vpow.pop %v4189
        %v4191 = vmul.f32 %v3870, 1.442695
        %v4192 = vpow.pop %v4191
        %v4193 = vmul.f32 %v3871, 1.442695
        %v4194 = vpow.pop %v4193
        %v4195 = vmul.f32 %v3872, 1.442695
        %v4196 = vpow.pop %v4195
        %v4197 = vmul.f32 %v3873, 1.442695
        %v4198 = vpow.pop %v4197
        %v4199 = vmul.f32 %v3874, 1.442695
        %v4200 = vpow.pop %v4199
        %v4201 = vmul.f32 %v3875, 1.442695
        %v4202 = vpow.pop %v4201
        %v4203 = vmul.f32 %v3876, 1.442695
        %v4204 = vpow.pop %v4203
        %v4205 = vmul.f32 %v3877, 1.442695
        %v4206 = vpow.pop %v4205
        %v4207 = vmul.f32 %v3878, 1.442695
        %v4208 = vpow.pop %v4207
        %v4209 = vmul.f32 %v3879, 1.442695
        %v4210 = vpow.pop %v4209
        %v4211 = vmul.f32 %v3880, 1.442695
        %v4212 = vpow.pop %v4211
        %v4213 = vmul.f32 %v3881, 1.442695
        %v4214 = vpow.pop %v4213
        %v4215 = vmul.f32 %v3882, 1.442695
        %v4216 = vpow.pop %v4215
        %v4217 = vmul.f32 %v3883, 1.442695
        %v4218 = vpow.pop %v4217
        %v4219 = vmul.f32 %v3884, 1.442695
        %v4220 = vpow.pop %v4219
        %v4221 = vmul.f32 %v3885, 1.442695
        %v4222 = vpow.pop %v4221
        %v4223 = vmul.f32 %v3886, 1.442695
        %v4224 = vpow.pop %v4223
        %v4225 = vmul.f32 %v3887, 1.442695
        %v4226 = vpow.pop %v4225
        %v4227 = vmul.f32 %v3888, 1.442695
        %v4228 = vpow.pop %v4227
        %v4229 = vmul.f32 %v3889, 1.442695
        %v4230 = vpow.pop %v4229
        %v4231 = vmul.f32 %v3890, 1.442695
        %v4232 = vpow.pop %v4231
        %v4233 = vmul.f32 %v3891, 1.442695
        %v4234 = vpow.pop %v4233
        %v4235 = vmul.f32 %v3892, 1.442695
        %v4236 = vpow.pop %v4235
        %v4237 = vmul.f32 %v3893, 1.442695
        %v4238 = vpow.pop %v4237
        %v4239 = vmul.f32 %v3894, 1.442695
        %v4240 = vpow.pop %v4239
        %v4241 = vmul.f32 %v3895, 1.442695
        %v4242 = vpow.pop %v4241
        %v4243 = vmul.f32 %v3896, 1.442695
        %v4244 = vpow.pop %v4243
        %v4245 = vmul.f32 %v3897, 1.442695
        %v4246 = vpow.pop %v4245
        %v4247 = vmul.f32 %v3898, 1.442695
        %v4248 = vpow.pop %v4247
        %v4249 = vmul.f32 %v3899, 1.442695
        %v4250 = vpow.pop %v4249
        %v4251 = vmul.f32 %v3900, 1.442695
        %v4252 = vpow.pop %v4251
        %v4253 = vmul.f32 %v3901, 1.442695
        %v4254 = vpow.pop %v4253
        %v4255 = vmul.f32 %v3902, 1.442695
        %v4256 = vpow.pop %v4255
        %v4257 = vmul.f32 %v3903, 1.442695
        %v4258 = vpow.pop %v4257
        %v4259 = vmul.f32 %v3904, 1.442695
        %v4260 = vpow.pop %v4259
        %v4261 = vmul.f32 %v3905, 1.442695
        %v4262 = vpow.pop %v4261
        %v4263 = vmul.f32 %v3906, 1.442695
        %v4264 = vpow.pop %v4263
        %v4265 = vmul.f32 %v3907, 1.442695
        %v4266 = vpow.pop %v4265
        %v4267 = vmul.f32 %v3908, 1.442695
        %v4268 = vpow.pop %v4267
        %v4269 = vmul.f32 %v3909, 1.442695
        %v4270 = vpow.pop %v4269
        %v4271 = vmul.f32 %v3910, 1.442695
        %v4272 = vpow.pop %v4271
        %v4273 = vmul.f32 %v3911, 1.442695
        %v4274 = vpow.pop %v4273
        %v4275 = vmul.f32 %v3912, 1.442695
        %v4276 = vpow.pop %v4275
        %v4277 = vmul.f32 %v3913, 1.442695
        %v4278 = vpow.pop %v4277
        %v4279 = vmul.f32 %v3914, 1.442695
        %v4280 = vpow.pop %v4279
        %v4281 = vmul.f32 %v3915, 1.442695
        %v4282 = vpow.pop %v4281
        %v4283 = vmul.f32 %v3916, 1.442695
        %v4284 = vpow.pop %v4283
        %v4285 = vmul.f32 %v3917, 1.442695
        %v4286 = vpow.pop %v4285
        %v4287 = vmul.f32 %v3918, 1.442695
        %v4288 = vpow.pop %v4287
        %v4289 = vmul.f32 %v3919, 1.442695
        %v4290 = vpow.pop %v4289
        %v4291 = vmul.f32 %v3920, 1.442695
        %v4292 = vpow.pop %v4291
        %v4293 = vmul.f32 %v3921, 1.442695
        %v4294 = vpow.pop %v4293
        %v4295 = vmul.f32 %v3922, 1.442695
        %v4296 = vpow.pop %v4295
        %v4297 = vmul.f32 %v3923, 1.442695
        %v4298 = vpow.pop %v4297
        %v4299 = vmul.f32 %v3924, 1.442695
        %v4300 = vpow.pop %v4299
        %v4301 = vmul.f32 %v3925, 1.442695
        %v4302 = vpow.pop %v4301
        %v4303 = vmul.f32 %v3926, 1.442695
        %v4304 = vpow.pop %v4303
        %v4305 = vmul.f32 %v3927, 1.442695
        %v4306 = vpow.pop %v4305
        %v4307 = vmul.f32 %v3928, 1.442695
        %v4308 = vpow.pop %v4307
        %v4309 = vmul.f32 %v3929, 1.442695
        %v4310 = vpow.pop %v4309
        %v4311 = vmul.f32 %v3930, 1.442695
        %v4312 = vpow.pop %v4311
        %v4313 = vmul.f32 %v3931, 1.442695
        %v4314 = vpow.pop %v4313
        %v4315 = vmul.f32 %v3932, 1.442695
        %v4316 = vpow.pop %v4315
        %v4317 = vmul.f32 %v3933, 1.442695
        %v4318 = vpow.pop %v4317
        %v4319 = vmul.f32 %v3934, 1.442695
        %v4320 = vpow.pop %v4319
        %v4321 = vmul.f32 %v3935, 1.442695
        %v4322 = vpow.pop %v4321
        %v4323 = vmul.f32 %v3936, 1.442695
        %v4324 = vpow.pop %v4323
        %v4325 = vmul.f32 %v3937, 1.442695
        %v4326 = vpow.pop %v4325
        %v4327 = vmul.f32 %v3938, 1.442695
        %v4328 = vpow.pop %v4327
        %v4329 = vmul.f32 %v3939, 1.442695
        %v4330 = vpow.pop %v4329
        %v4331 = vmul.f32 %v3940, 1.442695
        %v4332 = vpow.pop %v4331
        %v4333 = vmul.f32 %v3941, 1.442695
        %v4334 = vpow.pop %v4333
        %v4335 = vmul.f32 %v3942, 1.442695
        %v4336 = vpow.pop %v4335
        %v4337 = vmul.f32 %v3943, 1.442695
        %v4338 = vpow.pop %v4337
        %v4339 = vmul.f32 %v3944, 1.442695
        %v4340 = vpow.pop %v4339
        %v4341 = vmul.f32 %v3945, 1.442695
        %v4342 = vpow.pop %v4341
        %v4343 = vmul.f32 %v3946, 1.442695
        %v4344 = vpow.pop %v4343
        %v4345 = vmul.f32 %v3947, 1.442695
        %v4346 = vpow.pop %v4345
        %v4347 = vmul.f32 %v3948, 1.442695
        %v4348 = vpow.pop %v4347
        %v4349 = vmul.f32 %v3949, 1.442695
        %v4350 = vpow.pop %v4349
        %v4351 = vmul.f32 %v3950, 1.442695
        %v4352 = vpow.pop %v4351
        %v4353 = vmul.f32 %v3951, 1.442695
        %v4354 = vpow.pop %v4353
        %v4355 = vmul.f32 %v3952, 1.442695
        %v4356 = vpow.pop %v4355
        %v4357 = vmul.f32 %v3953, 1.442695
        %v4358 = vpow.pop %v4357
        %v4359 = vmul.f32 %v3954, 1.442695
        %v4360 = vpow.pop %v4359
        %v4361 = vmul.f32 %v3955, 1.442695
        %v4362 = vpow.pop %v4361
        %v4363 = vmul.f32 %v3956, 1.442695
        %v4364 = vpow.pop %v4363
        %v4365 = vmul.f32 %v3957, 1.442695
        %v4366 = vpow.pop %v4365
        %v4367 = vmul.f32 %v3958, 1.442695
        %v4368 = vpow.pop %v4367
        %v4369 = vmul.f32 %v3959, 1.442695
        %v4370 = vpow.pop %v4369
        %v4371 = vmul.f32 %v3960, 1.442695
        %v4372 = vpow.pop %v4371
        %v4373 = vmul.f32 %v3961, 1.442695
        %v4374 = vpow.pop %v4373
        %v4375 = vmul.f32 %v3962, 1.442695
        %v4376 = vpow.pop %v4375
        %v4377 = vmul.f32 %v3963, 1.442695
        %v4378 = vpow.pop %v4377
        %v4379 = vmul.f32 %v3964, 1.442695
        %v4380 = vpow.pop %v4379
        %v4381 = vmul.f32 %v3965, 1.442695
        %v4382 = vpow.pop %v4381
        %v4383 = vmul.f32 %v3966, 1.442695
        %v4384 = vpow.pop %v4383
        %v4385 = vmul.f32 %v3967, 1.442695
        %v4386 = vpow.pop %v4385
        %v4387 = vmul.f32 %v3968, 1.442695
        %v4388 = vpow.pop %v4387
        %v4389 = vmul.f32 %v3969, 1.442695
        %v4390 = vpow.pop %v4389
        %v4391 = vmul.f32 %v3970, 1.442695
        %v4392 = vpow.pop %v4391
        %v4393 = vmul.f32 %v3971, 1.442695
        %v4394 = vpow.pop %v4393
        %v4395 = vmul.f32 %v3972, 1.442695
        %v4396 = vpow.pop %v4395
        %v4397 = vmul.f32 %v3973, 1.442695
        %v4398 = vpow.pop %v4397
        %v4399 = vmul.f32 %v3974, 1.442695
        %v4400 = vpow.pop %v4399
        %v4401 = vmul.f32 %v3975, 1.442695
        %v4402 = vpow.pop %v4401
        %v4403 = vmul.f32 %v3976, 1.442695
        %v4404 = vpow.pop %v4403
        %v4405 = vmul.f32 %v3977, 1.442695
        %v4406 = vpow.pop %v4405
        %v4407 = vmul.f32 %v3978, 1.442695
        %v4408 = vpow.pop %v4407
        %v4409 = vmul.f32 %v3979, 1.442695
        %v4410 = vpow.pop %v4409
        %v4411 = vmul.f32 %v3980, 1.442695
        %v4412 = vpow.pop %v4411
        %v4413 = vmul.f32 %v3981, 1.442695
        %v4414 = vpow.pop %v4413
        %v4415 = vmul.f32 %v3982, 1.442695
        %v4416 = vpow.pop %v4415
        %v4417 = vmul.f32 %v3983, 1.442695
        %v4418 = vpow.pop %v4417
        %v4419 = vmul.f32 %v3984, 1.442695
        %v4420 = vpow.pop %v4419
        %v4421 = vmul.f32 %v3985, 1.442695
        %v4422 = vpow.pop %v4421
        %v4423 = vmul.f32 %v3986, 1.442695
        %v4424 = vpow.pop %v4423
        %v4425 = vmul.f32 %v3987, 1.442695
        %v4426 = vpow.pop %v4425
        %v4427 = vmul.f32 %v3988, 1.442695
        %v4428 = vpow.pop %v4427
        %v4429 = vmul.f32 %v3989, 1.442695
        %v4430 = vpow.pop %v4429
        %v4431 = vmul.f32 %v3990, 1.442695
        %v4432 = vpow.pop %v4431
        %v4433 = vmul.f32 %v3991, 1.442695
        %v4434 = vpow.pop %v4433
        %v4435 = vmul.f32 %v3992, 1.442695
        %v4436 = vpow.pop %v4435
        %v4437 = vmul.f32 %v3993, 1.442695
        %v4438 = vpow.pop %v4437
        %v4439 = vmul.f32 %v3994, 1.442695
        %v4440 = vpow.pop %v4439
        %v4441 = vmul.f32 %v3995, 1.442695
        %v4442 = vpow.pop %v4441
        %v4443 = vmul.f32 %v3996, 1.442695
        %v4444 = vpow.pop %v4443
        %v4445 = vmul.f32 %v3997, 1.442695
        %v4446 = vpow.pop %v4445
        %v4447 = vmul.f32 %v3998, 1.442695
        %v4448 = vpow.pop %v4447
        %v4449 = vmul.f32 %v3999, 1.442695
        %v4450 = vpow.pop %v4449
        %v4451 = vmul.f32 %v4000, 1.442695
        %v4452 = vpow.pop %v4451
        %v4453 = vmul.f32 %v4001, 1.442695
        %v4454 = vpow.pop %v4453
        %v4455 = vmul.f32 %v4002, 1.442695
        %v4456 = vpow.pop %v4455
        %v4457 = vmul.f32 %v4003, 1.442695
        %v4458 = vpow.pop %v4457
        %v4459 = vmul.f32 %v4004, 1.442695
        %v4460 = vpow.pop %v4459
        %v4461 = vmul.f32 %v4005, 1.442695
        %v4462 = vpow.pop %v4461
        %v4463 = vmul.f32 %v4006, 1.442695
        %v4464 = vpow.pop %v4463
        %v4465 = vmul.f32 %v4007, 1.442695
        %v4466 = vpow.pop %v4465
        %v4467 = vmul.f32 %v4008, 1.442695
        %v4468 = vpow.pop %v4467
        %v4469 = vmul.f32 %v4009, 1.442695
        %v4470 = vpow.pop %v4469
        %v4471 = vmul.f32 %v4010, 1.442695
        %v4472 = vpow.pop %v4471
        %v4473 = vmul.f32 %v4011, 1.442695
        %v4474 = vpow.pop %v4473
        %v4475 = vmul.f32 %v4012, 1.442695
        %v4476 = vpow.pop %v4475
        %v4477 = vmul.f32 %v4013, 1.442695
        %v4478 = vpow.pop %v4477
        %v4479 = vmul.f32 %v4014, 1.442695
        %v4480 = vpow.pop %v4479
        %v4481 = vmul.f32 %v4015, 1.442695
        %v4482 = vpow.pop %v4481
        %v4483 = vmul.f32 %v4016, 1.442695
        %v4484 = vpow.pop %v4483
        %v4485 = vmul.f32 %v4017, 1.442695
        %v4486 = vpow.pop %v4485
        %v4487 = vmul.f32 %v4018, 1.442695
        %v4488 = vpow.pop %v4487
        %v4489 = vmul.f32 %v4019, 1.442695
        %v4490 = vpow.pop %v4489
        %v4491 = vmul.f32 %v4020, 1.442695
        %v4492 = vpow.pop %v4491
        %v4493 = vmul.f32 %v4021, 1.442695
        %v4494 = vpow.pop %v4493
        %v4495 = vmul.f32 %v4022, 1.442695
        %v4496 = vpow.pop %v4495
        %v4497 = vmul.f32 %v4023, 1.442695
        %v4498 = vpow.pop %v4497
        %v4499 = vmul.f32 %v4024, 1.442695
        %v4500 = vpow.pop %v4499
        %v4501 = vmul.f32 %v4025, 1.442695
        %v4502 = vpow.pop %v4501
        %v4503 = vmul.f32 %v4026, 1.442695
        %v4504 = vpow.pop %v4503
        %v4505 = vmul.f32 %v4027, 1.442695
        %v4506 = vpow.pop %v4505
        %v4507 = vmul.f32 %v4028, 1.442695
        %v4508 = vpow.pop %v4507
        %v4509 = vmul.f32 %v4029, 1.442695
        %v4510 = vpow.pop %v4509
        %v4511 = vmul.f32 %v4030, 1.442695
        %v4512 = vpow.pop %v4511
        %v4513 = vmul.f32 %v4031, 1.442695
        %v4514 = vpow.pop %v4513
        %v4515 = vmul.f32 %v4032, 1.442695
        %v4516 = vpow.pop %v4515
        %v4517 = vmul.f32 %v4033, 1.442695
        %v4518 = vpow.pop %v4517
        %v4519 = vmul.f32 %v4034, 1.442695
        %v4520 = vpow.pop %v4519
        %v4521 = vmul.f32 %v4035, 1.442695
        %v4522 = vpow.pop %v4521
        %v4523 = vmul.f32 %v4036, 1.442695
        %v4524 = vpow.pop %v4523
        %v4525 = vmul.f32 %v4037, 1.442695
        %v4526 = vpow.pop %v4525
        %v4527 = vmul.f32 %v4038, 1.442695
        %v4528 = vpow.pop %v4527
        %v4529 = vmul.f32 %v4039, 1.442695
        %v4530 = vpow.pop %v4529
        %v4531 = vmul.f32 %v4040, 1.442695
        %v4532 = vpow.pop %v4531
        %v4533 = vmul.f32 %v4041, 1.442695
        %v4534 = vpow.pop %v4533
        %v4535 = vmul.f32 %v4042, 1.442695
        %v4536 = vpow.pop %v4535
        %v4537 = vmul.f32 %v4043, 1.442695
        %v4538 = vpow.pop %v4537
        %v4539 = vmul.f32 %v4044, 1.442695
        %v4540 = vpow.pop %v4539
        %v4541 = vmul.f32 %v4045, 1.442695
        %v4542 = vpow.pop %v4541
        %v4543 = vmul.f32 %v4046, 1.442695
        %v4544 = vpow.pop %v4543
        %v4545 = vmul.f32 %v4047, 1.442695
        %v4546 = vpow.pop %v4545
        %v4547 = vmul.f32 %v4048, 1.442695
        %v4548 = vpow.pop %v4547
        %v4549 = vmul.f32 %v4049, 1.442695
        %v4550 = vpow.pop %v4549
        %v4551 = vmul.f32 %v4050, 1.442695
        %v4552 = vpow.pop %v4551
        %v4553 = vmul.f32 %v4051, 1.442695
        %v4554 = vpow.pop %v4553
        %v4555 = vmul.f32 %v4052, 1.442695
        %v4556 = vpow.pop %v4555
        %v4557 = vmul.f32 %v4053, 1.442695
        %v4558 = vpow.pop %v4557
        %v4559 = vmul.f32 %v4054, 1.442695
        %v4560 = vpow.pop %v4559
        %v4561 = vmul.f32 %v4055, 1.442695
        %v4562 = vpow.pop %v4561
        %v4563 = vmul.f32 %v4056, 1.442695
        %v4564 = vpow.pop %v4563
        %v4565 = vmul.f32 %v4057, 1.442695
        %v4566 = vpow.pop %v4565
        %v4567 = vmul.f32 %v4058, 1.442695
        %v4568 = vpow.pop %v4567
        %v4569 = vmul.f32 %v4059, 1.442695
        %v4570 = vpow.pop %v4569
        %v4571 = vmul.f32 %v4060, 1.442695
        %v4572 = vpow.pop %v4571
        %v4573 = vadd.f32 %v4062, %v4064
        %v4574 = vadd.f32 %v4573, %v4066
        %v4575 = vadd.f32 %v4574, %v4068
        %4576 = vadd.xlane.f32.xlu0 %v4575
        %v4577 = vpop.xlane.xlu0 %4576
        %v4578 = vadd.f32 %v4070, %v4072
        %v4579 = vadd.f32 %v4578, %v4074
        %v4580 = vadd.f32 %v4579, %v4076
        %4581 = vadd.xlane.f32.xlu0 %v4580
        %v4582 = vpop.xlane.xlu0 %4581
        %v4583 = vadd.f32 %v4078, %v4080
        %v4584 = vadd.f32 %v4583, %v4082
        %v4585 = vadd.f32 %v4584, %v4084
        %4586 = vadd.xlane.f32.xlu0 %v4585
        %v4587 = vpop.xlane.xlu0 %4586
        %v4588 = vadd.f32 %v4086, %v4088
        %v4589 = vadd.f32 %v4588, %v4090
        %v4590 = vadd.f32 %v4589, %v4092
        %4591 = vadd.xlane.f32.xlu0 %v4590
        %v4592 = vpop.xlane.xlu0 %4591
        %v4593 = vadd.f32 %v4094, %v4096
        %v4594 = vadd.f32 %v4593, %v4098
        %v4595 = vadd.f32 %v4594, %v4100
        %4596 = vadd.xlane.f32.xlu0 %v4595
        %v4597 = vpop.xlane.xlu0 %4596
        %v4598 = vadd.f32 %v4102, %v4104
        %v4599 = vadd.f32 %v4598, %v4106
        %v4600 = vadd.f32 %v4599, %v4108
        %4601 = vadd.xlane.f32.xlu0 %v4600
        %v4602 = vpop.xlane.xlu0 %4601
        %v4603 = vadd.f32 %v4110, %v4112
        %v4604 = vadd.f32 %v4603, %v4114
        %v4605 = vadd.f32 %v4604, %v4116
        %4606 = vadd.xlane.f32.xlu0 %v4605
        %v4607 = vpop.xlane.xlu0 %4606
        %v4608 = vadd.f32 %v4118, %v4120
        %v4609 = vadd.f32 %v4608, %v4122
        %v4610 = vadd.f32 %v4609, %v4124
        %4611 = vadd.xlane.f32.xlu0 %v4610
        %v4612 = vpop.xlane.xlu0 %4611
        %v4613 = vadd.f32 %v4126, %v4128
        %v4614 = vadd.f32 %v4613, %v4130
        %v4615 = vadd.f32 %v4614, %v4132
        %4616 = vadd.xlane.f32.xlu0 %v4615
        %v4617 = vpop.xlane.xlu0 %4616
        %v4618 = vadd.f32 %v4134, %v4136
        %v4619 = vadd.f32 %v4618, %v4138
        %v4620 = vadd.f32 %v4619, %v4140
        %4621 = vadd.xlane.f32.xlu0 %v4620
        %v4622 = vpop.xlane.xlu0 %4621
        %v4623 = vadd.f32 %v4142, %v4144
        %v4624 = vadd.f32 %v4623, %v4146
        %v4625 = vadd.f32 %v4624, %v4148
        %4626 = vadd.xlane.f32.xlu0 %v4625
        %v4627 = vpop.xlane.xlu0 %4626
        %v4628 = vadd.f32 %v4150, %v4152
        %v4629 = vadd.f32 %v4628, %v4154
        %v4630 = vadd.f32 %v4629, %v4156
        %4631 = vadd.xlane.f32.xlu0 %v4630
        %v4632 = vpop.xlane.xlu0 %4631
        %v4633 = vadd.f32 %v4158, %v4160
        %v4634 = vadd.f32 %v4633, %v4162
        %v4635 = vadd.f32 %v4634, %v4164
        %4636 = vadd.xlane.f32.xlu0 %v4635
        %v4637 = vpop.xlane.xlu0 %4636
        %v4638 = vadd.f32 %v4166, %v4168
        %v4639 = vadd.f32 %v4638, %v4170
        %v4640 = vadd.f32 %v4639, %v4172
        %4641 = vadd.xlane.f32.xlu0 %v4640
        %v4642 = vpop.xlane.xlu0 %4641
        %v4643 = vadd.f32 %v4174, %v4176
        %v4644 = vadd.f32 %v4643, %v4178
        %v4645 = vadd.f32 %v4644, %v4180
        %4646 = vadd.xlane.f32.xlu0 %v4645
        %v4647 = vpop.xlane.xlu0 %4646
        %v4648 = vadd.f32 %v4182, %v4184
        %v4649 = vadd.f32 %v4648, %v4186
        %v4650 = vadd.f32 %v4649, %v4188
        %4651 = vadd.xlane.f32.xlu0 %v4650
        %v4652 = vpop.xlane.xlu0 %4651
        %v4653 = vadd.f32 %v4190, %v4192
        %v4654 = vadd.f32 %v4653, %v4194
        %v4655 = vadd.f32 %v4654, %v4196
        %4656 = vadd.xlane.f32.xlu0 %v4655
        %v4657 = vpop.xlane.xlu0 %4656
        %v4658 = vadd.f32 %v4198, %v4200
        %v4659 = vadd.f32 %v4658, %v4202
        %v4660 = vadd.f32 %v4659, %v4204
        %4661 = vadd.xlane.f32.xlu0 %v4660
        %v4662 = vpop.xlane.xlu0 %4661
        %v4663 = vadd.f32 %v4206, %v4208
        %v4664 = vadd.f32 %v4663, %v4210
        %v4665 = vadd.f32 %v4664, %v4212
        %4666 = vadd.xlane.f32.xlu0 %v4665
        %v4667 = vpop.xlane.xlu0 %4666
        %v4668 = vadd.f32 %v4214, %v4216
        %v4669 = vadd.f32 %v4668, %v4218
        %v4670 = vadd.f32 %v4669, %v4220
        %4671 = vadd.xlane.f32.xlu0 %v4670
        %v4672 = vpop.xlane.xlu0 %4671
        %v4673 = vadd.f32 %v4222, %v4224
        %v4674 = vadd.f32 %v4673, %v4226
        %v4675 = vadd.f32 %v4674, %v4228
        %4676 = vadd.xlane.f32.xlu0 %v4675
        %v4677 = vpop.xlane.xlu0 %4676
        %v4678 = vadd.f32 %v4230, %v4232
        %v4679 = vadd.f32 %v4678, %v4234
        %v4680 = vadd.f32 %v4679, %v4236
        %4681 = vadd.xlane.f32.xlu0 %v4680
        %v4682 = vpop.xlane.xlu0 %4681
        %v4683 = vadd.f32 %v4238, %v4240
        %v4684 = vadd.f32 %v4683, %v4242
        %v4685 = vadd.f32 %v4684, %v4244
        %4686 = vadd.xlane.f32.xlu0 %v4685
        %v4687 = vpop.xlane.xlu0 %4686
        %v4688 = vadd.f32 %v4246, %v4248
        %v4689 = vadd.f32 %v4688, %v4250
        %v4690 = vadd.f32 %v4689, %v4252
        %4691 = vadd.xlane.f32.xlu0 %v4690
        %v4692 = vpop.xlane.xlu0 %4691
        %v4693 = vadd.f32 %v4254, %v4256
        %v4694 = vadd.f32 %v4693, %v4258
        %v4695 = vadd.f32 %v4694, %v4260
        %4696 = vadd.xlane.f32.xlu0 %v4695
        %v4697 = vpop.xlane.xlu0 %4696
        %v4698 = vadd.f32 %v4262, %v4264
        %v4699 = vadd.f32 %v4698, %v4266
        %v4700 = vadd.f32 %v4699, %v4268
        %4701 = vadd.xlane.f32.xlu0 %v4700
        %v4702 = vpop.xlane.xlu0 %4701
        %v4703 = vadd.f32 %v4270, %v4272
        %v4704 = vadd.f32 %v4703, %v4274
        %v4705 = vadd.f32 %v4704, %v4276
        %4706 = vadd.xlane.f32.xlu0 %v4705
        %v4707 = vpop.xlane.xlu0 %4706
        %v4708 = vadd.f32 %v4278, %v4280
        %v4709 = vadd.f32 %v4708, %v4282
        %v4710 = vadd.f32 %v4709, %v4284
        %4711 = vadd.xlane.f32.xlu0 %v4710
        %v4712 = vpop.xlane.xlu0 %4711
        %v4713 = vadd.f32 %v4286, %v4288
        %v4714 = vadd.f32 %v4713, %v4290
        %v4715 = vadd.f32 %v4714, %v4292
        %4716 = vadd.xlane.f32.xlu0 %v4715
        %v4717 = vpop.xlane.xlu0 %4716
        %v4718 = vadd.f32 %v4294, %v4296
        %v4719 = vadd.f32 %v4718, %v4298
        %v4720 = vadd.f32 %v4719, %v4300
        %4721 = vadd.xlane.f32.xlu0 %v4720
        %v4722 = vpop.xlane.xlu0 %4721
        %v4723 = vadd.f32 %v4302, %v4304
        %v4724 = vadd.f32 %v4723, %v4306
        %v4725 = vadd.f32 %v4724, %v4308
        %4726 = vadd.xlane.f32.xlu0 %v4725
        %v4727 = vpop.xlane.xlu0 %4726
        %v4728 = vadd.f32 %v4310, %v4312
        %v4729 = vadd.f32 %v4728, %v4314
        %v4730 = vadd.f32 %v4729, %v4316
        %4731 = vadd.xlane.f32.xlu0 %v4730
        %v4732 = vpop.xlane.xlu0 %4731
        %v4733 = vadd.f32 %v4318, %v4320
        %v4734 = vadd.f32 %v4733, %v4322
        %v4735 = vadd.f32 %v4734, %v4324
        %4736 = vadd.xlane.f32.xlu0 %v4735
        %v4737 = vpop.xlane.xlu0 %4736
        %v4738 = vadd.f32 %v4326, %v4328
        %v4739 = vadd.f32 %v4738, %v4330
        %v4740 = vadd.f32 %v4739, %v4332
        %4741 = vadd.xlane.f32.xlu0 %v4740
        %v4742 = vpop.xlane.xlu0 %4741
        %v4743 = vadd.f32 %v4334, %v4336
        %v4744 = vadd.f32 %v4743, %v4338
        %v4745 = vadd.f32 %v4744, %v4340
        %4746 = vadd.xlane.f32.xlu0 %v4745
        %v4747 = vpop.xlane.xlu0 %4746
        %v4748 = vadd.f32 %v4342, %v4344
        %v4749 = vadd.f32 %v4748, %v4346
        %v4750 = vadd.f32 %v4749, %v4348
        %4751 = vadd.xlane.f32.xlu0 %v4750
        %v4752 = vpop.xlane.xlu0 %4751
        %v4753 = vadd.f32 %v4350, %v4352
        %v4754 = vadd.f32 %v4753, %v4354
        %v4755 = vadd.f32 %v4754, %v4356
        %4756 = vadd.xlane.f32.xlu0 %v4755
        %v4757 = vpop.xlane.xlu0 %4756
        %v4758 = vadd.f32 %v4358, %v4360
        %v4759 = vadd.f32 %v4758, %v4362
        %v4760 = vadd.f32 %v4759, %v4364
        %4761 = vadd.xlane.f32.xlu0 %v4760
        %v4762 = vpop.xlane.xlu0 %4761
        %v4763 = vadd.f32 %v4366, %v4368
        %v4764 = vadd.f32 %v4763, %v4370
        %v4765 = vadd.f32 %v4764, %v4372
        %4766 = vadd.xlane.f32.xlu0 %v4765
        %v4767 = vpop.xlane.xlu0 %4766
        %v4768 = vadd.f32 %v4374, %v4376
        %v4769 = vadd.f32 %v4768, %v4378
        %v4770 = vadd.f32 %v4769, %v4380
        %4771 = vadd.xlane.f32.xlu0 %v4770
        %v4772 = vpop.xlane.xlu0 %4771
        %v4773 = vadd.f32 %v4382, %v4384
        %v4774 = vadd.f32 %v4773, %v4386
        %v4775 = vadd.f32 %v4774, %v4388
        %4776 = vadd.xlane.f32.xlu0 %v4775
        %v4777 = vpop.xlane.xlu0 %4776
        %v4778 = vadd.f32 %v4390, %v4392
        %v4779 = vadd.f32 %v4778, %v4394
        %v4780 = vadd.f32 %v4779, %v4396
        %4781 = vadd.xlane.f32.xlu0 %v4780
        %v4782 = vpop.xlane.xlu0 %4781
        %v4783 = vadd.f32 %v4398, %v4400
        %v4784 = vadd.f32 %v4783, %v4402
        %v4785 = vadd.f32 %v4784, %v4404
        %4786 = vadd.xlane.f32.xlu0 %v4785
        %v4787 = vpop.xlane.xlu0 %4786
        %v4788 = vadd.f32 %v4406, %v4408
        %v4789 = vadd.f32 %v4788, %v4410
        %v4790 = vadd.f32 %v4789, %v4412
        %4791 = vadd.xlane.f32.xlu0 %v4790
        %v4792 = vpop.xlane.xlu0 %4791
        %v4793 = vadd.f32 %v4414, %v4416
        %v4794 = vadd.f32 %v4793, %v4418
        %v4795 = vadd.f32 %v4794, %v4420
        %4796 = vadd.xlane.f32.xlu0 %v4795
        %v4797 = vpop.xlane.xlu0 %4796
        %v4798 = vadd.f32 %v4422, %v4424
        %v4799 = vadd.f32 %v4798, %v4426
        %v4800 = vadd.f32 %v4799, %v4428
        %4801 = vadd.xlane.f32.xlu0 %v4800
        %v4802 = vpop.xlane.xlu0 %4801
        %v4803 = vadd.f32 %v4430, %v4432
        %v4804 = vadd.f32 %v4803, %v4434
        %v4805 = vadd.f32 %v4804, %v4436
        %4806 = vadd.xlane.f32.xlu0 %v4805
        %v4807 = vpop.xlane.xlu0 %4806
        %v4808 = vadd.f32 %v4438, %v4440
        %v4809 = vadd.f32 %v4808, %v4442
        %v4810 = vadd.f32 %v4809, %v4444
        %4811 = vadd.xlane.f32.xlu0 %v4810
        %v4812 = vpop.xlane.xlu0 %4811
        %v4813 = vadd.f32 %v4446, %v4448
        %v4814 = vadd.f32 %v4813, %v4450
        %v4815 = vadd.f32 %v4814, %v4452
        %4816 = vadd.xlane.f32.xlu0 %v4815
        %v4817 = vpop.xlane.xlu0 %4816
        %v4818 = vadd.f32 %v4454, %v4456
        %v4819 = vadd.f32 %v4818, %v4458
        %v4820 = vadd.f32 %v4819, %v4460
        %4821 = vadd.xlane.f32.xlu0 %v4820
        %v4822 = vpop.xlane.xlu0 %4821
        %v4823 = vadd.f32 %v4462, %v4464
        %v4824 = vadd.f32 %v4823, %v4466
        %v4825 = vadd.f32 %v4824, %v4468
        %4826 = vadd.xlane.f32.xlu0 %v4825
        %v4827 = vpop.xlane.xlu0 %4826
        %v4828 = vadd.f32 %v4470, %v4472
        %v4829 = vadd.f32 %v4828, %v4474
        %v4830 = vadd.f32 %v4829, %v4476
        %4831 = vadd.xlane.f32.xlu0 %v4830
        %v4832 = vpop.xlane.xlu0 %4831
        %v4833 = vadd.f32 %v4478, %v4480
        %v4834 = vadd.f32 %v4833, %v4482
        %v4835 = vadd.f32 %v4834, %v4484
        %4836 = vadd.xlane.f32.xlu0 %v4835
        %v4837 = vpop.xlane.xlu0 %4836
        %v4838 = vadd.f32 %v4486, %v4488
        %v4839 = vadd.f32 %v4838, %v4490
        %v4840 = vadd.f32 %v4839, %v4492
        %4841 = vadd.xlane.f32.xlu0 %v4840
        %v4842 = vpop.xlane.xlu0 %4841
        %v4843 = vadd.f32 %v4494, %v4496
        %v4844 = vadd.f32 %v4843, %v4498
        %v4845 = vadd.f32 %v4844, %v4500
        %4846 = vadd.xlane.f32.xlu0 %v4845
        %v4847 = vpop.xlane.xlu0 %4846
        %v4848 = vadd.f32 %v4502, %v4504
        %v4849 = vadd.f32 %v4848, %v4506
        %v4850 = vadd.f32 %v4849, %v4508
        %4851 = vadd.xlane.f32.xlu0 %v4850
        %v4852 = vpop.xlane.xlu0 %4851
        %v4853 = vadd.f32 %v4510, %v4512
        %v4854 = vadd.f32 %v4853, %v4514
        %v4855 = vadd.f32 %v4854, %v4516
        %4856 = vadd.xlane.f32.xlu0 %v4855
        %v4857 = vpop.xlane.xlu0 %4856
        %v4858 = vadd.f32 %v4518, %v4520
        %v4859 = vadd.f32 %v4858, %v4522
        %v4860 = vadd.f32 %v4859, %v4524
        %4861 = vadd.xlane.f32.xlu0 %v4860
        %v4862 = vpop.xlane.xlu0 %4861
        %v4863 = vadd.f32 %v4526, %v4528
        %v4864 = vadd.f32 %v4863, %v4530
        %v4865 = vadd.f32 %v4864, %v4532
        %4866 = vadd.xlane.f32.xlu0 %v4865
        %v4867 = vpop.xlane.xlu0 %4866
        %v4868 = vadd.f32 %v4534, %v4536
        %v4869 = vadd.f32 %v4868, %v4538
        %v4870 = vadd.f32 %v4869, %v4540
        %4871 = vadd.xlane.f32.xlu0 %v4870
        %v4872 = vpop.xlane.xlu0 %4871
        %v4873 = vadd.f32 %v4542, %v4544
        %v4874 = vadd.f32 %v4873, %v4546
        %v4875 = vadd.f32 %v4874, %v4548
        %4876 = vadd.xlane.f32.xlu0 %v4875
        %v4877 = vpop.xlane.xlu0 %4876
        %v4878 = vadd.f32 %v4550, %v4552
        %v4879 = vadd.f32 %v4878, %v4554
        %v4880 = vadd.f32 %v4879, %v4556
        %4881 = vadd.xlane.f32.xlu0 %v4880
        %v4882 = vpop.xlane.xlu0 %4881
        %v4883 = vadd.f32 %v4558, %v4560
        %v4884 = vadd.f32 %v4883, %v4562
        %v4885 = vadd.f32 %v4884, %v4564
        %4886 = vadd.xlane.f32.xlu0 %v4885
        %v4887 = vpop.xlane.xlu0 %4886
        %v4888 = vadd.f32 %v4566, %v4568
        %v4889 = vadd.f32 %v4888, %v4570
        %v4890 = vadd.f32 %v4889, %v4572
        %4891 = vadd.xlane.f32.xlu0 %v4890
        %v4892 = vpop.xlane.xlu0 %4891
        %v4893 = vrcp.pop %v4577
        %v4894 = vrcp.pop %v4582
        %v4895 = vrcp.pop %v4587
        %v4896 = vrcp.pop %v4592
        %v4897 = vrcp.pop %v4597
        %v4898 = vrcp.pop %v4602
        %v4899 = vrcp.pop %v4607
        %v4900 = vrcp.pop %v4612
        %v4901 = vrcp.pop %v4617
        %v4902 = vrcp.pop %v4622
        %v4903 = vrcp.pop %v4627
        %v4904 = vrcp.pop %v4632
        %v4905 = vrcp.pop %v4637
        %v4906 = vrcp.pop %v4642
        %v4907 = vrcp.pop %v4647
        %v4908 = vrcp.pop %v4652
        %v4909 = vrcp.pop %v4657
        %v4910 = vrcp.pop %v4662
        %v4911 = vrcp.pop %v4667
        %v4912 = vrcp.pop %v4672
        %v4913 = vrcp.pop %v4677
        %v4914 = vrcp.pop %v4682
        %v4915 = vrcp.pop %v4687
        %v4916 = vrcp.pop %v4692
        %v4917 = vrcp.pop %v4697
        %v4918 = vrcp.pop %v4702
        %v4919 = vrcp.pop %v4707
        %v4920 = vrcp.pop %v4712
        %v4921 = vrcp.pop %v4717
        %v4922 = vrcp.pop %v4722
        %v4923 = vrcp.pop %v4727
        %v4924 = vrcp.pop %v4732
        %v4925 = vrcp.pop %v4737
        %v4926 = vrcp.pop %v4742
        %v4927 = vrcp.pop %v4747
        %v4928 = vrcp.pop %v4752
        %v4929 = vrcp.pop %v4757
        %v4930 = vrcp.pop %v4762
        %v4931 = vrcp.pop %v4767
        %v4932 = vrcp.pop %v4772
        %v4933 = vrcp.pop %v4777
        %v4934 = vrcp.pop %v4782
        %v4935 = vrcp.pop %v4787
        %v4936 = vrcp.pop %v4792
        %v4937 = vrcp.pop %v4797
        %v4938 = vrcp.pop %v4802
        %v4939 = vrcp.pop %v4807
        %v4940 = vrcp.pop %v4812
        %v4941 = vrcp.pop %v4817
        %v4942 = vrcp.pop %v4822
        %v4943 = vrcp.pop %v4827
        %v4944 = vrcp.pop %v4832
        %v4945 = vrcp.pop %v4837
        %v4946 = vrcp.pop %v4842
        %v4947 = vrcp.pop %v4847
        %v4948 = vrcp.pop %v4852
        %v4949 = vrcp.pop %v4857
        %v4950 = vrcp.pop %v4862
        %v4951 = vrcp.pop %v4867
        %v4952 = vrcp.pop %v4872
        %v4953 = vrcp.pop %v4877
        %v4954 = vrcp.pop %v4882
        %v4955 = vrcp.pop %v4887
        %v4956 = vrcp.pop %v4892
        %v4957 = vmul.f32 %v4062, %v4893
        %v4958 = vmul.f32 %v4064, %v4893
        %v4959 = vmul.f32 %v4066, %v4893
        %v4960 = vmul.f32 %v4068, %v4893
        %v4961 = vmul.f32 %v4070, %v4894
        %v4962 = vmul.f32 %v4072, %v4894
        %v4963 = vmul.f32 %v4074, %v4894
        %v4964 = vmul.f32 %v4076, %v4894
        %v4965 = vmul.f32 %v4078, %v4895
        %v4966 = vmul.f32 %v4080, %v4895
        %v4967 = vmul.f32 %v4082, %v4895
        %v4968 = vmul.f32 %v4084, %v4895
        %v4969 = vmul.f32 %v4086, %v4896
        %v4970 = vmul.f32 %v4088, %v4896
        %v4971 = vmul.f32 %v4090, %v4896
        %v4972 = vmul.f32 %v4092, %v4896
        %v4973 = vmul.f32 %v4094, %v4897
        %v4974 = vmul.f32 %v4096, %v4897
        %v4975 = vmul.f32 %v4098, %v4897
        %v4976 = vmul.f32 %v4100, %v4897
        %v4977 = vmul.f32 %v4102, %v4898
        %v4978 = vmul.f32 %v4104, %v4898
        %v4979 = vmul.f32 %v4106, %v4898
        %v4980 = vmul.f32 %v4108, %v4898
        %v4981 = vmul.f32 %v4110, %v4899
        %v4982 = vmul.f32 %v4112, %v4899
        %v4983 = vmul.f32 %v4114, %v4899
        %v4984 = vmul.f32 %v4116, %v4899
        %v4985 = vmul.f32 %v4118, %v4900
        %v4986 = vmul.f32 %v4120, %v4900
        %v4987 = vmul.f32 %v4122, %v4900
        %v4988 = vmul.f32 %v4124, %v4900
        %v4989 = vmul.f32 %v4126, %v4901
        %v4990 = vmul.f32 %v4128, %v4901
        %v4991 = vmul.f32 %v4130, %v4901
        %v4992 = vmul.f32 %v4132, %v4901
        %v4993 = vmul.f32 %v4134, %v4902
        %v4994 = vmul.f32 %v4136, %v4902
        %v4995 = vmul.f32 %v4138, %v4902
        %v4996 = vmul.f32 %v4140, %v4902
        %v4997 = vmul.f32 %v4142, %v4903
        %v4998 = vmul.f32 %v4144, %v4903
        %v4999 = vmul.f32 %v4146, %v4903
        %v5000 = vmul.f32 %v4148, %v4903
        %v5001 = vmul.f32 %v4150, %v4904
        %v5002 = vmul.f32 %v4152, %v4904
        %v5003 = vmul.f32 %v4154, %v4904
        %v5004 = vmul.f32 %v4156, %v4904
        %v5005 = vmul.f32 %v4158, %v4905
        %v5006 = vmul.f32 %v4160, %v4905
        %v5007 = vmul.f32 %v4162, %v4905
        %v5008 = vmul.f32 %v4164, %v4905
        %v5009 = vmul.f32 %v4166, %v4906
        %v5010 = vmul.f32 %v4168, %v4906
        %v5011 = vmul.f32 %v4170, %v4906
        %v5012 = vmul.f32 %v4172, %v4906
        %v5013 = vmul.f32 %v4174, %v4907
        %v5014 = vmul.f32 %v4176, %v4907
        %v5015 = vmul.f32 %v4178, %v4907
        %v5016 = vmul.f32 %v4180, %v4907
        %v5017 = vmul.f32 %v4182, %v4908
        %v5018 = vmul.f32 %v4184, %v4908
        %v5019 = vmul.f32 %v4186, %v4908
        %v5020 = vmul.f32 %v4188, %v4908
        %v5021 = vmul.f32 %v4190, %v4909
        %v5022 = vmul.f32 %v4192, %v4909
        %v5023 = vmul.f32 %v4194, %v4909
        %v5024 = vmul.f32 %v4196, %v4909
        %v5025 = vmul.f32 %v4198, %v4910
        %v5026 = vmul.f32 %v4200, %v4910
        %v5027 = vmul.f32 %v4202, %v4910
        %v5028 = vmul.f32 %v4204, %v4910
        %v5029 = vmul.f32 %v4206, %v4911
        %v5030 = vmul.f32 %v4208, %v4911
        %v5031 = vmul.f32 %v4210, %v4911
        %v5032 = vmul.f32 %v4212, %v4911
        %v5033 = vmul.f32 %v4214, %v4912
        %v5034 = vmul.f32 %v4216, %v4912
        %v5035 = vmul.f32 %v4218, %v4912
        %v5036 = vmul.f32 %v4220, %v4912
        %v5037 = vmul.f32 %v4222, %v4913
        %v5038 = vmul.f32 %v4224, %v4913
        %v5039 = vmul.f32 %v4226, %v4913
        %v5040 = vmul.f32 %v4228, %v4913
        %v5041 = vmul.f32 %v4230, %v4914
        %v5042 = vmul.f32 %v4232, %v4914
        %v5043 = vmul.f32 %v4234, %v4914
        %v5044 = vmul.f32 %v4236, %v4914
        %v5045 = vmul.f32 %v4238, %v4915
        %v5046 = vmul.f32 %v4240, %v4915
        %v5047 = vmul.f32 %v4242, %v4915
        %v5048 = vmul.f32 %v4244, %v4915
        %v5049 = vmul.f32 %v4246, %v4916
        %v5050 = vmul.f32 %v4248, %v4916
        %v5051 = vmul.f32 %v4250, %v4916
        %v5052 = vmul.f32 %v4252, %v4916
        %v5053 = vmul.f32 %v4254, %v4917
        %v5054 = vmul.f32 %v4256, %v4917
        %v5055 = vmul.f32 %v4258, %v4917
        %v5056 = vmul.f32 %v4260, %v4917
        %v5057 = vmul.f32 %v4262, %v4918
        %v5058 = vmul.f32 %v4264, %v4918
        %v5059 = vmul.f32 %v4266, %v4918
        %v5060 = vmul.f32 %v4268, %v4918
        %v5061 = vmul.f32 %v4270, %v4919
        %v5062 = vmul.f32 %v4272, %v4919
        %v5063 = vmul.f32 %v4274, %v4919
        %v5064 = vmul.f32 %v4276, %v4919
        %v5065 = vmul.f32 %v4278, %v4920
        %v5066 = vmul.f32 %v4280, %v4920
        %v5067 = vmul.f32 %v4282, %v4920
        %v5068 = vmul.f32 %v4284, %v4920
        %v5069 = vmul.f32 %v4286, %v4921
        %v5070 = vmul.f32 %v4288, %v4921
        %v5071 = vmul.f32 %v4290, %v4921
        %v5072 = vmul.f32 %v4292, %v4921
        %v5073 = vmul.f32 %v4294, %v4922
        %v5074 = vmul.f32 %v4296, %v4922
        %v5075 = vmul.f32 %v4298, %v4922
        %v5076 = vmul.f32 %v4300, %v4922
        %v5077 = vmul.f32 %v4302, %v4923
        %v5078 = vmul.f32 %v4304, %v4923
        %v5079 = vmul.f32 %v4306, %v4923
        %v5080 = vmul.f32 %v4308, %v4923
        %v5081 = vmul.f32 %v4310, %v4924
        %v5082 = vmul.f32 %v4312, %v4924
        %v5083 = vmul.f32 %v4314, %v4924
        %v5084 = vmul.f32 %v4316, %v4924
        %v5085 = vmul.f32 %v4318, %v4925
        %v5086 = vmul.f32 %v4320, %v4925
        %v5087 = vmul.f32 %v4322, %v4925
        %v5088 = vmul.f32 %v4324, %v4925
        %v5089 = vmul.f32 %v4326, %v4926
        %v5090 = vmul.f32 %v4328, %v4926
        %v5091 = vmul.f32 %v4330, %v4926
        %v5092 = vmul.f32 %v4332, %v4926
        %v5093 = vmul.f32 %v4334, %v4927
        %v5094 = vmul.f32 %v4336, %v4927
        %v5095 = vmul.f32 %v4338, %v4927
        %v5096 = vmul.f32 %v4340, %v4927
        %v5097 = vmul.f32 %v4342, %v4928
        %v5098 = vmul.f32 %v4344, %v4928
        %v5099 = vmul.f32 %v4346, %v4928
        %v5100 = vmul.f32 %v4348, %v4928
        %v5101 = vmul.f32 %v4350, %v4929
        %v5102 = vmul.f32 %v4352, %v4929
        %v5103 = vmul.f32 %v4354, %v4929
        %v5104 = vmul.f32 %v4356, %v4929
        %v5105 = vmul.f32 %v4358, %v4930
        %v5106 = vmul.f32 %v4360, %v4930
        %v5107 = vmul.f32 %v4362, %v4930
        %v5108 = vmul.f32 %v4364, %v4930
        %v5109 = vmul.f32 %v4366, %v4931
        %v5110 = vmul.f32 %v4368, %v4931
        %v5111 = vmul.f32 %v4370, %v4931
        %v5112 = vmul.f32 %v4372, %v4931
        %v5113 = vmul.f32 %v4374, %v4932
        %v5114 = vmul.f32 %v4376, %v4932
        %v5115 = vmul.f32 %v4378, %v4932
        %v5116 = vmul.f32 %v4380, %v4932
        %v5117 = vmul.f32 %v4382, %v4933
        %v5118 = vmul.f32 %v4384, %v4933
        %v5119 = vmul.f32 %v4386, %v4933
        %v5120 = vmul.f32 %v4388, %v4933
        %v5121 = vmul.f32 %v4390, %v4934
        %v5122 = vmul.f32 %v4392, %v4934
        %v5123 = vmul.f32 %v4394, %v4934
        %v5124 = vmul.f32 %v4396, %v4934
        %v5125 = vmul.f32 %v4398, %v4935
        %v5126 = vmul.f32 %v4400, %v4935
        %v5127 = vmul.f32 %v4402, %v4935
        %v5128 = vmul.f32 %v4404, %v4935
        %v5129 = vmul.f32 %v4406, %v4936
        %v5130 = vmul.f32 %v4408, %v4936
        %v5131 = vmul.f32 %v4410, %v4936
        %v5132 = vmul.f32 %v4412, %v4936
        %v5133 = vmul.f32 %v4414, %v4937
        %v5134 = vmul.f32 %v4416, %v4937
        %v5135 = vmul.f32 %v4418, %v4937
        %v5136 = vmul.f32 %v4420, %v4937
        %v5137 = vmul.f32 %v4422, %v4938
        %v5138 = vmul.f32 %v4424, %v4938
        %v5139 = vmul.f32 %v4426, %v4938
        %v5140 = vmul.f32 %v4428, %v4938
        %v5141 = vmul.f32 %v4430, %v4939
        %v5142 = vmul.f32 %v4432, %v4939
        %v5143 = vmul.f32 %v4434, %v4939
        %v5144 = vmul.f32 %v4436, %v4939
        %v5145 = vmul.f32 %v4438, %v4940
        %v5146 = vmul.f32 %v4440, %v4940
        %v5147 = vmul.f32 %v4442, %v4940
        %v5148 = vmul.f32 %v4444, %v4940
        %v5149 = vmul.f32 %v4446, %v4941
        %v5150 = vmul.f32 %v4448, %v4941
        %v5151 = vmul.f32 %v4450, %v4941
        %v5152 = vmul.f32 %v4452, %v4941
        %v5153 = vmul.f32 %v4454, %v4942
        %v5154 = vmul.f32 %v4456, %v4942
        %v5155 = vmul.f32 %v4458, %v4942
        %v5156 = vmul.f32 %v4460, %v4942
        %v5157 = vmul.f32 %v4462, %v4943
        %v5158 = vmul.f32 %v4464, %v4943
        %v5159 = vmul.f32 %v4466, %v4943
        %v5160 = vmul.f32 %v4468, %v4943
        %v5161 = vmul.f32 %v4470, %v4944
        %v5162 = vmul.f32 %v4472, %v4944
        %v5163 = vmul.f32 %v4474, %v4944
        %v5164 = vmul.f32 %v4476, %v4944
        %v5165 = vmul.f32 %v4478, %v4945
        %v5166 = vmul.f32 %v4480, %v4945
        %v5167 = vmul.f32 %v4482, %v4945
        %v5168 = vmul.f32 %v4484, %v4945
        %v5169 = vmul.f32 %v4486, %v4946
        %v5170 = vmul.f32 %v4488, %v4946
        %v5171 = vmul.f32 %v4490, %v4946
        %v5172 = vmul.f32 %v4492, %v4946
        %v5173 = vmul.f32 %v4494, %v4947
        %v5174 = vmul.f32 %v4496, %v4947
        %v5175 = vmul.f32 %v4498, %v4947
        %v5176 = vmul.f32 %v4500, %v4947
        %v5177 = vmul.f32 %v4502, %v4948
        %v5178 = vmul.f32 %v4504, %v4948
        %v5179 = vmul.f32 %v4506, %v4948
        %v5180 = vmul.f32 %v4508, %v4948
        %v5181 = vmul.f32 %v4510, %v4949
        %v5182 = vmul.f32 %v4512, %v4949
        %v5183 = vmul.f32 %v4514, %v4949
        %v5184 = vmul.f32 %v4516, %v4949
        %v5185 = vmul.f32 %v4518, %v4950
        %v5186 = vmul.f32 %v4520, %v4950
        %v5187 = vmul.f32 %v4522, %v4950
        %v5188 = vmul.f32 %v4524, %v4950
        %v5189 = vmul.f32 %v4526, %v4951
        %v5190 = vmul.f32 %v4528, %v4951
        %v5191 = vmul.f32 %v4530, %v4951
        %v5192 = vmul.f32 %v4532, %v4951
        %v5193 = vmul.f32 %v4534, %v4952
        %v5194 = vmul.f32 %v4536, %v4952
        %v5195 = vmul.f32 %v4538, %v4952
        %v5196 = vmul.f32 %v4540, %v4952
        %v5197 = vmul.f32 %v4542, %v4953
        %v5198 = vmul.f32 %v4544, %v4953
        %v5199 = vmul.f32 %v4546, %v4953
        %v5200 = vmul.f32 %v4548, %v4953
        %v5201 = vmul.f32 %v4550, %v4954
        %v5202 = vmul.f32 %v4552, %v4954
        %v5203 = vmul.f32 %v4554, %v4954
        %v5204 = vmul.f32 %v4556, %v4954
        %v5205 = vmul.f32 %v4558, %v4955
        %v5206 = vmul.f32 %v4560, %v4955
        %v5207 = vmul.f32 %v4562, %v4955
        %v5208 = vmul.f32 %v4564, %v4955
        %v5209 = vmul.f32 %v4566, %v4956
        %v5210 = vmul.f32 %v4568, %v4956
        %v5211 = vmul.f32 %v4570, %v4956
        %v5212 = vmul.f32 %v4572, %v4956
        %v5213 = vpack.c.bf16 %v4961, %v4957
        %v5214 = vpack.c.bf16 %v4962, %v4958
        %v5215 = vpack.c.bf16 %v4963, %v4959
        %v5216 = vpack.c.bf16 %v4964, %v4960
        %v5217 = vpack.c.bf16 %v4969, %v4965
        %v5218 = vpack.c.bf16 %v4970, %v4966
        %v5219 = vpack.c.bf16 %v4971, %v4967
        %v5220 = vpack.c.bf16 %v4972, %v4968
        %v5221 = vpack.c.bf16 %v4977, %v4973
        %v5222 = vpack.c.bf16 %v4978, %v4974
        %v5223 = vpack.c.bf16 %v4979, %v4975
        %v5224 = vpack.c.bf16 %v4980, %v4976
        %v5225 = vpack.c.bf16 %v4985, %v4981
        %v5226 = vpack.c.bf16 %v4986, %v4982
        %v5227 = vpack.c.bf16 %v4987, %v4983
        %v5228 = vpack.c.bf16 %v4988, %v4984
        %v5229 = vpack.c.bf16 %v4993, %v4989
        %v5230 = vpack.c.bf16 %v4994, %v4990
        %v5231 = vpack.c.bf16 %v4995, %v4991
        %v5232 = vpack.c.bf16 %v4996, %v4992
        %v5233 = vpack.c.bf16 %v5001, %v4997
        %v5234 = vpack.c.bf16 %v5002, %v4998
        %v5235 = vpack.c.bf16 %v5003, %v4999
        %v5236 = vpack.c.bf16 %v5004, %v5000
        %v5237 = vpack.c.bf16 %v5009, %v5005
        %v5238 = vpack.c.bf16 %v5010, %v5006
        %v5239 = vpack.c.bf16 %v5011, %v5007
        %v5240 = vpack.c.bf16 %v5012, %v5008
        %v5241 = vpack.c.bf16 %v5017, %v5013
        %v5242 = vpack.c.bf16 %v5018, %v5014
        %v5243 = vpack.c.bf16 %v5019, %v5015
        %v5244 = vpack.c.bf16 %v5020, %v5016
        %v5245 = vpack.c.bf16 %v5025, %v5021
        %v5246 = vpack.c.bf16 %v5026, %v5022
        %v5247 = vpack.c.bf16 %v5027, %v5023
        %v5248 = vpack.c.bf16 %v5028, %v5024
        %v5249 = vpack.c.bf16 %v5033, %v5029
        %v5250 = vpack.c.bf16 %v5034, %v5030
        %v5251 = vpack.c.bf16 %v5035, %v5031
        %v5252 = vpack.c.bf16 %v5036, %v5032
        %v5253 = vpack.c.bf16 %v5041, %v5037
        %v5254 = vpack.c.bf16 %v5042, %v5038
        %v5255 = vpack.c.bf16 %v5043, %v5039
        %v5256 = vpack.c.bf16 %v5044, %v5040
        %v5257 = vpack.c.bf16 %v5049, %v5045
        %v5258 = vpack.c.bf16 %v5050, %v5046
        %v5259 = vpack.c.bf16 %v5051, %v5047
        %v5260 = vpack.c.bf16 %v5052, %v5048
        %v5261 = vpack.c.bf16 %v5057, %v5053
        %v5262 = vpack.c.bf16 %v5058, %v5054
        %v5263 = vpack.c.bf16 %v5059, %v5055
        %v5264 = vpack.c.bf16 %v5060, %v5056
        %v5265 = vpack.c.bf16 %v5065, %v5061
        %v5266 = vpack.c.bf16 %v5066, %v5062
        %v5267 = vpack.c.bf16 %v5067, %v5063
        %v5268 = vpack.c.bf16 %v5068, %v5064
        %v5269 = vpack.c.bf16 %v5073, %v5069
        %v5270 = vpack.c.bf16 %v5074, %v5070
        %v5271 = vpack.c.bf16 %v5075, %v5071
        %v5272 = vpack.c.bf16 %v5076, %v5072
        %v5273 = vpack.c.bf16 %v5081, %v5077
        %v5274 = vpack.c.bf16 %v5082, %v5078
        %v5275 = vpack.c.bf16 %v5083, %v5079
        %v5276 = vpack.c.bf16 %v5084, %v5080
        %v5277 = vpack.c.bf16 %v5089, %v5085
        %v5278 = vpack.c.bf16 %v5090, %v5086
        %v5279 = vpack.c.bf16 %v5091, %v5087
        %v5280 = vpack.c.bf16 %v5092, %v5088
        %v5281 = vpack.c.bf16 %v5097, %v5093
        %v5282 = vpack.c.bf16 %v5098, %v5094
        %v5283 = vpack.c.bf16 %v5099, %v5095
        %v5284 = vpack.c.bf16 %v5100, %v5096
        %v5285 = vpack.c.bf16 %v5105, %v5101
        %v5286 = vpack.c.bf16 %v5106, %v5102
        %v5287 = vpack.c.bf16 %v5107, %v5103
        %v5288 = vpack.c.bf16 %v5108, %v5104
        %v5289 = vpack.c.bf16 %v5113, %v5109
        %v5290 = vpack.c.bf16 %v5114, %v5110
        %v5291 = vpack.c.bf16 %v5115, %v5111
        %v5292 = vpack.c.bf16 %v5116, %v5112
        %v5293 = vpack.c.bf16 %v5121, %v5117
        %v5294 = vpack.c.bf16 %v5122, %v5118
        %v5295 = vpack.c.bf16 %v5123, %v5119
        %v5296 = vpack.c.bf16 %v5124, %v5120
        %v5297 = vpack.c.bf16 %v5129, %v5125
        %v5298 = vpack.c.bf16 %v5130, %v5126
        %v5299 = vpack.c.bf16 %v5131, %v5127
        %v5300 = vpack.c.bf16 %v5132, %v5128
        %v5301 = vpack.c.bf16 %v5137, %v5133
        %v5302 = vpack.c.bf16 %v5138, %v5134
        %v5303 = vpack.c.bf16 %v5139, %v5135
        %v5304 = vpack.c.bf16 %v5140, %v5136
        %v5305 = vpack.c.bf16 %v5145, %v5141
        %v5306 = vpack.c.bf16 %v5146, %v5142
        %v5307 = vpack.c.bf16 %v5147, %v5143
        %v5308 = vpack.c.bf16 %v5148, %v5144
        %v5309 = vpack.c.bf16 %v5153, %v5149
        %v5310 = vpack.c.bf16 %v5154, %v5150
        %v5311 = vpack.c.bf16 %v5155, %v5151
        %v5312 = vpack.c.bf16 %v5156, %v5152
        %v5313 = vpack.c.bf16 %v5161, %v5157
        %v5314 = vpack.c.bf16 %v5162, %v5158
        %v5315 = vpack.c.bf16 %v5163, %v5159
        %v5316 = vpack.c.bf16 %v5164, %v5160
        %v5317 = vpack.c.bf16 %v5169, %v5165
        %v5318 = vpack.c.bf16 %v5170, %v5166
        %v5319 = vpack.c.bf16 %v5171, %v5167
        %v5320 = vpack.c.bf16 %v5172, %v5168
        %v5321 = vpack.c.bf16 %v5177, %v5173
        %v5322 = vpack.c.bf16 %v5178, %v5174
        %v5323 = vpack.c.bf16 %v5179, %v5175
        %v5324 = vpack.c.bf16 %v5180, %v5176
        %v5325 = vpack.c.bf16 %v5185, %v5181
        %v5326 = vpack.c.bf16 %v5186, %v5182
        %v5327 = vpack.c.bf16 %v5187, %v5183
        %v5328 = vpack.c.bf16 %v5188, %v5184
        %v5329 = vpack.c.bf16 %v5193, %v5189
        %v5330 = vpack.c.bf16 %v5194, %v5190
        %v5331 = vpack.c.bf16 %v5195, %v5191
        %v5332 = vpack.c.bf16 %v5196, %v5192
        %v5333 = vpack.c.bf16 %v5201, %v5197
        %v5334 = vpack.c.bf16 %v5202, %v5198
        %v5335 = vpack.c.bf16 %v5203, %v5199
        %v5336 = vpack.c.bf16 %v5204, %v5200
        %v5337 = vpack.c.bf16 %v5209, %v5205
        %v5338 = vpack.c.bf16 %v5210, %v5206
        %v5339 = vpack.c.bf16 %v5211, %v5207
        %v5340 = vpack.c.bf16 %v5212, %v5208
        %5341 = vmatpush.bf16.msra.mxu0 %v1767
        %5342 = vmatpush.bf16.msra.mxu0 %v1766
        %5343 = vmatpush.bf16.msra.mxu0 %v1765
        %5344 = vmatpush.bf16.msra.mxu0 %v1764
        %5345 = vmatpush.bf16.msra.mxu0 %v1763
        %5346 = vmatpush.bf16.msra.mxu0 %v1762
        %5347 = vmatpush.bf16.msra.mxu0 %v1761
        %5348 = vmatpush.bf16.msra.mxu0 %v1760
        %5349 = vmatmul.bf16.gmra.mxu0 %v5213
        %v5350 = vpop.f32.mrf.mxu0
        %v5351 = vadd.f32 0.0, %v5350
        %v5352 = vpop.f32.mrf.mxu0
        %v5353 = vadd.f32 0.0, %v5352
        %5354 = vmatmul.bf16.gmra.mxu0 %v5217
        %v5355 = vpop.f32.mrf.mxu0
        %v5356 = vadd.f32 0.0, %v5355
        %v5357 = vpop.f32.mrf.mxu0
        %v5358 = vadd.f32 0.0, %v5357
        %5359 = vmatmul.bf16.gmra.mxu0 %v5221
        %v5360 = vpop.f32.mrf.mxu0
        %v5361 = vadd.f32 0.0, %v5360
        %v5362 = vpop.f32.mrf.mxu0
        %v5363 = vadd.f32 0.0, %v5362
        %5364 = vmatmul.bf16.gmra.mxu0 %v5225
        %v5365 = vpop.f32.mrf.mxu0
        %v5366 = vadd.f32 0.0, %v5365
        %v5367 = vpop.f32.mrf.mxu0
        %v5368 = vadd.f32 0.0, %v5367
        %5369 = vmatmul.bf16.gmra.mxu0 %v5229
        %v5370 = vpop.f32.mrf.mxu0
        %v5371 = vadd.f32 0.0, %v5370
        %v5372 = vpop.f32.mrf.mxu0
        %v5373 = vadd.f32 0.0, %v5372
        %5374 = vmatmul.bf16.gmra.mxu0 %v5233
        %v5375 = vpop.f32.mrf.mxu0
        %v5376 = vadd.f32 0.0, %v5375
        %v5377 = vpop.f32.mrf.mxu0
        %v5378 = vadd.f32 0.0, %v5377
        %5379 = vmatmul.bf16.gmra.mxu0 %v5237
        %v5380 = vpop.f32.mrf.mxu0
        %v5381 = vadd.f32 0.0, %v5380
        %v5382 = vpop.f32.mrf.mxu0
        %v5383 = vadd.f32 0.0, %v5382
        %5384 = vmatmul.bf16.gmra.mxu0 %v5241
        %v5385 = vpop.f32.mrf.mxu0
        %v5386 = vadd.f32 0.0, %v5385
        %v5387 = vpop.f32.mrf.mxu0
        %v5388 = vadd.f32 0.0, %v5387
        %5389 = vmatmul.bf16.gmra.mxu0 %v5245
        %v5390 = vpop.f32.mrf.mxu0
        %v5391 = vadd.f32 0.0, %v5390
        %v5392 = vpop.f32.mrf.mxu0
        %v5393 = vadd.f32 0.0, %v5392
        %5394 = vmatmul.bf16.gmra.mxu0 %v5249
        %v5395 = vpop.f32.mrf.mxu0
        %v5396 = vadd.f32 0.0, %v5395
        %v5397 = vpop.f32.mrf.mxu0
        %v5398 = vadd.f32 0.0, %v5397
        %5399 = vmatmul.bf16.gmra.mxu0 %v5253
        %v5400 = vpop.f32.mrf.mxu0
        %v5401 = vadd.f32 0.0, %v5400
        %v5402 = vpop.f32.mrf.mxu0
        %v5403 = vadd.f32 0.0, %v5402
        %5404 = vmatmul.bf16.gmra.mxu0 %v5257
        %v5405 = vpop.f32.mrf.mxu0
        %v5406 = vadd.f32 0.0, %v5405
        %v5407 = vpop.f32.mrf.mxu0
        %v5408 = vadd.f32 0.0, %v5407
        %5409 = vmatmul.bf16.gmra.mxu0 %v5261
        %v5410 = vpop.f32.mrf.mxu0
        %v5411 = vadd.f32 0.0, %v5410
        %v5412 = vpop.f32.mrf.mxu0
        %v5413 = vadd.f32 0.0, %v5412
        %5414 = vmatmul.bf16.gmra.mxu0 %v5265
        %v5415 = vpop.f32.mrf.mxu0
        %v5416 = vadd.f32 0.0, %v5415
        %v5417 = vpop.f32.mrf.mxu0
        %v5418 = vadd.f32 0.0, %v5417
        %5419 = vmatmul.bf16.gmra.mxu0 %v5269
        %v5420 = vpop.f32.mrf.mxu0
        %v5421 = vadd.f32 0.0, %v5420
        %v5422 = vpop.f32.mrf.mxu0
        %v5423 = vadd.f32 0.0, %v5422
        %5424 = vmatmul.bf16.gmra.mxu0 %v5273
        %v5425 = vpop.f32.mrf.mxu0
        %v5426 = vadd.f32 0.0, %v5425
        %v5427 = vpop.f32.mrf.mxu0
        %v5428 = vadd.f32 0.0, %v5427
        %5429 = vmatmul.bf16.gmra.mxu0 %v5277
        %v5430 = vpop.f32.mrf.mxu0
        %v5431 = vadd.f32 0.0, %v5430
        %v5432 = vpop.f32.mrf.mxu0
        %v5433 = vadd.f32 0.0, %v5432
        %5434 = vmatmul.bf16.gmra.mxu0 %v5281
        %v5435 = vpop.f32.mrf.mxu0
        %v5436 = vadd.f32 0.0, %v5435
        %v5437 = vpop.f32.mrf.mxu0
        %v5438 = vadd.f32 0.0, %v5437
        %5439 = vmatmul.bf16.gmra.mxu0 %v5285
        %v5440 = vpop.f32.mrf.mxu0
        %v5441 = vadd.f32 0.0, %v5440
        %v5442 = vpop.f32.mrf.mxu0
        %v5443 = vadd.f32 0.0, %v5442
        %5444 = vmatmul.bf16.gmra.mxu0 %v5289
        %v5445 = vpop.f32.mrf.mxu0
        %v5446 = vadd.f32 0.0, %v5445
        %v5447 = vpop.f32.mrf.mxu0
        %v5448 = vadd.f32 0.0, %v5447
        %5449 = vmatmul.bf16.gmra.mxu0 %v5293
        %v5450 = vpop.f32.mrf.mxu0
        %v5451 = vadd.f32 0.0, %v5450
        %v5452 = vpop.f32.mrf.mxu0
        %v5453 = vadd.f32 0.0, %v5452
        %5454 = vmatmul.bf16.gmra.mxu0 %v5297
        %v5455 = vpop.f32.mrf.mxu0
        %v5456 = vadd.f32 0.0, %v5455
        %v5457 = vpop.f32.mrf.mxu0
        %v5458 = vadd.f32 0.0, %v5457
        %5459 = vmatmul.bf16.gmra.mxu0 %v5301
        %v5460 = vpop.f32.mrf.mxu0
        %v5461 = vadd.f32 0.0, %v5460
        %v5462 = vpop.f32.mrf.mxu0
        %v5463 = vadd.f32 0.0, %v5462
        %5464 = vmatmul.bf16.gmra.mxu0 %v5305
        %v5465 = vpop.f32.mrf.mxu0
        %v5466 = vadd.f32 0.0, %v5465
        %v5467 = vpop.f32.mrf.mxu0
        %v5468 = vadd.f32 0.0, %v5467
        %5469 = vmatmul.bf16.gmra.mxu0 %v5309
        %v5470 = vpop.f32.mrf.mxu0
        %v5471 = vadd.f32 0.0, %v5470
        %v5472 = vpop.f32.mrf.mxu0
        %v5473 = vadd.f32 0.0, %v5472
        %5474 = vmatmul.bf16.gmra.mxu0 %v5313
        %v5475 = vpop.f32.mrf.mxu0
        %v5476 = vadd.f32 0.0, %v5475
        %v5477 = vpop.f32.mrf.mxu0
        %v5478 = vadd.f32 0.0, %v5477
        %5479 = vmatmul.bf16.gmra.mxu0 %v5317
        %v5480 = vpop.f32.mrf.mxu0
        %v5481 = vadd.f32 0.0, %v5480
        %v5482 = vpop.f32.mrf.mxu0
        %v5483 = vadd.f32 0.0, %v5482
        %5484 = vmatmul.bf16.gmra.mxu0 %v5321
        %v5485 = vpop.f32.mrf.mxu0
        %v5486 = vadd.f32 0.0, %v5485
        %v5487 = vpop.f32.mrf.mxu0
        %v5488 = vadd.f32 0.0, %v5487
        %5489 = vmatmul.bf16.gmra.mxu0 %v5325
        %v5490 = vpop.f32.mrf.mxu0
        %v5491 = vadd.f32 0.0, %v5490
        %v5492 = vpop.f32.mrf.mxu0
        %v5493 = vadd.f32 0.0, %v5492
        %5494 = vmatmul.bf16.gmra.mxu0 %v5329
        %v5495 = vpop.f32.mrf.mxu0
        %v5496 = vadd.f32 0.0, %v5495
        %v5497 = vpop.f32.mrf.mxu0
        %v5498 = vadd.f32 0.0, %v5497
        %5499 = vmatmul.bf16.gmra.mxu0 %v5333
        %v5500 = vpop.f32.mrf.mxu0
        %v5501 = vadd.f32 0.0, %v5500
        %v5502 = vpop.f32.mrf.mxu0
        %v5503 = vadd.f32 0.0, %v5502
        %5504 = vmatmul.bf16.gmra.mxu0 %v5337
        %v5505 = vpop.f32.mrf.mxu0
        %v5506 = vadd.f32 0.0, %v5505
        %v5507 = vpop.f32.mrf.mxu0
        %v5508 = vadd.f32 0.0, %v5507
        %5509 = vdwg.mxu0
        %5510 = vmatpush.bf16.msra.mxu0 %v1791
        %5511 = vmatpush.bf16.msra.mxu0 %v1789
        %5512 = vmatpush.bf16.msra.mxu0 %v1787
        %5513 = vmatpush.bf16.msra.mxu0 %v1785
        %5514 = vmatpush.bf16.msra.mxu0 %v1783
        %5515 = vmatpush.bf16.msra.mxu0 %v1781
        %5516 = vmatpush.bf16.msra.mxu0 %v1779
        %5517 = vmatpush.bf16.msra.mxu0 %v1777
        %5518 = vmatmul.bf16.gmra.mxu0 %v5214
        %v5519 = vpop.f32.mrf.mxu0
        %v5520 = vadd.f32 %v5351, %v5519
        %v5521 = vpop.f32.mrf.mxu0
        %v5522 = vadd.f32 %v5353, %v5521
        %5523 = vmatmul.bf16.gmra.mxu0 %v5218
        %v5524 = vpop.f32.mrf.mxu0
        %v5525 = vadd.f32 %v5356, %v5524
        %v5526 = vpop.f32.mrf.mxu0
        %v5527 = vadd.f32 %v5358, %v5526
        %5528 = vmatmul.bf16.gmra.mxu0 %v5222
        %v5529 = vpop.f32.mrf.mxu0
        %v5530 = vadd.f32 %v5361, %v5529
        %v5531 = vpop.f32.mrf.mxu0
        %v5532 = vadd.f32 %v5363, %v5531
        %5533 = vmatmul.bf16.gmra.mxu0 %v5226
        %v5534 = vpop.f32.mrf.mxu0
        %v5535 = vadd.f32 %v5366, %v5534
        %v5536 = vpop.f32.mrf.mxu0
        %v5537 = vadd.f32 %v5368, %v5536
        %5538 = vmatmul.bf16.gmra.mxu0 %v5230
        %v5539 = vpop.f32.mrf.mxu0
        %v5540 = vadd.f32 %v5371, %v5539
        %v5541 = vpop.f32.mrf.mxu0
        %v5542 = vadd.f32 %v5373, %v5541
        %5543 = vmatmul.bf16.gmra.mxu0 %v5234
        %v5544 = vpop.f32.mrf.mxu0
        %v5545 = vadd.f32 %v5376, %v5544
        %v5546 = vpop.f32.mrf.mxu0
        %v5547 = vadd.f32 %v5378, %v5546
        %5548 = vmatmul.bf16.gmra.mxu0 %v5238
        %v5549 = vpop.f32.mrf.mxu0
        %v5550 = vadd.f32 %v5381, %v5549
        %v5551 = vpop.f32.mrf.mxu0
        %v5552 = vadd.f32 %v5383, %v5551
        %5553 = vmatmul.bf16.gmra.mxu0 %v5242
        %v5554 = vpop.f32.mrf.mxu0
        %v5555 = vadd.f32 %v5386, %v5554
        %v5556 = vpop.f32.mrf.mxu0
        %v5557 = vadd.f32 %v5388, %v5556
        %5558 = vmatmul.bf16.gmra.mxu0 %v5246
        %v5559 = vpop.f32.mrf.mxu0
        %v5560 = vadd.f32 %v5391, %v5559
        %v5561 = vpop.f32.mrf.mxu0
        %v5562 = vadd.f32 %v5393, %v5561
        %5563 = vmatmul.bf16.gmra.mxu0 %v5250
        %v5564 = vpop.f32.mrf.mxu0
        %v5565 = vadd.f32 %v5396, %v5564
        %v5566 = vpop.f32.mrf.mxu0
        %v5567 = vadd.f32 %v5398, %v5566
        %5568 = vmatmul.bf16.gmra.mxu0 %v5254
        %v5569 = vpop.f32.mrf.mxu0
        %v5570 = vadd.f32 %v5401, %v5569
        %v5571 = vpop.f32.mrf.mxu0
        %v5572 = vadd.f32 %v5403, %v5571
        %5573 = vmatmul.bf16.gmra.mxu0 %v5258
        %v5574 = vpop.f32.mrf.mxu0
        %v5575 = vadd.f32 %v5406, %v5574
        %v5576 = vpop.f32.mrf.mxu0
        %v5577 = vadd.f32 %v5408, %v5576
        %5578 = vmatmul.bf16.gmra.mxu0 %v5262
        %v5579 = vpop.f32.mrf.mxu0
        %v5580 = vadd.f32 %v5411, %v5579
        %v5581 = vpop.f32.mrf.mxu0
        %v5582 = vadd.f32 %v5413, %v5581
        %5583 = vmatmul.bf16.gmra.mxu0 %v5266
        %v5584 = vpop.f32.mrf.mxu0
        %v5585 = vadd.f32 %v5416, %v5584
        %v5586 = vpop.f32.mrf.mxu0
        %v5587 = vadd.f32 %v5418, %v5586
        %5588 = vmatmul.bf16.gmra.mxu0 %v5270
        %v5589 = vpop.f32.mrf.mxu0
        %v5590 = vadd.f32 %v5421, %v5589
        %v5591 = vpop.f32.mrf.mxu0
        %v5592 = vadd.f32 %v5423, %v5591
        %5593 = vmatmul.bf16.gmra.mxu0 %v5274
        %v5594 = vpop.f32.mrf.mxu0
        %v5595 = vadd.f32 %v5426, %v5594
        %v5596 = vpop.f32.mrf.mxu0
        %v5597 = vadd.f32 %v5428, %v5596
        %5598 = vmatmul.bf16.gmra.mxu0 %v5278
        %v5599 = vpop.f32.mrf.mxu0
        %v5600 = vadd.f32 %v5431, %v5599
        %v5601 = vpop.f32.mrf.mxu0
        %v5602 = vadd.f32 %v5433, %v5601
        %5603 = vmatmul.bf16.gmra.mxu0 %v5282
        %v5604 = vpop.f32.mrf.mxu0
        %v5605 = vadd.f32 %v5436, %v5604
        %v5606 = vpop.f32.mrf.mxu0
        %v5607 = vadd.f32 %v5438, %v5606
        %5608 = vmatmul.bf16.gmra.mxu0 %v5286
        %v5609 = vpop.f32.mrf.mxu0
        %v5610 = vadd.f32 %v5441, %v5609
        %v5611 = vpop.f32.mrf.mxu0
        %v5612 = vadd.f32 %v5443, %v5611
        %5613 = vmatmul.bf16.gmra.mxu0 %v5290
        %v5614 = vpop.f32.mrf.mxu0
        %v5615 = vadd.f32 %v5446, %v5614
        %v5616 = vpop.f32.mrf.mxu0
        %v5617 = vadd.f32 %v5448, %v5616
        %5618 = vmatmul.bf16.gmra.mxu0 %v5294
        %v5619 = vpop.f32.mrf.mxu0
        %v5620 = vadd.f32 %v5451, %v5619
        %v5621 = vpop.f32.mrf.mxu0
        %v5622 = vadd.f32 %v5453, %v5621
        %5623 = vmatmul.bf16.gmra.mxu0 %v5298
        %v5624 = vpop.f32.mrf.mxu0
        %v5625 = vadd.f32 %v5456, %v5624
        %v5626 = vpop.f32.mrf.mxu0
        %v5627 = vadd.f32 %v5458, %v5626
        %5628 = vmatmul.bf16.gmra.mxu0 %v5302
        %v5629 = vpop.f32.mrf.mxu0
        %v5630 = vadd.f32 %v5461, %v5629
        %v5631 = vpop.f32.mrf.mxu0
        %v5632 = vadd.f32 %v5463, %v5631
        %5633 = vmatmul.bf16.gmra.mxu0 %v5306
        %v5634 = vpop.f32.mrf.mxu0
        %v5635 = vadd.f32 %v5466, %v5634
        %v5636 = vpop.f32.mrf.mxu0
        %v5637 = vadd.f32 %v5468, %v5636
        %5638 = vmatmul.bf16.gmra.mxu0 %v5310
        %v5639 = vpop.f32.mrf.mxu0
        %v5640 = vadd.f32 %v5471, %v5639
        %v5641 = vpop.f32.mrf.mxu0
        %v5642 = vadd.f32 %v5473, %v5641
        %5643 = vmatmul.bf16.gmra.mxu0 %v5314
        %v5644 = vpop.f32.mrf.mxu0
        %v5645 = vadd.f32 %v5476, %v5644
        %v5646 = vpop.f32.mrf.mxu0
        %v5647 = vadd.f32 %v5478, %v5646
        %5648 = vmatmul.bf16.gmra.mxu0 %v5318
        %v5649 = vpop.f32.mrf.mxu0
        %v5650 = vadd.f32 %v5481, %v5649
        %v5651 = vpop.f32.mrf.mxu0
        %v5652 = vadd.f32 %v5483, %v5651
        %5653 = vmatmul.bf16.gmra.mxu0 %v5322
        %v5654 = vpop.f32.mrf.mxu0
        %v5655 = vadd.f32 %v5486, %v5654
        %v5656 = vpop.f32.mrf.mxu0
        %v5657 = vadd.f32 %v5488, %v5656
        %5658 = vmatmul.bf16.gmra.mxu0 %v5326
        %v5659 = vpop.f32.mrf.mxu0
        %v5660 = vadd.f32 %v5491, %v5659
        %v5661 = vpop.f32.mrf.mxu0
        %v5662 = vadd.f32 %v5493, %v5661
        %5663 = vmatmul.bf16.gmra.mxu0 %v5330
        %v5664 = vpop.f32.mrf.mxu0
        %v5665 = vadd.f32 %v5496, %v5664
        %v5666 = vpop.f32.mrf.mxu0
        %v5667 = vadd.f32 %v5498, %v5666
        %5668 = vmatmul.bf16.gmra.mxu0 %v5334
        %v5669 = vpop.f32.mrf.mxu0
        %v5670 = vadd.f32 %v5501, %v5669
        %v5671 = vpop.f32.mrf.mxu0
        %v5672 = vadd.f32 %v5503, %v5671
        %5673 = vmatmul.bf16.gmra.mxu0 %v5338
        %v5674 = vpop.f32.mrf.mxu0
        %v5675 = vadd.f32 %v5506, %v5674
        %v5676 = vpop.f32.mrf.mxu0
        %v5677 = vadd.f32 %v5508, %v5676
        %5678 = vdwg.mxu0
        %5679 = vmatpush.bf16.msra.mxu0 %v1815
        %5680 = vmatpush.bf16.msra.mxu0 %v1813
        %5681 = vmatpush.bf16.msra.mxu0 %v1811
        %5682 = vmatpush.bf16.msra.mxu0 %v1809
        %5683 = vmatpush.bf16.msra.mxu0 %v1807
        %5684 = vmatpush.bf16.msra.mxu0 %v1805
        %5685 = vmatpush.bf16.msra.mxu0 %v1803
        %5686 = vmatpush.bf16.msra.mxu0 %v1801
        %5687 = vmatmul.bf16.gmra.mxu0 %v5215
        %v5688 = vpop.f32.mrf.mxu0
        %v5689 = vadd.f32 %v5520, %v5688
        %v5690 = vpop.f32.mrf.mxu0
        %v5691 = vadd.f32 %v5522, %v5690
        %5692 = vmatmul.bf16.gmra.mxu0 %v5219
        %v5693 = vpop.f32.mrf.mxu0
        %v5694 = vadd.f32 %v5525, %v5693
        %v5695 = vpop.f32.mrf.mxu0
        %v5696 = vadd.f32 %v5527, %v5695
        %5697 = vmatmul.bf16.gmra.mxu0 %v5223
        %v5698 = vpop.f32.mrf.mxu0
        %v5699 = vadd.f32 %v5530, %v5698
        %v5700 = vpop.f32.mrf.mxu0
        %v5701 = vadd.f32 %v5532, %v5700
        %5702 = vmatmul.bf16.gmra.mxu0 %v5227
        %v5703 = vpop.f32.mrf.mxu0
        %v5704 = vadd.f32 %v5535, %v5703
        %v5705 = vpop.f32.mrf.mxu0
        %v5706 = vadd.f32 %v5537, %v5705
        %5707 = vmatmul.bf16.gmra.mxu0 %v5231
        %v5708 = vpop.f32.mrf.mxu0
        %v5709 = vadd.f32 %v5540, %v5708
        %v5710 = vpop.f32.mrf.mxu0
        %v5711 = vadd.f32 %v5542, %v5710
        %5712 = vmatmul.bf16.gmra.mxu0 %v5235
        %v5713 = vpop.f32.mrf.mxu0
        %v5714 = vadd.f32 %v5545, %v5713
        %v5715 = vpop.f32.mrf.mxu0
        %v5716 = vadd.f32 %v5547, %v5715
        %5717 = vmatmul.bf16.gmra.mxu0 %v5239
        %v5718 = vpop.f32.mrf.mxu0
        %v5719 = vadd.f32 %v5550, %v5718
        %v5720 = vpop.f32.mrf.mxu0
        %v5721 = vadd.f32 %v5552, %v5720
        %5722 = vmatmul.bf16.gmra.mxu0 %v5243
        %v5723 = vpop.f32.mrf.mxu0
        %v5724 = vadd.f32 %v5555, %v5723
        %v5725 = vpop.f32.mrf.mxu0
        %v5726 = vadd.f32 %v5557, %v5725
        %5727 = vmatmul.bf16.gmra.mxu0 %v5247
        %v5728 = vpop.f32.mrf.mxu0
        %v5729 = vadd.f32 %v5560, %v5728
        %v5730 = vpop.f32.mrf.mxu0
        %v5731 = vadd.f32 %v5562, %v5730
        %5732 = vmatmul.bf16.gmra.mxu0 %v5251
        %v5733 = vpop.f32.mrf.mxu0
        %v5734 = vadd.f32 %v5565, %v5733
        %v5735 = vpop.f32.mrf.mxu0
        %v5736 = vadd.f32 %v5567, %v5735
        %5737 = vmatmul.bf16.gmra.mxu0 %v5255
        %v5738 = vpop.f32.mrf.mxu0
        %v5739 = vadd.f32 %v5570, %v5738
        %v5740 = vpop.f32.mrf.mxu0
        %v5741 = vadd.f32 %v5572, %v5740
        %5742 = vmatmul.bf16.gmra.mxu0 %v5259
        %v5743 = vpop.f32.mrf.mxu0
        %v5744 = vadd.f32 %v5575, %v5743
        %v5745 = vpop.f32.mrf.mxu0
        %v5746 = vadd.f32 %v5577, %v5745
        %5747 = vmatmul.bf16.gmra.mxu0 %v5263
        %v5748 = vpop.f32.mrf.mxu0
        %v5749 = vadd.f32 %v5580, %v5748
        %v5750 = vpop.f32.mrf.mxu0
        %v5751 = vadd.f32 %v5582, %v5750
        %5752 = vmatmul.bf16.gmra.mxu0 %v5267
        %v5753 = vpop.f32.mrf.mxu0
        %v5754 = vadd.f32 %v5585, %v5753
        %v5755 = vpop.f32.mrf.mxu0
        %v5756 = vadd.f32 %v5587, %v5755
        %5757 = vmatmul.bf16.gmra.mxu0 %v5271
        %v5758 = vpop.f32.mrf.mxu0
        %v5759 = vadd.f32 %v5590, %v5758
        %v5760 = vpop.f32.mrf.mxu0
        %v5761 = vadd.f32 %v5592, %v5760
        %5762 = vmatmul.bf16.gmra.mxu0 %v5275
        %v5763 = vpop.f32.mrf.mxu0
        %v5764 = vadd.f32 %v5595, %v5763
        %v5765 = vpop.f32.mrf.mxu0
        %v5766 = vadd.f32 %v5597, %v5765
        %5767 = vmatmul.bf16.gmra.mxu0 %v5279
        %v5768 = vpop.f32.mrf.mxu0
        %v5769 = vadd.f32 %v5600, %v5768
        %v5770 = vpop.f32.mrf.mxu0
        %v5771 = vadd.f32 %v5602, %v5770
        %5772 = vmatmul.bf16.gmra.mxu0 %v5283
        %v5773 = vpop.f32.mrf.mxu0
        %v5774 = vadd.f32 %v5605, %v5773
        %v5775 = vpop.f32.mrf.mxu0
        %v5776 = vadd.f32 %v5607, %v5775
        %5777 = vmatmul.bf16.gmra.mxu0 %v5287
        %v5778 = vpop.f32.mrf.mxu0
        %v5779 = vadd.f32 %v5610, %v5778
        %v5780 = vpop.f32.mrf.mxu0
        %v5781 = vadd.f32 %v5612, %v5780
        %5782 = vmatmul.bf16.gmra.mxu0 %v5291
        %v5783 = vpop.f32.mrf.mxu0
        %v5784 = vadd.f32 %v5615, %v5783
        %v5785 = vpop.f32.mrf.mxu0
        %v5786 = vadd.f32 %v5617, %v5785
        %5787 = vmatmul.bf16.gmra.mxu0 %v5295
        %v5788 = vpop.f32.mrf.mxu0
        %v5789 = vadd.f32 %v5620, %v5788
        %v5790 = vpop.f32.mrf.mxu0
        %v5791 = vadd.f32 %v5622, %v5790
        %5792 = vmatmul.bf16.gmra.mxu0 %v5299
        %v5793 = vpop.f32.mrf.mxu0
        %v5794 = vadd.f32 %v5625, %v5793
        %v5795 = vpop.f32.mrf.mxu0
        %v5796 = vadd.f32 %v5627, %v5795
        %5797 = vmatmul.bf16.gmra.mxu0 %v5303
        %v5798 = vpop.f32.mrf.mxu0
        %v5799 = vadd.f32 %v5630, %v5798
        %v5800 = vpop.f32.mrf.mxu0
        %v5801 = vadd.f32 %v5632, %v5800
        %5802 = vmatmul.bf16.gmra.mxu0 %v5307
        %v5803 = vpop.f32.mrf.mxu0
        %v5804 = vadd.f32 %v5635, %v5803
        %v5805 = vpop.f32.mrf.mxu0
        %v5806 = vadd.f32 %v5637, %v5805
        %5807 = vmatmul.bf16.gmra.mxu0 %v5311
        %v5808 = vpop.f32.mrf.mxu0
        %v5809 = vadd.f32 %v5640, %v5808
        %v5810 = vpop.f32.mrf.mxu0
        %v5811 = vadd.f32 %v5642, %v5810
        %5812 = vmatmul.bf16.gmra.mxu0 %v5315
        %v5813 = vpop.f32.mrf.mxu0
        %v5814 = vadd.f32 %v5645, %v5813
        %v5815 = vpop.f32.mrf.mxu0
        %v5816 = vadd.f32 %v5647, %v5815
        %5817 = vmatmul.bf16.gmra.mxu0 %v5319
        %v5818 = vpop.f32.mrf.mxu0
        %v5819 = vadd.f32 %v5650, %v5818
        %v5820 = vpop.f32.mrf.mxu0
        %v5821 = vadd.f32 %v5652, %v5820
        %5822 = vmatmul.bf16.gmra.mxu0 %v5323
        %v5823 = vpop.f32.mrf.mxu0
        %v5824 = vadd.f32 %v5655, %v5823
        %v5825 = vpop.f32.mrf.mxu0
        %v5826 = vadd.f32 %v5657, %v5825
        %5827 = vmatmul.bf16.gmra.mxu0 %v5327
        %v5828 = vpop.f32.mrf.mxu0
        %v5829 = vadd.f32 %v5660, %v5828
        %v5830 = vpop.f32.mrf.mxu0
        %v5831 = vadd.f32 %v5662, %v5830
        %5832 = vmatmul.bf16.gmra.mxu0 %v5331
        %v5833 = vpop.f32.mrf.mxu0
        %v5834 = vadd.f32 %v5665, %v5833
        %v5835 = vpop.f32.mrf.mxu0
        %v5836 = vadd.f32 %v5667, %v5835
        %5837 = vmatmul.bf16.gmra.mxu0 %v5335
        %v5838 = vpop.f32.mrf.mxu0
        %v5839 = vadd.f32 %v5670, %v5838
        %v5840 = vpop.f32.mrf.mxu0
        %v5841 = vadd.f32 %v5672, %v5840
        %5842 = vmatmul.bf16.gmra.mxu0 %v5339
        %v5843 = vpop.f32.mrf.mxu0
        %v5844 = vadd.f32 %v5675, %v5843
        %v5845 = vpop.f32.mrf.mxu0
        %v5846 = vadd.f32 %v5677, %v5845
        %5847 = vdwg.mxu0
        %5848 = vmatpush.bf16.msra.mxu0 %v1839
        %5849 = vmatpush.bf16.msra.mxu0 %v1837
        %5850 = vmatpush.bf16.msra.mxu0 %v1835
        %5851 = vmatpush.bf16.msra.mxu0 %v1833
        %5852 = vmatpush.bf16.msra.mxu0 %v1831
        %5853 = vmatpush.bf16.msra.mxu0 %v1829
        %5854 = vmatpush.bf16.msra.mxu0 %v1827
        %5855 = vmatpush.bf16.msra.mxu0 %v1825
        %5856 = vmatmul.bf16.gmra.mxu0 %v5216
        %v5857 = vpop.f32.mrf.mxu0
        %v5858 = vadd.f32 %v5689, %v5857
        %v5859 = vpop.f32.mrf.mxu0
        %v5860 = vadd.f32 %v5691, %v5859
        %5861 = vmatmul.bf16.gmra.mxu0 %v5220
        %v5862 = vpop.f32.mrf.mxu0
        %v5863 = vadd.f32 %v5694, %v5862
        %v5864 = vpop.f32.mrf.mxu0
        %v5865 = vadd.f32 %v5696, %v5864
        %5866 = vmatmul.bf16.gmra.mxu0 %v5224
        %v5867 = vpop.f32.mrf.mxu0
        %v5868 = vadd.f32 %v5699, %v5867
        %v5869 = vpop.f32.mrf.mxu0
        %v5870 = vadd.f32 %v5701, %v5869
        %5871 = vmatmul.bf16.gmra.mxu0 %v5228
        %v5872 = vpop.f32.mrf.mxu0
        %v5873 = vadd.f32 %v5704, %v5872
        %v5874 = vpop.f32.mrf.mxu0
        %v5875 = vadd.f32 %v5706, %v5874
        %5876 = vmatmul.bf16.gmra.mxu0 %v5232
        %v5877 = vpop.f32.mrf.mxu0
        %v5878 = vadd.f32 %v5709, %v5877
        %v5879 = vpop.f32.mrf.mxu0
        %v5880 = vadd.f32 %v5711, %v5879
        %5881 = vmatmul.bf16.gmra.mxu0 %v5236
        %v5882 = vpop.f32.mrf.mxu0
        %v5883 = vadd.f32 %v5714, %v5882
        %v5884 = vpop.f32.mrf.mxu0
        %v5885 = vadd.f32 %v5716, %v5884
        %5886 = vmatmul.bf16.gmra.mxu0 %v5240
        %v5887 = vpop.f32.mrf.mxu0
        %v5888 = vadd.f32 %v5719, %v5887
        %v5889 = vpop.f32.mrf.mxu0
        %v5890 = vadd.f32 %v5721, %v5889
        %5891 = vmatmul.bf16.gmra.mxu0 %v5244
        %v5892 = vpop.f32.mrf.mxu0
        %v5893 = vadd.f32 %v5724, %v5892
        %v5894 = vpop.f32.mrf.mxu0
        %v5895 = vadd.f32 %v5726, %v5894
        %5896 = vmatmul.bf16.gmra.mxu0 %v5248
        %v5897 = vpop.f32.mrf.mxu0
        %v5898 = vadd.f32 %v5729, %v5897
        %v5899 = vpop.f32.mrf.mxu0
        %v5900 = vadd.f32 %v5731, %v5899
        %5901 = vmatmul.bf16.gmra.mxu0 %v5252
        %v5902 = vpop.f32.mrf.mxu0
        %v5903 = vadd.f32 %v5734, %v5902
        %v5904 = vpop.f32.mrf.mxu0
        %v5905 = vadd.f32 %v5736, %v5904
        %5906 = vmatmul.bf16.gmra.mxu0 %v5256
        %v5907 = vpop.f32.mrf.mxu0
        %v5908 = vadd.f32 %v5739, %v5907
        %v5909 = vpop.f32.mrf.mxu0
        %v5910 = vadd.f32 %v5741, %v5909
        %5911 = vmatmul.bf16.gmra.mxu0 %v5260
        %v5912 = vpop.f32.mrf.mxu0
        %v5913 = vadd.f32 %v5744, %v5912
        %v5914 = vpop.f32.mrf.mxu0
        %v5915 = vadd.f32 %v5746, %v5914
        %5916 = vmatmul.bf16.gmra.mxu0 %v5264
        %v5917 = vpop.f32.mrf.mxu0
        %v5918 = vadd.f32 %v5749, %v5917
        %v5919 = vpop.f32.mrf.mxu0
        %v5920 = vadd.f32 %v5751, %v5919
        %5921 = vmatmul.bf16.gmra.mxu0 %v5268
        %v5922 = vpop.f32.mrf.mxu0
        %v5923 = vadd.f32 %v5754, %v5922
        %v5924 = vpop.f32.mrf.mxu0
        %v5925 = vadd.f32 %v5756, %v5924
        %5926 = vmatmul.bf16.gmra.mxu0 %v5272
        %v5927 = vpop.f32.mrf.mxu0
        %v5928 = vadd.f32 %v5759, %v5927
        %v5929 = vpop.f32.mrf.mxu0
        %v5930 = vadd.f32 %v5761, %v5929
        %5931 = vmatmul.bf16.gmra.mxu0 %v5276
        %v5932 = vpop.f32.mrf.mxu0
        %v5933 = vadd.f32 %v5764, %v5932
        %v5934 = vpop.f32.mrf.mxu0
        %v5935 = vadd.f32 %v5766, %v5934
        %5936 = vmatmul.bf16.gmra.mxu0 %v5280
        %v5937 = vpop.f32.mrf.mxu0
        %v5938 = vadd.f32 %v5769, %v5937
        %v5939 = vpop.f32.mrf.mxu0
        %v5940 = vadd.f32 %v5771, %v5939
        %5941 = vmatmul.bf16.gmra.mxu0 %v5284
        %v5942 = vpop.f32.mrf.mxu0
        %v5943 = vadd.f32 %v5774, %v5942
        %v5944 = vpop.f32.mrf.mxu0
        %v5945 = vadd.f32 %v5776, %v5944
        %5946 = vmatmul.bf16.gmra.mxu0 %v5288
        %v5947 = vpop.f32.mrf.mxu0
        %v5948 = vadd.f32 %v5779, %v5947
        %v5949 = vpop.f32.mrf.mxu0
        %v5950 = vadd.f32 %v5781, %v5949
        %5951 = vmatmul.bf16.gmra.mxu0 %v5292
        %v5952 = vpop.f32.mrf.mxu0
        %v5953 = vadd.f32 %v5784, %v5952
        %v5954 = vpop.f32.mrf.mxu0
        %v5955 = vadd.f32 %v5786, %v5954
        %5956 = vmatmul.bf16.gmra.mxu0 %v5296
        %v5957 = vpop.f32.mrf.mxu0
        %v5958 = vadd.f32 %v5789, %v5957
        %v5959 = vpop.f32.mrf.mxu0
        %v5960 = vadd.f32 %v5791, %v5959
        %5961 = vmatmul.bf16.gmra.mxu0 %v5300
        %v5962 = vpop.f32.mrf.mxu0
        %v5963 = vadd.f32 %v5794, %v5962
        %v5964 = vpop.f32.mrf.mxu0
        %v5965 = vadd.f32 %v5796, %v5964
        %5966 = vmatmul.bf16.gmra.mxu0 %v5304
        %v5967 = vpop.f32.mrf.mxu0
        %v5968 = vadd.f32 %v5799, %v5967
        %v5969 = vpop.f32.mrf.mxu0
        %v5970 = vadd.f32 %v5801, %v5969
        %5971 = vmatmul.bf16.gmra.mxu0 %v5308
        %v5972 = vpop.f32.mrf.mxu0
        %v5973 = vadd.f32 %v5804, %v5972
        %v5974 = vpop.f32.mrf.mxu0
        %v5975 = vadd.f32 %v5806, %v5974
        %5976 = vmatmul.bf16.gmra.mxu0 %v5312
        %v5977 = vpop.f32.mrf.mxu0
        %v5978 = vadd.f32 %v5809, %v5977
        %v5979 = vpop.f32.mrf.mxu0
        %v5980 = vadd.f32 %v5811, %v5979
        %5981 = vmatmul.bf16.gmra.mxu0 %v5316
        %v5982 = vpop.f32.mrf.mxu0
        %v5983 = vadd.f32 %v5814, %v5982
        %v5984 = vpop.f32.mrf.mxu0
        %v5985 = vadd.f32 %v5816, %v5984
        %5986 = vmatmul.bf16.gmra.mxu0 %v5320
        %v5987 = vpop.f32.mrf.mxu0
        %v5988 = vadd.f32 %v5819, %v5987
        %v5989 = vpop.f32.mrf.mxu0
        %v5990 = vadd.f32 %v5821, %v5989
        %5991 = vmatmul.bf16.gmra.mxu0 %v5324
        %v5992 = vpop.f32.mrf.mxu0
        %v5993 = vadd.f32 %v5824, %v5992
        %v5994 = vpop.f32.mrf.mxu0
        %v5995 = vadd.f32 %v5826, %v5994
        %5996 = vmatmul.bf16.gmra.mxu0 %v5328
        %v5997 = vpop.f32.mrf.mxu0
        %v5998 = vadd.f32 %v5829, %v5997
        %v5999 = vpop.f32.mrf.mxu0
        %v6000 = vadd.f32 %v5831, %v5999
        %6001 = vmatmul.bf16.gmra.mxu0 %v5332
        %v6002 = vpop.f32.mrf.mxu0
        %v6003 = vadd.f32 %v5834, %v6002
        %v6004 = vpop.f32.mrf.mxu0
        %v6005 = vadd.f32 %v5836, %v6004
        %6006 = vmatmul.bf16.gmra.mxu0 %v5336
        %v6007 = vpop.f32.mrf.mxu0
        %v6008 = vadd.f32 %v5839, %v6007
        %v6009 = vpop.f32.mrf.mxu0
        %v6010 = vadd.f32 %v5841, %v6009
        %6011 = vmatmul.bf16.gmra.mxu0 %v5340
        %v6012 = vpop.f32.mrf.mxu0
        %v6013 = vadd.f32 %v5844, %v6012
        %v6014 = vpop.f32.mrf.mxu0
        %v6015 = vadd.f32 %v5846, %v6014
        %6016 = vdwg.mxu0
        %6033 = vrot.lane.b32.xlu0 %v5898, 32
        %v6034 = vpop.permute.xlu0 %6033
        %6035 = vrot.lane.b32.xlu0 %v5900, 32
        %v6036 = vpop.permute.xlu0 %6035
        %6037 = vrot.lane.b32.xlu0 %v5903, 32
        %v6038 = vpop.permute.xlu0 %6037
        %6039 = vrot.lane.b32.xlu0 %v5905, 32
        %v6040 = vpop.permute.xlu0 %6039
        %6041 = vrot.lane.b32.xlu0 %v5908, 32
        %v6042 = vpop.permute.xlu0 %6041
        %6043 = vrot.lane.b32.xlu0 %v5910, 32
        %v6044 = vpop.permute.xlu0 %6043
        %6045 = vrot.lane.b32.xlu0 %v5913, 32
        %v6046 = vpop.permute.xlu0 %6045
        %6047 = vrot.lane.b32.xlu0 %v5915, 32
        %v6048 = vpop.permute.xlu0 %6047
        %6049 = vrot.lane.b32.xlu0 %v5918, 32
        %v6050 = vpop.permute.xlu0 %6049
        %6051 = vrot.lane.b32.xlu0 %v5920, 32
        %v6052 = vpop.permute.xlu0 %6051
        %6053 = vrot.lane.b32.xlu0 %v5923, 32
        %v6054 = vpop.permute.xlu0 %6053
        %6055 = vrot.lane.b32.xlu0 %v5925, 32
        %v6056 = vpop.permute.xlu0 %6055
        %6057 = vrot.lane.b32.xlu0 %v5928, 32
        %v6058 = vpop.permute.xlu0 %6057
        %6059 = vrot.lane.b32.xlu0 %v5930, 32
        %v6060 = vpop.permute.xlu0 %6059
        %6061 = vrot.lane.b32.xlu0 %v5933, 32
        %v6062 = vpop.permute.xlu0 %6061
        %6063 = vrot.lane.b32.xlu0 %v5935, 32
        %v6064 = vpop.permute.xlu0 %6063
        %6097 = vrot.lane.b32.xlu0 %v5938, 64
        %v6098 = vpop.permute.xlu0 %6097
        %6099 = vrot.lane.b32.xlu0 %v5940, 64
        %v6100 = vpop.permute.xlu0 %6099
        %6101 = vrot.lane.b32.xlu0 %v5943, 64
        %v6102 = vpop.permute.xlu0 %6101
        %6103 = vrot.lane.b32.xlu0 %v5945, 64
        %v6104 = vpop.permute.xlu0 %6103
        %6105 = vrot.lane.b32.xlu0 %v5948, 64
        %v6106 = vpop.permute.xlu0 %6105
        %6107 = vrot.lane.b32.xlu0 %v5950, 64
        %v6108 = vpop.permute.xlu0 %6107
        %6109 = vrot.lane.b32.xlu0 %v5953, 64
        %v6110 = vpop.permute.xlu0 %6109
        %6111 = vrot.lane.b32.xlu0 %v5955, 64
        %v6112 = vpop.permute.xlu0 %6111
        %6113 = vrot.lane.b32.xlu0 %v5958, 64
        %v6114 = vpop.permute.xlu0 %6113
        %6115 = vrot.lane.b32.xlu0 %v5960, 64
        %v6116 = vpop.permute.xlu0 %6115
        %6117 = vrot.lane.b32.xlu0 %v5963, 64
        %v6118 = vpop.permute.xlu0 %6117
        %6119 = vrot.lane.b32.xlu0 %v5965, 64
        %v6120 = vpop.permute.xlu0 %6119
        %6121 = vrot.lane.b32.xlu0 %v5968, 64
        %v6122 = vpop.permute.xlu0 %6121
        %6123 = vrot.lane.b32.xlu0 %v5970, 64
        %v6124 = vpop.permute.xlu0 %6123
        %6125 = vrot.lane.b32.xlu0 %v5973, 64
        %v6126 = vpop.permute.xlu0 %6125
        %6127 = vrot.lane.b32.xlu0 %v5975, 64
        %v6128 = vpop.permute.xlu0 %6127
        %6161 = vrot.lane.b32.xlu0 %v5978, 96
        %v6162 = vpop.permute.xlu0 %6161
        %6163 = vrot.lane.b32.xlu0 %v5980, 96
        %v6164 = vpop.permute.xlu0 %6163
        %6165 = vrot.lane.b32.xlu0 %v5983, 96
        %v6166 = vpop.permute.xlu0 %6165
        %6167 = vrot.lane.b32.xlu0 %v5985, 96
        %v6168 = vpop.permute.xlu0 %6167
        %6169 = vrot.lane.b32.xlu0 %v5988, 96
        %v6170 = vpop.permute.xlu0 %6169
        %6171 = vrot.lane.b32.xlu0 %v5990, 96
        %v6172 = vpop.permute.xlu0 %6171
        %6173 = vrot.lane.b32.xlu0 %v5993, 96
        %v6174 = vpop.permute.xlu0 %6173
        %6175 = vrot.lane.b32.xlu0 %v5995, 96
        %v6176 = vpop.permute.xlu0 %6175
        %6177 = vrot.lane.b32.xlu0 %v5998, 96
        %v6178 = vpop.permute.xlu0 %6177
        %6179 = vrot.lane.b32.xlu0 %v6000, 96
        %v6180 = vpop.permute.xlu0 %6179
        %6181 = vrot.lane.b32.xlu0 %v6003, 96
        %v6182 = vpop.permute.xlu0 %6181
        %6183 = vrot.lane.b32.xlu0 %v6005, 96
        %v6184 = vpop.permute.xlu0 %6183
        %6185 = vrot.lane.b32.xlu0 %v6008, 96
        %v6186 = vpop.permute.xlu0 %6185
        %6187 = vrot.lane.b32.xlu0 %v6010, 96
        %v6188 = vpop.permute.xlu0 %6187
        %6189 = vrot.lane.b32.xlu0 %v6013, 96
        %v6190 = vpop.permute.xlu0 %6189
        %6191 = vrot.lane.b32.xlu0 %v6015, 96
        %v6192 = vpop.permute.xlu0 %6191
        %v6209 = vsel %vm1848, %v5858, %v6034
        %v6210 = vsel %vm1848, %v5860, %v6036
        %v6211 = vsel %vm1848, %v5863, %v6038
        %v6212 = vsel %vm1848, %v5865, %v6040
        %v6213 = vsel %vm1848, %v5868, %v6042
        %v6214 = vsel %vm1848, %v5870, %v6044
        %v6215 = vsel %vm1848, %v5873, %v6046
        %v6216 = vsel %vm1848, %v5875, %v6048
        %v6217 = vsel %vm1848, %v5878, %v6050
        %v6218 = vsel %vm1848, %v5880, %v6052
        %v6219 = vsel %vm1848, %v5883, %v6054
        %v6220 = vsel %vm1848, %v5885, %v6056
        %v6221 = vsel %vm1848, %v5888, %v6058
        %v6222 = vsel %vm1848, %v5890, %v6060
        %v6223 = vsel %vm1848, %v5893, %v6062
        %v6224 = vsel %vm1848, %v5895, %v6064
        %vm6225 = vcmask 523264
        %v6226 = vsel %vm6225, %v6209, %v6098
        %v6227 = vsel %vm6225, %v6210, %v6100
        %v6228 = vsel %vm6225, %v6211, %v6102
        %v6229 = vsel %vm6225, %v6212, %v6104
        %v6230 = vsel %vm6225, %v6213, %v6106
        %v6231 = vsel %vm6225, %v6214, %v6108
        %v6232 = vsel %vm6225, %v6215, %v6110
        %v6233 = vsel %vm6225, %v6216, %v6112
        %v6234 = vsel %vm6225, %v6217, %v6114
        %v6235 = vsel %vm6225, %v6218, %v6116
        %v6236 = vsel %vm6225, %v6219, %v6118
        %v6237 = vsel %vm6225, %v6220, %v6120
        %v6238 = vsel %vm6225, %v6221, %v6122
        %v6239 = vsel %vm6225, %v6222, %v6124
        %v6240 = vsel %vm6225, %v6223, %v6126
        %v6241 = vsel %vm6225, %v6224, %v6128
        %vm6242 = vcmask 785408
        %v6243 = vsel %vm6242, %v6226, %v6162
        %v6244 = vsel %vm6242, %v6227, %v6164
        %v6245 = vsel %vm6242, %v6228, %v6166
        %v6246 = vsel %vm6242, %v6229, %v6168
        %v6247 = vsel %vm6242, %v6230, %v6170
        %v6248 = vsel %vm6242, %v6231, %v6172
        %v6249 = vsel %vm6242, %v6232, %v6174
        %v6250 = vsel %vm6242, %v6233, %v6176
        %v6251 = vsel %vm6242, %v6234, %v6178
        %v6252 = vsel %vm6242, %v6235, %v6180
        %v6253 = vsel %vm6242, %v6236, %v6182
        %v6254 = vsel %vm6242, %v6237, %v6184
        %v6255 = vsel %vm6242, %v6238, %v6186
        %v6256 = vsel %vm6242, %v6239, %v6188
        %v6257 = vsel %vm6242, %v6240, %v6190
        %v6258 = vsel %vm6242, %v6241, %v6192
        %v6259 = vpack.c.bf16 %v6244, %v6243
        %v6260 = vpack.c.bf16 %v6246, %v6245
        %v6261 = vpack.c.bf16 %v6248, %v6247
        %v6262 = vpack.c.bf16 %v6250, %v6249
        %v6263 = vpack.c.bf16 %v6252, %v6251
        %v6264 = vpack.c.bf16 %v6254, %v6253
        %v6265 = vpack.c.bf16 %v6256, %v6255
        %v6266 = vpack.c.bf16 %v6258, %v6257
        %v6267 = vld [vmem:[%s761] sm:$0xf]
        %v6268 = vld [vmem:[%s761 + $0x4] sm:$0xf]
        %v6269 = vld [vmem:[%s761 + $0x8] sm:$0xf]
        %v6270 = vld [vmem:[%s761 + $0xc] sm:$0xf]
        %v6271 = vld [vmem:[%s761 + $0x10] sm:$0xf]
        %v6272 = vld [vmem:[%s761 + $0x14] sm:$0xf]
        %v6273 = vld [vmem:[%s761 + $0x18] sm:$0xf]
        %v6274 = vld [vmem:[%s761 + $0x1c] sm:$0xf]
        %v6275 = vld [vmem:[%s761 + $0x20] sm:$0xf]
        %v6276 = vld [vmem:[%s761 + $0x24] sm:$0xf]
        %v6277 = vld [vmem:[%s761 + $0x28] sm:$0xf]
        %v6278 = vld [vmem:[%s761 + $0x2c] sm:$0xf]
        %v6279 = vld [vmem:[%s761 + $0x30] sm:$0xf]
        %v6280 = vld [vmem:[%s761 + $0x34] sm:$0xf]
        %v6281 = vld [vmem:[%s761 + $0x38] sm:$0xf]
        %v6282 = vld [vmem:[%s761 + $0x3c] sm:$0xf]
        %v6283 = vld [vmem:[%s764] sm:$0x1]
        %v6285 = vperm.slane %v6283, 0
        %v6303 = vunpack.c.l.b16 %v6267
        %v6304 = vunpack.c.l.b16 %v6268
        %v6305 = vunpack.c.l.b16 %v6269
        %v6306 = vunpack.c.l.b16 %v6270
        %v6307 = vunpack.c.l.b16 %v6271
        %v6308 = vunpack.c.l.b16 %v6272
        %v6309 = vunpack.c.l.b16 %v6273
        %v6310 = vunpack.c.l.b16 %v6274
        %v6311 = vunpack.c.l.b16 %v6275
        %v6312 = vunpack.c.l.b16 %v6276
        %v6313 = vunpack.c.l.b16 %v6277
        %v6314 = vunpack.c.l.b16 %v6278
        %v6315 = vunpack.c.l.b16 %v6279
        %v6316 = vunpack.c.l.b16 %v6280
        %v6317 = vunpack.c.l.b16 %v6281
        %v6318 = vunpack.c.l.b16 %v6282
        %v6319 = vpack.c.b16 %v6304, %v6303
        %v6320 = vpack.c.b16 %v6306, %v6305
        %v6321 = vpack.c.b16 %v6308, %v6307
        %v6322 = vpack.c.b16 %v6310, %v6309
        %v6323 = vpack.c.b16 %v6312, %v6311
        %v6324 = vpack.c.b16 %v6314, %v6313
        %v6325 = vpack.c.b16 %v6316, %v6315
        %v6326 = vpack.c.b16 %v6318, %v6317
        %6335 = vmatpush.bf16.msra.mxu0 %v6326
        %6336 = vmatpush.bf16.msra.mxu0 %v6325
        %6337 = vmatpush.bf16.msra.mxu0 %v6324
        %6338 = vmatpush.bf16.msra.mxu0 %v6323
        %6339 = vmatpush.bf16.msra.mxu0 %v6322
        %6340 = vmatpush.bf16.msra.mxu0 %v6321
        %6341 = vmatpush.bf16.msra.mxu0 %v6320
        %6342 = vmatpush.bf16.msra.mxu0 %v6319
        %6343 = vmatmul.bf16.gmra.mxu0 %v6259
        %v6344 = vpop.f32.mrf.mxu0
        %v6345 = vadd.f32 %v6285, %v6344
        %v6346 = vpop.f32.mrf.mxu0
        %v6347 = vadd.f32 %v6285, %v6346
        %6348 = vmatmul.bf16.gmra.mxu0 %v6260
        %v6349 = vpop.f32.mrf.mxu0
        %v6350 = vadd.f32 %v6285, %v6349
        %v6351 = vpop.f32.mrf.mxu0
        %v6352 = vadd.f32 %v6285, %v6351
        %6353 = vmatmul.bf16.gmra.mxu0 %v6261
        %v6354 = vpop.f32.mrf.mxu0
        %v6355 = vadd.f32 %v6285, %v6354
        %v6356 = vpop.f32.mrf.mxu0
        %v6357 = vadd.f32 %v6285, %v6356
        %6358 = vmatmul.bf16.gmra.mxu0 %v6262
        %v6359 = vpop.f32.mrf.mxu0
        %v6360 = vadd.f32 %v6285, %v6359
        %v6361 = vpop.f32.mrf.mxu0
        %v6362 = vadd.f32 %v6285, %v6361
        %6363 = vmatmul.bf16.gmra.mxu0 %v6263
        %v6364 = vpop.f32.mrf.mxu0
        %v6365 = vadd.f32 %v6285, %v6364
        %v6366 = vpop.f32.mrf.mxu0
        %v6367 = vadd.f32 %v6285, %v6366
        %6368 = vmatmul.bf16.gmra.mxu0 %v6264
        %v6369 = vpop.f32.mrf.mxu0
        %v6370 = vadd.f32 %v6285, %v6369
        %v6371 = vpop.f32.mrf.mxu0
        %v6372 = vadd.f32 %v6285, %v6371
        %6373 = vmatmul.bf16.gmra.mxu0 %v6265
        %v6374 = vpop.f32.mrf.mxu0
        %v6375 = vadd.f32 %v6285, %v6374
        %v6376 = vpop.f32.mrf.mxu0
        %v6377 = vadd.f32 %v6285, %v6376
        %6378 = vmatmul.bf16.gmra.mxu0 %v6266
        %v6379 = vpop.f32.mrf.mxu0
        %v6380 = vadd.f32 %v6285, %v6379
        %v6381 = vpop.f32.mrf.mxu0
        %v6382 = vadd.f32 %v6285, %v6381
        %6383 = vdwg.mxu0
        %v6384 = vadd.f32 %v6345, %v1197
        %v6385 = vadd.f32 %v6347, %v1198
        %v6386 = vadd.f32 %v6350, %v1199
        %v6387 = vadd.f32 %v6352, %v1200
        %v6388 = vadd.f32 %v6355, %v1201
        %v6389 = vadd.f32 %v6357, %v1202
        %v6390 = vadd.f32 %v6360, %v1203
        %v6391 = vadd.f32 %v6362, %v1204
        %v6392 = vadd.f32 %v6365, %v1205
        %v6393 = vadd.f32 %v6367, %v1206
        %v6394 = vadd.f32 %v6370, %v1207
        %v6395 = vadd.f32 %v6372, %v1208
        %v6396 = vadd.f32 %v6375, %v1209
        %v6397 = vadd.f32 %v6377, %v1210
        %v6398 = vadd.f32 %v6380, %v1211
        %v6399 = vadd.f32 %v6382, %v1212
        %v6400 = vld [vmem:[%s767] sm:$0x1]
        %v6401 = vld [vmem:[%s770] sm:$0x1]
        %6402 = vadd.xlane.f32.xlu0 %v6384
        %v6403 = vpop.xlane.xlu0 %6402
        %6404 = vadd.xlane.f32.xlu0 %v6385
        %v6405 = vpop.xlane.xlu0 %6404
        %6406 = vadd.xlane.f32.xlu0 %v6386
        %v6407 = vpop.xlane.xlu0 %6406
        %6408 = vadd.xlane.f32.xlu0 %v6387
        %v6409 = vpop.xlane.xlu0 %6408
        %6410 = vadd.xlane.f32.xlu0 %v6388
        %v6411 = vpop.xlane.xlu0 %6410
        %6412 = vadd.xlane.f32.xlu0 %v6389
        %v6413 = vpop.xlane.xlu0 %6412
        %6414 = vadd.xlane.f32.xlu0 %v6390
        %v6415 = vpop.xlane.xlu0 %6414
        %6416 = vadd.xlane.f32.xlu0 %v6391
        %v6417 = vpop.xlane.xlu0 %6416
        %6418 = vadd.xlane.f32.xlu0 %v6392
        %v6419 = vpop.xlane.xlu0 %6418
        %6420 = vadd.xlane.f32.xlu0 %v6393
        %v6421 = vpop.xlane.xlu0 %6420
        %6422 = vadd.xlane.f32.xlu0 %v6394
        %v6423 = vpop.xlane.xlu0 %6422
        %6424 = vadd.xlane.f32.xlu0 %v6395
        %v6425 = vpop.xlane.xlu0 %6424
        %6426 = vadd.xlane.f32.xlu0 %v6396
        %v6427 = vpop.xlane.xlu0 %6426
        %6428 = vadd.xlane.f32.xlu0 %v6397
        %v6429 = vpop.xlane.xlu0 %6428
        %6430 = vadd.xlane.f32.xlu0 %v6398
        %v6431 = vpop.xlane.xlu0 %6430
        %6432 = vadd.xlane.f32.xlu0 %v6399
        %v6433 = vpop.xlane.xlu0 %6432
        %v6434 = vrcp.pop 128.0
        %v6435 = vmul.f32 128.0, %v6434
        %v6436 = vsub.f32 1.0, %v6435
        %v6437 = vmul.f32 %v6434, %v6436
        %v6438 = vadd.f32 %v6434, %v6437
        %vm6439 = vweird.f32 %v6434
        %v6440 = vsel %vm6439, %v6434, %v6438
        %v6441 = vmul.f32 %v6403, %v6440
        %v6442 = vmul.f32 %v6405, %v6440
        %v6443 = vmul.f32 %v6407, %v6440
        %v6444 = vmul.f32 %v6409, %v6440
        %v6445 = vmul.f32 %v6411, %v6440
        %v6446 = vmul.f32 %v6413, %v6440
        %v6447 = vmul.f32 %v6415, %v6440
        %v6448 = vmul.f32 %v6417, %v6440
        %v6449 = vmul.f32 %v6419, %v6440
        %v6450 = vmul.f32 %v6421, %v6440
        %v6451 = vmul.f32 %v6423, %v6440
        %v6452 = vmul.f32 %v6425, %v6440
        %v6453 = vmul.f32 %v6427, %v6440
        %v6454 = vmul.f32 %v6429, %v6440
        %v6455 = vmul.f32 %v6431, %v6440
        %v6456 = vmul.f32 %v6433, %v6440
        %v6457 = vsub.f32 %v6384, %v6441
        %v6458 = vsub.f32 %v6385, %v6442
        %v6459 = vsub.f32 %v6386, %v6443
        %v6460 = vsub.f32 %v6387, %v6444
        %v6461 = vsub.f32 %v6388, %v6445
        %v6462 = vsub.f32 %v6389, %v6446
        %v6463 = vsub.f32 %v6390, %v6447
        %v6464 = vsub.f32 %v6391, %v6448
        %v6465 = vsub.f32 %v6392, %v6449
        %v6466 = vsub.f32 %v6393, %v6450
        %v6467 = vsub.f32 %v6394, %v6451
        %v6468 = vsub.f32 %v6395, %v6452
        %v6469 = vsub.f32 %v6396, %v6453
        %v6470 = vsub.f32 %v6397, %v6454
        %v6471 = vsub.f32 %v6398, %v6455
        %v6472 = vsub.f32 %v6399, %v6456
        %v6473 = vmul.f32 %v6457, %v6457
        %v6474 = vmul.f32 %v6458, %v6458
        %v6475 = vmul.f32 %v6459, %v6459
        %v6476 = vmul.f32 %v6460, %v6460
        %v6477 = vmul.f32 %v6461, %v6461
        %v6478 = vmul.f32 %v6462, %v6462
        %v6479 = vmul.f32 %v6463, %v6463
        %v6480 = vmul.f32 %v6464, %v6464
        %v6481 = vmul.f32 %v6465, %v6465
        %v6482 = vmul.f32 %v6466, %v6466
        %v6483 = vmul.f32 %v6467, %v6467
        %v6484 = vmul.f32 %v6468, %v6468
        %v6485 = vmul.f32 %v6469, %v6469
        %v6486 = vmul.f32 %v6470, %v6470
        %v6487 = vmul.f32 %v6471, %v6471
        %v6488 = vmul.f32 %v6472, %v6472
        %6489 = vadd.xlane.f32.xlu0 %v6473
        %v6490 = vpop.xlane.xlu0 %6489
        %6491 = vadd.xlane.f32.xlu0 %v6474
        %v6492 = vpop.xlane.xlu0 %6491
        %6493 = vadd.xlane.f32.xlu0 %v6475
        %v6494 = vpop.xlane.xlu0 %6493
        %6495 = vadd.xlane.f32.xlu0 %v6476
        %v6496 = vpop.xlane.xlu0 %6495
        %6497 = vadd.xlane.f32.xlu0 %v6477
        %v6498 = vpop.xlane.xlu0 %6497
        %6499 = vadd.xlane.f32.xlu0 %v6478
        %v6500 = vpop.xlane.xlu0 %6499
        %6501 = vadd.xlane.f32.xlu0 %v6479
        %v6502 = vpop.xlane.xlu0 %6501
        %6503 = vadd.xlane.f32.xlu0 %v6480
        %v6504 = vpop.xlane.xlu0 %6503
        %6505 = vadd.xlane.f32.xlu0 %v6481
        %v6506 = vpop.xlane.xlu0 %6505
        %6507 = vadd.xlane.f32.xlu0 %v6482
        %v6508 = vpop.xlane.xlu0 %6507
        %6509 = vadd.xlane.f32.xlu0 %v6483
        %v6510 = vpop.xlane.xlu0 %6509
        %6511 = vadd.xlane.f32.xlu0 %v6484
        %v6512 = vpop.xlane.xlu0 %6511
        %6513 = vadd.xlane.f32.xlu0 %v6485
        %v6514 = vpop.xlane.xlu0 %6513
        %6515 = vadd.xlane.f32.xlu0 %v6486
        %v6516 = vpop.xlane.xlu0 %6515
        %6517 = vadd.xlane.f32.xlu0 %v6487
        %v6518 = vpop.xlane.xlu0 %6517
        %6519 = vadd.xlane.f32.xlu0 %v6488
        %v6520 = vpop.xlane.xlu0 %6519
        %v6521 = vmul.f32 %v6490, %v6440
        %v6522 = vmul.f32 %v6492, %v6440
        %v6523 = vmul.f32 %v6494, %v6440
        %v6524 = vmul.f32 %v6496, %v6440
        %v6525 = vmul.f32 %v6498, %v6440
        %v6526 = vmul.f32 %v6500, %v6440
        %v6527 = vmul.f32 %v6502, %v6440
        %v6528 = vmul.f32 %v6504, %v6440
        %v6529 = vmul.f32 %v6506, %v6440
        %v6530 = vmul.f32 %v6508, %v6440
        %v6531 = vmul.f32 %v6510, %v6440
        %v6532 = vmul.f32 %v6512, %v6440
        %v6533 = vmul.f32 %v6514, %v6440
        %v6534 = vmul.f32 %v6516, %v6440
        %v6535 = vmul.f32 %v6518, %v6440
        %v6536 = vmul.f32 %v6520, %v6440
        %v6537 = vadd.f32 %v6521, 1e-05
        %v6538 = vadd.f32 %v6522, 1e-05
        %v6539 = vadd.f32 %v6523, 1e-05
        %v6540 = vadd.f32 %v6524, 1e-05
        %v6541 = vadd.f32 %v6525, 1e-05
        %v6542 = vadd.f32 %v6526, 1e-05
        %v6543 = vadd.f32 %v6527, 1e-05
        %v6544 = vadd.f32 %v6528, 1e-05
        %v6545 = vadd.f32 %v6529, 1e-05
        %v6546 = vadd.f32 %v6530, 1e-05
        %v6547 = vadd.f32 %v6531, 1e-05
        %v6548 = vadd.f32 %v6532, 1e-05
        %v6549 = vadd.f32 %v6533, 1e-05
        %v6550 = vadd.f32 %v6534, 1e-05
        %v6551 = vadd.f32 %v6535, 1e-05
        %v6552 = vadd.f32 %v6536, 1e-05
        %v6553 = vrsqrt.pop %v6537
        %v6554 = vmul.f32 %v6553, %v6537
        %v6555 = vmul.f32 %v6554, %v6553
        %v6556 = vmul.f32 0.5, %v6555
        %v6557 = vsub.f32 1.5, %v6556
        %v6558 = vmul.f32 %v6553, %v6557
        %vm6559 = vweird.f32 %v6537
        %vm6560 = vweird.f32 %v6553
        %vm6561 = vmor %vm6559, %vm6560
        %v6562 = vsel %vm6561, %v6553, %v6558
        %v6563 = vrsqrt.pop %v6538
        %v6564 = vmul.f32 %v6563, %v6538
        %v6565 = vmul.f32 %v6564, %v6563
        %v6566 = vmul.f32 0.5, %v6565
        %v6567 = vsub.f32 1.5, %v6566
        %v6568 = vmul.f32 %v6563, %v6567
        %vm6569 = vweird.f32 %v6538
        %vm6570 = vweird.f32 %v6563
        %vm6571 = vmor %vm6569, %vm6570
        %v6572 = vsel %vm6571, %v6563, %v6568
        %v6573 = vrsqrt.pop %v6539
        %v6574 = vmul.f32 %v6573, %v6539
        %v6575 = vmul.f32 %v6574, %v6573
        %v6576 = vmul.f32 0.5, %v6575
        %v6577 = vsub.f32 1.5, %v6576
        %v6578 = vmul.f32 %v6573, %v6577
        %vm6579 = vweird.f32 %v6539
        %vm6580 = vweird.f32 %v6573
        %vm6581 = vmor %vm6579, %vm6580
        %v6582 = vsel %vm6581, %v6573, %v6578
        %v6583 = vrsqrt.pop %v6540
        %v6584 = vmul.f32 %v6583, %v6540
        %v6585 = vmul.f32 %v6584, %v6583
        %v6586 = vmul.f32 0.5, %v6585
        %v6587 = vsub.f32 1.5, %v6586
        %v6588 = vmul.f32 %v6583, %v6587
        %vm6589 = vweird.f32 %v6540
        %vm6590 = vweird.f32 %v6583
        %vm6591 = vmor %vm6589, %vm6590
        %v6592 = vsel %vm6591, %v6583, %v6588
        %v6593 = vrsqrt.pop %v6541
        %v6594 = vmul.f32 %v6593, %v6541
        %v6595 = vmul.f32 %v6594, %v6593
        %v6596 = vmul.f32 0.5, %v6595
        %v6597 = vsub.f32 1.5, %v6596
        %v6598 = vmul.f32 %v6593, %v6597
        %vm6599 = vweird.f32 %v6541
        %vm6600 = vweird.f32 %v6593
        %vm6601 = vmor %vm6599, %vm6600
        %v6602 = vsel %vm6601, %v6593, %v6598
        %v6603 = vrsqrt.pop %v6542
        %v6604 = vmul.f32 %v6603, %v6542
        %v6605 = vmul.f32 %v6604, %v6603
        %v6606 = vmul.f32 0.5, %v6605
        %v6607 = vsub.f32 1.5, %v6606
        %v6608 = vmul.f32 %v6603, %v6607
        %vm6609 = vweird.f32 %v6542
        %vm6610 = vweird.f32 %v6603
        %vm6611 = vmor %vm6609, %vm6610
        %v6612 = vsel %vm6611, %v6603, %v6608
        %v6613 = vrsqrt.pop %v6543
        %v6614 = vmul.f32 %v6613, %v6543
        %v6615 = vmul.f32 %v6614, %v6613
        %v6616 = vmul.f32 0.5, %v6615
        %v6617 = vsub.f32 1.5, %v6616
        %v6618 = vmul.f32 %v6613, %v6617
        %vm6619 = vweird.f32 %v6543
        %vm6620 = vweird.f32 %v6613
        %vm6621 = vmor %vm6619, %vm6620
        %v6622 = vsel %vm6621, %v6613, %v6618
        %v6623 = vrsqrt.pop %v6544
        %v6624 = vmul.f32 %v6623, %v6544
        %v6625 = vmul.f32 %v6624, %v6623
        %v6626 = vmul.f32 0.5, %v6625
        %v6627 = vsub.f32 1.5, %v6626
        %v6628 = vmul.f32 %v6623, %v6627
        %vm6629 = vweird.f32 %v6544
        %vm6630 = vweird.f32 %v6623
        %vm6631 = vmor %vm6629, %vm6630
        %v6632 = vsel %vm6631, %v6623, %v6628
        %v6633 = vrsqrt.pop %v6545
        %v6634 = vmul.f32 %v6633, %v6545
        %v6635 = vmul.f32 %v6634, %v6633
        %v6636 = vmul.f32 0.5, %v6635
        %v6637 = vsub.f32 1.5, %v6636
        %v6638 = vmul.f32 %v6633, %v6637
        %vm6639 = vweird.f32 %v6545
        %vm6640 = vweird.f32 %v6633
        %vm6641 = vmor %vm6639, %vm6640
        %v6642 = vsel %vm6641, %v6633, %v6638
        %v6643 = vrsqrt.pop %v6546
        %v6644 = vmul.f32 %v6643, %v6546
        %v6645 = vmul.f32 %v6644, %v6643
        %v6646 = vmul.f32 0.5, %v6645
        %v6647 = vsub.f32 1.5, %v6646
        %v6648 = vmul.f32 %v6643, %v6647
        %vm6649 = vweird.f32 %v6546
        %vm6650 = vweird.f32 %v6643
        %vm6651 = vmor %vm6649, %vm6650
        %v6652 = vsel %vm6651, %v6643, %v6648
        %v6653 = vrsqrt.pop %v6547
        %v6654 = vmul.f32 %v6653, %v6547
        %v6655 = vmul.f32 %v6654, %v6653
        %v6656 = vmul.f32 0.5, %v6655
        %v6657 = vsub.f32 1.5, %v6656
        %v6658 = vmul.f32 %v6653, %v6657
        %vm6659 = vweird.f32 %v6547
        %vm6660 = vweird.f32 %v6653
        %vm6661 = vmor %vm6659, %vm6660
        %v6662 = vsel %vm6661, %v6653, %v6658
        %v6663 = vrsqrt.pop %v6548
        %v6664 = vmul.f32 %v6663, %v6548
        %v6665 = vmul.f32 %v6664, %v6663
        %v6666 = vmul.f32 0.5, %v6665
        %v6667 = vsub.f32 1.5, %v6666
        %v6668 = vmul.f32 %v6663, %v6667
        %vm6669 = vweird.f32 %v6548
        %vm6670 = vweird.f32 %v6663
        %vm6671 = vmor %vm6669, %vm6670
        %v6672 = vsel %vm6671, %v6663, %v6668
        %v6673 = vrsqrt.pop %v6549
        %v6674 = vmul.f32 %v6673, %v6549
        %v6675 = vmul.f32 %v6674, %v6673
        %v6676 = vmul.f32 0.5, %v6675
        %v6677 = vsub.f32 1.5, %v6676
        %v6678 = vmul.f32 %v6673, %v6677
        %vm6679 = vweird.f32 %v6549
        %vm6680 = vweird.f32 %v6673
        %vm6681 = vmor %vm6679, %vm6680
        %v6682 = vsel %vm6681, %v6673, %v6678
        %v6683 = vrsqrt.pop %v6550
        %v6684 = vmul.f32 %v6683, %v6550
        %v6685 = vmul.f32 %v6684, %v6683
        %v6686 = vmul.f32 0.5, %v6685
        %v6687 = vsub.f32 1.5, %v6686
        %v6688 = vmul.f32 %v6683, %v6687
        %vm6689 = vweird.f32 %v6550
        %vm6690 = vweird.f32 %v6683
        %vm6691 = vmor %vm6689, %vm6690
        %v6692 = vsel %vm6691, %v6683, %v6688
        %v6693 = vrsqrt.pop %v6551
        %v6694 = vmul.f32 %v6693, %v6551
        %v6695 = vmul.f32 %v6694, %v6693
        %v6696 = vmul.f32 0.5, %v6695
        %v6697 = vsub.f32 1.5, %v6696
        %v6698 = vmul.f32 %v6693, %v6697
        %vm6699 = vweird.f32 %v6551
        %vm6700 = vweird.f32 %v6693
        %vm6701 = vmor %vm6699, %vm6700
        %v6702 = vsel %vm6701, %v6693, %v6698
        %v6703 = vrsqrt.pop %v6552
        %v6704 = vmul.f32 %v6703, %v6552
        %v6705 = vmul.f32 %v6704, %v6703
        %v6706 = vmul.f32 0.5, %v6705
        %v6707 = vsub.f32 1.5, %v6706
        %v6708 = vmul.f32 %v6703, %v6707
        %vm6709 = vweird.f32 %v6552
        %vm6710 = vweird.f32 %v6703
        %vm6711 = vmor %vm6709, %vm6710
        %v6712 = vsel %vm6711, %v6703, %v6708
        %v6713 = vmul.f32 %v6457, %v6562
        %v6714 = vmul.f32 %v6458, %v6572
        %v6715 = vmul.f32 %v6459, %v6582
        %v6716 = vmul.f32 %v6460, %v6592
        %v6717 = vmul.f32 %v6461, %v6602
        %v6718 = vmul.f32 %v6462, %v6612
        %v6719 = vmul.f32 %v6463, %v6622
        %v6720 = vmul.f32 %v6464, %v6632
        %v6721 = vmul.f32 %v6465, %v6642
        %v6722 = vmul.f32 %v6466, %v6652
        %v6723 = vmul.f32 %v6467, %v6662
        %v6724 = vmul.f32 %v6468, %v6672
        %v6725 = vmul.f32 %v6469, %v6682
        %v6726 = vmul.f32 %v6470, %v6692
        %v6727 = vmul.f32 %v6471, %v6702
        %v6728 = vmul.f32 %v6472, %v6712
        %v6730 = vperm.slane %v6400, 0
        %v6732 = vmul.f32 %v6713, %v6730
        %v6733 = vmul.f32 %v6714, %v6730
        %v6734 = vmul.f32 %v6715, %v6730
        %v6735 = vmul.f32 %v6716, %v6730
        %v6736 = vmul.f32 %v6717, %v6730
        %v6737 = vmul.f32 %v6718, %v6730
        %v6738 = vmul.f32 %v6719, %v6730
        %v6739 = vmul.f32 %v6720, %v6730
        %v6740 = vmul.f32 %v6721, %v6730
        %v6741 = vmul.f32 %v6722, %v6730
        %v6742 = vmul.f32 %v6723, %v6730
        %v6743 = vmul.f32 %v6724, %v6730
        %v6744 = vmul.f32 %v6725, %v6730
        %v6745 = vmul.f32 %v6726, %v6730
        %v6746 = vmul.f32 %v6727, %v6730
        %v6747 = vmul.f32 %v6728, %v6730
        %v6749 = vperm.slane %v6401, 0
        %v6751 = vadd.f32 %v6732, %v6749
        %v6752 = vadd.f32 %v6733, %v6749
        %v6753 = vadd.f32 %v6734, %v6749
        %v6754 = vadd.f32 %v6735, %v6749
        %v6755 = vadd.f32 %v6736, %v6749
        %v6756 = vadd.f32 %v6737, %v6749
        %v6757 = vadd.f32 %v6738, %v6749
        %v6758 = vadd.f32 %v6739, %v6749
        %v6759 = vadd.f32 %v6740, %v6749
        %v6760 = vadd.f32 %v6741, %v6749
        %v6761 = vadd.f32 %v6742, %v6749
        %v6762 = vadd.f32 %v6743, %v6749
        %v6763 = vadd.f32 %v6744, %v6749
        %v6764 = vadd.f32 %v6745, %v6749
        %v6765 = vadd.f32 %v6746, %v6749
        %v6766 = vadd.f32 %v6747, %v6749
        %v6767 = vpack.c.bf16 %v6752, %v6751
        %v6768 = vpack.c.bf16 %v6754, %v6753
        %v6769 = vpack.c.bf16 %v6756, %v6755
        %v6770 = vpack.c.bf16 %v6758, %v6757
        %v6771 = vpack.c.bf16 %v6760, %v6759
        %v6772 = vpack.c.bf16 %v6762, %v6761
        %v6773 = vpack.c.bf16 %v6764, %v6763
        %v6774 = vpack.c.bf16 %v6766, %v6765
        %v6775 = vld [vmem:[%s775] sm:$0xff]
        %v6776 = vld [vmem:[%s775 + $0x8] sm:$0xff]
        %v6777 = vld [vmem:[%s775 + $0x10] sm:$0xff]
        %v6778 = vld [vmem:[%s775 + $0x18] sm:$0xff]
        %v6779 = vld [vmem:[%s775 + $0x20] sm:$0xff]
        %v6780 = vld [vmem:[%s775 + $0x28] sm:$0xff]
        %v6781 = vld [vmem:[%s775 + $0x30] sm:$0xff]
        %v6782 = vld [vmem:[%s775 + $0x38] sm:$0xff]
        %v6783 = vld [vmem:[%s775 + $0x40] sm:$0xff]
        %v6784 = vld [vmem:[%s775 + $0x48] sm:$0xff]
        %v6785 = vld [vmem:[%s775 + $0x50] sm:$0xff]
        %v6786 = vld [vmem:[%s775 + $0x58] sm:$0xff]
        %v6787 = vld [vmem:[%s775 + $0x60] sm:$0xff]
        %v6788 = vld [vmem:[%s775 + $0x68] sm:$0xff]
        %v6789 = vld [vmem:[%s775 + $0x70] sm:$0xff]
        %v6790 = vld [vmem:[%s775 + $0x78] sm:$0xff]
        %v6791 = vld [vmem:[%s779] sm:$0x3]
        %v6793 = vperm.slane %v6791, 0
        %v6794 = vperm.slane %v6791, 1
        %v6813 = vunpack.c.l.b16 %v6775
        %v6814 = vunpack.c.h.b16 %v6775
        %v6815 = vunpack.c.l.b16 %v6776
        %v6816 = vunpack.c.h.b16 %v6776
        %v6817 = vunpack.c.l.b16 %v6777
        %v6818 = vunpack.c.h.b16 %v6777
        %v6819 = vunpack.c.l.b16 %v6778
        %v6820 = vunpack.c.h.b16 %v6778
        %v6821 = vunpack.c.l.b16 %v6779
        %v6822 = vunpack.c.h.b16 %v6779
        %v6823 = vunpack.c.l.b16 %v6780
        %v6824 = vunpack.c.h.b16 %v6780
        %v6825 = vunpack.c.l.b16 %v6781
        %v6826 = vunpack.c.h.b16 %v6781
        %v6827 = vunpack.c.l.b16 %v6782
        %v6828 = vunpack.c.h.b16 %v6782
        %v6829 = vunpack.c.l.b16 %v6783
        %v6830 = vunpack.c.h.b16 %v6783
        %v6831 = vunpack.c.l.b16 %v6784
        %v6832 = vunpack.c.h.b16 %v6784
        %v6833 = vunpack.c.l.b16 %v6785
        %v6834 = vunpack.c.h.b16 %v6785
        %v6835 = vunpack.c.l.b16 %v6786
        %v6836 = vunpack.c.h.b16 %v6786
        %v6837 = vunpack.c.l.b16 %v6787
        %v6838 = vunpack.c.h.b16 %v6787
        %v6839 = vunpack.c.l.b16 %v6788
        %v6840 = vunpack.c.h.b16 %v6788
        %v6841 = vunpack.c.l.b16 %v6789
        %v6842 = vunpack.c.h.b16 %v6789
        %v6843 = vunpack.c.l.b16 %v6790
        %v6844 = vunpack.c.h.b16 %v6790
        %v6845 = vpack.c.b16 %v6815, %v6813
        %v6846 = vpack.c.b16 %v6816, %v6814
        %v6847 = vpack.c.b16 %v6819, %v6817
        %v6848 = vpack.c.b16 %v6820, %v6818
        %v6849 = vpack.c.b16 %v6823, %v6821
        %v6850 = vpack.c.b16 %v6824, %v6822
        %v6851 = vpack.c.b16 %v6827, %v6825
        %v6852 = vpack.c.b16 %v6828, %v6826
        %v6853 = vpack.c.b16 %v6831, %v6829
        %v6854 = vpack.c.b16 %v6832, %v6830
        %v6855 = vpack.c.b16 %v6835, %v6833
        %v6856 = vpack.c.b16 %v6836, %v6834
        %v6857 = vpack.c.b16 %v6839, %v6837
        %v6858 = vpack.c.b16 %v6840, %v6838
        %v6859 = vpack.c.b16 %v6843, %v6841
        %v6860 = vpack.c.b16 %v6844, %v6842
        %6877 = vmatpush.bf16.msra.mxu0 %v6859
        %6878 = vmatpush.bf16.msra.mxu0 %v6857
        %6879 = vmatpush.bf16.msra.mxu0 %v6855
        %6880 = vmatpush.bf16.msra.mxu0 %v6853
        %6881 = vmatpush.bf16.msra.mxu0 %v6851
        %6882 = vmatpush.bf16.msra.mxu0 %v6849
        %6883 = vmatpush.bf16.msra.mxu0 %v6847
        %6884 = vmatpush.bf16.msra.mxu0 %v6845
        %6885 = vmatmul.bf16.gmra.mxu0 %v6767
        %v6886 = vpop.f32.mrf.mxu0
        %v6887 = vadd.f32 %v6793, %v6886
        %v6888 = vpop.f32.mrf.mxu0
        %v6889 = vadd.f32 %v6793, %v6888
        %6890 = vmatmul.bf16.gmra.mxu0 %v6768
        %v6891 = vpop.f32.mrf.mxu0
        %v6892 = vadd.f32 %v6793, %v6891
        %v6893 = vpop.f32.mrf.mxu0
        %v6894 = vadd.f32 %v6793, %v6893
        %6895 = vmatmul.bf16.gmra.mxu0 %v6769
        %v6896 = vpop.f32.mrf.mxu0
        %v6897 = vadd.f32 %v6793, %v6896
        %v6898 = vpop.f32.mrf.mxu0
        %v6899 = vadd.f32 %v6793, %v6898
        %6900 = vmatmul.bf16.gmra.mxu0 %v6770
        %v6901 = vpop.f32.mrf.mxu0
        %v6902 = vadd.f32 %v6793, %v6901
        %v6903 = vpop.f32.mrf.mxu0
        %v6904 = vadd.f32 %v6793, %v6903
        %6905 = vmatmul.bf16.gmra.mxu0 %v6771
        %v6906 = vpop.f32.mrf.mxu0
        %v6907 = vadd.f32 %v6793, %v6906
        %v6908 = vpop.f32.mrf.mxu0
        %v6909 = vadd.f32 %v6793, %v6908
        %6910 = vmatmul.bf16.gmra.mxu0 %v6772
        %v6911 = vpop.f32.mrf.mxu0
        %v6912 = vadd.f32 %v6793, %v6911
        %v6913 = vpop.f32.mrf.mxu0
        %v6914 = vadd.f32 %v6793, %v6913
        %6915 = vmatmul.bf16.gmra.mxu0 %v6773
        %v6916 = vpop.f32.mrf.mxu0
        %v6917 = vadd.f32 %v6793, %v6916
        %v6918 = vpop.f32.mrf.mxu0
        %v6919 = vadd.f32 %v6793, %v6918
        %6920 = vmatmul.bf16.gmra.mxu0 %v6774
        %v6921 = vpop.f32.mrf.mxu0
        %v6922 = vadd.f32 %v6793, %v6921
        %v6923 = vpop.f32.mrf.mxu0
        %v6924 = vadd.f32 %v6793, %v6923
        %6925 = vdwg.mxu0
        %6926 = vmatpush.bf16.msra.mxu0 %v6860
        %6927 = vmatpush.bf16.msra.mxu0 %v6858
        %6928 = vmatpush.bf16.msra.mxu0 %v6856
        %6929 = vmatpush.bf16.msra.mxu0 %v6854
        %6930 = vmatpush.bf16.msra.mxu0 %v6852
        %6931 = vmatpush.bf16.msra.mxu0 %v6850
        %6932 = vmatpush.bf16.msra.mxu0 %v6848
        %6933 = vmatpush.bf16.msra.mxu0 %v6846
        %6934 = vmatmul.bf16.gmra.mxu0 %v6767
        %v6935 = vpop.f32.mrf.mxu0
        %v6936 = vadd.f32 %v6794, %v6935
        %v6937 = vpop.f32.mrf.mxu0
        %v6938 = vadd.f32 %v6794, %v6937
        %6939 = vmatmul.bf16.gmra.mxu0 %v6768
        %v6940 = vpop.f32.mrf.mxu0
        %v6941 = vadd.f32 %v6794, %v6940
        %v6942 = vpop.f32.mrf.mxu0
        %v6943 = vadd.f32 %v6794, %v6942
        %6944 = vmatmul.bf16.gmra.mxu0 %v6769
        %v6945 = vpop.f32.mrf.mxu0
        %v6946 = vadd.f32 %v6794, %v6945
        %v6947 = vpop.f32.mrf.mxu0
        %v6948 = vadd.f32 %v6794, %v6947
        %6949 = vmatmul.bf16.gmra.mxu0 %v6770
        %v6950 = vpop.f32.mrf.mxu0
        %v6951 = vadd.f32 %v6794, %v6950
        %v6952 = vpop.f32.mrf.mxu0
        %v6953 = vadd.f32 %v6794, %v6952
        %6954 = vmatmul.bf16.gmra.mxu0 %v6771
        %v6955 = vpop.f32.mrf.mxu0
        %v6956 = vadd.f32 %v6794, %v6955
        %v6957 = vpop.f32.mrf.mxu0
        %v6958 = vadd.f32 %v6794, %v6957
        %6959 = vmatmul.bf16.gmra.mxu0 %v6772
        %v6960 = vpop.f32.mrf.mxu0
        %v6961 = vadd.f32 %v6794, %v6960
        %v6962 = vpop.f32.mrf.mxu0
        %v6963 = vadd.f32 %v6794, %v6962
        %6964 = vmatmul.bf16.gmra.mxu0 %v6773
        %v6965 = vpop.f32.mrf.mxu0
        %v6966 = vadd.f32 %v6794, %v6965
        %v6967 = vpop.f32.mrf.mxu0
        %v6968 = vadd.f32 %v6794, %v6967
        %6969 = vmatmul.bf16.gmra.mxu0 %v6774
        %v6970 = vpop.f32.mrf.mxu0
        %v6971 = vadd.f32 %v6794, %v6970
        %v6972 = vpop.f32.mrf.mxu0
        %v6973 = vadd.f32 %v6794, %v6972
        %6974 = vdwg.mxu0
        %v6975 = vmul.f32 %v6887, 0.5
        %v6976 = vmul.f32 %v6936, 0.5
        %v6977 = vmul.f32 %v6889, 0.5
        %v6978 = vmul.f32 %v6938, 0.5
        %v6979 = vmul.f32 %v6892, 0.5
        %v6980 = vmul.f32 %v6941, 0.5
        %v6981 = vmul.f32 %v6894, 0.5
        %v6982 = vmul.f32 %v6943, 0.5
        %v6983 = vmul.f32 %v6897, 0.5
        %v6984 = vmul.f32 %v6946, 0.5
        %v6985 = vmul.f32 %v6899, 0.5
        %v6986 = vmul.f32 %v6948, 0.5
        %v6987 = vmul.f32 %v6902, 0.5
        %v6988 = vmul.f32 %v6951, 0.5
        %v6989 = vmul.f32 %v6904, 0.5
        %v6990 = vmul.f32 %v6953, 0.5
        %v6991 = vmul.f32 %v6907, 0.5
        %v6992 = vmul.f32 %v6956, 0.5
        %v6993 = vmul.f32 %v6909, 0.5
        %v6994 = vmul.f32 %v6958, 0.5
        %v6995 = vmul.f32 %v6912, 0.5
        %v6996 = vmul.f32 %v6961, 0.5
        %v6997 = vmul.f32 %v6914, 0.5
        %v6998 = vmul.f32 %v6963, 0.5
        %v6999 = vmul.f32 %v6917, 0.5
        %v7000 = vmul.f32 %v6966, 0.5
        %v7001 = vmul.f32 %v6919, 0.5
        %v7002 = vmul.f32 %v6968, 0.5
        %v7003 = vmul.f32 %v6922, 0.5
        %v7004 = vmul.f32 %v6971, 0.5
        %v7005 = vmul.f32 %v6924, 0.5
        %v7006 = vmul.f32 %v6973, 0.5
        %v7007 = vmul.f32 %v6887, 0.044715
        %v7008 = vmul.f32 %v6936, 0.044715
        %v7009 = vmul.f32 %v6889, 0.044715
        %v7010 = vmul.f32 %v6938, 0.044715
        %v7011 = vmul.f32 %v6892, 0.044715
        %v7012 = vmul.f32 %v6941, 0.044715
        %v7013 = vmul.f32 %v6894, 0.044715
        %v7014 = vmul.f32 %v6943, 0.044715
        %v7015 = vmul.f32 %v6897, 0.044715
        %v7016 = vmul.f32 %v6946, 0.044715
        %v7017 = vmul.f32 %v6899, 0.044715
        %v7018 = vmul.f32 %v6948, 0.044715
        %v7019 = vmul.f32 %v6902, 0.044715
        %v7020 = vmul.f32 %v6951, 0.044715
        %v7021 = vmul.f32 %v6904, 0.044715
        %v7022 = vmul.f32 %v6953, 0.044715
        %v7023 = vmul.f32 %v6907, 0.044715
        %v7024 = vmul.f32 %v6956, 0.044715
        %v7025 = vmul.f32 %v6909, 0.044715
        %v7026 = vmul.f32 %v6958, 0.044715
        %v7027 = vmul.f32 %v6912, 0.044715
        %v7028 = vmul.f32 %v6961, 0.044715
        %v7029 = vmul.f32 %v6914, 0.044715
        %v7030 = vmul.f32 %v6963, 0.044715
        %v7031 = vmul.f32 %v6917, 0.044715
        %v7032 = vmul.f32 %v6966, 0.044715
        %v7033 = vmul.f32 %v6919, 0.044715
        %v7034 = vmul.f32 %v6968, 0.044715
        %v7035 = vmul.f32 %v6922, 0.044715
        %v7036 = vmul.f32 %v6971, 0.044715
        %v7037 = vmul.f32 %v6924, 0.044715
        %v7038 = vmul.f32 %v6973, 0.044715
        %v7039 = vmul.f32 %v7007, %v6887
        %v7040 = vmul.f32 %v7008, %v6936
        %v7041 = vmul.f32 %v7009, %v6889
        %v7042 = vmul.f32 %v7010, %v6938
        %v7043 = vmul.f32 %v7011, %v6892
        %v7044 = vmul.f32 %v7012, %v6941
        %v7045 = vmul.f32 %v7013, %v6894
        %v7046 = vmul.f32 %v7014, %v6943
        %v7047 = vmul.f32 %v7015, %v6897
        %v7048 = vmul.f32 %v7016, %v6946
        %v7049 = vmul.f32 %v7017, %v6899
        %v7050 = vmul.f32 %v7018, %v6948
        %v7051 = vmul.f32 %v7019, %v6902
        %v7052 = vmul.f32 %v7020, %v6951
        %v7053 = vmul.f32 %v7021, %v6904
        %v7054 = vmul.f32 %v7022, %v6953
        %v7055 = vmul.f32 %v7023, %v6907
        %v7056 = vmul.f32 %v7024, %v6956
        %v7057 = vmul.f32 %v7025, %v6909
        %v7058 = vmul.f32 %v7026, %v6958
        %v7059 = vmul.f32 %v7027, %v6912
        %v7060 = vmul.f32 %v7028, %v6961
        %v7061 = vmul.f32 %v7029, %v6914
        %v7062 = vmul.f32 %v7030, %v6963
        %v7063 = vmul.f32 %v7031, %v6917
        %v7064 = vmul.f32 %v7032, %v6966
        %v7065 = vmul.f32 %v7033, %v6919
        %v7066 = vmul.f32 %v7034, %v6968
        %v7067 = vmul.f32 %v7035, %v6922
        %v7068 = vmul.f32 %v7036, %v6971
        %v7069 = vmul.f32 %v7037, %v6924
        %v7070 = vmul.f32 %v7038, %v6973
        %v7071 = vmul.f32 %v7039, %v6887
        %v7072 = vmul.f32 %v7040, %v6936
        %v7073 = vmul.f32 %v7041, %v6889
        %v7074 = vmul.f32 %v7042, %v6938
        %v7075 = vmul.f32 %v7043, %v6892
        %v7076 = vmul.f32 %v7044, %v6941
        %v7077 = vmul.f32 %v7045, %v6894
        %v7078 = vmul.f32 %v7046, %v6943
        %v7079 = vmul.f32 %v7047, %v6897
        %v7080 = vmul.f32 %v7048, %v6946
        %v7081 = vmul.f32 %v7049, %v6899
        %v7082 = vmul.f32 %v7050, %v6948
        %v7083 = vmul.f32 %v7051, %v6902
        %v7084 = vmul.f32 %v7052, %v6951
        %v7085 = vmul.f32 %v7053, %v6904
        %v7086 = vmul.f32 %v7054, %v6953
        %v7087 = vmul.f32 %v7055, %v6907
        %v7088 = vmul.f32 %v7056, %v6956
        %v7089 = vmul.f32 %v7057, %v6909
        %v7090 = vmul.f32 %v7058, %v6958
        %v7091 = vmul.f32 %v7059, %v6912
        %v7092 = vmul.f32 %v7060, %v6961
        %v7093 = vmul.f32 %v7061, %v6914
        %v7094 = vmul.f32 %v7062, %v6963
        %v7095 = vmul.f32 %v7063, %v6917
        %v7096 = vmul.f32 %v7064, %v6966
        %v7097 = vmul.f32 %v7065, %v6919
        %v7098 = vmul.f32 %v7066, %v6968
        %v7099 = vmul.f32 %v7067, %v6922
        %v7100 = vmul.f32 %v7068, %v6971
        %v7101 = vmul.f32 %v7069, %v6924
        %v7102 = vmul.f32 %v7070, %v6973
        %v7103 = vadd.f32 %v6887, %v7071
        %v7104 = vadd.f32 %v6936, %v7072
        %v7105 = vadd.f32 %v6889, %v7073
        %v7106 = vadd.f32 %v6938, %v7074
        %v7107 = vadd.f32 %v6892, %v7075
        %v7108 = vadd.f32 %v6941, %v7076
        %v7109 = vadd.f32 %v6894, %v7077
        %v7110 = vadd.f32 %v6943, %v7078
        %v7111 = vadd.f32 %v6897, %v7079
        %v7112 = vadd.f32 %v6946, %v7080
        %v7113 = vadd.f32 %v6899, %v7081
        %v7114 = vadd.f32 %v6948, %v7082
        %v7115 = vadd.f32 %v6902, %v7083
        %v7116 = vadd.f32 %v6951, %v7084
        %v7117 = vadd.f32 %v6904, %v7085
        %v7118 = vadd.f32 %v6953, %v7086
        %v7119 = vadd.f32 %v6907, %v7087
        %v7120 = vadd.f32 %v6956, %v7088
        %v7121 = vadd.f32 %v6909, %v7089
        %v7122 = vadd.f32 %v6958, %v7090
        %v7123 = vadd.f32 %v6912, %v7091
        %v7124 = vadd.f32 %v6961, %v7092
        %v7125 = vadd.f32 %v6914, %v7093
        %v7126 = vadd.f32 %v6963, %v7094
        %v7127 = vadd.f32 %v6917, %v7095
        %v7128 = vadd.f32 %v6966, %v7096
        %v7129 = vadd.f32 %v6919, %v7097
        %v7130 = vadd.f32 %v6968, %v7098
        %v7131 = vadd.f32 %v6922, %v7099
        %v7132 = vadd.f32 %v6971, %v7100
        %v7133 = vadd.f32 %v6924, %v7101
        %v7134 = vadd.f32 %v6973, %v7102
        %v7135 = vmul.f32 %v7103, 0.7978846
        %v7136 = vmul.f32 %v7104, 0.7978846
        %v7137 = vmul.f32 %v7105, 0.7978846
        %v7138 = vmul.f32 %v7106, 0.7978846
        %v7139 = vmul.f32 %v7107, 0.7978846
        %v7140 = vmul.f32 %v7108, 0.7978846
        %v7141 = vmul.f32 %v7109, 0.7978846
        %v7142 = vmul.f32 %v7110, 0.7978846
        %v7143 = vmul.f32 %v7111, 0.7978846
        %v7144 = vmul.f32 %v7112, 0.7978846
        %v7145 = vmul.f32 %v7113, 0.7978846
        %v7146 = vmul.f32 %v7114, 0.7978846
        %v7147 = vmul.f32 %v7115, 0.7978846
        %v7148 = vmul.f32 %v7116, 0.7978846
        %v7149 = vmul.f32 %v7117, 0.7978846
        %v7150 = vmul.f32 %v7118, 0.7978846
        %v7151 = vmul.f32 %v7119, 0.7978846
        %v7152 = vmul.f32 %v7120, 0.7978846
        %v7153 = vmul.f32 %v7121, 0.7978846
        %v7154 = vmul.f32 %v7122, 0.7978846
        %v7155 = vmul.f32 %v7123, 0.7978846
        %v7156 = vmul.f32 %v7124, 0.7978846
        %v7157 = vmul.f32 %v7125, 0.7978846
        %v7158 = vmul.f32 %v7126, 0.7978846
        %v7159 = vmul.f32 %v7127, 0.7978846
        %v7160 = vmul.f32 %v7128, 0.7978846
        %v7161 = vmul.f32 %v7129, 0.7978846
        %v7162 = vmul.f32 %v7130, 0.7978846
        %v7163 = vmul.f32 %v7131, 0.7978846
        %v7164 = vmul.f32 %v7132, 0.7978846
        %v7165 = vmul.f32 %v7133, 0.7978846
        %v7166 = vmul.f32 %v7134, 0.7978846
        %v7167 = vtanh.pop %v7135
        %v7168 = vtanh.pop %v7136
        %v7169 = vtanh.pop %v7137
        %v7170 = vtanh.pop %v7138
        %v7171 = vtanh.pop %v7139
        %v7172 = vtanh.pop %v7140
        %v7173 = vtanh.pop %v7141
        %v7174 = vtanh.pop %v7142
        %v7175 = vtanh.pop %v7143
        %v7176 = vtanh.pop %v7144
        %v7177 = vtanh.pop %v7145
        %v7178 = vtanh.pop %v7146
        %v7179 = vtanh.pop %v7147
        %v7180 = vtanh.pop %v7148
        %v7181 = vtanh.pop %v7149
        %v7182 = vtanh.pop %v7150
        %v7183 = vtanh.pop %v7151
        %v7184 = vtanh.pop %v7152
        %v7185 = vtanh.pop %v7153
        %v7186 = vtanh.pop %v7154
        %v7187 = vtanh.pop %v7155
        %v7188 = vtanh.pop %v7156
        %v7189 = vtanh.pop %v7157
        %v7190 = vtanh.pop %v7158
        %v7191 = vtanh.pop %v7159
        %v7192 = vtanh.pop %v7160
        %v7193 = vtanh.pop %v7161
        %v7194 = vtanh.pop %v7162
        %v7195 = vtanh.pop %v7163
        %v7196 = vtanh.pop %v7164
        %v7197 = vtanh.pop %v7165
        %v7198 = vtanh.pop %v7166
        %v7199 = vadd.f32 %v7167, 1.0
        %v7200 = vadd.f32 %v7168, 1.0
        %v7201 = vadd.f32 %v7169, 1.0
        %v7202 = vadd.f32 %v7170, 1.0
        %v7203 = vadd.f32 %v7171, 1.0
        %v7204 = vadd.f32 %v7172, 1.0
        %v7205 = vadd.f32 %v7173, 1.0
        %v7206 = vadd.f32 %v7174, 1.0
        %v7207 = vadd.f32 %v7175, 1.0
        %v7208 = vadd.f32 %v7176, 1.0
        %v7209 = vadd.f32 %v7177, 1.0
        %v7210 = vadd.f32 %v7178, 1.0
        %v7211 = vadd.f32 %v7179, 1.0
        %v7212 = vadd.f32 %v7180, 1.0
        %v7213 = vadd.f32 %v7181, 1.0
        %v7214 = vadd.f32 %v7182, 1.0
        %v7215 = vadd.f32 %v7183, 1.0
        %v7216 = vadd.f32 %v7184, 1.0
        %v7217 = vadd.f32 %v7185, 1.0
        %v7218 = vadd.f32 %v7186, 1.0
        %v7219 = vadd.f32 %v7187, 1.0
        %v7220 = vadd.f32 %v7188, 1.0
        %v7221 = vadd.f32 %v7189, 1.0
        %v7222 = vadd.f32 %v7190, 1.0
        %v7223 = vadd.f32 %v7191, 1.0
        %v7224 = vadd.f32 %v7192, 1.0
        %v7225 = vadd.f32 %v7193, 1.0
        %v7226 = vadd.f32 %v7194, 1.0
        %v7227 = vadd.f32 %v7195, 1.0
        %v7228 = vadd.f32 %v7196, 1.0
        %v7229 = vadd.f32 %v7197, 1.0
        %v7230 = vadd.f32 %v7198, 1.0
        %v7231 = vmul.f32 %v6975, %v7199
        %v7232 = vmul.f32 %v6976, %v7200
        %v7233 = vmul.f32 %v6977, %v7201
        %v7234 = vmul.f32 %v6978, %v7202
        %v7235 = vmul.f32 %v6979, %v7203
        %v7236 = vmul.f32 %v6980, %v7204
        %v7237 = vmul.f32 %v6981, %v7205
        %v7238 = vmul.f32 %v6982, %v7206
        %v7239 = vmul.f32 %v6983, %v7207
        %v7240 = vmul.f32 %v6984, %v7208
        %v7241 = vmul.f32 %v6985, %v7209
        %v7242 = vmul.f32 %v6986, %v7210
        %v7243 = vmul.f32 %v6987, %v7211
        %v7244 = vmul.f32 %v6988, %v7212
        %v7245 = vmul.f32 %v6989, %v7213
        %v7246 = vmul.f32 %v6990, %v7214
        %v7247 = vmul.f32 %v6991, %v7215
        %v7248 = vmul.f32 %v6992, %v7216
        %v7249 = vmul.f32 %v6993, %v7217
        %v7250 = vmul.f32 %v6994, %v7218
        %v7251 = vmul.f32 %v6995, %v7219
        %v7252 = vmul.f32 %v6996, %v7220
        %v7253 = vmul.f32 %v6997, %v7221
        %v7254 = vmul.f32 %v6998, %v7222
        %v7255 = vmul.f32 %v6999, %v7223
        %v7256 = vmul.f32 %v7000, %v7224
        %v7257 = vmul.f32 %v7001, %v7225
        %v7258 = vmul.f32 %v7002, %v7226
        %v7259 = vmul.f32 %v7003, %v7227
        %v7260 = vmul.f32 %v7004, %v7228
        %v7261 = vmul.f32 %v7005, %v7229
        %v7262 = vmul.f32 %v7006, %v7230
        %v7263 = vpack.c.bf16 %v7233, %v7231
        %v7264 = vpack.c.bf16 %v7234, %v7232
        %v7265 = vpack.c.bf16 %v7237, %v7235
        %v7266 = vpack.c.bf16 %v7238, %v7236
        %v7267 = vpack.c.bf16 %v7241, %v7239
        %v7268 = vpack.c.bf16 %v7242, %v7240
        %v7269 = vpack.c.bf16 %v7245, %v7243
        %v7270 = vpack.c.bf16 %v7246, %v7244
        %v7271 = vpack.c.bf16 %v7249, %v7247
        %v7272 = vpack.c.bf16 %v7250, %v7248
        %v7273 = vpack.c.bf16 %v7253, %v7251
        %v7274 = vpack.c.bf16 %v7254, %v7252
        %v7275 = vpack.c.bf16 %v7257, %v7255
        %v7276 = vpack.c.bf16 %v7258, %v7256
        %v7277 = vpack.c.bf16 %v7261, %v7259
        %v7278 = vpack.c.bf16 %v7262, %v7260
        %v7279 = vld [vmem:[%s784] sm:$0xf]
        %v7280 = vld [vmem:[%s784 + $0x4] sm:$0xf]
        %v7281 = vld [vmem:[%s784 + $0x8] sm:$0xf]
        %v7282 = vld [vmem:[%s784 + $0xc] sm:$0xf]
        %v7283 = vld [vmem:[%s784 + $0x10] sm:$0xf]
        %v7284 = vld [vmem:[%s784 + $0x14] sm:$0xf]
        %v7285 = vld [vmem:[%s784 + $0x18] sm:$0xf]
        %v7286 = vld [vmem:[%s784 + $0x1c] sm:$0xf]
        %v7287 = vld [vmem:[%s784 + $0x20] sm:$0xf]
        %v7288 = vld [vmem:[%s784 + $0x24] sm:$0xf]
        %v7289 = vld [vmem:[%s784 + $0x28] sm:$0xf]
        %v7290 = vld [vmem:[%s784 + $0x2c] sm:$0xf]
        %v7291 = vld [vmem:[%s784 + $0x30] sm:$0xf]
        %v7292 = vld [vmem:[%s784 + $0x34] sm:$0xf]
        %v7293 = vld [vmem:[%s784 + $0x38] sm:$0xf]
        %v7294 = vld [vmem:[%s784 + $0x3c] sm:$0xf]
        %v7295 = vld [vmem:[%s784 + $0x40] sm:$0xf]
        %v7296 = vld [vmem:[%s784 + $0x44] sm:$0xf]
        %v7297 = vld [vmem:[%s784 + $0x48] sm:$0xf]
        %v7298 = vld [vmem:[%s784 + $0x4c] sm:$0xf]
        %v7299 = vld [vmem:[%s784 + $0x50] sm:$0xf]
        %v7300 = vld [vmem:[%s784 + $0x54] sm:$0xf]
        %v7301 = vld [vmem:[%s784 + $0x58] sm:$0xf]
        %v7302 = vld [vmem:[%s784 + $0x5c] sm:$0xf]
        %v7303 = vld [vmem:[%s784 + $0x60] sm:$0xf]
        %v7304 = vld [vmem:[%s784 + $0x64] sm:$0xf]
        %v7305 = vld [vmem:[%s784 + $0x68] sm:$0xf]
        %v7306 = vld [vmem:[%s784 + $0x6c] sm:$0xf]
        %v7307 = vld [vmem:[%s784 + $0x70] sm:$0xf]
        %v7308 = vld [vmem:[%s784 + $0x74] sm:$0xf]
        %v7309 = vld [vmem:[%s784 + $0x78] sm:$0xf]
        %v7310 = vld [vmem:[%s784 + $0x7c] sm:$0xf]
        %v7311 = vld [vmem:[%s787] sm:$0x1]
        %v7313 = vperm.slane %v7311, 0
        %v7347 = vunpack.c.l.b16 %v7279
        %v7348 = vunpack.c.l.b16 %v7280
        %v7349 = vunpack.c.l.b16 %v7281
        %v7350 = vunpack.c.l.b16 %v7282
        %v7351 = vunpack.c.l.b16 %v7283
        %v7352 = vunpack.c.l.b16 %v7284
        %v7353 = vunpack.c.l.b16 %v7285
        %v7354 = vunpack.c.l.b16 %v7286
        %v7355 = vunpack.c.l.b16 %v7287
        %v7356 = vunpack.c.l.b16 %v7288
        %v7357 = vunpack.c.l.b16 %v7289
        %v7358 = vunpack.c.l.b16 %v7290
        %v7359 = vunpack.c.l.b16 %v7291
        %v7360 = vunpack.c.l.b16 %v7292
        %v7361 = vunpack.c.l.b16 %v7293
        %v7362 = vunpack.c.l.b16 %v7294
        %v7363 = vunpack.c.l.b16 %v7295
        %v7364 = vunpack.c.l.b16 %v7296
        %v7365 = vunpack.c.l.b16 %v7297
        %v7366 = vunpack.c.l.b16 %v7298
        %v7367 = vunpack.c.l.b16 %v7299
        %v7368 = vunpack.c.l.b16 %v7300
        %v7369 = vunpack.c.l.b16 %v7301
        %v7370 = vunpack.c.l.b16 %v7302
        %v7371 = vunpack.c.l.b16 %v7303
        %v7372 = vunpack.c.l.b16 %v7304
        %v7373 = vunpack.c.l.b16 %v7305
        %v7374 = vunpack.c.l.b16 %v7306
        %v7375 = vunpack.c.l.b16 %v7307
        %v7376 = vunpack.c.l.b16 %v7308
        %v7377 = vunpack.c.l.b16 %v7309
        %v7378 = vunpack.c.l.b16 %v7310
        %v7379 = vpack.c.b16 %v7348, %v7347
        %v7380 = vpack.c.b16 %v7350, %v7349
        %v7381 = vpack.c.b16 %v7352, %v7351
        %v7382 = vpack.c.b16 %v7354, %v7353
        %v7383 = vpack.c.b16 %v7356, %v7355
        %v7384 = vpack.c.b16 %v7358, %v7357
        %v7385 = vpack.c.b16 %v7360, %v7359
        %v7386 = vpack.c.b16 %v7362, %v7361
        %v7387 = vpack.c.b16 %v7364, %v7363
        %v7388 = vpack.c.b16 %v7366, %v7365
        %v7389 = vpack.c.b16 %v7368, %v7367
        %v7390 = vpack.c.b16 %v7370, %v7369
        %v7391 = vpack.c.b16 %v7372, %v7371
        %v7392 = vpack.c.b16 %v7374, %v7373
        %v7393 = vpack.c.b16 %v7376, %v7375
        %v7394 = vpack.c.b16 %v7378, %v7377
        %7411 = vmatpush.bf16.msra.mxu0 %v7386
        %7412 = vmatpush.bf16.msra.mxu0 %v7385
        %7413 = vmatpush.bf16.msra.mxu0 %v7384
        %7414 = vmatpush.bf16.msra.mxu0 %v7383
        %7415 = vmatpush.bf16.msra.mxu0 %v7382
        %7416 = vmatpush.bf16.msra.mxu0 %v7381
        %7417 = vmatpush.bf16.msra.mxu0 %v7380
        %7418 = vmatpush.bf16.msra.mxu0 %v7379
        %7419 = vmatmul.bf16.gmra.mxu0 %v7263
        %v7420 = vpop.f32.mrf.mxu0
        %v7421 = vadd.f32 %v7313, %v7420
        %v7422 = vpop.f32.mrf.mxu0
        %v7423 = vadd.f32 %v7313, %v7422
        %7424 = vmatmul.bf16.gmra.mxu0 %v7265
        %v7425 = vpop.f32.mrf.mxu0
        %v7426 = vadd.f32 %v7313, %v7425
        %v7427 = vpop.f32.mrf.mxu0
        %v7428 = vadd.f32 %v7313, %v7427
        %7429 = vmatmul.bf16.gmra.mxu0 %v7267
        %v7430 = vpop.f32.mrf.mxu0
        %v7431 = vadd.f32 %v7313, %v7430
        %v7432 = vpop.f32.mrf.mxu0
        %v7433 = vadd.f32 %v7313, %v7432
        %7434 = vmatmul.bf16.gmra.mxu0 %v7269
        %v7435 = vpop.f32.mrf.mxu0
        %v7436 = vadd.f32 %v7313, %v7435
        %v7437 = vpop.f32.mrf.mxu0
        %v7438 = vadd.f32 %v7313, %v7437
        %7439 = vmatmul.bf16.gmra.mxu0 %v7271
        %v7440 = vpop.f32.mrf.mxu0
        %v7441 = vadd.f32 %v7313, %v7440
        %v7442 = vpop.f32.mrf.mxu0
        %v7443 = vadd.f32 %v7313, %v7442
        %7444 = vmatmul.bf16.gmra.mxu0 %v7273
        %v7445 = vpop.f32.mrf.mxu0
        %v7446 = vadd.f32 %v7313, %v7445
        %v7447 = vpop.f32.mrf.mxu0
        %v7448 = vadd.f32 %v7313, %v7447
        %7449 = vmatmul.bf16.gmra.mxu0 %v7275
        %v7450 = vpop.f32.mrf.mxu0
        %v7451 = vadd.f32 %v7313, %v7450
        %v7452 = vpop.f32.mrf.mxu0
        %v7453 = vadd.f32 %v7313, %v7452
        %7454 = vmatmul.bf16.gmra.mxu0 %v7277
        %v7455 = vpop.f32.mrf.mxu0
        %v7456 = vadd.f32 %v7313, %v7455
        %v7457 = vpop.f32.mrf.mxu0
        %v7458 = vadd.f32 %v7313, %v7457
        %7459 = vdwg.mxu0
        %7460 = vmatpush.bf16.msra.mxu0 %v7394
        %7461 = vmatpush.bf16.msra.mxu0 %v7393
        %7462 = vmatpush.bf16.msra.mxu0 %v7392
        %7463 = vmatpush.bf16.msra.mxu0 %v7391
        %7464 = vmatpush.bf16.msra.mxu0 %v7390
        %7465 = vmatpush.bf16.msra.mxu0 %v7389
        %7466 = vmatpush.bf16.msra.mxu0 %v7388
        %7467 = vmatpush.bf16.msra.mxu0 %v7387
        %7468 = vmatmul.bf16.gmra.mxu0 %v7264
        %v7469 = vpop.f32.mrf.mxu0
        %v7470 = vadd.f32 %v7421, %v7469
        %v7471 = vpop.f32.mrf.mxu0
        %v7472 = vadd.f32 %v7423, %v7471
        %7473 = vmatmul.bf16.gmra.mxu0 %v7266
        %v7474 = vpop.f32.mrf.mxu0
        %v7475 = vadd.f32 %v7426, %v7474
        %v7476 = vpop.f32.mrf.mxu0
        %v7477 = vadd.f32 %v7428, %v7476
        %7478 = vmatmul.bf16.gmra.mxu0 %v7268
        %v7479 = vpop.f32.mrf.mxu0
        %v7480 = vadd.f32 %v7431, %v7479
        %v7481 = vpop.f32.mrf.mxu0
        %v7482 = vadd.f32 %v7433, %v7481
        %7483 = vmatmul.bf16.gmra.mxu0 %v7270
        %v7484 = vpop.f32.mrf.mxu0
        %v7485 = vadd.f32 %v7436, %v7484
        %v7486 = vpop.f32.mrf.mxu0
        %v7487 = vadd.f32 %v7438, %v7486
        %7488 = vmatmul.bf16.gmra.mxu0 %v7272
        %v7489 = vpop.f32.mrf.mxu0
        %v7490 = vadd.f32 %v7441, %v7489
        %v7491 = vpop.f32.mrf.mxu0
        %v7492 = vadd.f32 %v7443, %v7491
        %7493 = vmatmul.bf16.gmra.mxu0 %v7274
        %v7494 = vpop.f32.mrf.mxu0
        %v7495 = vadd.f32 %v7446, %v7494
        %v7496 = vpop.f32.mrf.mxu0
        %v7497 = vadd.f32 %v7448, %v7496
        %7498 = vmatmul.bf16.gmra.mxu0 %v7276
        %v7499 = vpop.f32.mrf.mxu0
        %v7500 = vadd.f32 %v7451, %v7499
        %v7501 = vpop.f32.mrf.mxu0
        %v7502 = vadd.f32 %v7453, %v7501
        %7503 = vmatmul.bf16.gmra.mxu0 %v7278
        %v7504 = vpop.f32.mrf.mxu0
        %v7505 = vadd.f32 %v7456, %v7504
        %v7506 = vpop.f32.mrf.mxu0
        %v7507 = vadd.f32 %v7458, %v7506
        %7508 = vdwg.mxu0
        %v7509 = vadd.f32 %v7470, %v6751
        %v7510 = vadd.f32 %v7472, %v6752
        %v7511 = vadd.f32 %v7475, %v6753
        %v7512 = vadd.f32 %v7477, %v6754
        %v7513 = vadd.f32 %v7480, %v6755
        %v7514 = vadd.f32 %v7482, %v6756
        %v7515 = vadd.f32 %v7485, %v6757
        %v7516 = vadd.f32 %v7487, %v6758
        %v7517 = vadd.f32 %v7490, %v6759
        %v7518 = vadd.f32 %v7492, %v6760
        %v7519 = vadd.f32 %v7495, %v6761
        %v7520 = vadd.f32 %v7497, %v6762
        %v7521 = vadd.f32 %v7500, %v6763
        %v7522 = vadd.f32 %v7502, %v6764
        %v7523 = vadd.f32 %v7505, %v6765
        %v7524 = vadd.f32 %v7507, %v6766
        %v7525 = vld [vmem:[%s790] sm:$0x1]
        %v7526 = vld [vmem:[%s793] sm:$0x1]
        %7527 = vadd.xlane.f32.xlu0 %v7509
        %v7528 = vpop.xlane.xlu0 %7527
        %7529 = vadd.xlane.f32.xlu0 %v7510
        %v7530 = vpop.xlane.xlu0 %7529
        %7531 = vadd.xlane.f32.xlu0 %v7511
        %v7532 = vpop.xlane.xlu0 %7531
        %7533 = vadd.xlane.f32.xlu0 %v7512
        %v7534 = vpop.xlane.xlu0 %7533
        %7535 = vadd.xlane.f32.xlu0 %v7513
        %v7536 = vpop.xlane.xlu0 %7535
        %7537 = vadd.xlane.f32.xlu0 %v7514
        %v7538 = vpop.xlane.xlu0 %7537
        %7539 = vadd.xlane.f32.xlu0 %v7515
        %v7540 = vpop.xlane.xlu0 %7539
        %7541 = vadd.xlane.f32.xlu0 %v7516
        %v7542 = vpop.xlane.xlu0 %7541
        %7543 = vadd.xlane.f32.xlu0 %v7517
        %v7544 = vpop.xlane.xlu0 %7543
        %7545 = vadd.xlane.f32.xlu0 %v7518
        %v7546 = vpop.xlane.xlu0 %7545
        %7547 = vadd.xlane.f32.xlu0 %v7519
        %v7548 = vpop.xlane.xlu0 %7547
        %7549 = vadd.xlane.f32.xlu0 %v7520
        %v7550 = vpop.xlane.xlu0 %7549
        %7551 = vadd.xlane.f32.xlu0 %v7521
        %v7552 = vpop.xlane.xlu0 %7551
        %7553 = vadd.xlane.f32.xlu0 %v7522
        %v7554 = vpop.xlane.xlu0 %7553
        %7555 = vadd.xlane.f32.xlu0 %v7523
        %v7556 = vpop.xlane.xlu0 %7555
        %7557 = vadd.xlane.f32.xlu0 %v7524
        %v7558 = vpop.xlane.xlu0 %7557
        %v7559 = vmul.f32 %v7528, %v6440
        %v7560 = vmul.f32 %v7530, %v6440
        %v7561 = vmul.f32 %v7532, %v6440
        %v7562 = vmul.f32 %v7534, %v6440
        %v7563 = vmul.f32 %v7536, %v6440
        %v7564 = vmul.f32 %v7538, %v6440
        %v7565 = vmul.f32 %v7540, %v6440
        %v7566 = vmul.f32 %v7542, %v6440
        %v7567 = vmul.f32 %v7544, %v6440
        %v7568 = vmul.f32 %v7546, %v6440
        %v7569 = vmul.f32 %v7548, %v6440
        %v7570 = vmul.f32 %v7550, %v6440
        %v7571 = vmul.f32 %v7552, %v6440
        %v7572 = vmul.f32 %v7554, %v6440
        %v7573 = vmul.f32 %v7556, %v6440
        %v7574 = vmul.f32 %v7558, %v6440
        %v7575 = vsub.f32 %v7509, %v7559
        %v7576 = vsub.f32 %v7510, %v7560
        %v7577 = vsub.f32 %v7511, %v7561
        %v7578 = vsub.f32 %v7512, %v7562
        %v7579 = vsub.f32 %v7513, %v7563
        %v7580 = vsub.f32 %v7514, %v7564
        %v7581 = vsub.f32 %v7515, %v7565
        %v7582 = vsub.f32 %v7516, %v7566
        %v7583 = vsub.f32 %v7517, %v7567
        %v7584 = vsub.f32 %v7518, %v7568
        %v7585 = vsub.f32 %v7519, %v7569
        %v7586 = vsub.f32 %v7520, %v7570
        %v7587 = vsub.f32 %v7521, %v7571
        %v7588 = vsub.f32 %v7522, %v7572
        %v7589 = vsub.f32 %v7523, %v7573
        %v7590 = vsub.f32 %v7524, %v7574
        %v7591 = vmul.f32 %v7575, %v7575
        %v7592 = vmul.f32 %v7576, %v7576
        %v7593 = vmul.f32 %v7577, %v7577
        %v7594 = vmul.f32 %v7578, %v7578
        %v7595 = vmul.f32 %v7579, %v7579
        %v7596 = vmul.f32 %v7580, %v7580
        %v7597 = vmul.f32 %v7581, %v7581
        %v7598 = vmul.f32 %v7582, %v7582
        %v7599 = vmul.f32 %v7583, %v7583
        %v7600 = vmul.f32 %v7584, %v7584
        %v7601 = vmul.f32 %v7585, %v7585
        %v7602 = vmul.f32 %v7586, %v7586
        %v7603 = vmul.f32 %v7587, %v7587
        %v7604 = vmul.f32 %v7588, %v7588
        %v7605 = vmul.f32 %v7589, %v7589
        %v7606 = vmul.f32 %v7590, %v7590
        %7607 = vadd.xlane.f32.xlu0 %v7591
        %v7608 = vpop.xlane.xlu0 %7607
        %7609 = vadd.xlane.f32.xlu0 %v7592
        %v7610 = vpop.xlane.xlu0 %7609
        %7611 = vadd.xlane.f32.xlu0 %v7593
        %v7612 = vpop.xlane.xlu0 %7611
        %7613 = vadd.xlane.f32.xlu0 %v7594
        %v7614 = vpop.xlane.xlu0 %7613
        %7615 = vadd.xlane.f32.xlu0 %v7595
        %v7616 = vpop.xlane.xlu0 %7615
        %7617 = vadd.xlane.f32.xlu0 %v7596
        %v7618 = vpop.xlane.xlu0 %7617
        %7619 = vadd.xlane.f32.xlu0 %v7597
        %v7620 = vpop.xlane.xlu0 %7619
        %7621 = vadd.xlane.f32.xlu0 %v7598
        %v7622 = vpop.xlane.xlu0 %7621
        %7623 = vadd.xlane.f32.xlu0 %v7599
        %v7624 = vpop.xlane.xlu0 %7623
        %7625 = vadd.xlane.f32.xlu0 %v7600
        %v7626 = vpop.xlane.xlu0 %7625
        %7627 = vadd.xlane.f32.xlu0 %v7601
        %v7628 = vpop.xlane.xlu0 %7627
        %7629 = vadd.xlane.f32.xlu0 %v7602
        %v7630 = vpop.xlane.xlu0 %7629
        %7631 = vadd.xlane.f32.xlu0 %v7603
        %v7632 = vpop.xlane.xlu0 %7631
        %7633 = vadd.xlane.f32.xlu0 %v7604
        %v7634 = vpop.xlane.xlu0 %7633
        %7635 = vadd.xlane.f32.xlu0 %v7605
        %v7636 = vpop.xlane.xlu0 %7635
        %7637 = vadd.xlane.f32.xlu0 %v7606
        %v7638 = vpop.xlane.xlu0 %7637
        %v7639 = vmul.f32 %v7608, %v6440
        %v7640 = vmul.f32 %v7610, %v6440
        %v7641 = vmul.f32 %v7612, %v6440
        %v7642 = vmul.f32 %v7614, %v6440
        %v7643 = vmul.f32 %v7616, %v6440
        %v7644 = vmul.f32 %v7618, %v6440
        %v7645 = vmul.f32 %v7620, %v6440
        %v7646 = vmul.f32 %v7622, %v6440
        %v7647 = vmul.f32 %v7624, %v6440
        %v7648 = vmul.f32 %v7626, %v6440
        %v7649 = vmul.f32 %v7628, %v6440
        %v7650 = vmul.f32 %v7630, %v6440
        %v7651 = vmul.f32 %v7632, %v6440
        %v7652 = vmul.f32 %v7634, %v6440
        %v7653 = vmul.f32 %v7636, %v6440
        %v7654 = vmul.f32 %v7638, %v6440
        %v7655 = vadd.f32 %v7639, 1e-05
        %v7656 = vadd.f32 %v7640, 1e-05
        %v7657 = vadd.f32 %v7641, 1e-05
        %v7658 = vadd.f32 %v7642, 1e-05
        %v7659 = vadd.f32 %v7643, 1e-05
        %v7660 = vadd.f32 %v7644, 1e-05
        %v7661 = vadd.f32 %v7645, 1e-05
        %v7662 = vadd.f32 %v7646, 1e-05
        %v7663 = vadd.f32 %v7647, 1e-05
        %v7664 = vadd.f32 %v7648, 1e-05
        %v7665 = vadd.f32 %v7649, 1e-05
        %v7666 = vadd.f32 %v7650, 1e-05
        %v7667 = vadd.f32 %v7651, 1e-05
        %v7668 = vadd.f32 %v7652, 1e-05
        %v7669 = vadd.f32 %v7653, 1e-05
        %v7670 = vadd.f32 %v7654, 1e-05
        %v7671 = vrsqrt.pop %v7655
        %v7672 = vmul.f32 %v7671, %v7655
        %v7673 = vmul.f32 %v7672, %v7671
        %v7674 = vmul.f32 0.5, %v7673
        %v7675 = vsub.f32 1.5, %v7674
        %v7676 = vmul.f32 %v7671, %v7675
        %vm7677 = vweird.f32 %v7655
        %vm7678 = vweird.f32 %v7671
        %vm7679 = vmor %vm7677, %vm7678
        %v7680 = vsel %vm7679, %v7671, %v7676
        %v7681 = vrsqrt.pop %v7656
        %v7682 = vmul.f32 %v7681, %v7656
        %v7683 = vmul.f32 %v7682, %v7681
        %v7684 = vmul.f32 0.5, %v7683
        %v7685 = vsub.f32 1.5, %v7684
        %v7686 = vmul.f32 %v7681, %v7685
        %vm7687 = vweird.f32 %v7656
        %vm7688 = vweird.f32 %v7681
        %vm7689 = vmor %vm7687, %vm7688
        %v7690 = vsel %vm7689, %v7681, %v7686
        %v7691 = vrsqrt.pop %v7657
        %v7692 = vmul.f32 %v7691, %v7657
        %v7693 = vmul.f32 %v7692, %v7691
        %v7694 = vmul.f32 0.5, %v7693
        %v7695 = vsub.f32 1.5, %v7694
        %v7696 = vmul.f32 %v7691, %v7695
        %vm7697 = vweird.f32 %v7657
        %vm7698 = vweird.f32 %v7691
        %vm7699 = vmor %vm7697, %vm7698
        %v7700 = vsel %vm7699, %v7691, %v7696
        %v7701 = vrsqrt.pop %v7658
        %v7702 = vmul.f32 %v7701, %v7658
        %v7703 = vmul.f32 %v7702, %v7701
        %v7704 = vmul.f32 0.5, %v7703
        %v7705 = vsub.f32 1.5, %v7704
        %v7706 = vmul.f32 %v7701, %v7705
        %vm7707 = vweird.f32 %v7658
        %vm7708 = vweird.f32 %v7701
        %vm7709 = vmor %vm7707, %vm7708
        %v7710 = vsel %vm7709, %v7701, %v7706
        %v7711 = vrsqrt.pop %v7659
        %v7712 = vmul.f32 %v7711, %v7659
        %v7713 = vmul.f32 %v7712, %v7711
        %v7714 = vmul.f32 0.5, %v7713
        %v7715 = vsub.f32 1.5, %v7714
        %v7716 = vmul.f32 %v7711, %v7715
        %vm7717 = vweird.f32 %v7659
        %vm7718 = vweird.f32 %v7711
        %vm7719 = vmor %vm7717, %vm7718
        %v7720 = vsel %vm7719, %v7711, %v7716
        %v7721 = vrsqrt.pop %v7660
        %v7722 = vmul.f32 %v7721, %v7660
        %v7723 = vmul.f32 %v7722, %v7721
        %v7724 = vmul.f32 0.5, %v7723
        %v7725 = vsub.f32 1.5, %v7724
        %v7726 = vmul.f32 %v7721, %v7725
        %vm7727 = vweird.f32 %v7660
        %vm7728 = vweird.f32 %v7721
        %vm7729 = vmor %vm7727, %vm7728
        %v7730 = vsel %vm7729, %v7721, %v7726
        %v7731 = vrsqrt.pop %v7661
        %v7732 = vmul.f32 %v7731, %v7661
        %v7733 = vmul.f32 %v7732, %v7731
        %v7734 = vmul.f32 0.5, %v7733
        %v7735 = vsub.f32 1.5, %v7734
        %v7736 = vmul.f32 %v7731, %v7735
        %vm7737 = vweird.f32 %v7661
        %vm7738 = vweird.f32 %v7731
        %vm7739 = vmor %vm7737, %vm7738
        %v7740 = vsel %vm7739, %v7731, %v7736
        %v7741 = vrsqrt.pop %v7662
        %v7742 = vmul.f32 %v7741, %v7662
        %v7743 = vmul.f32 %v7742, %v7741
        %v7744 = vmul.f32 0.5, %v7743
        %v7745 = vsub.f32 1.5, %v7744
        %v7746 = vmul.f32 %v7741, %v7745
        %vm7747 = vweird.f32 %v7662
        %vm7748 = vweird.f32 %v7741
        %vm7749 = vmor %vm7747, %vm7748
        %v7750 = vsel %vm7749, %v7741, %v7746
        %v7751 = vrsqrt.pop %v7663
        %v7752 = vmul.f32 %v7751, %v7663
        %v7753 = vmul.f32 %v7752, %v7751
        %v7754 = vmul.f32 0.5, %v7753
        %v7755 = vsub.f32 1.5, %v7754
        %v7756 = vmul.f32 %v7751, %v7755
        %vm7757 = vweird.f32 %v7663
        %vm7758 = vweird.f32 %v7751
        %vm7759 = vmor %vm7757, %vm7758
        %v7760 = vsel %vm7759, %v7751, %v7756
        %v7761 = vrsqrt.pop %v7664
        %v7762 = vmul.f32 %v7761, %v7664
        %v7763 = vmul.f32 %v7762, %v7761
        %v7764 = vmul.f32 0.5, %v7763
        %v7765 = vsub.f32 1.5, %v7764
        %v7766 = vmul.f32 %v7761, %v7765
        %vm7767 = vweird.f32 %v7664
        %vm7768 = vweird.f32 %v7761
        %vm7769 = vmor %vm7767, %vm7768
        %v7770 = vsel %vm7769, %v7761, %v7766
        %v7771 = vrsqrt.pop %v7665
        %v7772 = vmul.f32 %v7771, %v7665
        %v7773 = vmul.f32 %v7772, %v7771
        %v7774 = vmul.f32 0.5, %v7773
        %v7775 = vsub.f32 1.5, %v7774
        %v7776 = vmul.f32 %v7771, %v7775
        %vm7777 = vweird.f32 %v7665
        %vm7778 = vweird.f32 %v7771
        %vm7779 = vmor %vm7777, %vm7778
        %v7780 = vsel %vm7779, %v7771, %v7776
        %v7781 = vrsqrt.pop %v7666
        %v7782 = vmul.f32 %v7781, %v7666
        %v7783 = vmul.f32 %v7782, %v7781
        %v7784 = vmul.f32 0.5, %v7783
        %v7785 = vsub.f32 1.5, %v7784
        %v7786 = vmul.f32 %v7781, %v7785
        %vm7787 = vweird.f32 %v7666
        %vm7788 = vweird.f32 %v7781
        %vm7789 = vmor %vm7787, %vm7788
        %v7790 = vsel %vm7789, %v7781, %v7786
        %v7791 = vrsqrt.pop %v7667
        %v7792 = vmul.f32 %v7791, %v7667
        %v7793 = vmul.f32 %v7792, %v7791
        %v7794 = vmul.f32 0.5, %v7793
        %v7795 = vsub.f32 1.5, %v7794
        %v7796 = vmul.f32 %v7791, %v7795
        %vm7797 = vweird.f32 %v7667
        %vm7798 = vweird.f32 %v7791
        %vm7799 = vmor %vm7797, %vm7798
        %v7800 = vsel %vm7799, %v7791, %v7796
        %v7801 = vrsqrt.pop %v7668
        %v7802 = vmul.f32 %v7801, %v7668
        %v7803 = vmul.f32 %v7802, %v7801
        %v7804 = vmul.f32 0.5, %v7803
        %v7805 = vsub.f32 1.5, %v7804
        %v7806 = vmul.f32 %v7801, %v7805
        %vm7807 = vweird.f32 %v7668
        %vm7808 = vweird.f32 %v7801
        %vm7809 = vmor %vm7807, %vm7808
        %v7810 = vsel %vm7809, %v7801, %v7806
        %v7811 = vrsqrt.pop %v7669
        %v7812 = vmul.f32 %v7811, %v7669
        %v7813 = vmul.f32 %v7812, %v7811
        %v7814 = vmul.f32 0.5, %v7813
        %v7815 = vsub.f32 1.5, %v7814
        %v7816 = vmul.f32 %v7811, %v7815
        %vm7817 = vweird.f32 %v7669
        %vm7818 = vweird.f32 %v7811
        %vm7819 = vmor %vm7817, %vm7818
        %v7820 = vsel %vm7819, %v7811, %v7816
        %v7821 = vrsqrt.pop %v7670
        %v7822 = vmul.f32 %v7821, %v7670
        %v7823 = vmul.f32 %v7822, %v7821
        %v7824 = vmul.f32 0.5, %v7823
        %v7825 = vsub.f32 1.5, %v7824
        %v7826 = vmul.f32 %v7821, %v7825
        %vm7827 = vweird.f32 %v7670
        %vm7828 = vweird.f32 %v7821
        %vm7829 = vmor %vm7827, %vm7828
        %v7830 = vsel %vm7829, %v7821, %v7826
        %v7831 = vmul.f32 %v7575, %v7680
        %v7832 = vmul.f32 %v7576, %v7690
        %v7833 = vmul.f32 %v7577, %v7700
        %v7834 = vmul.f32 %v7578, %v7710
        %v7835 = vmul.f32 %v7579, %v7720
        %v7836 = vmul.f32 %v7580, %v7730
        %v7837 = vmul.f32 %v7581, %v7740
        %v7838 = vmul.f32 %v7582, %v7750
        %v7839 = vmul.f32 %v7583, %v7760
        %v7840 = vmul.f32 %v7584, %v7770
        %v7841 = vmul.f32 %v7585, %v7780
        %v7842 = vmul.f32 %v7586, %v7790
        %v7843 = vmul.f32 %v7587, %v7800
        %v7844 = vmul.f32 %v7588, %v7810
        %v7845 = vmul.f32 %v7589, %v7820
        %v7846 = vmul.f32 %v7590, %v7830
        %v7848 = vperm.slane %v7525, 0
        %v7850 = vmul.f32 %v7831, %v7848
        %v7851 = vmul.f32 %v7832, %v7848
        %v7852 = vmul.f32 %v7833, %v7848
        %v7853 = vmul.f32 %v7834, %v7848
        %v7854 = vmul.f32 %v7835, %v7848
        %v7855 = vmul.f32 %v7836, %v7848
        %v7856 = vmul.f32 %v7837, %v7848
        %v7857 = vmul.f32 %v7838, %v7848
        %v7858 = vmul.f32 %v7839, %v7848
        %v7859 = vmul.f32 %v7840, %v7848
        %v7860 = vmul.f32 %v7841, %v7848
        %v7861 = vmul.f32 %v7842, %v7848
        %v7862 = vmul.f32 %v7843, %v7848
        %v7863 = vmul.f32 %v7844, %v7848
        %v7864 = vmul.f32 %v7845, %v7848
        %v7865 = vmul.f32 %v7846, %v7848
        %v7867 = vperm.slane %v7526, 0
        %v7869 = vadd.f32 %v7850, %v7867
        %v7870 = vadd.f32 %v7851, %v7867
        %v7871 = vadd.f32 %v7852, %v7867
        %v7872 = vadd.f32 %v7853, %v7867
        %v7873 = vadd.f32 %v7854, %v7867
        %v7874 = vadd.f32 %v7855, %v7867
        %v7875 = vadd.f32 %v7856, %v7867
        %v7876 = vadd.f32 %v7857, %v7867
        %v7877 = vadd.f32 %v7858, %v7867
        %v7878 = vadd.f32 %v7859, %v7867
        %v7879 = vadd.f32 %v7860, %v7867
        %v7880 = vadd.f32 %v7861, %v7867
        %v7881 = vadd.f32 %v7862, %v7867
        %v7882 = vadd.f32 %v7863, %v7867
        %v7883 = vadd.f32 %v7864, %v7867
        %v7884 = vadd.f32 %v7865, %v7867
        %7885 = vst [vmem:[#allocation2] sm:$0xff] %v7869
        %7886 = vst [vmem:[#allocation2 + $0x8] sm:$0xff] %v7870
        %7887 = vst [vmem:[#allocation2 + $0x10] sm:$0xff] %v7871
        %7888 = vst [vmem:[#allocation2 + $0x18] sm:$0xff] %v7872
        %7889 = vst [vmem:[#allocation2 + $0x20] sm:$0xff] %v7873
        %7890 = vst [vmem:[#allocation2 + $0x28] sm:$0xff] %v7874
        %7891 = vst [vmem:[#allocation2 + $0x30] sm:$0xff] %v7875
        %7892 = vst [vmem:[#allocation2 + $0x38] sm:$0xff] %v7876
        %7893 = vst [vmem:[#allocation2 + $0x40] sm:$0xff] %v7877
        %7894 = vst [vmem:[#allocation2 + $0x48] sm:$0xff] %v7878
        %7895 = vst [vmem:[#allocation2 + $0x50] sm:$0xff] %v7879
        %7896 = vst [vmem:[#allocation2 + $0x58] sm:$0xff] %v7880
        %7897 = vst [vmem:[#allocation2 + $0x60] sm:$0xff] %v7881
        %7898 = vst [vmem:[#allocation2 + $0x68] sm:$0xff] %v7882
        %7899 = vst [vmem:[#allocation2 + $0x70] sm:$0xff] %v7883
        %7900 = vst [vmem:[#allocation2 + $0x78] sm:$0xff] %v7884
        %p7901 = scmp.eq.s32.totalorder %s32, 1
        // Predicated region
        $region105: #{forward.1} parent=99 // pred_check
          %p7902 = pneg %p7901
        $region106: #{forward.1} parent=99 // pred_check_branch
          %7904 = sbr.rel (%p7902) target = $region108
        $region107: #{forward.1} parent=99 // pred_region
          %v7905 = vld [vmem:[#allocation2] ss:$32 sm:$0x1]
          %v7906 = vld [vmem:[#allocation2] ss:$32 sm:$0x2]
          %v7907 = vor.u32 %v7905, %v7906
          %v7908 = vld [vmem:[#allocation2] ss:$32 sm:$0x4]
          %v7909 = vor.u32 %v7907, %v7908
          %v7910 = vld [vmem:[#allocation2] ss:$32 sm:$0x8]
          %v7911 = vor.u32 %v7909, %v7910
          %v7912 = vpack.c.bf16 %v7911, %v7911
          %v7913 = vld [vmem:[%s16] sm:$0xf]
          %v7914 = vld [vmem:[%s16 + $0x4] sm:$0xf]
          %v7915 = vld [vmem:[%s16 + $0x8] sm:$0xf]
          %v7916 = vld [vmem:[%s16 + $0xc] sm:$0xf]
          %v7917 = vld [vmem:[%s16 + $0x10] sm:$0xf]
          %v7918 = vld [vmem:[%s16 + $0x14] sm:$0xf]
          %v7919 = vld [vmem:[%s16 + $0x18] sm:$0xf]
          %v7920 = vld [vmem:[%s16 + $0x1c] sm:$0xf]
          %v7921 = vld [vmem:[%s16 + $0x20] sm:$0xf]
          %v7922 = vld [vmem:[%s16 + $0x24] sm:$0xf]
          %v7923 = vld [vmem:[%s16 + $0x28] sm:$0xf]
          %v7924 = vld [vmem:[%s16 + $0x2c] sm:$0xf]
          %v7925 = vld [vmem:[%s16 + $0x30] sm:$0xf]
          %v7926 = vld [vmem:[%s16 + $0x34] sm:$0xf]
          %v7927 = vld [vmem:[%s16 + $0x38] sm:$0xf]
          %v7928 = vld [vmem:[%s16 + $0x3c] sm:$0xf]
          %v7929 = vld [vmem:[%s17] sm:$0x1]
          %v7931 = vperm.slane %v7929, 0
          %v7949 = vunpack.c.l.b16 %v7913
          %v7950 = vunpack.c.l.b16 %v7914
          %v7951 = vunpack.c.l.b16 %v7915
          %v7952 = vunpack.c.l.b16 %v7916
          %v7953 = vunpack.c.l.b16 %v7917
          %v7954 = vunpack.c.l.b16 %v7918
          %v7955 = vunpack.c.l.b16 %v7919
          %v7956 = vunpack.c.l.b16 %v7920
          %v7957 = vunpack.c.l.b16 %v7921
          %v7958 = vunpack.c.l.b16 %v7922
          %v7959 = vunpack.c.l.b16 %v7923
          %v7960 = vunpack.c.l.b16 %v7924
          %v7961 = vunpack.c.l.b16 %v7925
          %v7962 = vunpack.c.l.b16 %v7926
          %v7963 = vunpack.c.l.b16 %v7927
          %v7964 = vunpack.c.l.b16 %v7928
          %v7965 = vpack.c.b16 %v7950, %v7949
          %v7966 = vpack.c.b16 %v7952, %v7951
          %v7967 = vpack.c.b16 %v7954, %v7953
          %v7968 = vpack.c.b16 %v7956, %v7955
          %v7969 = vpack.c.b16 %v7958, %v7957
          %v7970 = vpack.c.b16 %v7960, %v7959
          %v7971 = vpack.c.b16 %v7962, %v7961
          %v7972 = vpack.c.b16 %v7964, %v7963
          %7981 = vmatpush.bf16.msra.mxu0 %v7972
          %7982 = vmatpush.bf16.msra.mxu0 %v7971
          %7983 = vmatpush.bf16.msra.mxu0 %v7970
          %7984 = vmatpush.bf16.msra.mxu0 %v7969
          %7985 = vmatpush.bf16.msra.mxu0 %v7968
          %7986 = vmatpush.bf16.msra.mxu0 %v7967
          %7987 = vmatpush.bf16.msra.mxu0 %v7966
          %7988 = vmatpush.bf16.msra.mxu0 %v7965
          %7989 = vmatmul.bf16.gmra.mxu0 %v7912
          %v7990 = vpop.f32.mrf.mxu0
          %v7991 = vadd.f32 %v7931, %v7990
          %v7992 = vpop.f32.mrf.mxu0
          %7993 = vdwg.mxu0
          %v7994 = vtanh.pop %v7991
          %v7995 = vpack.c.bf16 %v7994, %v7994
          %v7996 = vld [vmem:[%s18] sm:$0xf]
          %v7997 = vld [vmem:[%s18 + $0x4] sm:$0xf]
          %v7998 = vld [vmem:[%s18 + $0x8] sm:$0xf]
          %v7999 = vld [vmem:[%s18 + $0xc] sm:$0xf]
          %v8000 = vld [vmem:[%s18 + $0x10] sm:$0xf]
          %v8001 = vld [vmem:[%s18 + $0x14] sm:$0xf]
          %v8002 = vld [vmem:[%s18 + $0x18] sm:$0xf]
          %v8003 = vld [vmem:[%s18 + $0x1c] sm:$0xf]
          %v8004 = vld [vmem:[%s18 + $0x20] sm:$0xf]
          %v8005 = vld [vmem:[%s18 + $0x24] sm:$0xf]
          %v8006 = vld [vmem:[%s18 + $0x28] sm:$0xf]
          %v8007 = vld [vmem:[%s18 + $0x2c] sm:$0xf]
          %v8008 = vld [vmem:[%s18 + $0x30] sm:$0xf]
          %v8009 = vld [vmem:[%s18 + $0x34] sm:$0xf]
          %v8010 = vld [vmem:[%s18 + $0x38] sm:$0xf]
          %v8011 = vld [vmem:[%s18 + $0x3c] sm:$0xf]
          %v8012 = vld [vmem:[%s19] sm:$0x1]
          %v8014 = vperm.slane %v8012, 0
          %v8032 = vunpack.c.l.b16 %v7996
          %v8033 = vunpack.c.l.b16 %v7997
          %v8034 = vunpack.c.l.b16 %v7998
          %v8035 = vunpack.c.l.b16 %v7999
          %v8036 = vunpack.c.l.b16 %v8000
          %v8037 = vunpack.c.l.b16 %v8001
          %v8038 = vunpack.c.l.b16 %v8002
          %v8039 = vunpack.c.l.b16 %v8003
          %v8040 = vunpack.c.l.b16 %v8004
          %v8041 = vunpack.c.l.b16 %v8005
          %v8042 = vunpack.c.l.b16 %v8006
          %v8043 = vunpack.c.l.b16 %v8007
          %v8044 = vunpack.c.l.b16 %v8008
          %v8045 = vunpack.c.l.b16 %v8009
          %v8046 = vunpack.c.l.b16 %v8010
          %v8047 = vunpack.c.l.b16 %v8011
          %v8048 = vpack.c.b16 %v8033, %v8032
          %v8049 = vpack.c.b16 %v8035, %v8034
          %v8050 = vpack.c.b16 %v8037, %v8036
          %v8051 = vpack.c.b16 %v8039, %v8038
          %v8052 = vpack.c.b16 %v8041, %v8040
          %v8053 = vpack.c.b16 %v8043, %v8042
          %v8054 = vpack.c.b16 %v8045, %v8044
          %v8055 = vpack.c.b16 %v8047, %v8046
          %8064 = vmatpush.bf16.msra.mxu0 %v8055
          %8065 = vmatpush.bf16.msra.mxu0 %v8054
          %8066 = vmatpush.bf16.msra.mxu0 %v8053
          %8067 = vmatpush.bf16.msra.mxu0 %v8052
          %8068 = vmatpush.bf16.msra.mxu0 %v8051
          %8069 = vmatpush.bf16.msra.mxu0 %v8050
          %8070 = vmatpush.bf16.msra.mxu0 %v8049
          %8071 = vmatpush.bf16.msra.mxu0 %v8048
          %8072 = vmatmul.bf16.gmra.mxu0 %v7995
          %v8073 = vpop.f32.mrf.mxu0
          %v8074 = vadd.f32 %v8014, %v8073
          %v8075 = vpop.f32.mrf.mxu0
          %8076 = vdwg.mxu0
          %8077 = vst [vmem:[#allocation3] sm:$0xf] %v8074
        $region108: #{forward.1} parent=99 // pred_fallthru
          _
        // Predicated region
        $region109: #{forward.1} parent=99 // pred_check
          %p8078 = pneg %p525
        $region110: #{forward.1} parent=99 // pred_check_branch
          %8080 = sbr.rel (%p8078) target = $region112
        $region111: #{forward.1} parent=99 // pred_region
          %8082 = vsyncadd [#allocation4], 0
          %s8084 = sshll.u32 [#allocation3], 4
          %s8085 = int_to_ptr.vmem [resolvable:$true] %s8084
          %s8086 = sshll.u32 %s20, 4
          %s8087 = int_to_ptr.hbm [resolvable:$true] %s8086
          %8089 = dma.vmem_to_hbm [thread:$0]  %s8085, 64, %s8087, [#allocation4]
        $region112: #{forward.1} parent=99 // pred_fallthru
          _
        // Predicated region
        $region113: #{forward.1} parent=99 // pred_check
          %p8090 = pneg %p525
        $region114: #{forward.1} parent=99 // pred_check_branch
          %8092 = sbr.rel (%p8090) target = $region116
        $region115: #{forward.1} parent=99 // pred_region
          %8094 = dma.done [#allocation4], 64
        $region116: #{forward.1} parent=99 // pred_fallthru
          _
      $region100: #{forward.1} parent=5 // pred_fallthru
        _
      %p8095 = scmp.le.s32.totalorder 2, %s27
      // Predicated region
      $region117: #{forward.1} parent=5 // pred_check
        %p8096 = pneg %p8095
      $region118: #{forward.1} parent=5 // pred_check_branch
        %8098 = sbr.rel (%p8096) target = $region120
      $region119: #{forward.1} parent=5 // pred_region
        %s8099 = ssub.s32 %s27, 2
      $region120: #{forward.1} parent=5 // pred_fallthru
        _
    $region6: #{forward.1} parent=1 // loop_footer
      %s31 = sadd.s32 1, %s27
    $region7: #{forward.1} parent=1 // loop_footer_branch
      %26 = sbr.rel target = $region3
    $region8: #{forward.1} parent=1 // loop_exit
      _
    %8100 = vsyncpa [#allocation4], 1
    %s8101 = scalar_lea.sflag [#allocation4], 1
    %8102 = vsyncpa %s8101, 1

</llo_original>
